<compile_context>
chip_gen: v7x
topology: tpu7x:2x2x1
jax: 0.10.0
libtpu: 0.0.40
codegen_flags: <defaults>
</compile_context>

<pallas_src>
import math

import jax
import jax.numpy as jnp
from jax import lax
from jax.experimental import pallas as pl
from jax.experimental.pallas import tpu as pltpu

EMB = 64          # emb_dim
NUM_LAYERS = 5    # num_layers
IN_DIM = 6        # in_dim (lin_in is applied to the full x)
MLP_HID = 32      # hidden width of the final edge MLP
BN_EPS = 1e-5
AGGR_CHUNK = 8    # edges per vectorized scatter-max chunk (~16 live vregs)


def _relu(x):
    return jnp.maximum(x, 0.0)


def _bn_train_ref(x, gamma, beta):
    # Reference (two-pass) PyTorch BatchNorm1d, training mode, biased variance.
    mean = jnp.mean(x, axis=0, keepdims=True)
    var = jnp.mean((x - mean) ** 2, axis=0, keepdims=True)
    return (x - mean) * lax.rsqrt(var + BN_EPS) * gamma + beta


def _bn_train_kernel(x, gamma, beta):
    # One-pass variance: the two sublane (XLU) reductions are independent.
    mean = jnp.mean(x, axis=0, keepdims=True)
    mean_sq = jnp.mean(x * x, axis=0, keepdims=True)
    var = mean_sq - mean * mean
    return (x - mean) * lax.rsqrt(var + BN_EPS) * gamma + beta


def _mpnn_kernel(
    feat_ref, dst_ref, src_ref,
    lin_w_ref, lin_b_ref,
    msg_w1i_ref, msg_w1j_ref, msg_b1_ref, msg_g1_ref, msg_be1_ref,
    msg_w2_ref, msg_b2_ref, msg_g2_ref, msg_be2_ref,
    upd_w1h_ref, upd_w1a_ref, upd_b1_ref, upd_g1_ref, upd_be1_ref,
    upd_w2_ref, upd_b2_ref, upd_g2_ref, upd_be2_ref,
    mlp_w1u_ref, mlp_w1v_ref, mlp_b1_ref, mlp_w2_ref, mlp_b2_ref,
    out_ref,
):
    f32, bf16 = jnp.float32, jnp.bfloat16
    N = feat_ref.shape[0]
    E = dst_ref.shape[0]

    def mxdot(a, w_bf16):
        # bf16 MXU operands (weights pre-cast wrapper-side), f32 accumulation.
        return jnp.dot(a.astype(bf16), w_bf16, preferred_element_type=f32)

    # ---- layer-invariant one-hot gather / scatter matrices (built once) ----
    dst_col = dst_ref[...]                                   # [E, 1] int32 (h_i endpoint)
    src_col = src_ref[...]                                   # [E, 1] int32 (h_j endpoint)
    col_n = lax.broadcasted_iota(jnp.int32, (E, N), 1)
    dst_oh = (dst_col == col_n).astype(f32)                  # [E, N]
    src_oh = (src_col == col_n).astype(f32)                  # [E, N]
    # Fused endpoint-gather matrix:
    #   cat_oh @ [[P_dst], [P_src]] = dst_oh @ P_dst + src_oh @ P_src
    col_2n = lax.broadcasted_iota(jnp.int32, (E, 2 * N), 1)
    cat_oh = ((col_2n == dst_col) | (col_2n == src_col + N)).astype(f32)   # [E, 2N]

    # lin_in on the full node features (tiny, kept in f32).
    h = jnp.dot(feat_ref[...], lin_w_ref[...], preferred_element_type=f32) + lin_b_ref[...]

    for l in range(NUM_LAYERS):
        # ---- message MLP: first linear commuted with the gather (E > N).
        # Project on the [N, EMB] node matrix, then gather the projections with
        # one fused f32 one-hot matmul (one-hots exact; h never re-rounded).
        p_i = mxdot(h, msg_w1i_ref[l])                        # [N, EMB] (dst / h_i half)
        p_j = mxdot(h, msg_w1j_ref[l])                        # [N, EMB] (src / h_j half)
        p_cat = jnp.concatenate([p_i, p_j], axis=0)           # [2N, EMB]
        m = jnp.dot(cat_oh, p_cat, preferred_element_type=f32) + msg_b1_ref[l]
        m = _relu(_bn_train_kernel(m, msg_g1_ref[l], msg_be1_ref[l]))
        m = mxdot(m, msg_w2_ref[l]) + msg_b2_ref[l]
        m = _relu(_bn_train_kernel(m, msg_g2_ref[l], msg_be2_ref[l]))      # [E, EMB] >= 0

        # ---- aggregate: scatter-max over destinations, chunked & vectorized.
        # Messages are post-ReLU (>= 0), so a zeros init matches the reference
        # scatter 'max' (empty destinations -> 0).  Each chunk builds a
        # [C, N, EMB] masked slab and reduces it with elementwise maxes; only
        # E/AGGR_CHUNK (= 4) dependent steps remain instead of E (= 32).
        aggr = jnp.zeros((N, EMB), f32)
        for c0 in range(0, E, AGGR_CHUNK):
            c1 = min(c0 + AGGR_CHUNK, E)
            blk = dst_oh[c0:c1, :, None] * m[c0:c1, None, :]   # [C, N, EMB]
            aggr = jnp.maximum(aggr, jnp.max(blk, axis=0))

        # ---- update MLP: Linear(2*EMB, EMB) as two aligned 64-deep matmuls ----
        u = mxdot(h, upd_w1h_ref[l]) + mxdot(aggr, upd_w1a_ref[l]) + upd_b1_ref[l]
        u = _relu(_bn_train_kernel(u, upd_g1_ref[l], upd_be1_ref[l]))
        u = mxdot(u, upd_w2_ref[l]) + upd_b2_ref[l]
        u = _relu(_bn_train_kernel(u, upd_g2_ref[l], upd_be2_ref[l]))

        h = h + u                                             # residual

    # ---- final edge MLP on [h[us] | h[vs]] = [h[src] | h[dst]], commuted ----
    q_u = mxdot(h, mlp_w1u_ref[...])                          # [N, MLP_HID] (src half)
    q_v = mxdot(h, mlp_w1v_ref[...])                          # [N, MLP_HID] (dst half)
    q_cat = jnp.concatenate([q_v, q_u], axis=0)               # dst half on top -> matches cat_oh
    z = _relu(jnp.dot(cat_oh, q_cat, preferred_element_type=f32) + mlp_b1_ref[...])   # [E, 32]
    # Final projection + one-hot scatter kept in f32 (tiny).
    he = jnp.dot(z, mlp_w2_ref[...], preferred_element_type=f32) + mlp_b2_ref[...]    # [E, 1]

    # out[src, dst] += h_e  (sums duplicate edges; unique edges here, matching
    # PyTorch's `E[tuple(edge_index)] += h`).
    dims0 = (((0,), (0,)), ((), ()))                          # contract the edge axis
    out_ref[...] = lax.dot_general(src_oh * he, dst_oh, dims0, preferred_element_type=f32)


def mpnn_nobn_forward(x, edge_index, params):
    """x: [N, IN_DIM] float32, edge_index: [2, E] int32 -> dense [N, N] float32."""
    (lin_w, lin_b,
     msg_w1, msg_b1, msg_g1, msg_be1, msg_w2, msg_b2, msg_g2, msg_be2,
     upd_w1, upd_b1, upd_g1, upd_be1, upd_w2, upd_b2, upd_g2, upd_be2,
     mlp_w1, mlp_b1, mlp_w2, mlp_b2) = params
    N = x.shape[0]
    E = edge_index.shape[1]
    bf16 = jnp.bfloat16
    src = edge_index[0].astype(jnp.int32).reshape(E, 1)   # us (h_j endpoints)
    dst = edge_index[1].astype(jnp.int32).reshape(E, 1)   # vs (h_i endpoints)

    # Pre-split the 2*EMB-input weights and pre-cast all MXU weight halves to
    # bf16 wrapper-side; biases and BN gamma/beta stay f32.
    kernel_inputs = (
        x.astype(jnp.float32), dst, src,
        lin_w, lin_b,
        msg_w1[:, :EMB, :].astype(bf16), msg_w1[:, EMB:, :].astype(bf16),
        msg_b1, msg_g1, msg_be1,
        msg_w2.astype(bf16), msg_b2, msg_g2, msg_be2,
        upd_w1[:, :EMB, :].astype(bf16), upd_w1[:, EMB:, :].astype(bf16),
        upd_b1, upd_g1, upd_be1,
        upd_w2.astype(bf16), upd_b2, upd_g2, upd_be2,
        mlp_w1[:EMB, :].astype(bf16), mlp_w1[EMB:, :].astype(bf16),
        mlp_b1, mlp_w2, mlp_b2,
    )

    # Whole problem (< 1 MiB) is VMEM resident; single grid point, no scratch.
    # TODO(synk): a single graph with a sequential layer loop has no clean
    # "parallel" grid axis; batching several graphs on a leading parallel axis
    # would be needed to occupy v7x's second TensorCore.
    return pl.pallas_call(
        _mpnn_kernel,
        out_shape=jax.ShapeDtypeStruct((N, N), jnp.float32),
        in_specs=[pl.BlockSpec(memory_space=pltpu.MemorySpace.VMEM)] * len(kernel_inputs),
        out_specs=pl.BlockSpec(memory_space=pltpu.MemorySpace.VMEM),
    )(*kernel_inputs)


def init_params(key):
    def linear(k, fan_in, fan_out):
        k1, k2 = jax.random.split(k)
        bound = 1.0 / math.sqrt(fan_in)
        w = jax.random.uniform(k1, (fan_in, fan_out), jnp.float32, -bound, bound)
        b = jax.random.uniform(k2, (1, fan_out), jnp.float32, -bound, bound)
        return w, b

    def bn_params(k):
        k1, k2 = jax.random.split(k)
        g = 1.0 + 0.05 * jax.random.normal(k1, (1, EMB), jnp.float32)
        b = 0.05 * jax.random.normal(k2, (1, EMB), jnp.float32)
        return g, b

    keys = iter(jax.random.split(key, 64))

    lin_w, lin_b = linear(next(keys), IN_DIM, EMB)

    def stack_layers(make):
        outs = [make(next(keys)) for _ in range(NUM_LAYERS)]
        return tuple(jnp.stack([o[i] for o in outs]) for i in range(len(outs[0])))

    msg_w1, msg_b1 = stack_layers(lambda k: linear(k, 2 * EMB, EMB))
    msg_g1, msg_be1 = stack_layers(bn_params)
    msg_w2, msg_b2 = stack_layers(lambda k: linear(k, EMB, EMB))
    msg_g2, msg_be2 = stack_layers(bn_params)
    upd_w1, upd_b1 = stack_layers(lambda k: linear(k, 2 * EMB, EMB))
    upd_g1, upd_be1 = stack_layers(bn_params)
    upd_w2, upd_b2 = stack_layers(lambda k: linear(k, EMB, EMB))
    upd_g2, upd_be2 = stack_layers(bn_params)

    mlp_w1, mlp_b1 = linear(next(keys), 2 * EMB, MLP_HID)
    mlp_w2, mlp_b2 = linear(next(keys), MLP_HID, 1)

    return (lin_w, lin_b,
            msg_w1, msg_b1, msg_g1, msg_be1, msg_w2, msg_b2, msg_g2, msg_be2,
            upd_w1, upd_b1, upd_g1, upd_be1, upd_w2, upd_b2, upd_g2, upd_be2,
            mlp_w1, mlp_b1, mlp_w2, mlp_b2)


def reference_forward(x, edge_index, params):
    # Pure-JAX f32 reference matching MPNNModelNoBN.forward (training-mode BN,
    # per the BatchNorm1d layers inside each MPNNLayer's MLPs).
    (lin_w, lin_b,
     msg_w1, msg_b1, msg_g1, msg_be1, msg_w2, msg_b2, msg_g2, msg_be2,
     upd_w1, upd_b1, upd_g1, upd_be1, upd_w2, upd_b2, upd_g2, upd_be2,
     mlp_w1, mlp_b1, mlp_w2, mlp_b2) = params
    N = x.shape[0]
    src = edge_index[0]
    dst = edge_index[1]

    h = x @ lin_w + lin_b
    for l in range(NUM_LAYERS):
        h_i, h_j = h[dst], h[src]
        m = _relu(_bn_train_ref(jnp.concatenate([h_i, h_j], -1) @ msg_w1[l] + msg_b1[l],
                                msg_g1[l], msg_be1[l]))
        m = _relu(_bn_train_ref(m @ msg_w2[l] + msg_b2[l], msg_g2[l], msg_be2[l]))
        aggr = jnp.zeros((N, EMB), jnp.float32).at[dst].max(m)
        u = _relu(_bn_train_ref(jnp.concatenate([h, aggr], -1) @ upd_w1[l] + upd_b1[l],
                                upd_g1[l], upd_be1[l]))
        u = _relu(_bn_train_ref(u @ upd_w2[l] + upd_b2[l], upd_g2[l], upd_be2[l]))
        h = h + u

    he = _relu(jnp.concatenate([h[src], h[dst]], -1) @ mlp_w1 + mlp_b1)
    he = (he @ mlp_w2 + mlp_b2)[:, 0]
    return jnp.zeros((N, N), jnp.float32).at[src, dst].add(he)


if __name__ == "__main__":
    key = jax.random.PRNGKey(0)
    kx, kp = jax.random.split(key)

    N = 16
    ids = jnp.arange(N, dtype=jnp.int32)
    # 32 unique directed edges (two ring shifts): every node has in/out degree 2.
    src = jnp.concatenate([ids, ids])
    dst = jnp.concatenate([(ids + 1) % N, (ids + 3) % N])
    edge_index = jnp.stack([src, dst]).astype(jnp.int32)        # [2, 32]

    x = jax.random.normal(kx, (N, IN_DIM), jnp.float32)         # [16, 6]
    params = init_params(kp)

    out = mpnn_nobn_forward(x, edge_index, params)
    out = jax.block_until_ready(out)

    ref = reference_forward(x, edge_index, params)
    assert out.shape == (N, N)
    max_diff = float(jnp.max(jnp.abs(out - ref)))
    # bf16 MXU weight operands add ~1% rounding vs the all-f32 reference.
    assert jnp.allclose(out, ref, rtol=3e-2, atol=3e-2), f"max abs diff {max_diff}"
    # TODO(synk): BatchNorm running-stat buffers are not updated (training-mode
    # forward output does not depend on them); self.pool / self.lin_pred are
    # unused in MPNNModelNoBN.forward and therefore omitted.
    print("KERNEL_OK")
</pallas_src>

<mosaic_0001>
module attributes {stable_mosaic.version = 11 : i64} {
  func.func @_mpnn_kernel(%arg0: memref<16x6xf32, #tpu.memory_space<vmem>>, %arg1: memref<32x1xi32, #tpu.memory_space<vmem>>, %arg2: memref<32x1xi32, #tpu.memory_space<vmem>>, %arg3: memref<6x64xf32, #tpu.memory_space<vmem>>, %arg4: memref<1x64xf32, #tpu.memory_space<vmem>>, %arg5: memref<5x64x64xbf16, #tpu.memory_space<vmem>>, %arg6: memref<5x64x64xbf16, #tpu.memory_space<vmem>>, %arg7: memref<5x1x64xf32, #tpu.memory_space<vmem>>, %arg8: memref<5x1x64xf32, #tpu.memory_space<vmem>>, %arg9: memref<5x1x64xf32, #tpu.memory_space<vmem>>, %arg10: memref<5x64x64xbf16, #tpu.memory_space<vmem>>, %arg11: memref<5x1x64xf32, #tpu.memory_space<vmem>>, %arg12: memref<5x1x64xf32, #tpu.memory_space<vmem>>, %arg13: memref<5x1x64xf32, #tpu.memory_space<vmem>>, %arg14: memref<5x64x64xbf16, #tpu.memory_space<vmem>>, %arg15: memref<5x64x64xbf16, #tpu.memory_space<vmem>>, %arg16: memref<5x1x64xf32, #tpu.memory_space<vmem>>, %arg17: memref<5x1x64xf32, #tpu.memory_space<vmem>>, %arg18: memref<5x1x64xf32, #tpu.memory_space<vmem>>, %arg19: memref<5x64x64xbf16, #tpu.memory_space<vmem>>, %arg20: memref<5x1x64xf32, #tpu.memory_space<vmem>>, %arg21: memref<5x1x64xf32, #tpu.memory_space<vmem>>, %arg22: memref<5x1x64xf32, #tpu.memory_space<vmem>>, %arg23: memref<64x32xbf16, #tpu.memory_space<vmem>>, %arg24: memref<64x32xbf16, #tpu.memory_space<vmem>>, %arg25: memref<1x32xf32, #tpu.memory_space<vmem>>, %arg26: memref<32x1xf32, #tpu.memory_space<vmem>>, %arg27: memref<1x1xf32, #tpu.memory_space<vmem>>, %arg28: memref<16x16xf32, #tpu.memory_space<vmem>>) attributes {dimension_semantics = [], scalar_prefetch = 0 : i64, scratch_operands = 0 : i64, tpu.core_type = #tpu.core_type<tc>} {
    %c0 = arith.constant 0 : index
    %c0_0 = arith.constant 0 : index
    %0 = vector.load %arg1[%c0, %c0_0] : memref<32x1xi32, #tpu.memory_space<vmem>>, vector<32x1xi32>
    %c0_1 = arith.constant 0 : index
    %c0_2 = arith.constant 0 : index
    %1 = vector.load %arg2[%c0_1, %c0_2] : memref<32x1xi32, #tpu.memory_space<vmem>>, vector<32x1xi32>
    %2 = tpu.iota {dimensions = array<i32: 1>} : vector<32x16xi32>
    %3 = vector.broadcast %0 : vector<32x1xi32> to vector<32x16xi32>
    %4 = arith.cmpi eq, %3, %2 : vector<32x16xi32>
    %5 = arith.extui %4 : vector<32x16xi1> to vector<32x16xi32>
    %6 = arith.sitofp %5 : vector<32x16xi32> to vector<32x16xf32>
    %7 = vector.broadcast %1 : vector<32x1xi32> to vector<32x16xi32>
    %8 = arith.cmpi eq, %7, %2 : vector<32x16xi32>
    %9 = arith.extui %8 : vector<32x16xi1> to vector<32x16xi32>
    %10 = arith.sitofp %9 : vector<32x16xi32> to vector<32x16xf32>
    %11 = tpu.iota {dimensions = array<i32: 1>} : vector<32x32xi32>
    %12 = vector.broadcast %0 : vector<32x1xi32> to vector<32x32xi32>
    %13 = arith.cmpi eq, %11, %12 : vector<32x32xi32>
    %c16_i32 = arith.constant 16 : i32
    %14 = vector.broadcast %c16_i32 : i32 to vector<32x1xi32>
    %15 = arith.addi %1, %14 : vector<32x1xi32>
    %16 = vector.broadcast %15 : vector<32x1xi32> to vector<32x32xi32>
    %17 = arith.cmpi eq, %11, %16 : vector<32x32xi32>
    %18 = arith.ori %13, %17 : vector<32x32xi1>
    %19 = arith.extui %18 : vector<32x32xi1> to vector<32x32xi32>
    %20 = arith.sitofp %19 : vector<32x32xi32> to vector<32x32xf32>
    %c0_3 = arith.constant 0 : index
    %c0_4 = arith.constant 0 : index
    %21 = vector.load %arg0[%c0_3, %c0_4] : memref<16x6xf32, #tpu.memory_space<vmem>>, vector<16x6xf32>
    %c0_5 = arith.constant 0 : index
    %c0_6 = arith.constant 0 : index
    %22 = vector.load %arg3[%c0_5, %c0_6] : memref<6x64xf32, #tpu.memory_space<vmem>>, vector<6x64xf32>
    %cst = arith.constant dense<0.000000e+00> : vector<16x64xf32>
    %23 = tpu.matmul %21, %22, %cst {dimension_numbers = #tpu.dot_dimension_numbers<[1], [0], [0], [1], [0, 0, 1, 1], [], []>} : vector<16x6xf32>, vector<6x64xf32>, vector<16x64xf32> -> vector<16x64xf32>
    %c0_7 = arith.constant 0 : index
    %c0_8 = arith.constant 0 : index
    %24 = vector.load %arg4[%c0_7, %c0_8] : memref<1x64xf32, #tpu.memory_space<vmem>>, vector<1x64xf32>
    %25 = vector.broadcast %24 : vector<1x64xf32> to vector<16x64xf32>
    %26 = arith.addf %23, %25 : vector<16x64xf32>
    %c0_9 = arith.constant 0 : index
    %c0_10 = arith.constant 0 : index
    %c0_11 = arith.constant 0 : index
    %27 = vector.load %arg5[%c0_9, %c0_10, %c0_11] : memref<5x64x64xbf16, #tpu.memory_space<vmem>>, vector<1x64x64xbf16>
    %28 = vector.shape_cast %27 : vector<1x64x64xbf16> to vector<64x64xbf16>
    %29 = arith.truncf %26 : vector<16x64xf32> to vector<16x64xbf16>
    %cst_12 = arith.constant dense<0.000000e+00> : vector<16x64xf32>
    %30 = tpu.matmul %29, %28, %cst_12 {dimension_numbers = #tpu.dot_dimension_numbers<[1], [0], [0], [1], [0, 0, 1, 1], [], []>} : vector<16x64xbf16>, vector<64x64xbf16>, vector<16x64xf32> -> vector<16x64xf32>
    %c0_13 = arith.constant 0 : index
    %c0_14 = arith.constant 0 : index
    %c0_15 = arith.constant 0 : index
    %31 = vector.load %arg6[%c0_13, %c0_14, %c0_15] : memref<5x64x64xbf16, #tpu.memory_space<vmem>>, vector<1x64x64xbf16>
    %32 = vector.shape_cast %31 : vector<1x64x64xbf16> to vector<64x64xbf16>
    %33 = arith.truncf %26 : vector<16x64xf32> to vector<16x64xbf16>
    %cst_16 = arith.constant dense<0.000000e+00> : vector<16x64xf32>
    %34 = tpu.matmul %33, %32, %cst_16 {dimension_numbers = #tpu.dot_dimension_numbers<[1], [0], [0], [1], [0, 0, 1, 1], [], []>} : vector<16x64xbf16>, vector<64x64xbf16>, vector<16x64xf32> -> vector<16x64xf32>
    %35 = tpu.concatenate %30, %34 in 0 : vector<16x64xf32>, vector<16x64xf32> -> vector<32x64xf32>
    %cst_17 = arith.constant dense<0.000000e+00> : vector<32x64xf32>
    %36 = tpu.matmul %20, %35, %cst_17 {dimension_numbers = #tpu.dot_dimension_numbers<[1], [0], [0], [1], [0, 0, 1, 1], [], []>} : vector<32x32xf32>, vector<32x64xf32>, vector<32x64xf32> -> vector<32x64xf32>
    %c0_18 = arith.constant 0 : index
    %c0_19 = arith.constant 0 : index
    %c0_20 = arith.constant 0 : index
    %37 = vector.load %arg7[%c0_18, %c0_19, %c0_20] : memref<5x1x64xf32, #tpu.memory_space<vmem>>, vector<1x1x64xf32>
    %38 = vector.shape_cast %37 : vector<1x1x64xf32> to vector<1x64xf32>
    %39 = vector.broadcast %38 : vector<1x64xf32> to vector<32x64xf32>
    %40 = arith.addf %36, %39 : vector<32x64xf32>
    %c0_21 = arith.constant 0 : index
    %c0_22 = arith.constant 0 : index
    %c0_23 = arith.constant 0 : index
    %41 = vector.load %arg8[%c0_21, %c0_22, %c0_23] : memref<5x1x64xf32, #tpu.memory_space<vmem>>, vector<1x1x64xf32>
    %42 = vector.shape_cast %41 : vector<1x1x64xf32> to vector<1x64xf32>
    %c0_24 = arith.constant 0 : index
    %c0_25 = arith.constant 0 : index
    %c0_26 = arith.constant 0 : index
    %43 = vector.load %arg9[%c0_24, %c0_25, %c0_26] : memref<5x1x64xf32, #tpu.memory_space<vmem>>, vector<1x1x64xf32>
    %44 = vector.shape_cast %43 : vector<1x1x64xf32> to vector<1x64xf32>
    %cst_27 = arith.constant dense<0.000000e+00> : vector<64xf32>
    %45 = vector.multi_reduction <add>, %40, %cst_27 [0] : vector<32x64xf32> to vector<64xf32>
    %46 = vector.shape_cast %45 : vector<64xf32> to vector<1x64xf32>
    %cst_28 = arith.constant 3.200000e+01 : f32
    %47 = vector.broadcast %cst_28 : f32 to vector<1x64xf32>
    %48 = arith.divf %46, %47 : vector<1x64xf32>
    %49 = arith.mulf %40, %40 : vector<32x64xf32>
    %cst_29 = arith.constant dense<0.000000e+00> : vector<64xf32>
    %50 = vector.multi_reduction <add>, %49, %cst_29 [0] : vector<32x64xf32> to vector<64xf32>
    %51 = vector.shape_cast %50 : vector<64xf32> to vector<1x64xf32>
    %cst_30 = arith.constant 3.200000e+01 : f32
    %52 = vector.broadcast %cst_30 : f32 to vector<1x64xf32>
    %53 = arith.divf %51, %52 : vector<1x64xf32>
    %54 = arith.mulf %48, %48 : vector<1x64xf32>
    %55 = arith.subf %53, %54 : vector<1x64xf32>
    %56 = vector.broadcast %48 : vector<1x64xf32> to vector<32x64xf32>
    %57 = arith.subf %40, %56 : vector<32x64xf32>
    %cst_31 = arith.constant 9.99999974E-6 : f32
    %58 = vector.broadcast %cst_31 : f32 to vector<1x64xf32>
    %59 = arith.addf %55, %58 : vector<1x64xf32>
    %60 = math.rsqrt %59 : vector<1x64xf32>
    %61 = vector.broadcast %60 : vector<1x64xf32> to vector<32x64xf32>
    %62 = arith.mulf %57, %61 : vector<32x64xf32>
    %63 = vector.broadcast %42 : vector<1x64xf32> to vector<32x64xf32>
    %64 = arith.mulf %62, %63 : vector<32x64xf32>
    %65 = vector.broadcast %44 : vector<1x64xf32> to vector<32x64xf32>
    %66 = arith.addf %64, %65 : vector<32x64xf32>
    %cst_32 = arith.constant 0.000000e+00 : f32
    %67 = vector.broadcast %cst_32 : f32 to vector<32x64xf32>
    %68 = arith.maximumf %66, %67 : vector<32x64xf32>
    %c0_33 = arith.constant 0 : index
    %c0_34 = arith.constant 0 : index
    %c0_35 = arith.constant 0 : index
    %69 = vector.load %arg10[%c0_33, %c0_34, %c0_35] : memref<5x64x64xbf16, #tpu.memory_space<vmem>>, vector<1x64x64xbf16>
    %70 = vector.shape_cast %69 : vector<1x64x64xbf16> to vector<64x64xbf16>
    %71 = arith.truncf %68 : vector<32x64xf32> to vector<32x64xbf16>
    %cst_36 = arith.constant dense<0.000000e+00> : vector<32x64xf32>
    %72 = tpu.matmul %71, %70, %cst_36 {dimension_numbers = #tpu.dot_dimension_numbers<[1], [0], [0], [1], [0, 0, 1, 1], [], []>} : vector<32x64xbf16>, vector<64x64xbf16>, vector<32x64xf32> -> vector<32x64xf32>
    %c0_37 = arith.constant 0 : index
    %c0_38 = arith.constant 0 : index
    %c0_39 = arith.constant 0 : index
    %73 = vector.load %arg11[%c0_37, %c0_38, %c0_39] : memref<5x1x64xf32, #tpu.memory_space<vmem>>, vector<1x1x64xf32>
    %74 = vector.shape_cast %73 : vector<1x1x64xf32> to vector<1x64xf32>
    %75 = vector.broadcast %74 : vector<1x64xf32> to vector<32x64xf32>
    %76 = arith.addf %72, %75 : vector<32x64xf32>
    %c0_40 = arith.constant 0 : index
    %c0_41 = arith.constant 0 : index
    %c0_42 = arith.constant 0 : index
    %77 = vector.load %arg12[%c0_40, %c0_41, %c0_42] : memref<5x1x64xf32, #tpu.memory_space<vmem>>, vector<1x1x64xf32>
    %78 = vector.shape_cast %77 : vector<1x1x64xf32> to vector<1x64xf32>
    %c0_43 = arith.constant 0 : index
    %c0_44 = arith.constant 0 : index
    %c0_45 = arith.constant 0 : index
    %79 = vector.load %arg13[%c0_43, %c0_44, %c0_45] : memref<5x1x64xf32, #tpu.memory_space<vmem>>, vector<1x1x64xf32>
    %80 = vector.shape_cast %79 : vector<1x1x64xf32> to vector<1x64xf32>
    %cst_46 = arith.constant dense<0.000000e+00> : vector<64xf32>
    %81 = vector.multi_reduction <add>, %76, %cst_46 [0] : vector<32x64xf32> to vector<64xf32>
    %82 = vector.shape_cast %81 : vector<64xf32> to vector<1x64xf32>
    %cst_47 = arith.constant 3.200000e+01 : f32
    %83 = vector.broadcast %cst_47 : f32 to vector<1x64xf32>
    %84 = arith.divf %82, %83 : vector<1x64xf32>
    %85 = arith.mulf %76, %76 : vector<32x64xf32>
    %cst_48 = arith.constant dense<0.000000e+00> : vector<64xf32>
    %86 = vector.multi_reduction <add>, %85, %cst_48 [0] : vector<32x64xf32> to vector<64xf32>
    %87 = vector.shape_cast %86 : vector<64xf32> to vector<1x64xf32>
    %cst_49 = arith.constant 3.200000e+01 : f32
    %88 = vector.broadcast %cst_49 : f32 to vector<1x64xf32>
    %89 = arith.divf %87, %88 : vector<1x64xf32>
    %90 = arith.mulf %84, %84 : vector<1x64xf32>
    %91 = arith.subf %89, %90 : vector<1x64xf32>
    %92 = vector.broadcast %84 : vector<1x64xf32> to vector<32x64xf32>
    %93 = arith.subf %76, %92 : vector<32x64xf32>
    %cst_50 = arith.constant 9.99999974E-6 : f32
    %94 = vector.broadcast %cst_50 : f32 to vector<1x64xf32>
    %95 = arith.addf %91, %94 : vector<1x64xf32>
    %96 = math.rsqrt %95 : vector<1x64xf32>
    %97 = vector.broadcast %96 : vector<1x64xf32> to vector<32x64xf32>
    %98 = arith.mulf %93, %97 : vector<32x64xf32>
    %99 = vector.broadcast %78 : vector<1x64xf32> to vector<32x64xf32>
    %100 = arith.mulf %98, %99 : vector<32x64xf32>
    %101 = vector.broadcast %80 : vector<1x64xf32> to vector<32x64xf32>
    %102 = arith.addf %100, %101 : vector<32x64xf32>
    %cst_51 = arith.constant 0.000000e+00 : f32
    %103 = vector.broadcast %cst_51 : f32 to vector<32x64xf32>
    %104 = arith.maximumf %102, %103 : vector<32x64xf32>
    %cst_52 = arith.constant 0.000000e+00 : f32
    %105 = vector.broadcast %cst_52 : f32 to vector<16x64xf32>
    %106 = vector.extract_strided_slice %6 {offsets = [0, 0], sizes = [8, 16], strides = [1, 1]} : vector<32x16xf32> to vector<8x16xf32>
    %107 = vector.shape_cast %106 : vector<8x16xf32> to vector<8x16x1xf32>
    %108 = vector.extract_strided_slice %104 {offsets = [0, 0], sizes = [8, 64], strides = [1, 1]} : vector<32x64xf32> to vector<8x64xf32>
    %109 = vector.shape_cast %108 : vector<8x64xf32> to vector<8x1x64xf32>
    %110 = vector.broadcast %107 : vector<8x16x1xf32> to vector<8x16x64xf32>
    %111 = vector.broadcast %109 : vector<8x1x64xf32> to vector<8x16x64xf32>
    %112 = arith.mulf %110, %111 : vector<8x16x64xf32>
    %cst_53 = arith.constant dense<0xFF800000> : vector<16x64xf32>
    %113 = vector.multi_reduction <maximumf>, %112, %cst_53 [0] : vector<8x16x64xf32> to vector<16x64xf32>
    %114 = arith.maximumf %105, %113 : vector<16x64xf32>
    %115 = vector.extract_strided_slice %6 {offsets = [8, 0], sizes = [8, 16], strides = [1, 1]} : vector<32x16xf32> to vector<8x16xf32>
    %116 = vector.shape_cast %115 : vector<8x16xf32> to vector<8x16x1xf32>
    %117 = vector.extract_strided_slice %104 {offsets = [8, 0], sizes = [8, 64], strides = [1, 1]} : vector<32x64xf32> to vector<8x64xf32>
    %118 = vector.shape_cast %117 : vector<8x64xf32> to vector<8x1x64xf32>
    %119 = vector.broadcast %116 : vector<8x16x1xf32> to vector<8x16x64xf32>
    %120 = vector.broadcast %118 : vector<8x1x64xf32> to vector<8x16x64xf32>
    %121 = arith.mulf %119, %120 : vector<8x16x64xf32>
    %cst_54 = arith.constant dense<0xFF800000> : vector<16x64xf32>
    %122 = vector.multi_reduction <maximumf>, %121, %cst_54 [0] : vector<8x16x64xf32> to vector<16x64xf32>
    %123 = arith.maximumf %114, %122 : vector<16x64xf32>
    %124 = vector.extract_strided_slice %6 {offsets = [16, 0], sizes = [8, 16], strides = [1, 1]} : vector<32x16xf32> to vector<8x16xf32>
    %125 = vector.shape_cast %124 : vector<8x16xf32> to vector<8x16x1xf32>
    %126 = vector.extract_strided_slice %104 {offsets = [16, 0], sizes = [8, 64], strides = [1, 1]} : vector<32x64xf32> to vector<8x64xf32>
    %127 = vector.shape_cast %126 : vector<8x64xf32> to vector<8x1x64xf32>
    %128 = vector.broadcast %125 : vector<8x16x1xf32> to vector<8x16x64xf32>
    %129 = vector.broadcast %127 : vector<8x1x64xf32> to vector<8x16x64xf32>
    %130 = arith.mulf %128, %129 : vector<8x16x64xf32>
    %cst_55 = arith.constant dense<0xFF800000> : vector<16x64xf32>
    %131 = vector.multi_reduction <maximumf>, %130, %cst_55 [0] : vector<8x16x64xf32> to vector<16x64xf32>
    %132 = arith.maximumf %123, %131 : vector<16x64xf32>
    %133 = vector.extract_strided_slice %6 {offsets = [24, 0], sizes = [8, 16], strides = [1, 1]} : vector<32x16xf32> to vector<8x16xf32>
    %134 = vector.shape_cast %133 : vector<8x16xf32> to vector<8x16x1xf32>
    %135 = vector.extract_strided_slice %104 {offsets = [24, 0], sizes = [8, 64], strides = [1, 1]} : vector<32x64xf32> to vector<8x64xf32>
    %136 = vector.shape_cast %135 : vector<8x64xf32> to vector<8x1x64xf32>
    %137 = vector.broadcast %134 : vector<8x16x1xf32> to vector<8x16x64xf32>
    %138 = vector.broadcast %136 : vector<8x1x64xf32> to vector<8x16x64xf32>
    %139 = arith.mulf %137, %138 : vector<8x16x64xf32>
    %cst_56 = arith.constant dense<0xFF800000> : vector<16x64xf32>
    %140 = vector.multi_reduction <maximumf>, %139, %cst_56 [0] : vector<8x16x64xf32> to vector<16x64xf32>
    %141 = arith.maximumf %132, %140 : vector<16x64xf32>
    %c0_57 = arith.constant 0 : index
    %c0_58 = arith.constant 0 : index
    %c0_59 = arith.constant 0 : index
    %142 = vector.load %arg14[%c0_57, %c0_58, %c0_59] : memref<5x64x64xbf16, #tpu.memory_space<vmem>>, vector<1x64x64xbf16>
    %143 = vector.shape_cast %142 : vector<1x64x64xbf16> to vector<64x64xbf16>
    %144 = arith.truncf %26 : vector<16x64xf32> to vector<16x64xbf16>
    %cst_60 = arith.constant dense<0.000000e+00> : vector<16x64xf32>
    %145 = tpu.matmul %144, %143, %cst_60 {dimension_numbers = #tpu.dot_dimension_numbers<[1], [0], [0], [1], [0, 0, 1, 1], [], []>} : vector<16x64xbf16>, vector<64x64xbf16>, vector<16x64xf32> -> vector<16x64xf32>
    %c0_61 = arith.constant 0 : index
    %c0_62 = arith.constant 0 : index
    %c0_63 = arith.constant 0 : index
    %146 = vector.load %arg15[%c0_61, %c0_62, %c0_63] : memref<5x64x64xbf16, #tpu.memory_space<vmem>>, vector<1x64x64xbf16>
    %147 = vector.shape_cast %146 : vector<1x64x64xbf16> to vector<64x64xbf16>
    %148 = arith.truncf %141 : vector<16x64xf32> to vector<16x64xbf16>
    %cst_64 = arith.constant dense<0.000000e+00> : vector<16x64xf32>
    %149 = tpu.matmul %148, %147, %cst_64 {dimension_numbers = #tpu.dot_dimension_numbers<[1], [0], [0], [1], [0, 0, 1, 1], [], []>} : vector<16x64xbf16>, vector<64x64xbf16>, vector<16x64xf32> -> vector<16x64xf32>
    %150 = arith.addf %145, %149 : vector<16x64xf32>
    %c0_65 = arith.constant 0 : index
    %c0_66 = arith.constant 0 : index
    %c0_67 = arith.constant 0 : index
    %151 = vector.load %arg16[%c0_65, %c0_66, %c0_67] : memref<5x1x64xf32, #tpu.memory_space<vmem>>, vector<1x1x64xf32>
    %152 = vector.shape_cast %151 : vector<1x1x64xf32> to vector<1x64xf32>
    %153 = vector.broadcast %152 : vector<1x64xf32> to vector<16x64xf32>
    %154 = arith.addf %150, %153 : vector<16x64xf32>
    %c0_68 = arith.constant 0 : index
    %c0_69 = arith.constant 0 : index
    %c0_70 = arith.constant 0 : index
    %155 = vector.load %arg17[%c0_68, %c0_69, %c0_70] : memref<5x1x64xf32, #tpu.memory_space<vmem>>, vector<1x1x64xf32>
    %156 = vector.shape_cast %155 : vector<1x1x64xf32> to vector<1x64xf32>
    %c0_71 = arith.constant 0 : index
    %c0_72 = arith.constant 0 : index
    %c0_73 = arith.constant 0 : index
    %157 = vector.load %arg18[%c0_71, %c0_72, %c0_73] : memref<5x1x64xf32, #tpu.memory_space<vmem>>, vector<1x1x64xf32>
    %158 = vector.shape_cast %157 : vector<1x1x64xf32> to vector<1x64xf32>
    %cst_74 = arith.constant dense<0.000000e+00> : vector<64xf32>
    %159 = vector.multi_reduction <add>, %154, %cst_74 [0] : vector<16x64xf32> to vector<64xf32>
    %160 = vector.shape_cast %159 : vector<64xf32> to vector<1x64xf32>
    %cst_75 = arith.constant 1.600000e+01 : f32
    %161 = vector.broadcast %cst_75 : f32 to vector<1x64xf32>
    %162 = arith.divf %160, %161 : vector<1x64xf32>
    %163 = arith.mulf %154, %154 : vector<16x64xf32>
    %cst_76 = arith.constant dense<0.000000e+00> : vector<64xf32>
    %164 = vector.multi_reduction <add>, %163, %cst_76 [0] : vector<16x64xf32> to vector<64xf32>
    %165 = vector.shape_cast %164 : vector<64xf32> to vector<1x64xf32>
    %cst_77 = arith.constant 1.600000e+01 : f32
    %166 = vector.broadcast %cst_77 : f32 to vector<1x64xf32>
    %167 = arith.divf %165, %166 : vector<1x64xf32>
    %168 = arith.mulf %162, %162 : vector<1x64xf32>
    %169 = arith.subf %167, %168 : vector<1x64xf32>
    %170 = vector.broadcast %162 : vector<1x64xf32> to vector<16x64xf32>
    %171 = arith.subf %154, %170 : vector<16x64xf32>
    %cst_78 = arith.constant 9.99999974E-6 : f32
    %172 = vector.broadcast %cst_78 : f32 to vector<1x64xf32>
    %173 = arith.addf %169, %172 : vector<1x64xf32>
    %174 = math.rsqrt %173 : vector<1x64xf32>
    %175 = vector.broadcast %174 : vector<1x64xf32> to vector<16x64xf32>
    %176 = arith.mulf %171, %175 : vector<16x64xf32>
    %177 = vector.broadcast %156 : vector<1x64xf32> to vector<16x64xf32>
    %178 = arith.mulf %176, %177 : vector<16x64xf32>
    %179 = vector.broadcast %158 : vector<1x64xf32> to vector<16x64xf32>
    %180 = arith.addf %178, %179 : vector<16x64xf32>
    %cst_79 = arith.constant 0.000000e+00 : f32
    %181 = vector.broadcast %cst_79 : f32 to vector<16x64xf32>
    %182 = arith.maximumf %180, %181 : vector<16x64xf32>
    %c0_80 = arith.constant 0 : index
    %c0_81 = arith.constant 0 : index
    %c0_82 = arith.constant 0 : index
    %183 = vector.load %arg19[%c0_80, %c0_81, %c0_82] : memref<5x64x64xbf16, #tpu.memory_space<vmem>>, vector<1x64x64xbf16>
    %184 = vector.shape_cast %183 : vector<1x64x64xbf16> to vector<64x64xbf16>
    %185 = arith.truncf %182 : vector<16x64xf32> to vector<16x64xbf16>
    %cst_83 = arith.constant dense<0.000000e+00> : vector<16x64xf32>
    %186 = tpu.matmul %185, %184, %cst_83 {dimension_numbers = #tpu.dot_dimension_numbers<[1], [0], [0], [1], [0, 0, 1, 1], [], []>} : vector<16x64xbf16>, vector<64x64xbf16>, vector<16x64xf32> -> vector<16x64xf32>
    %c0_84 = arith.constant 0 : index
    %c0_85 = arith.constant 0 : index
    %c0_86 = arith.constant 0 : index
    %187 = vector.load %arg20[%c0_84, %c0_85, %c0_86] : memref<5x1x64xf32, #tpu.memory_space<vmem>>, vector<1x1x64xf32>
    %188 = vector.shape_cast %187 : vector<1x1x64xf32> to vector<1x64xf32>
    %189 = vector.broadcast %188 : vector<1x64xf32> to vector<16x64xf32>
    %190 = arith.addf %186, %189 : vector<16x64xf32>
    %c0_87 = arith.constant 0 : index
    %c0_88 = arith.constant 0 : index
    %c0_89 = arith.constant 0 : index
    %191 = vector.load %arg21[%c0_87, %c0_88, %c0_89] : memref<5x1x64xf32, #tpu.memory_space<vmem>>, vector<1x1x64xf32>
    %192 = vector.shape_cast %191 : vector<1x1x64xf32> to vector<1x64xf32>
    %c0_90 = arith.constant 0 : index
    %c0_91 = arith.constant 0 : index
    %c0_92 = arith.constant 0 : index
    %193 = vector.load %arg22[%c0_90, %c0_91, %c0_92] : memref<5x1x64xf32, #tpu.memory_space<vmem>>, vector<1x1x64xf32>
    %194 = vector.shape_cast %193 : vector<1x1x64xf32> to vector<1x64xf32>
    %cst_93 = arith.constant dense<0.000000e+00> : vector<64xf32>
    %195 = vector.multi_reduction <add>, %190, %cst_93 [0] : vector<16x64xf32> to vector<64xf32>
    %196 = vector.shape_cast %195 : vector<64xf32> to vector<1x64xf32>
    %cst_94 = arith.constant 1.600000e+01 : f32
    %197 = vector.broadcast %cst_94 : f32 to vector<1x64xf32>
    %198 = arith.divf %196, %197 : vector<1x64xf32>
    %199 = arith.mulf %190, %190 : vector<16x64xf32>
    %cst_95 = arith.constant dense<0.000000e+00> : vector<64xf32>
    %200 = vector.multi_reduction <add>, %199, %cst_95 [0] : vector<16x64xf32> to vector<64xf32>
    %201 = vector.shape_cast %200 : vector<64xf32> to vector<1x64xf32>
    %cst_96 = arith.constant 1.600000e+01 : f32
    %202 = vector.broadcast %cst_96 : f32 to vector<1x64xf32>
    %203 = arith.divf %201, %202 : vector<1x64xf32>
    %204 = arith.mulf %198, %198 : vector<1x64xf32>
    %205 = arith.subf %203, %204 : vector<1x64xf32>
    %206 = vector.broadcast %198 : vector<1x64xf32> to vector<16x64xf32>
    %207 = arith.subf %190, %206 : vector<16x64xf32>
    %cst_97 = arith.constant 9.99999974E-6 : f32
    %208 = vector.broadcast %cst_97 : f32 to vector<1x64xf32>
    %209 = arith.addf %205, %208 : vector<1x64xf32>
    %210 = math.rsqrt %209 : vector<1x64xf32>
    %211 = vector.broadcast %210 : vector<1x64xf32> to vector<16x64xf32>
    %212 = arith.mulf %207, %211 : vector<16x64xf32>
    %213 = vector.broadcast %192 : vector<1x64xf32> to vector<16x64xf32>
    %214 = arith.mulf %212, %213 : vector<16x64xf32>
    %215 = vector.broadcast %194 : vector<1x64xf32> to vector<16x64xf32>
    %216 = arith.addf %214, %215 : vector<16x64xf32>
    %cst_98 = arith.constant 0.000000e+00 : f32
    %217 = vector.broadcast %cst_98 : f32 to vector<16x64xf32>
    %218 = arith.maximumf %216, %217 : vector<16x64xf32>
    %219 = arith.addf %26, %218 : vector<16x64xf32>
    %c1 = arith.constant 1 : index
    %c0_99 = arith.constant 0 : index
    %c0_100 = arith.constant 0 : index
    %220 = vector.load %arg5[%c1, %c0_99, %c0_100] : memref<5x64x64xbf16, #tpu.memory_space<vmem>>, vector<1x64x64xbf16>
    %221 = vector.shape_cast %220 : vector<1x64x64xbf16> to vector<64x64xbf16>
    %222 = arith.truncf %219 : vector<16x64xf32> to vector<16x64xbf16>
    %cst_101 = arith.constant dense<0.000000e+00> : vector<16x64xf32>
    %223 = tpu.matmul %222, %221, %cst_101 {dimension_numbers = #tpu.dot_dimension_numbers<[1], [0], [0], [1], [0, 0, 1, 1], [], []>} : vector<16x64xbf16>, vector<64x64xbf16>, vector<16x64xf32> -> vector<16x64xf32>
    %c1_102 = arith.constant 1 : index
    %c0_103 = arith.constant 0 : index
    %c0_104 = arith.constant 0 : index
    %224 = vector.load %arg6[%c1_102, %c0_103, %c0_104] : memref<5x64x64xbf16, #tpu.memory_space<vmem>>, vector<1x64x64xbf16>
    %225 = vector.shape_cast %224 : vector<1x64x64xbf16> to vector<64x64xbf16>
    %226 = arith.truncf %219 : vector<16x64xf32> to vector<16x64xbf16>
    %cst_105 = arith.constant dense<0.000000e+00> : vector<16x64xf32>
    %227 = tpu.matmul %226, %225, %cst_105 {dimension_numbers = #tpu.dot_dimension_numbers<[1], [0], [0], [1], [0, 0, 1, 1], [], []>} : vector<16x64xbf16>, vector<64x64xbf16>, vector<16x64xf32> -> vector<16x64xf32>
    %228 = tpu.concatenate %223, %227 in 0 : vector<16x64xf32>, vector<16x64xf32> -> vector<32x64xf32>
    %cst_106 = arith.constant dense<0.000000e+00> : vector<32x64xf32>
    %229 = tpu.matmul %20, %228, %cst_106 {dimension_numbers = #tpu.dot_dimension_numbers<[1], [0], [0], [1], [0, 0, 1, 1], [], []>} : vector<32x32xf32>, vector<32x64xf32>, vector<32x64xf32> -> vector<32x64xf32>
    %c1_107 = arith.constant 1 : index
    %c0_108 = arith.constant 0 : index
    %c0_109 = arith.constant 0 : index
    %230 = vector.load %arg7[%c1_107, %c0_108, %c0_109] : memref<5x1x64xf32, #tpu.memory_space<vmem>>, vector<1x1x64xf32>
    %231 = vector.shape_cast %230 : vector<1x1x64xf32> to vector<1x64xf32>
    %232 = vector.broadcast %231 : vector<1x64xf32> to vector<32x64xf32>
    %233 = arith.addf %229, %232 : vector<32x64xf32>
    %c1_110 = arith.constant 1 : index
    %c0_111 = arith.constant 0 : index
    %c0_112 = arith.constant 0 : index
    %234 = vector.load %arg8[%c1_110, %c0_111, %c0_112] : memref<5x1x64xf32, #tpu.memory_space<vmem>>, vector<1x1x64xf32>
    %235 = vector.shape_cast %234 : vector<1x1x64xf32> to vector<1x64xf32>
    %c1_113 = arith.constant 1 : index
    %c0_114 = arith.constant 0 : index
    %c0_115 = arith.constant 0 : index
    %236 = vector.load %arg9[%c1_113, %c0_114, %c0_115] : memref<5x1x64xf32, #tpu.memory_space<vmem>>, vector<1x1x64xf32>
    %237 = vector.shape_cast %236 : vector<1x1x64xf32> to vector<1x64xf32>
    %cst_116 = arith.constant dense<0.000000e+00> : vector<64xf32>
    %238 = vector.multi_reduction <add>, %233, %cst_116 [0] : vector<32x64xf32> to vector<64xf32>
    %239 = vector.shape_cast %238 : vector<64xf32> to vector<1x64xf32>
    %cst_117 = arith.constant 3.200000e+01 : f32
    %240 = vector.broadcast %cst_117 : f32 to vector<1x64xf32>
    %241 = arith.divf %239, %240 : vector<1x64xf32>
    %242 = arith.mulf %233, %233 : vector<32x64xf32>
    %cst_118 = arith.constant dense<0.000000e+00> : vector<64xf32>
    %243 = vector.multi_reduction <add>, %242, %cst_118 [0] : vector<32x64xf32> to vector<64xf32>
    %244 = vector.shape_cast %243 : vector<64xf32> to vector<1x64xf32>
    %cst_119 = arith.constant 3.200000e+01 : f32
    %245 = vector.broadcast %cst_119 : f32 to vector<1x64xf32>
    %246 = arith.divf %244, %245 : vector<1x64xf32>
    %247 = arith.mulf %241, %241 : vector<1x64xf32>
    %248 = arith.subf %246, %247 : vector<1x64xf32>
    %249 = vector.broadcast %241 : vector<1x64xf32> to vector<32x64xf32>
    %250 = arith.subf %233, %249 : vector<32x64xf32>
    %cst_120 = arith.constant 9.99999974E-6 : f32
    %251 = vector.broadcast %cst_120 : f32 to vector<1x64xf32>
    %252 = arith.addf %248, %251 : vector<1x64xf32>
    %253 = math.rsqrt %252 : vector<1x64xf32>
    %254 = vector.broadcast %253 : vector<1x64xf32> to vector<32x64xf32>
    %255 = arith.mulf %250, %254 : vector<32x64xf32>
    %256 = vector.broadcast %235 : vector<1x64xf32> to vector<32x64xf32>
    %257 = arith.mulf %255, %256 : vector<32x64xf32>
    %258 = vector.broadcast %237 : vector<1x64xf32> to vector<32x64xf32>
    %259 = arith.addf %257, %258 : vector<32x64xf32>
    %cst_121 = arith.constant 0.000000e+00 : f32
    %260 = vector.broadcast %cst_121 : f32 to vector<32x64xf32>
    %261 = arith.maximumf %259, %260 : vector<32x64xf32>
    %c1_122 = arith.constant 1 : index
    %c0_123 = arith.constant 0 : index
    %c0_124 = arith.constant 0 : index
    %262 = vector.load %arg10[%c1_122, %c0_123, %c0_124] : memref<5x64x64xbf16, #tpu.memory_space<vmem>>, vector<1x64x64xbf16>
    %263 = vector.shape_cast %262 : vector<1x64x64xbf16> to vector<64x64xbf16>
    %264 = arith.truncf %261 : vector<32x64xf32> to vector<32x64xbf16>
    %cst_125 = arith.constant dense<0.000000e+00> : vector<32x64xf32>
    %265 = tpu.matmul %264, %263, %cst_125 {dimension_numbers = #tpu.dot_dimension_numbers<[1], [0], [0], [1], [0, 0, 1, 1], [], []>} : vector<32x64xbf16>, vector<64x64xbf16>, vector<32x64xf32> -> vector<32x64xf32>
    %c1_126 = arith.constant 1 : index
    %c0_127 = arith.constant 0 : index
    %c0_128 = arith.constant 0 : index
    %266 = vector.load %arg11[%c1_126, %c0_127, %c0_128] : memref<5x1x64xf32, #tpu.memory_space<vmem>>, vector<1x1x64xf32>
    %267 = vector.shape_cast %266 : vector<1x1x64xf32> to vector<1x64xf32>
    %268 = vector.broadcast %267 : vector<1x64xf32> to vector<32x64xf32>
    %269 = arith.addf %265, %268 : vector<32x64xf32>
    %c1_129 = arith.constant 1 : index
    %c0_130 = arith.constant 0 : index
    %c0_131 = arith.constant 0 : index
    %270 = vector.load %arg12[%c1_129, %c0_130, %c0_131] : memref<5x1x64xf32, #tpu.memory_space<vmem>>, vector<1x1x64xf32>
    %271 = vector.shape_cast %270 : vector<1x1x64xf32> to vector<1x64xf32>
    %c1_132 = arith.constant 1 : index
    %c0_133 = arith.constant 0 : index
    %c0_134 = arith.constant 0 : index
    %272 = vector.load %arg13[%c1_132, %c0_133, %c0_134] : memref<5x1x64xf32, #tpu.memory_space<vmem>>, vector<1x1x64xf32>
    %273 = vector.shape_cast %272 : vector<1x1x64xf32> to vector<1x64xf32>
    %cst_135 = arith.constant dense<0.000000e+00> : vector<64xf32>
    %274 = vector.multi_reduction <add>, %269, %cst_135 [0] : vector<32x64xf32> to vector<64xf32>
    %275 = vector.shape_cast %274 : vector<64xf32> to vector<1x64xf32>
    %cst_136 = arith.constant 3.200000e+01 : f32
    %276 = vector.broadcast %cst_136 : f32 to vector<1x64xf32>
    %277 = arith.divf %275, %276 : vector<1x64xf32>
    %278 = arith.mulf %269, %269 : vector<32x64xf32>
    %cst_137 = arith.constant dense<0.000000e+00> : vector<64xf32>
    %279 = vector.multi_reduction <add>, %278, %cst_137 [0] : vector<32x64xf32> to vector<64xf32>
    %280 = vector.shape_cast %279 : vector<64xf32> to vector<1x64xf32>
    %cst_138 = arith.constant 3.200000e+01 : f32
    %281 = vector.broadcast %cst_138 : f32 to vector<1x64xf32>
    %282 = arith.divf %280, %281 : vector<1x64xf32>
    %283 = arith.mulf %277, %277 : vector<1x64xf32>
    %284 = arith.subf %282, %283 : vector<1x64xf32>
    %285 = vector.broadcast %277 : vector<1x64xf32> to vector<32x64xf32>
    %286 = arith.subf %269, %285 : vector<32x64xf32>
    %cst_139 = arith.constant 9.99999974E-6 : f32
    %287 = vector.broadcast %cst_139 : f32 to vector<1x64xf32>
    %288 = arith.addf %284, %287 : vector<1x64xf32>
    %289 = math.rsqrt %288 : vector<1x64xf32>
    %290 = vector.broadcast %289 : vector<1x64xf32> to vector<32x64xf32>
    %291 = arith.mulf %286, %290 : vector<32x64xf32>
    %292 = vector.broadcast %271 : vector<1x64xf32> to vector<32x64xf32>
    %293 = arith.mulf %291, %292 : vector<32x64xf32>
    %294 = vector.broadcast %273 : vector<1x64xf32> to vector<32x64xf32>
    %295 = arith.addf %293, %294 : vector<32x64xf32>
    %cst_140 = arith.constant 0.000000e+00 : f32
    %296 = vector.broadcast %cst_140 : f32 to vector<32x64xf32>
    %297 = arith.maximumf %295, %296 : vector<32x64xf32>
    %cst_141 = arith.constant 0.000000e+00 : f32
    %298 = vector.broadcast %cst_141 : f32 to vector<16x64xf32>
    %299 = vector.extract_strided_slice %6 {offsets = [0, 0], sizes = [8, 16], strides = [1, 1]} : vector<32x16xf32> to vector<8x16xf32>
    %300 = vector.shape_cast %299 : vector<8x16xf32> to vector<8x16x1xf32>
    %301 = vector.extract_strided_slice %297 {offsets = [0, 0], sizes = [8, 64], strides = [1, 1]} : vector<32x64xf32> to vector<8x64xf32>
    %302 = vector.shape_cast %301 : vector<8x64xf32> to vector<8x1x64xf32>
    %303 = vector.broadcast %300 : vector<8x16x1xf32> to vector<8x16x64xf32>
    %304 = vector.broadcast %302 : vector<8x1x64xf32> to vector<8x16x64xf32>
    %305 = arith.mulf %303, %304 : vector<8x16x64xf32>
    %cst_142 = arith.constant dense<0xFF800000> : vector<16x64xf32>
    %306 = vector.multi_reduction <maximumf>, %305, %cst_142 [0] : vector<8x16x64xf32> to vector<16x64xf32>
    %307 = arith.maximumf %298, %306 : vector<16x64xf32>
    %308 = vector.extract_strided_slice %6 {offsets = [8, 0], sizes = [8, 16], strides = [1, 1]} : vector<32x16xf32> to vector<8x16xf32>
    %309 = vector.shape_cast %308 : vector<8x16xf32> to vector<8x16x1xf32>
    %310 = vector.extract_strided_slice %297 {offsets = [8, 0], sizes = [8, 64], strides = [1, 1]} : vector<32x64xf32> to vector<8x64xf32>
    %311 = vector.shape_cast %310 : vector<8x64xf32> to vector<8x1x64xf32>
    %312 = vector.broadcast %309 : vector<8x16x1xf32> to vector<8x16x64xf32>
    %313 = vector.broadcast %311 : vector<8x1x64xf32> to vector<8x16x64xf32>
    %314 = arith.mulf %312, %313 : vector<8x16x64xf32>
    %cst_143 = arith.constant dense<0xFF800000> : vector<16x64xf32>
    %315 = vector.multi_reduction <maximumf>, %314, %cst_143 [0] : vector<8x16x64xf32> to vector<16x64xf32>
    %316 = arith.maximumf %307, %315 : vector<16x64xf32>
    %317 = vector.extract_strided_slice %6 {offsets = [16, 0], sizes = [8, 16], strides = [1, 1]} : vector<32x16xf32> to vector<8x16xf32>
    %318 = vector.shape_cast %317 : vector<8x16xf32> to vector<8x16x1xf32>
    %319 = vector.extract_strided_slice %297 {offsets = [16, 0], sizes = [8, 64], strides = [1, 1]} : vector<32x64xf32> to vector<8x64xf32>
    %320 = vector.shape_cast %319 : vector<8x64xf32> to vector<8x1x64xf32>
    %321 = vector.broadcast %318 : vector<8x16x1xf32> to vector<8x16x64xf32>
    %322 = vector.broadcast %320 : vector<8x1x64xf32> to vector<8x16x64xf32>
    %323 = arith.mulf %321, %322 : vector<8x16x64xf32>
    %cst_144 = arith.constant dense<0xFF800000> : vector<16x64xf32>
    %324 = vector.multi_reduction <maximumf>, %323, %cst_144 [0] : vector<8x16x64xf32> to vector<16x64xf32>
    %325 = arith.maximumf %316, %324 : vector<16x64xf32>
    %326 = vector.extract_strided_slice %6 {offsets = [24, 0], sizes = [8, 16], strides = [1, 1]} : vector<32x16xf32> to vector<8x16xf32>
    %327 = vector.shape_cast %326 : vector<8x16xf32> to vector<8x16x1xf32>
    %328 = vector.extract_strided_slice %297 {offsets = [24, 0], sizes = [8, 64], strides = [1, 1]} : vector<32x64xf32> to vector<8x64xf32>
    %329 = vector.shape_cast %328 : vector<8x64xf32> to vector<8x1x64xf32>
    %330 = vector.broadcast %327 : vector<8x16x1xf32> to vector<8x16x64xf32>
    %331 = vector.broadcast %329 : vector<8x1x64xf32> to vector<8x16x64xf32>
    %332 = arith.mulf %330, %331 : vector<8x16x64xf32>
    %cst_145 = arith.constant dense<0xFF800000> : vector<16x64xf32>
    %333 = vector.multi_reduction <maximumf>, %332, %cst_145 [0] : vector<8x16x64xf32> to vector<16x64xf32>
    %334 = arith.maximumf %325, %333 : vector<16x64xf32>
    %c1_146 = arith.constant 1 : index
    %c0_147 = arith.constant 0 : index
    %c0_148 = arith.constant 0 : index
    %335 = vector.load %arg14[%c1_146, %c0_147, %c0_148] : memref<5x64x64xbf16, #tpu.memory_space<vmem>>, vector<1x64x64xbf16>
    %336 = vector.shape_cast %335 : vector<1x64x64xbf16> to vector<64x64xbf16>
    %337 = arith.truncf %219 : vector<16x64xf32> to vector<16x64xbf16>
    %cst_149 = arith.constant dense<0.000000e+00> : vector<16x64xf32>
    %338 = tpu.matmul %337, %336, %cst_149 {dimension_numbers = #tpu.dot_dimension_numbers<[1], [0], [0], [1], [0, 0, 1, 1], [], []>} : vector<16x64xbf16>, vector<64x64xbf16>, vector<16x64xf32> -> vector<16x64xf32>
    %c1_150 = arith.constant 1 : index
    %c0_151 = arith.constant 0 : index
    %c0_152 = arith.constant 0 : index
    %339 = vector.load %arg15[%c1_150, %c0_151, %c0_152] : memref<5x64x64xbf16, #tpu.memory_space<vmem>>, vector<1x64x64xbf16>
    %340 = vector.shape_cast %339 : vector<1x64x64xbf16> to vector<64x64xbf16>
    %341 = arith.truncf %334 : vector<16x64xf32> to vector<16x64xbf16>
    %cst_153 = arith.constant dense<0.000000e+00> : vector<16x64xf32>
    %342 = tpu.matmul %341, %340, %cst_153 {dimension_numbers = #tpu.dot_dimension_numbers<[1], [0], [0], [1], [0, 0, 1, 1], [], []>} : vector<16x64xbf16>, vector<64x64xbf16>, vector<16x64xf32> -> vector<16x64xf32>
    %343 = arith.addf %338, %342 : vector<16x64xf32>
    %c1_154 = arith.constant 1 : index
    %c0_155 = arith.constant 0 : index
    %c0_156 = arith.constant 0 : index
    %344 = vector.load %arg16[%c1_154, %c0_155, %c0_156] : memref<5x1x64xf32, #tpu.memory_space<vmem>>, vector<1x1x64xf32>
    %345 = vector.shape_cast %344 : vector<1x1x64xf32> to vector<1x64xf32>
    %346 = vector.broadcast %345 : vector<1x64xf32> to vector<16x64xf32>
    %347 = arith.addf %343, %346 : vector<16x64xf32>
    %c1_157 = arith.constant 1 : index
    %c0_158 = arith.constant 0 : index
    %c0_159 = arith.constant 0 : index
    %348 = vector.load %arg17[%c1_157, %c0_158, %c0_159] : memref<5x1x64xf32, #tpu.memory_space<vmem>>, vector<1x1x64xf32>
    %349 = vector.shape_cast %348 : vector<1x1x64xf32> to vector<1x64xf32>
    %c1_160 = arith.constant 1 : index
    %c0_161 = arith.constant 0 : index
    %c0_162 = arith.constant 0 : index
    %350 = vector.load %arg18[%c1_160, %c0_161, %c0_162] : memref<5x1x64xf32, #tpu.memory_space<vmem>>, vector<1x1x64xf32>
    %351 = vector.shape_cast %350 : vector<1x1x64xf32> to vector<1x64xf32>
    %cst_163 = arith.constant dense<0.000000e+00> : vector<64xf32>
    %352 = vector.multi_reduction <add>, %347, %cst_163 [0] : vector<16x64xf32> to vector<64xf32>
    %353 = vector.shape_cast %352 : vector<64xf32> to vector<1x64xf32>
    %cst_164 = arith.constant 1.600000e+01 : f32
    %354 = vector.broadcast %cst_164 : f32 to vector<1x64xf32>
    %355 = arith.divf %353, %354 : vector<1x64xf32>
    %356 = arith.mulf %347, %347 : vector<16x64xf32>
    %cst_165 = arith.constant dense<0.000000e+00> : vector<64xf32>
    %357 = vector.multi_reduction <add>, %356, %cst_165 [0] : vector<16x64xf32> to vector<64xf32>
    %358 = vector.shape_cast %357 : vector<64xf32> to vector<1x64xf32>
    %cst_166 = arith.constant 1.600000e+01 : f32
    %359 = vector.broadcast %cst_166 : f32 to vector<1x64xf32>
    %360 = arith.divf %358, %359 : vector<1x64xf32>
    %361 = arith.mulf %355, %355 : vector<1x64xf32>
    %362 = arith.subf %360, %361 : vector<1x64xf32>
    %363 = vector.broadcast %355 : vector<1x64xf32> to vector<16x64xf32>
    %364 = arith.subf %347, %363 : vector<16x64xf32>
    %cst_167 = arith.constant 9.99999974E-6 : f32
    %365 = vector.broadcast %cst_167 : f32 to vector<1x64xf32>
    %366 = arith.addf %362, %365 : vector<1x64xf32>
    %367 = math.rsqrt %366 : vector<1x64xf32>
    %368 = vector.broadcast %367 : vector<1x64xf32> to vector<16x64xf32>
    %369 = arith.mulf %364, %368 : vector<16x64xf32>
    %370 = vector.broadcast %349 : vector<1x64xf32> to vector<16x64xf32>
    %371 = arith.mulf %369, %370 : vector<16x64xf32>
    %372 = vector.broadcast %351 : vector<1x64xf32> to vector<16x64xf32>
    %373 = arith.addf %371, %372 : vector<16x64xf32>
    %cst_168 = arith.constant 0.000000e+00 : f32
    %374 = vector.broadcast %cst_168 : f32 to vector<16x64xf32>
    %375 = arith.maximumf %373, %374 : vector<16x64xf32>
    %c1_169 = arith.constant 1 : index
    %c0_170 = arith.constant 0 : index
    %c0_171 = arith.constant 0 : index
    %376 = vector.load %arg19[%c1_169, %c0_170, %c0_171] : memref<5x64x64xbf16, #tpu.memory_space<vmem>>, vector<1x64x64xbf16>
    %377 = vector.shape_cast %376 : vector<1x64x64xbf16> to vector<64x64xbf16>
    %378 = arith.truncf %375 : vector<16x64xf32> to vector<16x64xbf16>
    %cst_172 = arith.constant dense<0.000000e+00> : vector<16x64xf32>
    %379 = tpu.matmul %378, %377, %cst_172 {dimension_numbers = #tpu.dot_dimension_numbers<[1], [0], [0], [1], [0, 0, 1, 1], [], []>} : vector<16x64xbf16>, vector<64x64xbf16>, vector<16x64xf32> -> vector<16x64xf32>
    %c1_173 = arith.constant 1 : index
    %c0_174 = arith.constant 0 : index
    %c0_175 = arith.constant 0 : index
    %380 = vector.load %arg20[%c1_173, %c0_174, %c0_175] : memref<5x1x64xf32, #tpu.memory_space<vmem>>, vector<1x1x64xf32>
    %381 = vector.shape_cast %380 : vector<1x1x64xf32> to vector<1x64xf32>
    %382 = vector.broadcast %381 : vector<1x64xf32> to vector<16x64xf32>
    %383 = arith.addf %379, %382 : vector<16x64xf32>
    %c1_176 = arith.constant 1 : index
    %c0_177 = arith.constant 0 : index
    %c0_178 = arith.constant 0 : index
    %384 = vector.load %arg21[%c1_176, %c0_177, %c0_178] : memref<5x1x64xf32, #tpu.memory_space<vmem>>, vector<1x1x64xf32>
    %385 = vector.shape_cast %384 : vector<1x1x64xf32> to vector<1x64xf32>
    %c1_179 = arith.constant 1 : index
    %c0_180 = arith.constant 0 : index
    %c0_181 = arith.constant 0 : index
    %386 = vector.load %arg22[%c1_179, %c0_180, %c0_181] : memref<5x1x64xf32, #tpu.memory_space<vmem>>, vector<1x1x64xf32>
    %387 = vector.shape_cast %386 : vector<1x1x64xf32> to vector<1x64xf32>
    %cst_182 = arith.constant dense<0.000000e+00> : vector<64xf32>
    %388 = vector.multi_reduction <add>, %383, %cst_182 [0] : vector<16x64xf32> to vector<64xf32>
    %389 = vector.shape_cast %388 : vector<64xf32> to vector<1x64xf32>
    %cst_183 = arith.constant 1.600000e+01 : f32
    %390 = vector.broadcast %cst_183 : f32 to vector<1x64xf32>
    %391 = arith.divf %389, %390 : vector<1x64xf32>
    %392 = arith.mulf %383, %383 : vector<16x64xf32>
    %cst_184 = arith.constant dense<0.000000e+00> : vector<64xf32>
    %393 = vector.multi_reduction <add>, %392, %cst_184 [0] : vector<16x64xf32> to vector<64xf32>
    %394 = vector.shape_cast %393 : vector<64xf32> to vector<1x64xf32>
    %cst_185 = arith.constant 1.600000e+01 : f32
    %395 = vector.broadcast %cst_185 : f32 to vector<1x64xf32>
    %396 = arith.divf %394, %395 : vector<1x64xf32>
    %397 = arith.mulf %391, %391 : vector<1x64xf32>
    %398 = arith.subf %396, %397 : vector<1x64xf32>
    %399 = vector.broadcast %391 : vector<1x64xf32> to vector<16x64xf32>
    %400 = arith.subf %383, %399 : vector<16x64xf32>
    %cst_186 = arith.constant 9.99999974E-6 : f32
    %401 = vector.broadcast %cst_186 : f32 to vector<1x64xf32>
    %402 = arith.addf %398, %401 : vector<1x64xf32>
    %403 = math.rsqrt %402 : vector<1x64xf32>
    %404 = vector.broadcast %403 : vector<1x64xf32> to vector<16x64xf32>
    %405 = arith.mulf %400, %404 : vector<16x64xf32>
    %406 = vector.broadcast %385 : vector<1x64xf32> to vector<16x64xf32>
    %407 = arith.mulf %405, %406 : vector<16x64xf32>
    %408 = vector.broadcast %387 : vector<1x64xf32> to vector<16x64xf32>
    %409 = arith.addf %407, %408 : vector<16x64xf32>
    %cst_187 = arith.constant 0.000000e+00 : f32
    %410 = vector.broadcast %cst_187 : f32 to vector<16x64xf32>
    %411 = arith.maximumf %409, %410 : vector<16x64xf32>
    %412 = arith.addf %219, %411 : vector<16x64xf32>
    %c2 = arith.constant 2 : index
    %c0_188 = arith.constant 0 : index
    %c0_189 = arith.constant 0 : index
    %413 = vector.load %arg5[%c2, %c0_188, %c0_189] : memref<5x64x64xbf16, #tpu.memory_space<vmem>>, vector<1x64x64xbf16>
    %414 = vector.shape_cast %413 : vector<1x64x64xbf16> to vector<64x64xbf16>
    %415 = arith.truncf %412 : vector<16x64xf32> to vector<16x64xbf16>
    %cst_190 = arith.constant dense<0.000000e+00> : vector<16x64xf32>
    %416 = tpu.matmul %415, %414, %cst_190 {dimension_numbers = #tpu.dot_dimension_numbers<[1], [0], [0], [1], [0, 0, 1, 1], [], []>} : vector<16x64xbf16>, vector<64x64xbf16>, vector<16x64xf32> -> vector<16x64xf32>
    %c2_191 = arith.constant 2 : index
    %c0_192 = arith.constant 0 : index
    %c0_193 = arith.constant 0 : index
    %417 = vector.load %arg6[%c2_191, %c0_192, %c0_193] : memref<5x64x64xbf16, #tpu.memory_space<vmem>>, vector<1x64x64xbf16>
    %418 = vector.shape_cast %417 : vector<1x64x64xbf16> to vector<64x64xbf16>
    %419 = arith.truncf %412 : vector<16x64xf32> to vector<16x64xbf16>
    %cst_194 = arith.constant dense<0.000000e+00> : vector<16x64xf32>
    %420 = tpu.matmul %419, %418, %cst_194 {dimension_numbers = #tpu.dot_dimension_numbers<[1], [0], [0], [1], [0, 0, 1, 1], [], []>} : vector<16x64xbf16>, vector<64x64xbf16>, vector<16x64xf32> -> vector<16x64xf32>
    %421 = tpu.concatenate %416, %420 in 0 : vector<16x64xf32>, vector<16x64xf32> -> vector<32x64xf32>
    %cst_195 = arith.constant dense<0.000000e+00> : vector<32x64xf32>
    %422 = tpu.matmul %20, %421, %cst_195 {dimension_numbers = #tpu.dot_dimension_numbers<[1], [0], [0], [1], [0, 0, 1, 1], [], []>} : vector<32x32xf32>, vector<32x64xf32>, vector<32x64xf32> -> vector<32x64xf32>
    %c2_196 = arith.constant 2 : index
    %c0_197 = arith.constant 0 : index
    %c0_198 = arith.constant 0 : index
    %423 = vector.load %arg7[%c2_196, %c0_197, %c0_198] : memref<5x1x64xf32, #tpu.memory_space<vmem>>, vector<1x1x64xf32>
    %424 = vector.shape_cast %423 : vector<1x1x64xf32> to vector<1x64xf32>
    %425 = vector.broadcast %424 : vector<1x64xf32> to vector<32x64xf32>
    %426 = arith.addf %422, %425 : vector<32x64xf32>
    %c2_199 = arith.constant 2 : index
    %c0_200 = arith.constant 0 : index
    %c0_201 = arith.constant 0 : index
    %427 = vector.load %arg8[%c2_199, %c0_200, %c0_201] : memref<5x1x64xf32, #tpu.memory_space<vmem>>, vector<1x1x64xf32>
    %428 = vector.shape_cast %427 : vector<1x1x64xf32> to vector<1x64xf32>
    %c2_202 = arith.constant 2 : index
    %c0_203 = arith.constant 0 : index
    %c0_204 = arith.constant 0 : index
    %429 = vector.load %arg9[%c2_202, %c0_203, %c0_204] : memref<5x1x64xf32, #tpu.memory_space<vmem>>, vector<1x1x64xf32>
    %430 = vector.shape_cast %429 : vector<1x1x64xf32> to vector<1x64xf32>
    %cst_205 = arith.constant dense<0.000000e+00> : vector<64xf32>
    %431 = vector.multi_reduction <add>, %426, %cst_205 [0] : vector<32x64xf32> to vector<64xf32>
    %432 = vector.shape_cast %431 : vector<64xf32> to vector<1x64xf32>
    %cst_206 = arith.constant 3.200000e+01 : f32
    %433 = vector.broadcast %cst_206 : f32 to vector<1x64xf32>
    %434 = arith.divf %432, %433 : vector<1x64xf32>
    %435 = arith.mulf %426, %426 : vector<32x64xf32>
    %cst_207 = arith.constant dense<0.000000e+00> : vector<64xf32>
    %436 = vector.multi_reduction <add>, %435, %cst_207 [0] : vector<32x64xf32> to vector<64xf32>
    %437 = vector.shape_cast %436 : vector<64xf32> to vector<1x64xf32>
    %cst_208 = arith.constant 3.200000e+01 : f32
    %438 = vector.broadcast %cst_208 : f32 to vector<1x64xf32>
    %439 = arith.divf %437, %438 : vector<1x64xf32>
    %440 = arith.mulf %434, %434 : vector<1x64xf32>
    %441 = arith.subf %439, %440 : vector<1x64xf32>
    %442 = vector.broadcast %434 : vector<1x64xf32> to vector<32x64xf32>
    %443 = arith.subf %426, %442 : vector<32x64xf32>
    %cst_209 = arith.constant 9.99999974E-6 : f32
    %444 = vector.broadcast %cst_209 : f32 to vector<1x64xf32>
    %445 = arith.addf %441, %444 : vector<1x64xf32>
    %446 = math.rsqrt %445 : vector<1x64xf32>
    %447 = vector.broadcast %446 : vector<1x64xf32> to vector<32x64xf32>
    %448 = arith.mulf %443, %447 : vector<32x64xf32>
    %449 = vector.broadcast %428 : vector<1x64xf32> to vector<32x64xf32>
    %450 = arith.mulf %448, %449 : vector<32x64xf32>
    %451 = vector.broadcast %430 : vector<1x64xf32> to vector<32x64xf32>
    %452 = arith.addf %450, %451 : vector<32x64xf32>
    %cst_210 = arith.constant 0.000000e+00 : f32
    %453 = vector.broadcast %cst_210 : f32 to vector<32x64xf32>
    %454 = arith.maximumf %452, %453 : vector<32x64xf32>
    %c2_211 = arith.constant 2 : index
    %c0_212 = arith.constant 0 : index
    %c0_213 = arith.constant 0 : index
    %455 = vector.load %arg10[%c2_211, %c0_212, %c0_213] : memref<5x64x64xbf16, #tpu.memory_space<vmem>>, vector<1x64x64xbf16>
    %456 = vector.shape_cast %455 : vector<1x64x64xbf16> to vector<64x64xbf16>
    %457 = arith.truncf %454 : vector<32x64xf32> to vector<32x64xbf16>
    %cst_214 = arith.constant dense<0.000000e+00> : vector<32x64xf32>
    %458 = tpu.matmul %457, %456, %cst_214 {dimension_numbers = #tpu.dot_dimension_numbers<[1], [0], [0], [1], [0, 0, 1, 1], [], []>} : vector<32x64xbf16>, vector<64x64xbf16>, vector<32x64xf32> -> vector<32x64xf32>
    %c2_215 = arith.constant 2 : index
    %c0_216 = arith.constant 0 : index
    %c0_217 = arith.constant 0 : index
    %459 = vector.load %arg11[%c2_215, %c0_216, %c0_217] : memref<5x1x64xf32, #tpu.memory_space<vmem>>, vector<1x1x64xf32>
    %460 = vector.shape_cast %459 : vector<1x1x64xf32> to vector<1x64xf32>
    %461 = vector.broadcast %460 : vector<1x64xf32> to vector<32x64xf32>
    %462 = arith.addf %458, %461 : vector<32x64xf32>
    %c2_218 = arith.constant 2 : index
    %c0_219 = arith.constant 0 : index
    %c0_220 = arith.constant 0 : index
    %463 = vector.load %arg12[%c2_218, %c0_219, %c0_220] : memref<5x1x64xf32, #tpu.memory_space<vmem>>, vector<1x1x64xf32>
    %464 = vector.shape_cast %463 : vector<1x1x64xf32> to vector<1x64xf32>
    %c2_221 = arith.constant 2 : index
    %c0_222 = arith.constant 0 : index
    %c0_223 = arith.constant 0 : index
    %465 = vector.load %arg13[%c2_221, %c0_222, %c0_223] : memref<5x1x64xf32, #tpu.memory_space<vmem>>, vector<1x1x64xf32>
    %466 = vector.shape_cast %465 : vector<1x1x64xf32> to vector<1x64xf32>
    %cst_224 = arith.constant dense<0.000000e+00> : vector<64xf32>
    %467 = vector.multi_reduction <add>, %462, %cst_224 [0] : vector<32x64xf32> to vector<64xf32>
    %468 = vector.shape_cast %467 : vector<64xf32> to vector<1x64xf32>
    %cst_225 = arith.constant 3.200000e+01 : f32
    %469 = vector.broadcast %cst_225 : f32 to vector<1x64xf32>
    %470 = arith.divf %468, %469 : vector<1x64xf32>
    %471 = arith.mulf %462, %462 : vector<32x64xf32>
    %cst_226 = arith.constant dense<0.000000e+00> : vector<64xf32>
    %472 = vector.multi_reduction <add>, %471, %cst_226 [0] : vector<32x64xf32> to vector<64xf32>
    %473 = vector.shape_cast %472 : vector<64xf32> to vector<1x64xf32>
    %cst_227 = arith.constant 3.200000e+01 : f32
    %474 = vector.broadcast %cst_227 : f32 to vector<1x64xf32>
    %475 = arith.divf %473, %474 : vector<1x64xf32>
    %476 = arith.mulf %470, %470 : vector<1x64xf32>
    %477 = arith.subf %475, %476 : vector<1x64xf32>
    %478 = vector.broadcast %470 : vector<1x64xf32> to vector<32x64xf32>
    %479 = arith.subf %462, %478 : vector<32x64xf32>
    %cst_228 = arith.constant 9.99999974E-6 : f32
    %480 = vector.broadcast %cst_228 : f32 to vector<1x64xf32>
    %481 = arith.addf %477, %480 : vector<1x64xf32>
    %482 = math.rsqrt %481 : vector<1x64xf32>
    %483 = vector.broadcast %482 : vector<1x64xf32> to vector<32x64xf32>
    %484 = arith.mulf %479, %483 : vector<32x64xf32>
    %485 = vector.broadcast %464 : vector<1x64xf32> to vector<32x64xf32>
    %486 = arith.mulf %484, %485 : vector<32x64xf32>
    %487 = vector.broadcast %466 : vector<1x64xf32> to vector<32x64xf32>
    %488 = arith.addf %486, %487 : vector<32x64xf32>
    %cst_229 = arith.constant 0.000000e+00 : f32
    %489 = vector.broadcast %cst_229 : f32 to vector<32x64xf32>
    %490 = arith.maximumf %488, %489 : vector<32x64xf32>
    %cst_230 = arith.constant 0.000000e+00 : f32
    %491 = vector.broadcast %cst_230 : f32 to vector<16x64xf32>
    %492 = vector.extract_strided_slice %6 {offsets = [0, 0], sizes = [8, 16], strides = [1, 1]} : vector<32x16xf32> to vector<8x16xf32>
    %493 = vector.shape_cast %492 : vector<8x16xf32> to vector<8x16x1xf32>
    %494 = vector.extract_strided_slice %490 {offsets = [0, 0], sizes = [8, 64], strides = [1, 1]} : vector<32x64xf32> to vector<8x64xf32>
    %495 = vector.shape_cast %494 : vector<8x64xf32> to vector<8x1x64xf32>
    %496 = vector.broadcast %493 : vector<8x16x1xf32> to vector<8x16x64xf32>
    %497 = vector.broadcast %495 : vector<8x1x64xf32> to vector<8x16x64xf32>
    %498 = arith.mulf %496, %497 : vector<8x16x64xf32>
    %cst_231 = arith.constant dense<0xFF800000> : vector<16x64xf32>
    %499 = vector.multi_reduction <maximumf>, %498, %cst_231 [0] : vector<8x16x64xf32> to vector<16x64xf32>
    %500 = arith.maximumf %491, %499 : vector<16x64xf32>
    %501 = vector.extract_strided_slice %6 {offsets = [8, 0], sizes = [8, 16], strides = [1, 1]} : vector<32x16xf32> to vector<8x16xf32>
    %502 = vector.shape_cast %501 : vector<8x16xf32> to vector<8x16x1xf32>
    %503 = vector.extract_strided_slice %490 {offsets = [8, 0], sizes = [8, 64], strides = [1, 1]} : vector<32x64xf32> to vector<8x64xf32>
    %504 = vector.shape_cast %503 : vector<8x64xf32> to vector<8x1x64xf32>
    %505 = vector.broadcast %502 : vector<8x16x1xf32> to vector<8x16x64xf32>
    %506 = vector.broadcast %504 : vector<8x1x64xf32> to vector<8x16x64xf32>
    %507 = arith.mulf %505, %506 : vector<8x16x64xf32>
    %cst_232 = arith.constant dense<0xFF800000> : vector<16x64xf32>
    %508 = vector.multi_reduction <maximumf>, %507, %cst_232 [0] : vector<8x16x64xf32> to vector<16x64xf32>
    %509 = arith.maximumf %500, %508 : vector<16x64xf32>
    %510 = vector.extract_strided_slice %6 {offsets = [16, 0], sizes = [8, 16], strides = [1, 1]} : vector<32x16xf32> to vector<8x16xf32>
    %511 = vector.shape_cast %510 : vector<8x16xf32> to vector<8x16x1xf32>
    %512 = vector.extract_strided_slice %490 {offsets = [16, 0], sizes = [8, 64], strides = [1, 1]} : vector<32x64xf32> to vector<8x64xf32>
    %513 = vector.shape_cast %512 : vector<8x64xf32> to vector<8x1x64xf32>
    %514 = vector.broadcast %511 : vector<8x16x1xf32> to vector<8x16x64xf32>
    %515 = vector.broadcast %513 : vector<8x1x64xf32> to vector<8x16x64xf32>
    %516 = arith.mulf %514, %515 : vector<8x16x64xf32>
    %cst_233 = arith.constant dense<0xFF800000> : vector<16x64xf32>
    %517 = vector.multi_reduction <maximumf>, %516, %cst_233 [0] : vector<8x16x64xf32> to vector<16x64xf32>
    %518 = arith.maximumf %509, %517 : vector<16x64xf32>
    %519 = vector.extract_strided_slice %6 {offsets = [24, 0], sizes = [8, 16], strides = [1, 1]} : vector<32x16xf32> to vector<8x16xf32>
    %520 = vector.shape_cast %519 : vector<8x16xf32> to vector<8x16x1xf32>
    %521 = vector.extract_strided_slice %490 {offsets = [24, 0], sizes = [8, 64], strides = [1, 1]} : vector<32x64xf32> to vector<8x64xf32>
    %522 = vector.shape_cast %521 : vector<8x64xf32> to vector<8x1x64xf32>
    %523 = vector.broadcast %520 : vector<8x16x1xf32> to vector<8x16x64xf32>
    %524 = vector.broadcast %522 : vector<8x1x64xf32> to vector<8x16x64xf32>
    %525 = arith.mulf %523, %524 : vector<8x16x64xf32>
    %cst_234 = arith.constant dense<0xFF800000> : vector<16x64xf32>
    %526 = vector.multi_reduction <maximumf>, %525, %cst_234 [0] : vector<8x16x64xf32> to vector<16x64xf32>
    %527 = arith.maximumf %518, %526 : vector<16x64xf32>
    %c2_235 = arith.constant 2 : index
    %c0_236 = arith.constant 0 : index
    %c0_237 = arith.constant 0 : index
    %528 = vector.load %arg14[%c2_235, %c0_236, %c0_237] : memref<5x64x64xbf16, #tpu.memory_space<vmem>>, vector<1x64x64xbf16>
    %529 = vector.shape_cast %528 : vector<1x64x64xbf16> to vector<64x64xbf16>
    %530 = arith.truncf %412 : vector<16x64xf32> to vector<16x64xbf16>
    %cst_238 = arith.constant dense<0.000000e+00> : vector<16x64xf32>
    %531 = tpu.matmul %530, %529, %cst_238 {dimension_numbers = #tpu.dot_dimension_numbers<[1], [0], [0], [1], [0, 0, 1, 1], [], []>} : vector<16x64xbf16>, vector<64x64xbf16>, vector<16x64xf32> -> vector<16x64xf32>
    %c2_239 = arith.constant 2 : index
    %c0_240 = arith.constant 0 : index
    %c0_241 = arith.constant 0 : index
    %532 = vector.load %arg15[%c2_239, %c0_240, %c0_241] : memref<5x64x64xbf16, #tpu.memory_space<vmem>>, vector<1x64x64xbf16>
    %533 = vector.shape_cast %532 : vector<1x64x64xbf16> to vector<64x64xbf16>
    %534 = arith.truncf %527 : vector<16x64xf32> to vector<16x64xbf16>
    %cst_242 = arith.constant dense<0.000000e+00> : vector<16x64xf32>
    %535 = tpu.matmul %534, %533, %cst_242 {dimension_numbers = #tpu.dot_dimension_numbers<[1], [0], [0], [1], [0, 0, 1, 1], [], []>} : vector<16x64xbf16>, vector<64x64xbf16>, vector<16x64xf32> -> vector<16x64xf32>
    %536 = arith.addf %531, %535 : vector<16x64xf32>
    %c2_243 = arith.constant 2 : index
    %c0_244 = arith.constant 0 : index
    %c0_245 = arith.constant 0 : index
    %537 = vector.load %arg16[%c2_243, %c0_244, %c0_245] : memref<5x1x64xf32, #tpu.memory_space<vmem>>, vector<1x1x64xf32>
    %538 = vector.shape_cast %537 : vector<1x1x64xf32> to vector<1x64xf32>
    %539 = vector.broadcast %538 : vector<1x64xf32> to vector<16x64xf32>
    %540 = arith.addf %536, %539 : vector<16x64xf32>
    %c2_246 = arith.constant 2 : index
    %c0_247 = arith.constant 0 : index
    %c0_248 = arith.constant 0 : index
    %541 = vector.load %arg17[%c2_246, %c0_247, %c0_248] : memref<5x1x64xf32, #tpu.memory_space<vmem>>, vector<1x1x64xf32>
    %542 = vector.shape_cast %541 : vector<1x1x64xf32> to vector<1x64xf32>
    %c2_249 = arith.constant 2 : index
    %c0_250 = arith.constant 0 : index
    %c0_251 = arith.constant 0 : index
    %543 = vector.load %arg18[%c2_249, %c0_250, %c0_251] : memref<5x1x64xf32, #tpu.memory_space<vmem>>, vector<1x1x64xf32>
    %544 = vector.shape_cast %543 : vector<1x1x64xf32> to vector<1x64xf32>
    %cst_252 = arith.constant dense<0.000000e+00> : vector<64xf32>
    %545 = vector.multi_reduction <add>, %540, %cst_252 [0] : vector<16x64xf32> to vector<64xf32>
    %546 = vector.shape_cast %545 : vector<64xf32> to vector<1x64xf32>
    %cst_253 = arith.constant 1.600000e+01 : f32
    %547 = vector.broadcast %cst_253 : f32 to vector<1x64xf32>
    %548 = arith.divf %546, %547 : vector<1x64xf32>
    %549 = arith.mulf %540, %540 : vector<16x64xf32>
    %cst_254 = arith.constant dense<0.000000e+00> : vector<64xf32>
    %550 = vector.multi_reduction <add>, %549, %cst_254 [0] : vector<16x64xf32> to vector<64xf32>
    %551 = vector.shape_cast %550 : vector<64xf32> to vector<1x64xf32>
    %cst_255 = arith.constant 1.600000e+01 : f32
    %552 = vector.broadcast %cst_255 : f32 to vector<1x64xf32>
    %553 = arith.divf %551, %552 : vector<1x64xf32>
    %554 = arith.mulf %548, %548 : vector<1x64xf32>
    %555 = arith.subf %553, %554 : vector<1x64xf32>
    %556 = vector.broadcast %548 : vector<1x64xf32> to vector<16x64xf32>
    %557 = arith.subf %540, %556 : vector<16x64xf32>
    %cst_256 = arith.constant 9.99999974E-6 : f32
    %558 = vector.broadcast %cst_256 : f32 to vector<1x64xf32>
    %559 = arith.addf %555, %558 : vector<1x64xf32>
    %560 = math.rsqrt %559 : vector<1x64xf32>
    %561 = vector.broadcast %560 : vector<1x64xf32> to vector<16x64xf32>
    %562 = arith.mulf %557, %561 : vector<16x64xf32>
    %563 = vector.broadcast %542 : vector<1x64xf32> to vector<16x64xf32>
    %564 = arith.mulf %562, %563 : vector<16x64xf32>
    %565 = vector.broadcast %544 : vector<1x64xf32> to vector<16x64xf32>
    %566 = arith.addf %564, %565 : vector<16x64xf32>
    %cst_257 = arith.constant 0.000000e+00 : f32
    %567 = vector.broadcast %cst_257 : f32 to vector<16x64xf32>
    %568 = arith.maximumf %566, %567 : vector<16x64xf32>
    %c2_258 = arith.constant 2 : index
    %c0_259 = arith.constant 0 : index
    %c0_260 = arith.constant 0 : index
    %569 = vector.load %arg19[%c2_258, %c0_259, %c0_260] : memref<5x64x64xbf16, #tpu.memory_space<vmem>>, vector<1x64x64xbf16>
    %570 = vector.shape_cast %569 : vector<1x64x64xbf16> to vector<64x64xbf16>
    %571 = arith.truncf %568 : vector<16x64xf32> to vector<16x64xbf16>
    %cst_261 = arith.constant dense<0.000000e+00> : vector<16x64xf32>
    %572 = tpu.matmul %571, %570, %cst_261 {dimension_numbers = #tpu.dot_dimension_numbers<[1], [0], [0], [1], [0, 0, 1, 1], [], []>} : vector<16x64xbf16>, vector<64x64xbf16>, vector<16x64xf32> -> vector<16x64xf32>
    %c2_262 = arith.constant 2 : index
    %c0_263 = arith.constant 0 : index
    %c0_264 = arith.constant 0 : index
    %573 = vector.load %arg20[%c2_262, %c0_263, %c0_264] : memref<5x1x64xf32, #tpu.memory_space<vmem>>, vector<1x1x64xf32>
    %574 = vector.shape_cast %573 : vector<1x1x64xf32> to vector<1x64xf32>
    %575 = vector.broadcast %574 : vector<1x64xf32> to vector<16x64xf32>
    %576 = arith.addf %572, %575 : vector<16x64xf32>
    %c2_265 = arith.constant 2 : index
    %c0_266 = arith.constant 0 : index
    %c0_267 = arith.constant 0 : index
    %577 = vector.load %arg21[%c2_265, %c0_266, %c0_267] : memref<5x1x64xf32, #tpu.memory_space<vmem>>, vector<1x1x64xf32>
    %578 = vector.shape_cast %577 : vector<1x1x64xf32> to vector<1x64xf32>
    %c2_268 = arith.constant 2 : index
    %c0_269 = arith.constant 0 : index
    %c0_270 = arith.constant 0 : index
    %579 = vector.load %arg22[%c2_268, %c0_269, %c0_270] : memref<5x1x64xf32, #tpu.memory_space<vmem>>, vector<1x1x64xf32>
    %580 = vector.shape_cast %579 : vector<1x1x64xf32> to vector<1x64xf32>
    %cst_271 = arith.constant dense<0.000000e+00> : vector<64xf32>
    %581 = vector.multi_reduction <add>, %576, %cst_271 [0] : vector<16x64xf32> to vector<64xf32>
    %582 = vector.shape_cast %581 : vector<64xf32> to vector<1x64xf32>
    %cst_272 = arith.constant 1.600000e+01 : f32
    %583 = vector.broadcast %cst_272 : f32 to vector<1x64xf32>
    %584 = arith.divf %582, %583 : vector<1x64xf32>
    %585 = arith.mulf %576, %576 : vector<16x64xf32>
    %cst_273 = arith.constant dense<0.000000e+00> : vector<64xf32>
    %586 = vector.multi_reduction <add>, %585, %cst_273 [0] : vector<16x64xf32> to vector<64xf32>
    %587 = vector.shape_cast %586 : vector<64xf32> to vector<1x64xf32>
    %cst_274 = arith.constant 1.600000e+01 : f32
    %588 = vector.broadcast %cst_274 : f32 to vector<1x64xf32>
    %589 = arith.divf %587, %588 : vector<1x64xf32>
    %590 = arith.mulf %584, %584 : vector<1x64xf32>
    %591 = arith.subf %589, %590 : vector<1x64xf32>
    %592 = vector.broadcast %584 : vector<1x64xf32> to vector<16x64xf32>
    %593 = arith.subf %576, %592 : vector<16x64xf32>
    %cst_275 = arith.constant 9.99999974E-6 : f32
    %594 = vector.broadcast %cst_275 : f32 to vector<1x64xf32>
    %595 = arith.addf %591, %594 : vector<1x64xf32>
    %596 = math.rsqrt %595 : vector<1x64xf32>
    %597 = vector.broadcast %596 : vector<1x64xf32> to vector<16x64xf32>
    %598 = arith.mulf %593, %597 : vector<16x64xf32>
    %599 = vector.broadcast %578 : vector<1x64xf32> to vector<16x64xf32>
    %600 = arith.mulf %598, %599 : vector<16x64xf32>
    %601 = vector.broadcast %580 : vector<1x64xf32> to vector<16x64xf32>
    %602 = arith.addf %600, %601 : vector<16x64xf32>
    %cst_276 = arith.constant 0.000000e+00 : f32
    %603 = vector.broadcast %cst_276 : f32 to vector<16x64xf32>
    %604 = arith.maximumf %602, %603 : vector<16x64xf32>
    %605 = arith.addf %412, %604 : vector<16x64xf32>
    %c3 = arith.constant 3 : index
    %c0_277 = arith.constant 0 : index
    %c0_278 = arith.constant 0 : index
    %606 = vector.load %arg5[%c3, %c0_277, %c0_278] : memref<5x64x64xbf16, #tpu.memory_space<vmem>>, vector<1x64x64xbf16>
    %607 = vector.shape_cast %606 : vector<1x64x64xbf16> to vector<64x64xbf16>
    %608 = arith.truncf %605 : vector<16x64xf32> to vector<16x64xbf16>
    %cst_279 = arith.constant dense<0.000000e+00> : vector<16x64xf32>
    %609 = tpu.matmul %608, %607, %cst_279 {dimension_numbers = #tpu.dot_dimension_numbers<[1], [0], [0], [1], [0, 0, 1, 1], [], []>} : vector<16x64xbf16>, vector<64x64xbf16>, vector<16x64xf32> -> vector<16x64xf32>
    %c3_280 = arith.constant 3 : index
    %c0_281 = arith.constant 0 : index
    %c0_282 = arith.constant 0 : index
    %610 = vector.load %arg6[%c3_280, %c0_281, %c0_282] : memref<5x64x64xbf16, #tpu.memory_space<vmem>>, vector<1x64x64xbf16>
    %611 = vector.shape_cast %610 : vector<1x64x64xbf16> to vector<64x64xbf16>
    %612 = arith.truncf %605 : vector<16x64xf32> to vector<16x64xbf16>
    %cst_283 = arith.constant dense<0.000000e+00> : vector<16x64xf32>
    %613 = tpu.matmul %612, %611, %cst_283 {dimension_numbers = #tpu.dot_dimension_numbers<[1], [0], [0], [1], [0, 0, 1, 1], [], []>} : vector<16x64xbf16>, vector<64x64xbf16>, vector<16x64xf32> -> vector<16x64xf32>
    %614 = tpu.concatenate %609, %613 in 0 : vector<16x64xf32>, vector<16x64xf32> -> vector<32x64xf32>
    %cst_284 = arith.constant dense<0.000000e+00> : vector<32x64xf32>
    %615 = tpu.matmul %20, %614, %cst_284 {dimension_numbers = #tpu.dot_dimension_numbers<[1], [0], [0], [1], [0, 0, 1, 1], [], []>} : vector<32x32xf32>, vector<32x64xf32>, vector<32x64xf32> -> vector<32x64xf32>
    %c3_285 = arith.constant 3 : index
    %c0_286 = arith.constant 0 : index
    %c0_287 = arith.constant 0 : index
    %616 = vector.load %arg7[%c3_285, %c0_286, %c0_287] : memref<5x1x64xf32, #tpu.memory_space<vmem>>, vector<1x1x64xf32>
    %617 = vector.shape_cast %616 : vector<1x1x64xf32> to vector<1x64xf32>
    %618 = vector.broadcast %617 : vector<1x64xf32> to vector<32x64xf32>
    %619 = arith.addf %615, %618 : vector<32x64xf32>
    %c3_288 = arith.constant 3 : index
    %c0_289 = arith.constant 0 : index
    %c0_290 = arith.constant 0 : index
    %620 = vector.load %arg8[%c3_288, %c0_289, %c0_290] : memref<5x1x64xf32, #tpu.memory_space<vmem>>, vector<1x1x64xf32>
    %621 = vector.shape_cast %620 : vector<1x1x64xf32> to vector<1x64xf32>
    %c3_291 = arith.constant 3 : index
    %c0_292 = arith.constant 0 : index
    %c0_293 = arith.constant 0 : index
    %622 = vector.load %arg9[%c3_291, %c0_292, %c0_293] : memref<5x1x64xf32, #tpu.memory_space<vmem>>, vector<1x1x64xf32>
    %623 = vector.shape_cast %622 : vector<1x1x64xf32> to vector<1x64xf32>
    %cst_294 = arith.constant dense<0.000000e+00> : vector<64xf32>
    %624 = vector.multi_reduction <add>, %619, %cst_294 [0] : vector<32x64xf32> to vector<64xf32>
    %625 = vector.shape_cast %624 : vector<64xf32> to vector<1x64xf32>
    %cst_295 = arith.constant 3.200000e+01 : f32
    %626 = vector.broadcast %cst_295 : f32 to vector<1x64xf32>
    %627 = arith.divf %625, %626 : vector<1x64xf32>
    %628 = arith.mulf %619, %619 : vector<32x64xf32>
    %cst_296 = arith.constant dense<0.000000e+00> : vector<64xf32>
    %629 = vector.multi_reduction <add>, %628, %cst_296 [0] : vector<32x64xf32> to vector<64xf32>
    %630 = vector.shape_cast %629 : vector<64xf32> to vector<1x64xf32>
    %cst_297 = arith.constant 3.200000e+01 : f32
    %631 = vector.broadcast %cst_297 : f32 to vector<1x64xf32>
    %632 = arith.divf %630, %631 : vector<1x64xf32>
    %633 = arith.mulf %627, %627 : vector<1x64xf32>
    %634 = arith.subf %632, %633 : vector<1x64xf32>
    %635 = vector.broadcast %627 : vector<1x64xf32> to vector<32x64xf32>
    %636 = arith.subf %619, %635 : vector<32x64xf32>
    %cst_298 = arith.constant 9.99999974E-6 : f32
    %637 = vector.broadcast %cst_298 : f32 to vector<1x64xf32>
    %638 = arith.addf %634, %637 : vector<1x64xf32>
    %639 = math.rsqrt %638 : vector<1x64xf32>
    %640 = vector.broadcast %639 : vector<1x64xf32> to vector<32x64xf32>
    %641 = arith.mulf %636, %640 : vector<32x64xf32>
    %642 = vector.broadcast %621 : vector<1x64xf32> to vector<32x64xf32>
    %643 = arith.mulf %641, %642 : vector<32x64xf32>
    %644 = vector.broadcast %623 : vector<1x64xf32> to vector<32x64xf32>
    %645 = arith.addf %643, %644 : vector<32x64xf32>
    %cst_299 = arith.constant 0.000000e+00 : f32
    %646 = vector.broadcast %cst_299 : f32 to vector<32x64xf32>
    %647 = arith.maximumf %645, %646 : vector<32x64xf32>
    %c3_300 = arith.constant 3 : index
    %c0_301 = arith.constant 0 : index
    %c0_302 = arith.constant 0 : index
    %648 = vector.load %arg10[%c3_300, %c0_301, %c0_302] : memref<5x64x64xbf16, #tpu.memory_space<vmem>>, vector<1x64x64xbf16>
    %649 = vector.shape_cast %648 : vector<1x64x64xbf16> to vector<64x64xbf16>
    %650 = arith.truncf %647 : vector<32x64xf32> to vector<32x64xbf16>
    %cst_303 = arith.constant dense<0.000000e+00> : vector<32x64xf32>
    %651 = tpu.matmul %650, %649, %cst_303 {dimension_numbers = #tpu.dot_dimension_numbers<[1], [0], [0], [1], [0, 0, 1, 1], [], []>} : vector<32x64xbf16>, vector<64x64xbf16>, vector<32x64xf32> -> vector<32x64xf32>
    %c3_304 = arith.constant 3 : index
    %c0_305 = arith.constant 0 : index
    %c0_306 = arith.constant 0 : index
    %652 = vector.load %arg11[%c3_304, %c0_305, %c0_306] : memref<5x1x64xf32, #tpu.memory_space<vmem>>, vector<1x1x64xf32>
    %653 = vector.shape_cast %652 : vector<1x1x64xf32> to vector<1x64xf32>
    %654 = vector.broadcast %653 : vector<1x64xf32> to vector<32x64xf32>
    %655 = arith.addf %651, %654 : vector<32x64xf32>
    %c3_307 = arith.constant 3 : index
    %c0_308 = arith.constant 0 : index
    %c0_309 = arith.constant 0 : index
    %656 = vector.load %arg12[%c3_307, %c0_308, %c0_309] : memref<5x1x64xf32, #tpu.memory_space<vmem>>, vector<1x1x64xf32>
    %657 = vector.shape_cast %656 : vector<1x1x64xf32> to vector<1x64xf32>
    %c3_310 = arith.constant 3 : index
    %c0_311 = arith.constant 0 : index
    %c0_312 = arith.constant 0 : index
    %658 = vector.load %arg13[%c3_310, %c0_311, %c0_312] : memref<5x1x64xf32, #tpu.memory_space<vmem>>, vector<1x1x64xf32>
    %659 = vector.shape_cast %658 : vector<1x1x64xf32> to vector<1x64xf32>
    %cst_313 = arith.constant dense<0.000000e+00> : vector<64xf32>
    %660 = vector.multi_reduction <add>, %655, %cst_313 [0] : vector<32x64xf32> to vector<64xf32>
    %661 = vector.shape_cast %660 : vector<64xf32> to vector<1x64xf32>
    %cst_314 = arith.constant 3.200000e+01 : f32
    %662 = vector.broadcast %cst_314 : f32 to vector<1x64xf32>
    %663 = arith.divf %661, %662 : vector<1x64xf32>
    %664 = arith.mulf %655, %655 : vector<32x64xf32>
    %cst_315 = arith.constant dense<0.000000e+00> : vector<64xf32>
    %665 = vector.multi_reduction <add>, %664, %cst_315 [0] : vector<32x64xf32> to vector<64xf32>
    %666 = vector.shape_cast %665 : vector<64xf32> to vector<1x64xf32>
    %cst_316 = arith.constant 3.200000e+01 : f32
    %667 = vector.broadcast %cst_316 : f32 to vector<1x64xf32>
    %668 = arith.divf %666, %667 : vector<1x64xf32>
    %669 = arith.mulf %663, %663 : vector<1x64xf32>
    %670 = arith.subf %668, %669 : vector<1x64xf32>
    %671 = vector.broadcast %663 : vector<1x64xf32> to vector<32x64xf32>
    %672 = arith.subf %655, %671 : vector<32x64xf32>
    %cst_317 = arith.constant 9.99999974E-6 : f32
    %673 = vector.broadcast %cst_317 : f32 to vector<1x64xf32>
    %674 = arith.addf %670, %673 : vector<1x64xf32>
    %675 = math.rsqrt %674 : vector<1x64xf32>
    %676 = vector.broadcast %675 : vector<1x64xf32> to vector<32x64xf32>
    %677 = arith.mulf %672, %676 : vector<32x64xf32>
    %678 = vector.broadcast %657 : vector<1x64xf32> to vector<32x64xf32>
    %679 = arith.mulf %677, %678 : vector<32x64xf32>
    %680 = vector.broadcast %659 : vector<1x64xf32> to vector<32x64xf32>
    %681 = arith.addf %679, %680 : vector<32x64xf32>
    %cst_318 = arith.constant 0.000000e+00 : f32
    %682 = vector.broadcast %cst_318 : f32 to vector<32x64xf32>
    %683 = arith.maximumf %681, %682 : vector<32x64xf32>
    %cst_319 = arith.constant 0.000000e+00 : f32
    %684 = vector.broadcast %cst_319 : f32 to vector<16x64xf32>
    %685 = vector.extract_strided_slice %6 {offsets = [0, 0], sizes = [8, 16], strides = [1, 1]} : vector<32x16xf32> to vector<8x16xf32>
    %686 = vector.shape_cast %685 : vector<8x16xf32> to vector<8x16x1xf32>
    %687 = vector.extract_strided_slice %683 {offsets = [0, 0], sizes = [8, 64], strides = [1, 1]} : vector<32x64xf32> to vector<8x64xf32>
    %688 = vector.shape_cast %687 : vector<8x64xf32> to vector<8x1x64xf32>
    %689 = vector.broadcast %686 : vector<8x16x1xf32> to vector<8x16x64xf32>
    %690 = vector.broadcast %688 : vector<8x1x64xf32> to vector<8x16x64xf32>
    %691 = arith.mulf %689, %690 : vector<8x16x64xf32>
    %cst_320 = arith.constant dense<0xFF800000> : vector<16x64xf32>
    %692 = vector.multi_reduction <maximumf>, %691, %cst_320 [0] : vector<8x16x64xf32> to vector<16x64xf32>
    %693 = arith.maximumf %684, %692 : vector<16x64xf32>
    %694 = vector.extract_strided_slice %6 {offsets = [8, 0], sizes = [8, 16], strides = [1, 1]} : vector<32x16xf32> to vector<8x16xf32>
    %695 = vector.shape_cast %694 : vector<8x16xf32> to vector<8x16x1xf32>
    %696 = vector.extract_strided_slice %683 {offsets = [8, 0], sizes = [8, 64], strides = [1, 1]} : vector<32x64xf32> to vector<8x64xf32>
    %697 = vector.shape_cast %696 : vector<8x64xf32> to vector<8x1x64xf32>
    %698 = vector.broadcast %695 : vector<8x16x1xf32> to vector<8x16x64xf32>
    %699 = vector.broadcast %697 : vector<8x1x64xf32> to vector<8x16x64xf32>
    %700 = arith.mulf %698, %699 : vector<8x16x64xf32>
    %cst_321 = arith.constant dense<0xFF800000> : vector<16x64xf32>
    %701 = vector.multi_reduction <maximumf>, %700, %cst_321 [0] : vector<8x16x64xf32> to vector<16x64xf32>
    %702 = arith.maximumf %693, %701 : vector<16x64xf32>
    %703 = vector.extract_strided_slice %6 {offsets = [16, 0], sizes = [8, 16], strides = [1, 1]} : vector<32x16xf32> to vector<8x16xf32>
    %704 = vector.shape_cast %703 : vector<8x16xf32> to vector<8x16x1xf32>
    %705 = vector.extract_strided_slice %683 {offsets = [16, 0], sizes = [8, 64], strides = [1, 1]} : vector<32x64xf32> to vector<8x64xf32>
    %706 = vector.shape_cast %705 : vector<8x64xf32> to vector<8x1x64xf32>
    %707 = vector.broadcast %704 : vector<8x16x1xf32> to vector<8x16x64xf32>
    %708 = vector.broadcast %706 : vector<8x1x64xf32> to vector<8x16x64xf32>
    %709 = arith.mulf %707, %708 : vector<8x16x64xf32>
    %cst_322 = arith.constant dense<0xFF800000> : vector<16x64xf32>
    %710 = vector.multi_reduction <maximumf>, %709, %cst_322 [0] : vector<8x16x64xf32> to vector<16x64xf32>
    %711 = arith.maximumf %702, %710 : vector<16x64xf32>
    %712 = vector.extract_strided_slice %6 {offsets = [24, 0], sizes = [8, 16], strides = [1, 1]} : vector<32x16xf32> to vector<8x16xf32>
    %713 = vector.shape_cast %712 : vector<8x16xf32> to vector<8x16x1xf32>
    %714 = vector.extract_strided_slice %683 {offsets = [24, 0], sizes = [8, 64], strides = [1, 1]} : vector<32x64xf32> to vector<8x64xf32>
    %715 = vector.shape_cast %714 : vector<8x64xf32> to vector<8x1x64xf32>
    %716 = vector.broadcast %713 : vector<8x16x1xf32> to vector<8x16x64xf32>
    %717 = vector.broadcast %715 : vector<8x1x64xf32> to vector<8x16x64xf32>
    %718 = arith.mulf %716, %717 : vector<8x16x64xf32>
    %cst_323 = arith.constant dense<0xFF800000> : vector<16x64xf32>
    %719 = vector.multi_reduction <maximumf>, %718, %cst_323 [0] : vector<8x16x64xf32> to vector<16x64xf32>
    %720 = arith.maximumf %711, %719 : vector<16x64xf32>
    %c3_324 = arith.constant 3 : index
    %c0_325 = arith.constant 0 : index
    %c0_326 = arith.constant 0 : index
    %721 = vector.load %arg14[%c3_324, %c0_325, %c0_326] : memref<5x64x64xbf16, #tpu.memory_space<vmem>>, vector<1x64x64xbf16>
    %722 = vector.shape_cast %721 : vector<1x64x64xbf16> to vector<64x64xbf16>
    %723 = arith.truncf %605 : vector<16x64xf32> to vector<16x64xbf16>
    %cst_327 = arith.constant dense<0.000000e+00> : vector<16x64xf32>
    %724 = tpu.matmul %723, %722, %cst_327 {dimension_numbers = #tpu.dot_dimension_numbers<[1], [0], [0], [1], [0, 0, 1, 1], [], []>} : vector<16x64xbf16>, vector<64x64xbf16>, vector<16x64xf32> -> vector<16x64xf32>
    %c3_328 = arith.constant 3 : index
    %c0_329 = arith.constant 0 : index
    %c0_330 = arith.constant 0 : index
    %725 = vector.load %arg15[%c3_328, %c0_329, %c0_330] : memref<5x64x64xbf16, #tpu.memory_space<vmem>>, vector<1x64x64xbf16>
    %726 = vector.shape_cast %725 : vector<1x64x64xbf16> to vector<64x64xbf16>
    %727 = arith.truncf %720 : vector<16x64xf32> to vector<16x64xbf16>
    %cst_331 = arith.constant dense<0.000000e+00> : vector<16x64xf32>
    %728 = tpu.matmul %727, %726, %cst_331 {dimension_numbers = #tpu.dot_dimension_numbers<[1], [0], [0], [1], [0, 0, 1, 1], [], []>} : vector<16x64xbf16>, vector<64x64xbf16>, vector<16x64xf32> -> vector<16x64xf32>
    %729 = arith.addf %724, %728 : vector<16x64xf32>
    %c3_332 = arith.constant 3 : index
    %c0_333 = arith.constant 0 : index
    %c0_334 = arith.constant 0 : index
    %730 = vector.load %arg16[%c3_332, %c0_333, %c0_334] : memref<5x1x64xf32, #tpu.memory_space<vmem>>, vector<1x1x64xf32>
    %731 = vector.shape_cast %730 : vector<1x1x64xf32> to vector<1x64xf32>
    %732 = vector.broadcast %731 : vector<1x64xf32> to vector<16x64xf32>
    %733 = arith.addf %729, %732 : vector<16x64xf32>
    %c3_335 = arith.constant 3 : index
    %c0_336 = arith.constant 0 : index
    %c0_337 = arith.constant 0 : index
    %734 = vector.load %arg17[%c3_335, %c0_336, %c0_337] : memref<5x1x64xf32, #tpu.memory_space<vmem>>, vector<1x1x64xf32>
    %735 = vector.shape_cast %734 : vector<1x1x64xf32> to vector<1x64xf32>
    %c3_338 = arith.constant 3 : index
    %c0_339 = arith.constant 0 : index
    %c0_340 = arith.constant 0 : index
    %736 = vector.load %arg18[%c3_338, %c0_339, %c0_340] : memref<5x1x64xf32, #tpu.memory_space<vmem>>, vector<1x1x64xf32>
    %737 = vector.shape_cast %736 : vector<1x1x64xf32> to vector<1x64xf32>
    %cst_341 = arith.constant dense<0.000000e+00> : vector<64xf32>
    %738 = vector.multi_reduction <add>, %733, %cst_341 [0] : vector<16x64xf32> to vector<64xf32>
    %739 = vector.shape_cast %738 : vector<64xf32> to vector<1x64xf32>
    %cst_342 = arith.constant 1.600000e+01 : f32
    %740 = vector.broadcast %cst_342 : f32 to vector<1x64xf32>
    %741 = arith.divf %739, %740 : vector<1x64xf32>
    %742 = arith.mulf %733, %733 : vector<16x64xf32>
    %cst_343 = arith.constant dense<0.000000e+00> : vector<64xf32>
    %743 = vector.multi_reduction <add>, %742, %cst_343 [0] : vector<16x64xf32> to vector<64xf32>
    %744 = vector.shape_cast %743 : vector<64xf32> to vector<1x64xf32>
    %cst_344 = arith.constant 1.600000e+01 : f32
    %745 = vector.broadcast %cst_344 : f32 to vector<1x64xf32>
    %746 = arith.divf %744, %745 : vector<1x64xf32>
    %747 = arith.mulf %741, %741 : vector<1x64xf32>
    %748 = arith.subf %746, %747 : vector<1x64xf32>
    %749 = vector.broadcast %741 : vector<1x64xf32> to vector<16x64xf32>
    %750 = arith.subf %733, %749 : vector<16x64xf32>
    %cst_345 = arith.constant 9.99999974E-6 : f32
    %751 = vector.broadcast %cst_345 : f32 to vector<1x64xf32>
    %752 = arith.addf %748, %751 : vector<1x64xf32>
    %753 = math.rsqrt %752 : vector<1x64xf32>
    %754 = vector.broadcast %753 : vector<1x64xf32> to vector<16x64xf32>
    %755 = arith.mulf %750, %754 : vector<16x64xf32>
    %756 = vector.broadcast %735 : vector<1x64xf32> to vector<16x64xf32>
    %757 = arith.mulf %755, %756 : vector<16x64xf32>
    %758 = vector.broadcast %737 : vector<1x64xf32> to vector<16x64xf32>
    %759 = arith.addf %757, %758 : vector<16x64xf32>
    %cst_346 = arith.constant 0.000000e+00 : f32
    %760 = vector.broadcast %cst_346 : f32 to vector<16x64xf32>
    %761 = arith.maximumf %759, %760 : vector<16x64xf32>
    %c3_347 = arith.constant 3 : index
    %c0_348 = arith.constant 0 : index
    %c0_349 = arith.constant 0 : index
    %762 = vector.load %arg19[%c3_347, %c0_348, %c0_349] : memref<5x64x64xbf16, #tpu.memory_space<vmem>>, vector<1x64x64xbf16>
    %763 = vector.shape_cast %762 : vector<1x64x64xbf16> to vector<64x64xbf16>
    %764 = arith.truncf %761 : vector<16x64xf32> to vector<16x64xbf16>
    %cst_350 = arith.constant dense<0.000000e+00> : vector<16x64xf32>
    %765 = tpu.matmul %764, %763, %cst_350 {dimension_numbers = #tpu.dot_dimension_numbers<[1], [0], [0], [1], [0, 0, 1, 1], [], []>} : vector<16x64xbf16>, vector<64x64xbf16>, vector<16x64xf32> -> vector<16x64xf32>
    %c3_351 = arith.constant 3 : index
    %c0_352 = arith.constant 0 : index
    %c0_353 = arith.constant 0 : index
    %766 = vector.load %arg20[%c3_351, %c0_352, %c0_353] : memref<5x1x64xf32, #tpu.memory_space<vmem>>, vector<1x1x64xf32>
    %767 = vector.shape_cast %766 : vector<1x1x64xf32> to vector<1x64xf32>
    %768 = vector.broadcast %767 : vector<1x64xf32> to vector<16x64xf32>
    %769 = arith.addf %765, %768 : vector<16x64xf32>
    %c3_354 = arith.constant 3 : index
    %c0_355 = arith.constant 0 : index
    %c0_356 = arith.constant 0 : index
    %770 = vector.load %arg21[%c3_354, %c0_355, %c0_356] : memref<5x1x64xf32, #tpu.memory_space<vmem>>, vector<1x1x64xf32>
    %771 = vector.shape_cast %770 : vector<1x1x64xf32> to vector<1x64xf32>
    %c3_357 = arith.constant 3 : index
    %c0_358 = arith.constant 0 : index
    %c0_359 = arith.constant 0 : index
    %772 = vector.load %arg22[%c3_357, %c0_358, %c0_359] : memref<5x1x64xf32, #tpu.memory_space<vmem>>, vector<1x1x64xf32>
    %773 = vector.shape_cast %772 : vector<1x1x64xf32> to vector<1x64xf32>
    %cst_360 = arith.constant dense<0.000000e+00> : vector<64xf32>
    %774 = vector.multi_reduction <add>, %769, %cst_360 [0] : vector<16x64xf32> to vector<64xf32>
    %775 = vector.shape_cast %774 : vector<64xf32> to vector<1x64xf32>
    %cst_361 = arith.constant 1.600000e+01 : f32
    %776 = vector.broadcast %cst_361 : f32 to vector<1x64xf32>
    %777 = arith.divf %775, %776 : vector<1x64xf32>
    %778 = arith.mulf %769, %769 : vector<16x64xf32>
    %cst_362 = arith.constant dense<0.000000e+00> : vector<64xf32>
    %779 = vector.multi_reduction <add>, %778, %cst_362 [0] : vector<16x64xf32> to vector<64xf32>
    %780 = vector.shape_cast %779 : vector<64xf32> to vector<1x64xf32>
    %cst_363 = arith.constant 1.600000e+01 : f32
    %781 = vector.broadcast %cst_363 : f32 to vector<1x64xf32>
    %782 = arith.divf %780, %781 : vector<1x64xf32>
    %783 = arith.mulf %777, %777 : vector<1x64xf32>
    %784 = arith.subf %782, %783 : vector<1x64xf32>
    %785 = vector.broadcast %777 : vector<1x64xf32> to vector<16x64xf32>
    %786 = arith.subf %769, %785 : vector<16x64xf32>
    %cst_364 = arith.constant 9.99999974E-6 : f32
    %787 = vector.broadcast %cst_364 : f32 to vector<1x64xf32>
    %788 = arith.addf %784, %787 : vector<1x64xf32>
    %789 = math.rsqrt %788 : vector<1x64xf32>
    %790 = vector.broadcast %789 : vector<1x64xf32> to vector<16x64xf32>
    %791 = arith.mulf %786, %790 : vector<16x64xf32>
    %792 = vector.broadcast %771 : vector<1x64xf32> to vector<16x64xf32>
    %793 = arith.mulf %791, %792 : vector<16x64xf32>
    %794 = vector.broadcast %773 : vector<1x64xf32> to vector<16x64xf32>
    %795 = arith.addf %793, %794 : vector<16x64xf32>
    %cst_365 = arith.constant 0.000000e+00 : f32
    %796 = vector.broadcast %cst_365 : f32 to vector<16x64xf32>
    %797 = arith.maximumf %795, %796 : vector<16x64xf32>
    %798 = arith.addf %605, %797 : vector<16x64xf32>
    %c4 = arith.constant 4 : index
    %c0_366 = arith.constant 0 : index
    %c0_367 = arith.constant 0 : index
    %799 = vector.load %arg5[%c4, %c0_366, %c0_367] : memref<5x64x64xbf16, #tpu.memory_space<vmem>>, vector<1x64x64xbf16>
    %800 = vector.shape_cast %799 : vector<1x64x64xbf16> to vector<64x64xbf16>
    %801 = arith.truncf %798 : vector<16x64xf32> to vector<16x64xbf16>
    %cst_368 = arith.constant dense<0.000000e+00> : vector<16x64xf32>
    %802 = tpu.matmul %801, %800, %cst_368 {dimension_numbers = #tpu.dot_dimension_numbers<[1], [0], [0], [1], [0, 0, 1, 1], [], []>} : vector<16x64xbf16>, vector<64x64xbf16>, vector<16x64xf32> -> vector<16x64xf32>
    %c4_369 = arith.constant 4 : index
    %c0_370 = arith.constant 0 : index
    %c0_371 = arith.constant 0 : index
    %803 = vector.load %arg6[%c4_369, %c0_370, %c0_371] : memref<5x64x64xbf16, #tpu.memory_space<vmem>>, vector<1x64x64xbf16>
    %804 = vector.shape_cast %803 : vector<1x64x64xbf16> to vector<64x64xbf16>
    %805 = arith.truncf %798 : vector<16x64xf32> to vector<16x64xbf16>
    %cst_372 = arith.constant dense<0.000000e+00> : vector<16x64xf32>
    %806 = tpu.matmul %805, %804, %cst_372 {dimension_numbers = #tpu.dot_dimension_numbers<[1], [0], [0], [1], [0, 0, 1, 1], [], []>} : vector<16x64xbf16>, vector<64x64xbf16>, vector<16x64xf32> -> vector<16x64xf32>
    %807 = tpu.concatenate %802, %806 in 0 : vector<16x64xf32>, vector<16x64xf32> -> vector<32x64xf32>
    %cst_373 = arith.constant dense<0.000000e+00> : vector<32x64xf32>
    %808 = tpu.matmul %20, %807, %cst_373 {dimension_numbers = #tpu.dot_dimension_numbers<[1], [0], [0], [1], [0, 0, 1, 1], [], []>} : vector<32x32xf32>, vector<32x64xf32>, vector<32x64xf32> -> vector<32x64xf32>
    %c4_374 = arith.constant 4 : index
    %c0_375 = arith.constant 0 : index
    %c0_376 = arith.constant 0 : index
    %809 = vector.load %arg7[%c4_374, %c0_375, %c0_376] : memref<5x1x64xf32, #tpu.memory_space<vmem>>, vector<1x1x64xf32>
    %810 = vector.shape_cast %809 : vector<1x1x64xf32> to vector<1x64xf32>
    %811 = vector.broadcast %810 : vector<1x64xf32> to vector<32x64xf32>
    %812 = arith.addf %808, %811 : vector<32x64xf32>
    %c4_377 = arith.constant 4 : index
    %c0_378 = arith.constant 0 : index
    %c0_379 = arith.constant 0 : index
    %813 = vector.load %arg8[%c4_377, %c0_378, %c0_379] : memref<5x1x64xf32, #tpu.memory_space<vmem>>, vector<1x1x64xf32>
    %814 = vector.shape_cast %813 : vector<1x1x64xf32> to vector<1x64xf32>
    %c4_380 = arith.constant 4 : index
    %c0_381 = arith.constant 0 : index
    %c0_382 = arith.constant 0 : index
    %815 = vector.load %arg9[%c4_380, %c0_381, %c0_382] : memref<5x1x64xf32, #tpu.memory_space<vmem>>, vector<1x1x64xf32>
    %816 = vector.shape_cast %815 : vector<1x1x64xf32> to vector<1x64xf32>
    %cst_383 = arith.constant dense<0.000000e+00> : vector<64xf32>
    %817 = vector.multi_reduction <add>, %812, %cst_383 [0] : vector<32x64xf32> to vector<64xf32>
    %818 = vector.shape_cast %817 : vector<64xf32> to vector<1x64xf32>
    %cst_384 = arith.constant 3.200000e+01 : f32
    %819 = vector.broadcast %cst_384 : f32 to vector<1x64xf32>
    %820 = arith.divf %818, %819 : vector<1x64xf32>
    %821 = arith.mulf %812, %812 : vector<32x64xf32>
    %cst_385 = arith.constant dense<0.000000e+00> : vector<64xf32>
    %822 = vector.multi_reduction <add>, %821, %cst_385 [0] : vector<32x64xf32> to vector<64xf32>
    %823 = vector.shape_cast %822 : vector<64xf32> to vector<1x64xf32>
    %cst_386 = arith.constant 3.200000e+01 : f32
    %824 = vector.broadcast %cst_386 : f32 to vector<1x64xf32>
    %825 = arith.divf %823, %824 : vector<1x64xf32>
    %826 = arith.mulf %820, %820 : vector<1x64xf32>
    %827 = arith.subf %825, %826 : vector<1x64xf32>
    %828 = vector.broadcast %820 : vector<1x64xf32> to vector<32x64xf32>
    %829 = arith.subf %812, %828 : vector<32x64xf32>
    %cst_387 = arith.constant 9.99999974E-6 : f32
    %830 = vector.broadcast %cst_387 : f32 to vector<1x64xf32>
    %831 = arith.addf %827, %830 : vector<1x64xf32>
    %832 = math.rsqrt %831 : vector<1x64xf32>
    %833 = vector.broadcast %832 : vector<1x64xf32> to vector<32x64xf32>
    %834 = arith.mulf %829, %833 : vector<32x64xf32>
    %835 = vector.broadcast %814 : vector<1x64xf32> to vector<32x64xf32>
    %836 = arith.mulf %834, %835 : vector<32x64xf32>
    %837 = vector.broadcast %816 : vector<1x64xf32> to vector<32x64xf32>
    %838 = arith.addf %836, %837 : vector<32x64xf32>
    %cst_388 = arith.constant 0.000000e+00 : f32
    %839 = vector.broadcast %cst_388 : f32 to vector<32x64xf32>
    %840 = arith.maximumf %838, %839 : vector<32x64xf32>
    %c4_389 = arith.constant 4 : index
    %c0_390 = arith.constant 0 : index
    %c0_391 = arith.constant 0 : index
    %841 = vector.load %arg10[%c4_389, %c0_390, %c0_391] : memref<5x64x64xbf16, #tpu.memory_space<vmem>>, vector<1x64x64xbf16>
    %842 = vector.shape_cast %841 : vector<1x64x64xbf16> to vector<64x64xbf16>
    %843 = arith.truncf %840 : vector<32x64xf32> to vector<32x64xbf16>
    %cst_392 = arith.constant dense<0.000000e+00> : vector<32x64xf32>
    %844 = tpu.matmul %843, %842, %cst_392 {dimension_numbers = #tpu.dot_dimension_numbers<[1], [0], [0], [1], [0, 0, 1, 1], [], []>} : vector<32x64xbf16>, vector<64x64xbf16>, vector<32x64xf32> -> vector<32x64xf32>
    %c4_393 = arith.constant 4 : index
    %c0_394 = arith.constant 0 : index
    %c0_395 = arith.constant 0 : index
    %845 = vector.load %arg11[%c4_393, %c0_394, %c0_395] : memref<5x1x64xf32, #tpu.memory_space<vmem>>, vector<1x1x64xf32>
    %846 = vector.shape_cast %845 : vector<1x1x64xf32> to vector<1x64xf32>
    %847 = vector.broadcast %846 : vector<1x64xf32> to vector<32x64xf32>
    %848 = arith.addf %844, %847 : vector<32x64xf32>
    %c4_396 = arith.constant 4 : index
    %c0_397 = arith.constant 0 : index
    %c0_398 = arith.constant 0 : index
    %849 = vector.load %arg12[%c4_396, %c0_397, %c0_398] : memref<5x1x64xf32, #tpu.memory_space<vmem>>, vector<1x1x64xf32>
    %850 = vector.shape_cast %849 : vector<1x1x64xf32> to vector<1x64xf32>
    %c4_399 = arith.constant 4 : index
    %c0_400 = arith.constant 0 : index
    %c0_401 = arith.constant 0 : index
    %851 = vector.load %arg13[%c4_399, %c0_400, %c0_401] : memref<5x1x64xf32, #tpu.memory_space<vmem>>, vector<1x1x64xf32>
    %852 = vector.shape_cast %851 : vector<1x1x64xf32> to vector<1x64xf32>
    %cst_402 = arith.constant dense<0.000000e+00> : vector<64xf32>
    %853 = vector.multi_reduction <add>, %848, %cst_402 [0] : vector<32x64xf32> to vector<64xf32>
    %854 = vector.shape_cast %853 : vector<64xf32> to vector<1x64xf32>
    %cst_403 = arith.constant 3.200000e+01 : f32
    %855 = vector.broadcast %cst_403 : f32 to vector<1x64xf32>
    %856 = arith.divf %854, %855 : vector<1x64xf32>
    %857 = arith.mulf %848, %848 : vector<32x64xf32>
    %cst_404 = arith.constant dense<0.000000e+00> : vector<64xf32>
    %858 = vector.multi_reduction <add>, %857, %cst_404 [0] : vector<32x64xf32> to vector<64xf32>
    %859 = vector.shape_cast %858 : vector<64xf32> to vector<1x64xf32>
    %cst_405 = arith.constant 3.200000e+01 : f32
    %860 = vector.broadcast %cst_405 : f32 to vector<1x64xf32>
    %861 = arith.divf %859, %860 : vector<1x64xf32>
    %862 = arith.mulf %856, %856 : vector<1x64xf32>
    %863 = arith.subf %861, %862 : vector<1x64xf32>
    %864 = vector.broadcast %856 : vector<1x64xf32> to vector<32x64xf32>
    %865 = arith.subf %848, %864 : vector<32x64xf32>
    %cst_406 = arith.constant 9.99999974E-6 : f32
    %866 = vector.broadcast %cst_406 : f32 to vector<1x64xf32>
    %867 = arith.addf %863, %866 : vector<1x64xf32>
    %868 = math.rsqrt %867 : vector<1x64xf32>
    %869 = vector.broadcast %868 : vector<1x64xf32> to vector<32x64xf32>
    %870 = arith.mulf %865, %869 : vector<32x64xf32>
    %871 = vector.broadcast %850 : vector<1x64xf32> to vector<32x64xf32>
    %872 = arith.mulf %870, %871 : vector<32x64xf32>
    %873 = vector.broadcast %852 : vector<1x64xf32> to vector<32x64xf32>
    %874 = arith.addf %872, %873 : vector<32x64xf32>
    %cst_407 = arith.constant 0.000000e+00 : f32
    %875 = vector.broadcast %cst_407 : f32 to vector<32x64xf32>
    %876 = arith.maximumf %874, %875 : vector<32x64xf32>
    %cst_408 = arith.constant 0.000000e+00 : f32
    %877 = vector.broadcast %cst_408 : f32 to vector<16x64xf32>
    %878 = vector.extract_strided_slice %6 {offsets = [0, 0], sizes = [8, 16], strides = [1, 1]} : vector<32x16xf32> to vector<8x16xf32>
    %879 = vector.shape_cast %878 : vector<8x16xf32> to vector<8x16x1xf32>
    %880 = vector.extract_strided_slice %876 {offsets = [0, 0], sizes = [8, 64], strides = [1, 1]} : vector<32x64xf32> to vector<8x64xf32>
    %881 = vector.shape_cast %880 : vector<8x64xf32> to vector<8x1x64xf32>
    %882 = vector.broadcast %879 : vector<8x16x1xf32> to vector<8x16x64xf32>
    %883 = vector.broadcast %881 : vector<8x1x64xf32> to vector<8x16x64xf32>
    %884 = arith.mulf %882, %883 : vector<8x16x64xf32>
    %cst_409 = arith.constant dense<0xFF800000> : vector<16x64xf32>
    %885 = vector.multi_reduction <maximumf>, %884, %cst_409 [0] : vector<8x16x64xf32> to vector<16x64xf32>
    %886 = arith.maximumf %877, %885 : vector<16x64xf32>
    %887 = vector.extract_strided_slice %6 {offsets = [8, 0], sizes = [8, 16], strides = [1, 1]} : vector<32x16xf32> to vector<8x16xf32>
    %888 = vector.shape_cast %887 : vector<8x16xf32> to vector<8x16x1xf32>
    %889 = vector.extract_strided_slice %876 {offsets = [8, 0], sizes = [8, 64], strides = [1, 1]} : vector<32x64xf32> to vector<8x64xf32>
    %890 = vector.shape_cast %889 : vector<8x64xf32> to vector<8x1x64xf32>
    %891 = vector.broadcast %888 : vector<8x16x1xf32> to vector<8x16x64xf32>
    %892 = vector.broadcast %890 : vector<8x1x64xf32> to vector<8x16x64xf32>
    %893 = arith.mulf %891, %892 : vector<8x16x64xf32>
    %cst_410 = arith.constant dense<0xFF800000> : vector<16x64xf32>
    %894 = vector.multi_reduction <maximumf>, %893, %cst_410 [0] : vector<8x16x64xf32> to vector<16x64xf32>
    %895 = arith.maximumf %886, %894 : vector<16x64xf32>
    %896 = vector.extract_strided_slice %6 {offsets = [16, 0], sizes = [8, 16], strides = [1, 1]} : vector<32x16xf32> to vector<8x16xf32>
    %897 = vector.shape_cast %896 : vector<8x16xf32> to vector<8x16x1xf32>
    %898 = vector.extract_strided_slice %876 {offsets = [16, 0], sizes = [8, 64], strides = [1, 1]} : vector<32x64xf32> to vector<8x64xf32>
    %899 = vector.shape_cast %898 : vector<8x64xf32> to vector<8x1x64xf32>
    %900 = vector.broadcast %897 : vector<8x16x1xf32> to vector<8x16x64xf32>
    %901 = vector.broadcast %899 : vector<8x1x64xf32> to vector<8x16x64xf32>
    %902 = arith.mulf %900, %901 : vector<8x16x64xf32>
    %cst_411 = arith.constant dense<0xFF800000> : vector<16x64xf32>
    %903 = vector.multi_reduction <maximumf>, %902, %cst_411 [0] : vector<8x16x64xf32> to vector<16x64xf32>
    %904 = arith.maximumf %895, %903 : vector<16x64xf32>
    %905 = vector.extract_strided_slice %6 {offsets = [24, 0], sizes = [8, 16], strides = [1, 1]} : vector<32x16xf32> to vector<8x16xf32>
    %906 = vector.shape_cast %905 : vector<8x16xf32> to vector<8x16x1xf32>
    %907 = vector.extract_strided_slice %876 {offsets = [24, 0], sizes = [8, 64], strides = [1, 1]} : vector<32x64xf32> to vector<8x64xf32>
    %908 = vector.shape_cast %907 : vector<8x64xf32> to vector<8x1x64xf32>
    %909 = vector.broadcast %906 : vector<8x16x1xf32> to vector<8x16x64xf32>
    %910 = vector.broadcast %908 : vector<8x1x64xf32> to vector<8x16x64xf32>
    %911 = arith.mulf %909, %910 : vector<8x16x64xf32>
    %cst_412 = arith.constant dense<0xFF800000> : vector<16x64xf32>
    %912 = vector.multi_reduction <maximumf>, %911, %cst_412 [0] : vector<8x16x64xf32> to vector<16x64xf32>
    %913 = arith.maximumf %904, %912 : vector<16x64xf32>
    %c4_413 = arith.constant 4 : index
    %c0_414 = arith.constant 0 : index
    %c0_415 = arith.constant 0 : index
    %914 = vector.load %arg14[%c4_413, %c0_414, %c0_415] : memref<5x64x64xbf16, #tpu.memory_space<vmem>>, vector<1x64x64xbf16>
    %915 = vector.shape_cast %914 : vector<1x64x64xbf16> to vector<64x64xbf16>
    %916 = arith.truncf %798 : vector<16x64xf32> to vector<16x64xbf16>
    %cst_416 = arith.constant dense<0.000000e+00> : vector<16x64xf32>
    %917 = tpu.matmul %916, %915, %cst_416 {dimension_numbers = #tpu.dot_dimension_numbers<[1], [0], [0], [1], [0, 0, 1, 1], [], []>} : vector<16x64xbf16>, vector<64x64xbf16>, vector<16x64xf32> -> vector<16x64xf32>
    %c4_417 = arith.constant 4 : index
    %c0_418 = arith.constant 0 : index
    %c0_419 = arith.constant 0 : index
    %918 = vector.load %arg15[%c4_417, %c0_418, %c0_419] : memref<5x64x64xbf16, #tpu.memory_space<vmem>>, vector<1x64x64xbf16>
    %919 = vector.shape_cast %918 : vector<1x64x64xbf16> to vector<64x64xbf16>
    %920 = arith.truncf %913 : vector<16x64xf32> to vector<16x64xbf16>
    %cst_420 = arith.constant dense<0.000000e+00> : vector<16x64xf32>
    %921 = tpu.matmul %920, %919, %cst_420 {dimension_numbers = #tpu.dot_dimension_numbers<[1], [0], [0], [1], [0, 0, 1, 1], [], []>} : vector<16x64xbf16>, vector<64x64xbf16>, vector<16x64xf32> -> vector<16x64xf32>
    %922 = arith.addf %917, %921 : vector<16x64xf32>
    %c4_421 = arith.constant 4 : index
    %c0_422 = arith.constant 0 : index
    %c0_423 = arith.constant 0 : index
    %923 = vector.load %arg16[%c4_421, %c0_422, %c0_423] : memref<5x1x64xf32, #tpu.memory_space<vmem>>, vector<1x1x64xf32>
    %924 = vector.shape_cast %923 : vector<1x1x64xf32> to vector<1x64xf32>
    %925 = vector.broadcast %924 : vector<1x64xf32> to vector<16x64xf32>
    %926 = arith.addf %922, %925 : vector<16x64xf32>
    %c4_424 = arith.constant 4 : index
    %c0_425 = arith.constant 0 : index
    %c0_426 = arith.constant 0 : index
    %927 = vector.load %arg17[%c4_424, %c0_425, %c0_426] : memref<5x1x64xf32, #tpu.memory_space<vmem>>, vector<1x1x64xf32>
    %928 = vector.shape_cast %927 : vector<1x1x64xf32> to vector<1x64xf32>
    %c4_427 = arith.constant 4 : index
    %c0_428 = arith.constant 0 : index
    %c0_429 = arith.constant 0 : index
    %929 = vector.load %arg18[%c4_427, %c0_428, %c0_429] : memref<5x1x64xf32, #tpu.memory_space<vmem>>, vector<1x1x64xf32>
    %930 = vector.shape_cast %929 : vector<1x1x64xf32> to vector<1x64xf32>
    %cst_430 = arith.constant dense<0.000000e+00> : vector<64xf32>
    %931 = vector.multi_reduction <add>, %926, %cst_430 [0] : vector<16x64xf32> to vector<64xf32>
    %932 = vector.shape_cast %931 : vector<64xf32> to vector<1x64xf32>
    %cst_431 = arith.constant 1.600000e+01 : f32
    %933 = vector.broadcast %cst_431 : f32 to vector<1x64xf32>
    %934 = arith.divf %932, %933 : vector<1x64xf32>
    %935 = arith.mulf %926, %926 : vector<16x64xf32>
    %cst_432 = arith.constant dense<0.000000e+00> : vector<64xf32>
    %936 = vector.multi_reduction <add>, %935, %cst_432 [0] : vector<16x64xf32> to vector<64xf32>
    %937 = vector.shape_cast %936 : vector<64xf32> to vector<1x64xf32>
    %cst_433 = arith.constant 1.600000e+01 : f32
    %938 = vector.broadcast %cst_433 : f32 to vector<1x64xf32>
    %939 = arith.divf %937, %938 : vector<1x64xf32>
    %940 = arith.mulf %934, %934 : vector<1x64xf32>
    %941 = arith.subf %939, %940 : vector<1x64xf32>
    %942 = vector.broadcast %934 : vector<1x64xf32> to vector<16x64xf32>
    %943 = arith.subf %926, %942 : vector<16x64xf32>
    %cst_434 = arith.constant 9.99999974E-6 : f32
    %944 = vector.broadcast %cst_434 : f32 to vector<1x64xf32>
    %945 = arith.addf %941, %944 : vector<1x64xf32>
    %946 = math.rsqrt %945 : vector<1x64xf32>
    %947 = vector.broadcast %946 : vector<1x64xf32> to vector<16x64xf32>
    %948 = arith.mulf %943, %947 : vector<16x64xf32>
    %949 = vector.broadcast %928 : vector<1x64xf32> to vector<16x64xf32>
    %950 = arith.mulf %948, %949 : vector<16x64xf32>
    %951 = vector.broadcast %930 : vector<1x64xf32> to vector<16x64xf32>
    %952 = arith.addf %950, %951 : vector<16x64xf32>
    %cst_435 = arith.constant 0.000000e+00 : f32
    %953 = vector.broadcast %cst_435 : f32 to vector<16x64xf32>
    %954 = arith.maximumf %952, %953 : vector<16x64xf32>
    %c4_436 = arith.constant 4 : index
    %c0_437 = arith.constant 0 : index
    %c0_438 = arith.constant 0 : index
    %955 = vector.load %arg19[%c4_436, %c0_437, %c0_438] : memref<5x64x64xbf16, #tpu.memory_space<vmem>>, vector<1x64x64xbf16>
    %956 = vector.shape_cast %955 : vector<1x64x64xbf16> to vector<64x64xbf16>
    %957 = arith.truncf %954 : vector<16x64xf32> to vector<16x64xbf16>
    %cst_439 = arith.constant dense<0.000000e+00> : vector<16x64xf32>
    %958 = tpu.matmul %957, %956, %cst_439 {dimension_numbers = #tpu.dot_dimension_numbers<[1], [0], [0], [1], [0, 0, 1, 1], [], []>} : vector<16x64xbf16>, vector<64x64xbf16>, vector<16x64xf32> -> vector<16x64xf32>
    %c4_440 = arith.constant 4 : index
    %c0_441 = arith.constant 0 : index
    %c0_442 = arith.constant 0 : index
    %959 = vector.load %arg20[%c4_440, %c0_441, %c0_442] : memref<5x1x64xf32, #tpu.memory_space<vmem>>, vector<1x1x64xf32>
    %960 = vector.shape_cast %959 : vector<1x1x64xf32> to vector<1x64xf32>
    %961 = vector.broadcast %960 : vector<1x64xf32> to vector<16x64xf32>
    %962 = arith.addf %958, %961 : vector<16x64xf32>
    %c4_443 = arith.constant 4 : index
    %c0_444 = arith.constant 0 : index
    %c0_445 = arith.constant 0 : index
    %963 = vector.load %arg21[%c4_443, %c0_444, %c0_445] : memref<5x1x64xf32, #tpu.memory_space<vmem>>, vector<1x1x64xf32>
    %964 = vector.shape_cast %963 : vector<1x1x64xf32> to vector<1x64xf32>
    %c4_446 = arith.constant 4 : index
    %c0_447 = arith.constant 0 : index
    %c0_448 = arith.constant 0 : index
    %965 = vector.load %arg22[%c4_446, %c0_447, %c0_448] : memref<5x1x64xf32, #tpu.memory_space<vmem>>, vector<1x1x64xf32>
    %966 = vector.shape_cast %965 : vector<1x1x64xf32> to vector<1x64xf32>
    %cst_449 = arith.constant dense<0.000000e+00> : vector<64xf32>
    %967 = vector.multi_reduction <add>, %962, %cst_449 [0] : vector<16x64xf32> to vector<64xf32>
    %968 = vector.shape_cast %967 : vector<64xf32> to vector<1x64xf32>
    %cst_450 = arith.constant 1.600000e+01 : f32
    %969 = vector.broadcast %cst_450 : f32 to vector<1x64xf32>
    %970 = arith.divf %968, %969 : vector<1x64xf32>
    %971 = arith.mulf %962, %962 : vector<16x64xf32>
    %cst_451 = arith.constant dense<0.000000e+00> : vector<64xf32>
    %972 = vector.multi_reduction <add>, %971, %cst_451 [0] : vector<16x64xf32> to vector<64xf32>
    %973 = vector.shape_cast %972 : vector<64xf32> to vector<1x64xf32>
    %cst_452 = arith.constant 1.600000e+01 : f32
    %974 = vector.broadcast %cst_452 : f32 to vector<1x64xf32>
    %975 = arith.divf %973, %974 : vector<1x64xf32>
    %976 = arith.mulf %970, %970 : vector<1x64xf32>
    %977 = arith.subf %975, %976 : vector<1x64xf32>
    %978 = vector.broadcast %970 : vector<1x64xf32> to vector<16x64xf32>
    %979 = arith.subf %962, %978 : vector<16x64xf32>
    %cst_453 = arith.constant 9.99999974E-6 : f32
    %980 = vector.broadcast %cst_453 : f32 to vector<1x64xf32>
    %981 = arith.addf %977, %980 : vector<1x64xf32>
    %982 = math.rsqrt %981 : vector<1x64xf32>
    %983 = vector.broadcast %982 : vector<1x64xf32> to vector<16x64xf32>
    %984 = arith.mulf %979, %983 : vector<16x64xf32>
    %985 = vector.broadcast %964 : vector<1x64xf32> to vector<16x64xf32>
    %986 = arith.mulf %984, %985 : vector<16x64xf32>
    %987 = vector.broadcast %966 : vector<1x64xf32> to vector<16x64xf32>
    %988 = arith.addf %986, %987 : vector<16x64xf32>
    %cst_454 = arith.constant 0.000000e+00 : f32
    %989 = vector.broadcast %cst_454 : f32 to vector<16x64xf32>
    %990 = arith.maximumf %988, %989 : vector<16x64xf32>
    %991 = arith.addf %798, %990 : vector<16x64xf32>
    %c0_455 = arith.constant 0 : index
    %c0_456 = arith.constant 0 : index
    %992 = vector.load %arg23[%c0_455, %c0_456] : memref<64x32xbf16, #tpu.memory_space<vmem>>, vector<64x32xbf16>
    %993 = arith.truncf %991 : vector<16x64xf32> to vector<16x64xbf16>
    %cst_457 = arith.constant dense<0.000000e+00> : vector<16x32xf32>
    %994 = tpu.matmul %993, %992, %cst_457 {dimension_numbers = #tpu.dot_dimension_numbers<[1], [0], [0], [1], [0, 0, 1, 1], [], []>} : vector<16x64xbf16>, vector<64x32xbf16>, vector<16x32xf32> -> vector<16x32xf32>
    %c0_458 = arith.constant 0 : index
    %c0_459 = arith.constant 0 : index
    %995 = vector.load %arg24[%c0_458, %c0_459] : memref<64x32xbf16, #tpu.memory_space<vmem>>, vector<64x32xbf16>
    %996 = arith.truncf %991 : vector<16x64xf32> to vector<16x64xbf16>
    %cst_460 = arith.constant dense<0.000000e+00> : vector<16x32xf32>
    %997 = tpu.matmul %996, %995, %cst_460 {dimension_numbers = #tpu.dot_dimension_numbers<[1], [0], [0], [1], [0, 0, 1, 1], [], []>} : vector<16x64xbf16>, vector<64x32xbf16>, vector<16x32xf32> -> vector<16x32xf32>
    %998 = tpu.concatenate %997, %994 in 0 : vector<16x32xf32>, vector<16x32xf32> -> vector<32x32xf32>
    %cst_461 = arith.constant dense<0.000000e+00> : vector<32x32xf32>
    %999 = tpu.matmul %20, %998, %cst_461 {dimension_numbers = #tpu.dot_dimension_numbers<[1], [0], [0], [1], [0, 0, 1, 1], [], []>} : vector<32x32xf32>, vector<32x32xf32>, vector<32x32xf32> -> vector<32x32xf32>
    %c0_462 = arith.constant 0 : index
    %c0_463 = arith.constant 0 : index
    %1000 = vector.load %arg25[%c0_462, %c0_463] : memref<1x32xf32, #tpu.memory_space<vmem>>, vector<1x32xf32>
    %1001 = vector.broadcast %1000 : vector<1x32xf32> to vector<32x32xf32>
    %1002 = arith.addf %999, %1001 : vector<32x32xf32>
    %cst_464 = arith.constant 0.000000e+00 : f32
    %1003 = vector.broadcast %cst_464 : f32 to vector<32x32xf32>
    %1004 = arith.maximumf %1002, %1003 : vector<32x32xf32>
    %c0_465 = arith.constant 0 : index
    %c0_466 = arith.constant 0 : index
    %1005 = vector.load %arg26[%c0_465, %c0_466] : memref<32x1xf32, #tpu.memory_space<vmem>>, vector<32x1xf32>
    %cst_467 = arith.constant dense<0.000000e+00> : vector<32x1xf32>
    %1006 = tpu.matmul %1004, %1005, %cst_467 {dimension_numbers = #tpu.dot_dimension_numbers<[1], [0], [0], [1], [0, 0, 1, 1], [], []>} : vector<32x32xf32>, vector<32x1xf32>, vector<32x1xf32> -> vector<32x1xf32>
    %c0_468 = arith.constant 0 : index
    %c0_469 = arith.constant 0 : index
    %1007 = vector.load %arg27[%c0_468, %c0_469] : memref<1x1xf32, #tpu.memory_space<vmem>>, vector<1x1xf32>
    %1008 = vector.broadcast %1007 : vector<1x1xf32> to vector<32x1xf32>
    %1009 = arith.addf %1006, %1008 : vector<32x1xf32>
    %1010 = vector.broadcast %1009 : vector<32x1xf32> to vector<32x16xf32>
    %1011 = arith.mulf %10, %1010 : vector<32x16xf32>
    %cst_470 = arith.constant dense<0.000000e+00> : vector<16x16xf32>
    %1012 = tpu.matmul %1011, %6, %cst_470 {dimension_numbers = #tpu.dot_dimension_numbers<[0], [0], [1], [1], [0, 1, 1, 1], [], []>} : vector<32x16xf32>, vector<32x16xf32>, vector<16x16xf32> -> vector<16x16xf32>
    %c0_471 = arith.constant 0 : index
    %c0_472 = arith.constant 0 : index
    %1013 = vector.load %arg28[%c0_471, %c0_472] : memref<16x16xf32, #tpu.memory_space<vmem>>, vector<16x16xf32>
    tpu.vector_store %arg28[%c0_471, %c0_472], %1012 {strides = array<i32>} : memref<16x16xf32, #tpu.memory_space<vmem>>, vector<16x16xf32>,
    return
  }
}

</mosaic_0001>

<llo_original>
// kernel: tpu_custom_call.1
$region0: #{tpu_custom_call.1}
  #allocation0 [shape = 'u32[]', space=smem, size = 0x4, offset = 0x4, fixed_abs, tag = 'smem constant byte address 0x4 - core index']
  #allocation1 [shape = 'u32[144,128]{1,0:T(1,128)}', space=vmem, size = 0x12000, scoped, tag = 'internal scratch']
  #allocation2 [shape = 'f32[1,1]{1,0:T(1,128)S(1)}', space=vmem, size = 0x200, scoped, tag = 'scoped memory for tpu_custom_call.1']
  %s0 = inlined_call_operand.vmem [shape: f32[16,6], index: 0, kind: input, shape index: {}]
  %s1 = inlined_call_operand.vmem [shape: s32[32,1], index: 1, kind: input, shape index: {}]
  %s2 = inlined_call_operand.vmem [shape: s32[32,1], index: 2, kind: input, shape index: {}]
  %s3 = inlined_call_operand.vmem [shape: f32[6,64], index: 3, kind: input, shape index: {}]
  %s4 = inlined_call_operand.hbm [shape: f32[1,64], index: 4, kind: input, shape index: {}]
  %s5 = inlined_call_operand.vmem [shape: bf16[5,64,64], index: 5, kind: input, shape index: {}]
  %s6 = inlined_call_operand.hbm [shape: bf16[5,64,64], index: 6, kind: input, shape index: {}]
  %s7 = inlined_call_operand.vmem [shape: f32[5,1,64], index: 7, kind: input, shape index: {}]
  %s8 = inlined_call_operand.vmem [shape: f32[5,1,64], index: 8, kind: input, shape index: {}]
  %s9 = inlined_call_operand.vmem [shape: f32[5,1,64], index: 9, kind: input, shape index: {}]
  %s10 = inlined_call_operand.hbm [shape: bf16[5,64,64], index: 10, kind: input, shape index: {}]
  %s11 = inlined_call_operand.vmem [shape: f32[5,1,64], index: 11, kind: input, shape index: {}]
  %s12 = inlined_call_operand.vmem [shape: f32[5,1,64], index: 12, kind: input, shape index: {}]
  %s13 = inlined_call_operand.vmem [shape: f32[5,1,64], index: 13, kind: input, shape index: {}]
  %s14 = inlined_call_operand.hbm [shape: bf16[5,64,64], index: 14, kind: input, shape index: {}]
  %s15 = inlined_call_operand.hbm [shape: bf16[5,64,64], index: 15, kind: input, shape index: {}]
  %s16 = inlined_call_operand.vmem [shape: f32[5,1,64], index: 16, kind: input, shape index: {}]
  %s17 = inlined_call_operand.vmem [shape: f32[5,1,64], index: 17, kind: input, shape index: {}]
  %s18 = inlined_call_operand.vmem [shape: f32[5,1,64], index: 18, kind: input, shape index: {}]
  %s19 = inlined_call_operand.hbm [shape: bf16[5,64,64], index: 19, kind: input, shape index: {}]
  %s20 = inlined_call_operand.vmem [shape: f32[5,1,64], index: 20, kind: input, shape index: {}]
  %s21 = inlined_call_operand.vmem [shape: f32[5,1,64], index: 21, kind: input, shape index: {}]
  %s22 = inlined_call_operand.vmem [shape: f32[5,1,64], index: 22, kind: input, shape index: {}]
  %s23 = inlined_call_operand.vmem [shape: bf16[64,32], index: 23, kind: input, shape index: {}]
  %s24 = inlined_call_operand.vmem [shape: bf16[64,32], index: 24, kind: input, shape index: {}]
  %s25 = inlined_call_operand.vmem [shape: f32[1,32], index: 25, kind: input, shape index: {}]
  %s26 = inlined_call_operand.vmem [shape: f32[32,1], index: 26, kind: input, shape index: {}]
  %s27 = inlined_call_operand.<no memory space> [shape: f32[1,1], index: 27, kind: input, shape index: {}]
  %s28 = inlined_call_operand.hbm [shape: f32[16,16], index: 28, kind: output, shape index: {}]
  %s29 = sld [smem:[#allocation0]]
  $region146: #{tpu_custom_call.1} parent=0
    _
  %s31 = ssub.s32 1, %s29
  %s32 = scalar_select 0, %s31, %s29
  %v33 = vstv %s27
  %34 = vst [vmem:[#allocation2] sm:$0x1] %v33
  $region1: #{tpu_custom_call.1} parent=0
    #allocation3 [shape = 'u8[512]{0}', space=vmem, size = 0x400, scoped, tag = 'input window, operand 4, single buffered']
    #allocation4 [shape = 's32[1]{0}', space=sflag, size = 0x4, scoped, tag = 'scoped memory for tpu_custom_call.1']
    #allocation5 [shape = 's32[1]{0}', space=sflag, size = 0x4, scoped, tag = 'scoped memory for tpu_custom_call.1']
    #allocation6 [shape = 'u8[81920]{0}', space=vmem, size = 0x14000, scoped, tag = 'input window, operand 6, single buffered']
    #allocation7 [shape = 's32[1]{0}', space=sflag, size = 0x4, scoped, tag = 'scoped memory for tpu_custom_call.1']
    #allocation8 [shape = 'u8[81920]{0}', space=vmem, size = 0x14000, scoped, tag = 'input window, operand 10, single buffered']
    #allocation9 [shape = 'u8[81920]{0}', space=vmem, size = 0x14000, scoped, tag = 'input window, operand 14, single buffered']
    #allocation10 [shape = 's32[1]{0}', space=sflag, size = 0x4, scoped, tag = 'scoped memory for tpu_custom_call.1']
    #allocation11 [shape = 'u8[81920]{0}', space=vmem, size = 0x14000, scoped, tag = 'input window, operand 15, single buffered']
    #allocation12 [shape = 'u8[81920]{0}', space=vmem, size = 0x14000, scoped, tag = 'input window, operand 19, single buffered']
    #allocation13 [shape = 's32[1]{0}', space=sflag, size = 0x4, scoped, tag = 'scoped memory for tpu_custom_call.1']
    #allocation14 [shape = 'u8[8192]{0}', space=vmem, size = 0x2000, scoped, tag = 'output window, operand 0, single buffered']
    %35 = vsyncpa [#allocation4], 0
    %36 = vsyncpa [#allocation7], 0
    %37 = vsyncpa [#allocation10], 0
    %38 = vsyncpa [#allocation13], 0
    %39 = vsyncpa [#allocation5], 0
    // Predicated region
    $region2: #{tpu_custom_call.1} parent=1 // pred_check
      _
    $region3: #{tpu_custom_call.1} parent=1 // pred_check_branch
      %41 = sbr.rel (0) target = $region5
    $region4: #{tpu_custom_call.1} parent=1 // pred_region
      _
    $region5: #{tpu_custom_call.1} parent=1 // pred_fallthru
      _
    // Predicated region
    $region6: #{tpu_custom_call.1} parent=1 // pred_check
      _
    $region7: #{tpu_custom_call.1} parent=1 // pred_check_branch
      %43 = sbr.rel (0) target = $region9
    $region8: #{tpu_custom_call.1} parent=1 // pred_region
      _
    $region9: #{tpu_custom_call.1} parent=1 // pred_fallthru
      _
    // Predicated region
    $region10: #{tpu_custom_call.1} parent=1 // pred_check
      _
    $region11: #{tpu_custom_call.1} parent=1 // pred_check_branch
      %45 = sbr.rel (0) target = $region13
    $region12: #{tpu_custom_call.1} parent=1 // pred_region
      _
    $region13: #{tpu_custom_call.1} parent=1 // pred_fallthru
      _
    // Predicated region
    $region14: #{tpu_custom_call.1} parent=1 // pred_check
      _
    $region15: #{tpu_custom_call.1} parent=1 // pred_check_branch
      %47 = sbr.rel (0) target = $region17
    $region16: #{tpu_custom_call.1} parent=1 // pred_region
      _
    $region17: #{tpu_custom_call.1} parent=1 // pred_fallthru
      _
    // Predicated region
    $region18: #{tpu_custom_call.1} parent=1 // pred_check
      _
    $region19: #{tpu_custom_call.1} parent=1 // pred_check_branch
      %49 = sbr.rel (0) target = $region21
    $region20: #{tpu_custom_call.1} parent=1 // pred_region
      %s51 = ssub.s32 16, 16
      %52 = vsyncadd [#allocation4], %s51
      %s54 = sshll.u32 [#allocation3], 4
      %s55 = int_to_ptr.vmem [resolvable:$true] %s54
      %57 = dma.hbm_to_vmem [thread:$0]  %s4, 16, %s55, [#allocation4]
    $region21: #{tpu_custom_call.1} parent=1 // pred_fallthru
      _
    // Predicated region
    $region22: #{tpu_custom_call.1} parent=1 // pred_check
      _
    $region23: #{tpu_custom_call.1} parent=1 // pred_check_branch
      %59 = sbr.rel (0) target = $region25
    $region24: #{tpu_custom_call.1} parent=1 // pred_region
      _
    $region25: #{tpu_custom_call.1} parent=1 // pred_fallthru
      _
    // Predicated region
    $region26: #{tpu_custom_call.1} parent=1 // pred_check
      _
    $region27: #{tpu_custom_call.1} parent=1 // pred_check_branch
      %61 = sbr.rel (0) target = $region29
    $region28: #{tpu_custom_call.1} parent=1 // pred_region
      %s63 = ssub.s32 2560, 2560
      %64 = vsyncadd [#allocation7], %s63
      %s65 = sshll.u32 [#allocation6], 4
      %s66 = int_to_ptr.vmem [resolvable:$true] %s65
      %71 = dma.hbm_to_vmem [thread:$0]  %s6, 2560, %s66, [#allocation7], 64, 64, 4
    $region29: #{tpu_custom_call.1} parent=1 // pred_fallthru
      _
    // Predicated region
    $region30: #{tpu_custom_call.1} parent=1 // pred_check
      _
    $region31: #{tpu_custom_call.1} parent=1 // pred_check_branch
      %73 = sbr.rel (0) target = $region33
    $region32: #{tpu_custom_call.1} parent=1 // pred_region
      _
    $region33: #{tpu_custom_call.1} parent=1 // pred_fallthru
      _
    // Predicated region
    $region34: #{tpu_custom_call.1} parent=1 // pred_check
      _
    $region35: #{tpu_custom_call.1} parent=1 // pred_check_branch
      %75 = sbr.rel (0) target = $region37
    $region36: #{tpu_custom_call.1} parent=1 // pred_region
      _
    $region37: #{tpu_custom_call.1} parent=1 // pred_fallthru
      _
    // Predicated region
    $region38: #{tpu_custom_call.1} parent=1 // pred_check
      _
    $region39: #{tpu_custom_call.1} parent=1 // pred_check_branch
      %77 = sbr.rel (0) target = $region41
    $region40: #{tpu_custom_call.1} parent=1 // pred_region
      _
    $region41: #{tpu_custom_call.1} parent=1 // pred_fallthru
      _
    // Predicated region
    $region42: #{tpu_custom_call.1} parent=1 // pred_check
      _
    $region43: #{tpu_custom_call.1} parent=1 // pred_check_branch
      %79 = sbr.rel (0) target = $region45
    $region44: #{tpu_custom_call.1} parent=1 // pred_region
      %s81 = ssub.s32 2560, 2560
      %82 = vsyncadd [#allocation7], %s81
      %s83 = sshll.u32 [#allocation8], 4
      %s84 = int_to_ptr.vmem [resolvable:$true] %s83
      %89 = dma.hbm_to_vmem [thread:$0]  %s10, 2560, %s84, [#allocation7], 64, 64, 4
    $region45: #{tpu_custom_call.1} parent=1 // pred_fallthru
      _
    // Predicated region
    $region46: #{tpu_custom_call.1} parent=1 // pred_check
      _
    $region47: #{tpu_custom_call.1} parent=1 // pred_check_branch
      %91 = sbr.rel (0) target = $region49
    $region48: #{tpu_custom_call.1} parent=1 // pred_region
      _
    $region49: #{tpu_custom_call.1} parent=1 // pred_fallthru
      _
    // Predicated region
    $region50: #{tpu_custom_call.1} parent=1 // pred_check
      _
    $region51: #{tpu_custom_call.1} parent=1 // pred_check_branch
      %93 = sbr.rel (0) target = $region53
    $region52: #{tpu_custom_call.1} parent=1 // pred_region
      _
    $region53: #{tpu_custom_call.1} parent=1 // pred_fallthru
      _
    // Predicated region
    $region54: #{tpu_custom_call.1} parent=1 // pred_check
      _
    $region55: #{tpu_custom_call.1} parent=1 // pred_check_branch
      %95 = sbr.rel (0) target = $region57
    $region56: #{tpu_custom_call.1} parent=1 // pred_region
      _
    $region57: #{tpu_custom_call.1} parent=1 // pred_fallthru
      _
    // Predicated region
    $region58: #{tpu_custom_call.1} parent=1 // pred_check
      _
    $region59: #{tpu_custom_call.1} parent=1 // pred_check_branch
      %97 = sbr.rel (0) target = $region61
    $region60: #{tpu_custom_call.1} parent=1 // pred_region
      %s99 = ssub.s32 2560, 2560
      %100 = vsyncadd [#allocation10], %s99
      %s101 = sshll.u32 [#allocation9], 4
      %s102 = int_to_ptr.vmem [resolvable:$true] %s101
      %107 = dma.hbm_to_vmem [thread:$0]  %s14, 2560, %s102, [#allocation10], 64, 64, 4
    $region61: #{tpu_custom_call.1} parent=1 // pred_fallthru
      _
    // Predicated region
    $region62: #{tpu_custom_call.1} parent=1 // pred_check
      _
    $region63: #{tpu_custom_call.1} parent=1 // pred_check_branch
      %109 = sbr.rel (0) target = $region65
    $region64: #{tpu_custom_call.1} parent=1 // pred_region
      %s111 = ssub.s32 2560, 2560
      %112 = vsyncadd [#allocation10], %s111
      %s113 = sshll.u32 [#allocation11], 4
      %s114 = int_to_ptr.vmem [resolvable:$true] %s113
      %119 = dma.hbm_to_vmem [thread:$0]  %s15, 2560, %s114, [#allocation10], 64, 64, 4
    $region65: #{tpu_custom_call.1} parent=1 // pred_fallthru
      _
    // Predicated region
    $region66: #{tpu_custom_call.1} parent=1 // pred_check
      _
    $region67: #{tpu_custom_call.1} parent=1 // pred_check_branch
      %121 = sbr.rel (0) target = $region69
    $region68: #{tpu_custom_call.1} parent=1 // pred_region
      _
    $region69: #{tpu_custom_call.1} parent=1 // pred_fallthru
      _
    // Predicated region
    $region70: #{tpu_custom_call.1} parent=1 // pred_check
      _
    $region71: #{tpu_custom_call.1} parent=1 // pred_check_branch
      %123 = sbr.rel (0) target = $region73
    $region72: #{tpu_custom_call.1} parent=1 // pred_region
      _
    $region73: #{tpu_custom_call.1} parent=1 // pred_fallthru
      _
    // Predicated region
    $region74: #{tpu_custom_call.1} parent=1 // pred_check
      _
    $region75: #{tpu_custom_call.1} parent=1 // pred_check_branch
      %125 = sbr.rel (0) target = $region77
    $region76: #{tpu_custom_call.1} parent=1 // pred_region
      _
    $region77: #{tpu_custom_call.1} parent=1 // pred_fallthru
      _
    // Predicated region
    $region78: #{tpu_custom_call.1} parent=1 // pred_check
      _
    $region79: #{tpu_custom_call.1} parent=1 // pred_check_branch
      %127 = sbr.rel (0) target = $region81
    $region80: #{tpu_custom_call.1} parent=1 // pred_region
      %s129 = ssub.s32 2560, 2560
      %130 = vsyncadd [#allocation13], %s129
      %s131 = sshll.u32 [#allocation12], 4
      %s132 = int_to_ptr.vmem [resolvable:$true] %s131
      %137 = dma.hbm_to_vmem [thread:$0]  %s19, 2560, %s132, [#allocation13], 64, 64, 4
    $region81: #{tpu_custom_call.1} parent=1 // pred_fallthru
      _
    // Predicated region
    $region82: #{tpu_custom_call.1} parent=1 // pred_check
      _
    $region83: #{tpu_custom_call.1} parent=1 // pred_check_branch
      %139 = sbr.rel (0) target = $region85
    $region84: #{tpu_custom_call.1} parent=1 // pred_region
      _
    $region85: #{tpu_custom_call.1} parent=1 // pred_fallthru
      _
    // Predicated region
    $region86: #{tpu_custom_call.1} parent=1 // pred_check
      _
    $region87: #{tpu_custom_call.1} parent=1 // pred_check_branch
      %141 = sbr.rel (0) target = $region89
    $region88: #{tpu_custom_call.1} parent=1 // pred_region
      _
    $region89: #{tpu_custom_call.1} parent=1 // pred_fallthru
      _
    // Predicated region
    $region90: #{tpu_custom_call.1} parent=1 // pred_check
      _
    $region91: #{tpu_custom_call.1} parent=1 // pred_check_branch
      %143 = sbr.rel (0) target = $region93
    $region92: #{tpu_custom_call.1} parent=1 // pred_region
      _
    $region93: #{tpu_custom_call.1} parent=1 // pred_fallthru
      _
    // Predicated region
    $region94: #{tpu_custom_call.1} parent=1 // pred_check
      _
    $region95: #{tpu_custom_call.1} parent=1 // pred_check_branch
      %145 = sbr.rel (0) target = $region97
    $region96: #{tpu_custom_call.1} parent=1 // pred_region
      _
    $region97: #{tpu_custom_call.1} parent=1 // pred_fallthru
      _
    // Predicated region
    $region98: #{tpu_custom_call.1} parent=1 // pred_check
      _
    $region99: #{tpu_custom_call.1} parent=1 // pred_check_branch
      %147 = sbr.rel (0) target = $region101
    $region100: #{tpu_custom_call.1} parent=1 // pred_region
      _
    $region101: #{tpu_custom_call.1} parent=1 // pred_fallthru
      _
    // Predicated region
    $region102: #{tpu_custom_call.1} parent=1 // pred_check
      _
    $region103: #{tpu_custom_call.1} parent=1 // pred_check_branch
      %149 = sbr.rel (0) target = $region105
    $region104: #{tpu_custom_call.1} parent=1 // pred_region
      _
    $region105: #{tpu_custom_call.1} parent=1 // pred_fallthru
      _
    // Predicated region
    $region106: #{tpu_custom_call.1} parent=1 // pred_check
      _
    $region107: #{tpu_custom_call.1} parent=1 // pred_check_branch
      %151 = sbr.rel (0) target = $region109
    $region108: #{tpu_custom_call.1} parent=1 // pred_region
      _
    $region109: #{tpu_custom_call.1} parent=1 // pred_fallthru
      _
    // Predicated region
    $region110: #{tpu_custom_call.1} parent=1 // pred_check
      _
    $region111: #{tpu_custom_call.1} parent=1 // pred_check_branch
      %153 = sbr.rel (0) target = $region113
    $region112: #{tpu_custom_call.1} parent=1 // pred_region
      _
    $region113: #{tpu_custom_call.1} parent=1 // pred_fallthru
      _
    // Predicated region
    $region114: #{tpu_custom_call.1} parent=1 // pred_check
      _
    $region115: #{tpu_custom_call.1} parent=1 // pred_check_branch
      %155 = sbr.rel (0) target = $region117
    $region116: #{tpu_custom_call.1} parent=1 // pred_region
      %156 = dma.done [#allocation4], 16
    $region117: #{tpu_custom_call.1} parent=1 // pred_fallthru
      _
    // Predicated region
    $region118: #{tpu_custom_call.1} parent=1 // pred_check
      _
    $region119: #{tpu_custom_call.1} parent=1 // pred_check_branch
      %158 = sbr.rel (0) target = $region121
    $region120: #{tpu_custom_call.1} parent=1 // pred_region
      %159 = dma.done [#allocation7], 2560
    $region121: #{tpu_custom_call.1} parent=1 // pred_fallthru
      _
    // Predicated region
    $region122: #{tpu_custom_call.1} parent=1 // pred_check
      _
    $region123: #{tpu_custom_call.1} parent=1 // pred_check_branch
      %161 = sbr.rel (0) target = $region125
    $region124: #{tpu_custom_call.1} parent=1 // pred_region
      %162 = dma.done [#allocation7], 2560
    $region125: #{tpu_custom_call.1} parent=1 // pred_fallthru
      _
    // Predicated region
    $region126: #{tpu_custom_call.1} parent=1 // pred_check
      _
    $region127: #{tpu_custom_call.1} parent=1 // pred_check_branch
      %164 = sbr.rel (0) target = $region129
    $region128: #{tpu_custom_call.1} parent=1 // pred_region
      %165 = dma.done [#allocation10], 2560
    $region129: #{tpu_custom_call.1} parent=1 // pred_fallthru
      _
    // Predicated region
    $region130: #{tpu_custom_call.1} parent=1 // pred_check
      _
    $region131: #{tpu_custom_call.1} parent=1 // pred_check_branch
      %167 = sbr.rel (0) target = $region133
    $region132: #{tpu_custom_call.1} parent=1 // pred_region
      %168 = dma.done [#allocation10], 2560
    $region133: #{tpu_custom_call.1} parent=1 // pred_fallthru
      _
    // Predicated region
    $region134: #{tpu_custom_call.1} parent=1 // pred_check
      _
    $region135: #{tpu_custom_call.1} parent=1 // pred_check_branch
      %170 = sbr.rel (0) target = $region137
    $region136: #{tpu_custom_call.1} parent=1 // pred_region
      %171 = dma.done [#allocation13], 2560
    $region137: #{tpu_custom_call.1} parent=1 // pred_fallthru
      _
    %v173 = vld [vmem:[%s1] sm:$0xff]
    %v174 = vld [vmem:[%s1 + $0x8] sm:$0xff]
    %v175 = vld [vmem:[%s1 + $0x10] sm:$0xff]
    %v176 = vld [vmem:[%s1 + $0x18] sm:$0xff]
    %v177 = vld [vmem:[%s2] sm:$0xff]
    %v178 = vld [vmem:[%s2 + $0x8] sm:$0xff]
    %v179 = vld [vmem:[%s2 + $0x10] sm:$0xff]
    %v180 = vld [vmem:[%s2 + $0x18] sm:$0xff]
    %v181 = vlaneseq
    %v182 = vand.u32 %v181, 127
    %183 = vset.pattern.permute.xlu0 0
    %184 = vperm.xlu0 %183, %v173
    %v185 = vpop.permute.xlu0 %184
    %186 = vset.pattern.permute.xlu0 0
    %187 = vperm.xlu0 %186, %v174
    %v188 = vpop.permute.xlu0 %187
    %189 = vset.pattern.permute.xlu0 0
    %190 = vperm.xlu0 %189, %v175
    %v191 = vpop.permute.xlu0 %190
    %192 = vset.pattern.permute.xlu0 0
    %193 = vperm.xlu0 %192, %v176
    %v194 = vpop.permute.xlu0 %193
    %vm195 = vcmp.eq.s32.totalorder %v185, %v182
    %vm196 = vcmp.eq.s32.totalorder %v188, %v182
    %vm197 = vcmp.eq.s32.totalorder %v191, %v182
    %vm198 = vcmp.eq.s32.totalorder %v194, %v182
    %v199 = vsel %vm195, 1, 0
    %v200 = vsel %vm196, 1, 0
    %v201 = vsel %vm197, 1, 0
    %v202 = vsel %vm198, 1, 0
    %v203 = vcvt.s32.f32 %v199
    %v204 = vcvt.s32.f32 %v200
    %v205 = vcvt.s32.f32 %v201
    %v206 = vcvt.s32.f32 %v202
    %207 = vset.pattern.permute.xlu0 0
    %208 = vperm.xlu0 %207, %v177
    %v209 = vpop.permute.xlu0 %208
    %210 = vset.pattern.permute.xlu0 0
    %211 = vperm.xlu0 %210, %v178
    %v212 = vpop.permute.xlu0 %211
    %213 = vset.pattern.permute.xlu0 0
    %214 = vperm.xlu0 %213, %v179
    %v215 = vpop.permute.xlu0 %214
    %216 = vset.pattern.permute.xlu0 0
    %217 = vperm.xlu0 %216, %v180
    %v218 = vpop.permute.xlu0 %217
    %vm219 = vcmp.eq.s32.totalorder %v209, %v182
    %vm220 = vcmp.eq.s32.totalorder %v212, %v182
    %vm221 = vcmp.eq.s32.totalorder %v215, %v182
    %vm222 = vcmp.eq.s32.totalorder %v218, %v182
    %v223 = vsel %vm219, 1, 0
    %v224 = vsel %vm220, 1, 0
    %v225 = vsel %vm221, 1, 0
    %v226 = vsel %vm222, 1, 0
    %v227 = vcvt.s32.f32 %v223
    %v228 = vcvt.s32.f32 %v224
    %v229 = vcvt.s32.f32 %v225
    %v230 = vcvt.s32.f32 %v226
    %vm231 = vcmp.eq.s32.totalorder %v182, %v185
    %vm232 = vcmp.eq.s32.totalorder %v182, %v188
    %vm233 = vcmp.eq.s32.totalorder %v182, %v191
    %vm234 = vcmp.eq.s32.totalorder %v182, %v194
    %v235 = vadd.s32 %v177, 16
    %v236 = vadd.s32 %v178, 16
    %v237 = vadd.s32 %v179, 16
    %v238 = vadd.s32 %v180, 16
    %239 = vset.pattern.permute.xlu0 0
    %240 = vperm.xlu0 %239, %v235
    %v241 = vpop.permute.xlu0 %240
    %242 = vset.pattern.permute.xlu0 0
    %243 = vperm.xlu0 %242, %v236
    %v244 = vpop.permute.xlu0 %243
    %245 = vset.pattern.permute.xlu0 0
    %246 = vperm.xlu0 %245, %v237
    %v247 = vpop.permute.xlu0 %246
    %248 = vset.pattern.permute.xlu0 0
    %249 = vperm.xlu0 %248, %v238
    %v250 = vpop.permute.xlu0 %249
    %vm251 = vcmp.eq.s32.totalorder %v182, %v241
    %vm252 = vcmp.eq.s32.totalorder %v182, %v244
    %vm253 = vcmp.eq.s32.totalorder %v182, %v247
    %vm254 = vcmp.eq.s32.totalorder %v182, %v250
    %vm255 = vmor %vm231, %vm251
    %vm256 = vmor %vm232, %vm252
    %vm257 = vmor %vm233, %vm253
    %vm258 = vmor %vm234, %vm254
    %v259 = vsel %vm255, 1, 0
    %v260 = vsel %vm256, 1, 0
    %v261 = vsel %vm257, 1, 0
    %v262 = vsel %vm258, 1, 0
    %v263 = vcvt.s32.f32 %v259
    %v264 = vcvt.s32.f32 %v260
    %v265 = vcvt.s32.f32 %v261
    %v266 = vcvt.s32.f32 %v262
    %v267 = vld [vmem:[%s0] sm:$0xff]
    %v268 = vld [vmem:[%s0 + $0x8] sm:$0xff]
    %v269 = vld [vmem:[%s3] sm:$0x3f]
    %v270 = vld [vmem:[#allocation3] sm:$0x1]
    %v272 = vlaneseq
    %v273 = vshrl.u32 %v272, 7
    %v274 = vsub.s32 0, %v273
    %v275 = vrot.slane %v270, %v274
    %vm277 = vcmask 48128
    %v279 = vsel %vm277, %v267, 0
    %v282 = vsel %vm277, %v268, 0
    %vm284 = vcmask 1045504
    %v286 = vsel %vm284, %v269, 0
    %288 = vmatprep.subr.mxu0 0.0
    %289 = vmatpush1.msra.mxu0 %v286
    %290 = vmatprep.subr.mxu0 0.0
    %291 = vmatpush1.msra.mxu0 0.0
    %292 = vmatprep.subr.mxu0 0.0
    %293 = vmatpush1.msra.mxu0 0.0
    %294 = vmatprep.subr.mxu0 0.0
    %295 = vmatpush1.msra.mxu0 0.0
    %296 = vmatprep.subr.mxu0 0.0
    %297 = vmatpush1.msra.mxu0 0.0
    %298 = vmatprep.subr.mxu0 0.0
    %299 = vmatpush1.msra.mxu0 0.0
    %300 = vmatprep.subr.mxu0 0.0
    %301 = vmatpush1.msra.mxu0 0.0
    %302 = vmatprep.subr.mxu0 0.0
    %303 = vmatpush1.msra.mxu0 0.0
    %304 = vmatprep.subr.mxu0 0.0
    %305 = vmatpush1.msra.mxu0 0.0
    %306 = vmatprep.subr.mxu0 0.0
    %307 = vmatpush1.msra.mxu0 0.0
    %308 = vmatprep.subr.mxu0 0.0
    %309 = vmatpush1.msra.mxu0 0.0
    %310 = vmatprep.subr.mxu0 0.0
    %311 = vmatpush1.msra.mxu0 0.0
    %312 = vmatprep.subr.mxu0 0.0
    %313 = vmatpush1.msra.mxu0 0.0
    %314 = vmatprep.subr.mxu0 0.0
    %315 = vmatpush1.msra.mxu0 0.0
    %316 = vmatprep.subr.mxu0 0.0
    %317 = vmatpush1.msra.mxu0 0.0
    %318 = vmatprep.subr.mxu0 0.0
    %319 = vmatpush1.msra.mxu0 0.0
    %320 = vmatprep.subr.mxu0 0.0
    %321 = vmatpush1.msra.mxu0 0.0
    %322 = vmatprep.subr.mxu0 0.0
    %323 = vmatpush1.msra.mxu0 0.0
    %324 = vmatprep.subr.mxu0 0.0
    %325 = vmatpush1.msra.mxu0 0.0
    %326 = vmatprep.subr.mxu0 0.0
    %327 = vmatpush1.msra.mxu0 0.0
    %328 = vmatprep.subr.mxu0 0.0
    %329 = vmatpush1.msra.mxu0 0.0
    %330 = vmatprep.subr.mxu0 0.0
    %331 = vmatpush1.msra.mxu0 0.0
    %332 = vmatprep.subr.mxu0 0.0
    %333 = vmatpush1.msra.mxu0 0.0
    %334 = vmatprep.subr.mxu0 0.0
    %335 = vmatpush1.msra.mxu0 0.0
    %336 = vmatprep.subr.mxu0 0.0
    %337 = vmatpush1.msra.mxu0 0.0
    %338 = vmatprep.subr.mxu0 0.0
    %339 = vmatpush1.msra.mxu0 0.0
    %340 = vmatprep.subr.mxu0 0.0
    %341 = vmatpush1.msra.mxu0 0.0
    %342 = vmatprep.subr.mxu0 0.0
    %343 = vmatpush1.msra.mxu0 0.0
    %344 = vmatprep.subr.mxu0 0.0
    %345 = vmatpush1.msra.mxu0 0.0
    %346 = vmatprep.subr.mxu0 0.0
    %347 = vmatpush1.msra.mxu0 0.0
    %348 = vmatprep.subr.mxu0 0.0
    %349 = vmatpush1.msra.mxu0 0.0
    %350 = vmatprep.subr.mxu0 0.0
    %351 = vmatpush1.msra.mxu0 0.0
    %352 = vmatprep.mubr.f32.mxu0 0.0
    %353 = vmatmul.mubr.f32.gmra.mrb[0].mxu0 %v279
    %v354 = vpop.f32.mrb[0].mxu0
    %v355 = vadd.f32 %v275, %v354
    %v356 = vpop.f32.mrb[0].mxu0
    %357 = vmatprep.mubr.f32.mxu0 0.0
    %358 = vmatmul.mubr.f32.gmra.mrb[0].mxu0 %v282
    %v359 = vpop.f32.mrb[0].mxu0
    %v360 = vadd.f32 %v275, %v359
    %v361 = vpop.f32.mrb[0].mxu0
    %362 = vdwg.mxu0
    %v363 = vld [vmem:[%s5] sm:$0xf]
    %v364 = vld [vmem:[%s5 + $0x4] sm:$0xf]
    %v365 = vld [vmem:[%s5 + $0x8] sm:$0xf]
    %v366 = vld [vmem:[%s5 + $0xc] sm:$0xf]
    %v367 = vld [vmem:[%s5 + $0x10] sm:$0xf]
    %v368 = vld [vmem:[%s5 + $0x14] sm:$0xf]
    %v369 = vld [vmem:[%s5 + $0x18] sm:$0xf]
    %v370 = vld [vmem:[%s5 + $0x1c] sm:$0xf]
    %v371 = vpack.c.bf16 %v360, %v355
    %v380 = vunpack.c.l.b16 %v363
    %v381 = vunpack.c.l.b16 %v364
    %v382 = vunpack.c.l.b16 %v365
    %v383 = vunpack.c.l.b16 %v366
    %v384 = vunpack.c.l.b16 %v367
    %v385 = vunpack.c.l.b16 %v368
    %v386 = vunpack.c.l.b16 %v369
    %v387 = vunpack.c.l.b16 %v370
    %v388 = vpack.c.b16 %v381, %v380
    %v389 = vpack.c.b16 %v383, %v382
    %v390 = vpack.c.b16 %v385, %v384
    %v391 = vpack.c.b16 %v387, %v386
    %vm396 = vcmask 523264
    %v398 = vsel %vm396, %v371, 0
    %400 = vmatprep.subr.bf16.mxu0 0
    %401 = vmatpush1.bf16.msra.mxu0 %v388
    %402 = vmatprep.subr.bf16.mxu0 0
    %403 = vmatpush1.bf16.msra.mxu0 %v389
    %404 = vmatprep.subr.bf16.mxu0 0
    %405 = vmatpush1.bf16.msra.mxu0 %v390
    %406 = vmatprep.subr.bf16.mxu0 0
    %407 = vmatpush1.bf16.msra.mxu0 %v391
    %408 = vmatprep.subr.bf16.mxu0 0
    %409 = vmatpush1.bf16.msra.mxu0 0
    %410 = vmatprep.subr.bf16.mxu0 0
    %411 = vmatpush1.bf16.msra.mxu0 0
    %412 = vmatprep.subr.bf16.mxu0 0
    %413 = vmatpush1.bf16.msra.mxu0 0
    %414 = vmatprep.subr.bf16.mxu0 0
    %415 = vmatpush1.bf16.msra.mxu0 0
    %416 = vmatprep.subr.bf16.mxu0 0
    %417 = vmatpush1.bf16.msra.mxu0 0
    %418 = vmatprep.subr.bf16.mxu0 0
    %419 = vmatpush1.bf16.msra.mxu0 0
    %420 = vmatprep.subr.bf16.mxu0 0
    %421 = vmatpush1.bf16.msra.mxu0 0
    %422 = vmatprep.subr.bf16.mxu0 0
    %423 = vmatpush1.bf16.msra.mxu0 0
    %424 = vmatprep.subr.bf16.mxu0 0
    %425 = vmatpush1.bf16.msra.mxu0 0
    %426 = vmatprep.subr.bf16.mxu0 0
    %427 = vmatpush1.bf16.msra.mxu0 0
    %428 = vmatprep.subr.bf16.mxu0 0
    %429 = vmatpush1.bf16.msra.mxu0 0
    %430 = vmatprep.subr.bf16.mxu0 0
    %431 = vmatpush1.bf16.msra.mxu0 0
    %432 = vmatprep.mubr.bf16.mxu0 0
    %433 = vmatmul.mubr.bf16.gmra.mrb[0].mxu0 %v398
    %v434 = vpop.f32.mrb[0].mxu0
    %v435 = vadd.f32 0.0, %v434
    %v436 = vpop.f32.mrb[0].mxu0
    %v437 = vpop.f32.mrb[0].mxu0
    %v438 = vadd.f32 0.0, %v437
    %v439 = vpop.f32.mrb[0].mxu0
    %440 = vdwg.mxu0
    %v441 = vld [vmem:[#allocation6] sm:$0xf]
    %v442 = vld [vmem:[#allocation6 + $0x4] sm:$0xf]
    %v443 = vld [vmem:[#allocation6 + $0x8] sm:$0xf]
    %v444 = vld [vmem:[#allocation6 + $0xc] sm:$0xf]
    %v445 = vld [vmem:[#allocation6 + $0x10] sm:$0xf]
    %v446 = vld [vmem:[#allocation6 + $0x14] sm:$0xf]
    %v447 = vld [vmem:[#allocation6 + $0x18] sm:$0xf]
    %v448 = vld [vmem:[#allocation6 + $0x1c] sm:$0xf]
    %v457 = vunpack.c.l.b16 %v441
    %v458 = vunpack.c.l.b16 %v442
    %v459 = vunpack.c.l.b16 %v443
    %v460 = vunpack.c.l.b16 %v444
    %v461 = vunpack.c.l.b16 %v445
    %v462 = vunpack.c.l.b16 %v446
    %v463 = vunpack.c.l.b16 %v447
    %v464 = vunpack.c.l.b16 %v448
    %v465 = vpack.c.b16 %v458, %v457
    %v466 = vpack.c.b16 %v460, %v459
    %v467 = vpack.c.b16 %v462, %v461
    %v468 = vpack.c.b16 %v464, %v463
    %473 = vmatprep.subr.bf16.mxu0 0
    %474 = vmatpush1.bf16.msra.mxu0 %v465
    %475 = vmatprep.subr.bf16.mxu0 0
    %476 = vmatpush1.bf16.msra.mxu0 %v466
    %477 = vmatprep.subr.bf16.mxu0 0
    %478 = vmatpush1.bf16.msra.mxu0 %v467
    %479 = vmatprep.subr.bf16.mxu0 0
    %480 = vmatpush1.bf16.msra.mxu0 %v468
    %481 = vmatprep.subr.bf16.mxu0 0
    %482 = vmatpush1.bf16.msra.mxu0 0
    %483 = vmatprep.subr.bf16.mxu0 0
    %484 = vmatpush1.bf16.msra.mxu0 0
    %485 = vmatprep.subr.bf16.mxu0 0
    %486 = vmatpush1.bf16.msra.mxu0 0
    %487 = vmatprep.subr.bf16.mxu0 0
    %488 = vmatpush1.bf16.msra.mxu0 0
    %489 = vmatprep.subr.bf16.mxu0 0
    %490 = vmatpush1.bf16.msra.mxu0 0
    %491 = vmatprep.subr.bf16.mxu0 0
    %492 = vmatpush1.bf16.msra.mxu0 0
    %493 = vmatprep.subr.bf16.mxu0 0
    %494 = vmatpush1.bf16.msra.mxu0 0
    %495 = vmatprep.subr.bf16.mxu0 0
    %496 = vmatpush1.bf16.msra.mxu0 0
    %497 = vmatprep.subr.bf16.mxu0 0
    %498 = vmatpush1.bf16.msra.mxu0 0
    %499 = vmatprep.subr.bf16.mxu0 0
    %500 = vmatpush1.bf16.msra.mxu0 0
    %501 = vmatprep.subr.bf16.mxu0 0
    %502 = vmatpush1.bf16.msra.mxu0 0
    %503 = vmatprep.subr.bf16.mxu0 0
    %504 = vmatpush1.bf16.msra.mxu0 0
    %505 = vmatprep.mubr.bf16.mxu0 0
    %506 = vmatmul.mubr.bf16.gmra.mrb[0].mxu0 %v398
    %v507 = vpop.f32.mrb[0].mxu0
    %v508 = vadd.f32 0.0, %v507
    %v509 = vpop.f32.mrb[0].mxu0
    %v510 = vpop.f32.mrb[0].mxu0
    %v511 = vadd.f32 0.0, %v510
    %v512 = vpop.f32.mrb[0].mxu0
    %513 = vdwg.mxu0
    %v514 = vld [vmem:[%s7] sm:$0x1]
    %v516 = vlaneseq
    %v517 = vshrl.u32 %v516, 7
    %v518 = vsub.s32 0, %v517
    %v519 = vrot.slane %v514, %v518
    %vm521 = vcmask 261120
    %v523 = vsel %vm521, %v263, 0
    %v526 = vsel %vm521, %v264, 0
    %v529 = vsel %vm521, %v265, 0
    %v532 = vsel %vm521, %v266, 0
    %534 = vmatprep.subr.mxu0 0.0
    %535 = vmatpush1.msra.mxu0 %v435
    %536 = vmatprep.subr.mxu0 0.0
    %537 = vmatpush1.msra.mxu0 %v438
    %538 = vmatprep.subr.mxu0 0.0
    %539 = vmatpush1.msra.mxu0 %v508
    %540 = vmatprep.subr.mxu0 0.0
    %541 = vmatpush1.msra.mxu0 %v511
    %542 = vmatprep.subr.mxu0 0.0
    %543 = vmatpush1.msra.mxu0 0.0
    %544 = vmatprep.subr.mxu0 0.0
    %545 = vmatpush1.msra.mxu0 0.0
    %546 = vmatprep.subr.mxu0 0.0
    %547 = vmatpush1.msra.mxu0 0.0
    %548 = vmatprep.subr.mxu0 0.0
    %549 = vmatpush1.msra.mxu0 0.0
    %550 = vmatprep.subr.mxu0 0.0
    %551 = vmatpush1.msra.mxu0 0.0
    %552 = vmatprep.subr.mxu0 0.0
    %553 = vmatpush1.msra.mxu0 0.0
    %554 = vmatprep.subr.mxu0 0.0
    %555 = vmatpush1.msra.mxu0 0.0
    %556 = vmatprep.subr.mxu0 0.0
    %557 = vmatpush1.msra.mxu0 0.0
    %558 = vmatprep.subr.mxu0 0.0
    %559 = vmatpush1.msra.mxu0 0.0
    %560 = vmatprep.subr.mxu0 0.0
    %561 = vmatpush1.msra.mxu0 0.0
    %562 = vmatprep.subr.mxu0 0.0
    %563 = vmatpush1.msra.mxu0 0.0
    %564 = vmatprep.subr.mxu0 0.0
    %565 = vmatpush1.msra.mxu0 0.0
    %566 = vmatprep.subr.mxu0 0.0
    %567 = vmatpush1.msra.mxu0 0.0
    %568 = vmatprep.subr.mxu0 0.0
    %569 = vmatpush1.msra.mxu0 0.0
    %570 = vmatprep.subr.mxu0 0.0
    %571 = vmatpush1.msra.mxu0 0.0
    %572 = vmatprep.subr.mxu0 0.0
    %573 = vmatpush1.msra.mxu0 0.0
    %574 = vmatprep.subr.mxu0 0.0
    %575 = vmatpush1.msra.mxu0 0.0
    %576 = vmatprep.subr.mxu0 0.0
    %577 = vmatpush1.msra.mxu0 0.0
    %578 = vmatprep.subr.mxu0 0.0
    %579 = vmatpush1.msra.mxu0 0.0
    %580 = vmatprep.subr.mxu0 0.0
    %581 = vmatpush1.msra.mxu0 0.0
    %582 = vmatprep.subr.mxu0 0.0
    %583 = vmatpush1.msra.mxu0 0.0
    %584 = vmatprep.subr.mxu0 0.0
    %585 = vmatpush1.msra.mxu0 0.0
    %586 = vmatprep.subr.mxu0 0.0
    %587 = vmatpush1.msra.mxu0 0.0
    %588 = vmatprep.subr.mxu0 0.0
    %589 = vmatpush1.msra.mxu0 0.0
    %590 = vmatprep.subr.mxu0 0.0
    %591 = vmatpush1.msra.mxu0 0.0
    %592 = vmatprep.subr.mxu0 0.0
    %593 = vmatpush1.msra.mxu0 0.0
    %594 = vmatprep.subr.mxu0 0.0
    %595 = vmatpush1.msra.mxu0 0.0
    %596 = vmatprep.subr.mxu0 0.0
    %597 = vmatpush1.msra.mxu0 0.0
    %598 = vmatprep.mubr.f32.mxu0 0.0
    %599 = vmatmul.mubr.f32.gmra.mrb[0].mxu0 %v523
    %v600 = vpop.f32.mrb[0].mxu0
    %v601 = vadd.f32 %v519, %v600
    %v602 = vpop.f32.mrb[0].mxu0
    %603 = vmatprep.mubr.f32.mxu0 0.0
    %604 = vmatmul.mubr.f32.gmra.mrb[0].mxu0 %v526
    %v605 = vpop.f32.mrb[0].mxu0
    %v606 = vadd.f32 %v519, %v605
    %v607 = vpop.f32.mrb[0].mxu0
    %608 = vmatprep.mubr.f32.mxu0 0.0
    %609 = vmatmul.mubr.f32.gmra.mrb[0].mxu0 %v529
    %v610 = vpop.f32.mrb[0].mxu0
    %v611 = vadd.f32 %v519, %v610
    %v612 = vpop.f32.mrb[0].mxu0
    %613 = vmatprep.mubr.f32.mxu0 0.0
    %614 = vmatmul.mubr.f32.gmra.mrb[0].mxu0 %v532
    %v615 = vpop.f32.mrb[0].mxu0
    %v616 = vadd.f32 %v519, %v615
    %v617 = vpop.f32.mrb[0].mxu0
    %618 = vdwg.mxu0
    %v619 = vld [vmem:[%s8] sm:$0x1]
    %v620 = vld [vmem:[%s9] sm:$0x1]
    %v621 = vsel %vm396, %v601, 0.0
    %v622 = vsel %vm396, %v606, 0.0
    %v623 = vadd.f32 %v621, %v622
    %v624 = vsel %vm396, %v611, 0.0
    %v625 = vadd.f32 %v623, %v624
    %v626 = vsel %vm396, %v616, 0.0
    %v627 = vadd.f32 %v625, %v626
    %v628 = vrot.slane %v627, 4
    %v629 = vadd.f32 %v627, %v628
    %v630 = vrot.slane %v629, 2
    %v631 = vadd.f32 %v629, %v630
    %v632 = vrot.slane %v631, 1
    %v633 = vadd.f32 %v631, %v632
    %v634 = vrcp.pop 32.0
    %v635 = vmul.f32 %v633, %v634
    %v636 = vmul.f32 %v601, %v601
    %v637 = vmul.f32 %v606, %v606
    %v638 = vmul.f32 %v611, %v611
    %v639 = vmul.f32 %v616, %v616
    %v640 = vsel %vm396, %v636, 0.0
    %v641 = vsel %vm396, %v637, 0.0
    %v642 = vadd.f32 %v640, %v641
    %v643 = vsel %vm396, %v638, 0.0
    %v644 = vadd.f32 %v642, %v643
    %v645 = vsel %vm396, %v639, 0.0
    %v646 = vadd.f32 %v644, %v645
    %v647 = vrot.slane %v646, 4
    %v648 = vadd.f32 %v646, %v647
    %v649 = vrot.slane %v648, 2
    %v650 = vadd.f32 %v648, %v649
    %v651 = vrot.slane %v650, 1
    %v652 = vadd.f32 %v650, %v651
    %v653 = vmul.f32 %v652, %v634
    %v654 = vmul.f32 %v635, %v635
    %v655 = vsub.f32 %v653, %v654
    %v656 = vsub.f32 %v601, %v635
    %v657 = vsub.f32 %v606, %v635
    %v658 = vsub.f32 %v611, %v635
    %v659 = vsub.f32 %v616, %v635
    %v660 = vadd.f32 %v655, 1e-05
    %v661 = vrsqrt.pop %v660
    %v662 = vmul.f32 %v656, %v661
    %v663 = vmul.f32 %v657, %v661
    %v664 = vmul.f32 %v658, %v661
    %v665 = vmul.f32 %v659, %v661
    %v667 = vlaneseq
    %v668 = vshrl.u32 %v667, 7
    %v669 = vsub.s32 0, %v668
    %v670 = vrot.slane %v619, %v669
    %v672 = vmul.f32 %v662, %v670
    %v673 = vmul.f32 %v663, %v670
    %v674 = vmul.f32 %v664, %v670
    %v675 = vmul.f32 %v665, %v670
    %v677 = vlaneseq
    %v678 = vshrl.u32 %v677, 7
    %v679 = vsub.s32 0, %v678
    %v680 = vrot.slane %v620, %v679
    %v682 = vadd.f32 %v672, %v680
    %v683 = vadd.f32 %v673, %v680
    %v684 = vadd.f32 %v674, %v680
    %v685 = vadd.f32 %v675, %v680
    %v686 = vmax.f32 %v682, 0.0
    %v687 = vmax.f32 %v683, 0.0
    %v688 = vmax.f32 %v684, 0.0
    %v689 = vmax.f32 %v685, 0.0
    %v690 = vld [vmem:[#allocation8] sm:$0xf]
    %v691 = vld [vmem:[#allocation8 + $0x4] sm:$0xf]
    %v692 = vld [vmem:[#allocation8 + $0x8] sm:$0xf]
    %v693 = vld [vmem:[#allocation8 + $0xc] sm:$0xf]
    %v694 = vld [vmem:[#allocation8 + $0x10] sm:$0xf]
    %v695 = vld [vmem:[#allocation8 + $0x14] sm:$0xf]
    %v696 = vld [vmem:[#allocation8 + $0x18] sm:$0xf]
    %v697 = vld [vmem:[#allocation8 + $0x1c] sm:$0xf]
    %v698 = vpack.c.bf16 %v687, %v686
    %v699 = vpack.c.bf16 %v689, %v688
    %v700 = vld [vmem:[%s11] sm:$0x1]
    %v702 = vlaneseq
    %v703 = vshrl.u32 %v702, 7
    %v704 = vsub.s32 0, %v703
    %v705 = vrot.slane %v700, %v704
    %v715 = vunpack.c.l.b16 %v690
    %v716 = vunpack.c.l.b16 %v691
    %v717 = vunpack.c.l.b16 %v692
    %v718 = vunpack.c.l.b16 %v693
    %v719 = vunpack.c.l.b16 %v694
    %v720 = vunpack.c.l.b16 %v695
    %v721 = vunpack.c.l.b16 %v696
    %v722 = vunpack.c.l.b16 %v697
    %v723 = vpack.c.b16 %v716, %v715
    %v724 = vpack.c.b16 %v718, %v717
    %v725 = vpack.c.b16 %v720, %v719
    %v726 = vpack.c.b16 %v722, %v721
    %v732 = vsel %vm396, %v698, 0
    %v735 = vsel %vm396, %v699, 0
    %737 = vmatprep.subr.bf16.mxu0 0
    %738 = vmatpush1.bf16.msra.mxu0 %v723
    %739 = vmatprep.subr.bf16.mxu0 0
    %740 = vmatpush1.bf16.msra.mxu0 %v724
    %741 = vmatprep.subr.bf16.mxu0 0
    %742 = vmatpush1.bf16.msra.mxu0 %v725
    %743 = vmatprep.subr.bf16.mxu0 0
    %744 = vmatpush1.bf16.msra.mxu0 %v726
    %745 = vmatprep.subr.bf16.mxu0 0
    %746 = vmatpush1.bf16.msra.mxu0 0
    %747 = vmatprep.subr.bf16.mxu0 0
    %748 = vmatpush1.bf16.msra.mxu0 0
    %749 = vmatprep.subr.bf16.mxu0 0
    %750 = vmatpush1.bf16.msra.mxu0 0
    %751 = vmatprep.subr.bf16.mxu0 0
    %752 = vmatpush1.bf16.msra.mxu0 0
    %753 = vmatprep.subr.bf16.mxu0 0
    %754 = vmatpush1.bf16.msra.mxu0 0
    %755 = vmatprep.subr.bf16.mxu0 0
    %756 = vmatpush1.bf16.msra.mxu0 0
    %757 = vmatprep.subr.bf16.mxu0 0
    %758 = vmatpush1.bf16.msra.mxu0 0
    %759 = vmatprep.subr.bf16.mxu0 0
    %760 = vmatpush1.bf16.msra.mxu0 0
    %761 = vmatprep.subr.bf16.mxu0 0
    %762 = vmatpush1.bf16.msra.mxu0 0
    %763 = vmatprep.subr.bf16.mxu0 0
    %764 = vmatpush1.bf16.msra.mxu0 0
    %765 = vmatprep.subr.bf16.mxu0 0
    %766 = vmatpush1.bf16.msra.mxu0 0
    %767 = vmatprep.subr.bf16.mxu0 0
    %768 = vmatpush1.bf16.msra.mxu0 0
    %769 = vmatprep.mubr.bf16.mxu0 0
    %770 = vmatmul.mubr.bf16.gmra.mrb[0].mxu0 %v732
    %v771 = vpop.f32.mrb[0].mxu0
    %v772 = vadd.f32 %v705, %v771
    %v773 = vpop.f32.mrb[0].mxu0
    %v774 = vpop.f32.mrb[0].mxu0
    %v775 = vadd.f32 %v705, %v774
    %v776 = vpop.f32.mrb[0].mxu0
    %777 = vmatprep.mubr.bf16.mxu0 0
    %778 = vmatmul.mubr.bf16.gmra.mrb[0].mxu0 %v735
    %v779 = vpop.f32.mrb[0].mxu0
    %v780 = vadd.f32 %v705, %v779
    %v781 = vpop.f32.mrb[0].mxu0
    %v782 = vpop.f32.mrb[0].mxu0
    %v783 = vadd.f32 %v705, %v782
    %v784 = vpop.f32.mrb[0].mxu0
    %785 = vdwg.mxu0
    %v786 = vld [vmem:[%s12] sm:$0x1]
    %v787 = vld [vmem:[%s13] sm:$0x1]
    %v788 = vsel %vm396, %v772, 0.0
    %v789 = vsel %vm396, %v775, 0.0
    %v790 = vadd.f32 %v788, %v789
    %v791 = vsel %vm396, %v780, 0.0
    %v792 = vadd.f32 %v790, %v791
    %v793 = vsel %vm396, %v783, 0.0
    %v794 = vadd.f32 %v792, %v793
    %v795 = vrot.slane %v794, 4
    %v796 = vadd.f32 %v794, %v795
    %v797 = vrot.slane %v796, 2
    %v798 = vadd.f32 %v796, %v797
    %v799 = vrot.slane %v798, 1
    %v800 = vadd.f32 %v798, %v799
    %v801 = vmul.f32 %v800, %v634
    %v802 = vmul.f32 %v772, %v772
    %v803 = vmul.f32 %v775, %v775
    %v804 = vmul.f32 %v780, %v780
    %v805 = vmul.f32 %v783, %v783
    %v806 = vsel %vm396, %v802, 0.0
    %v807 = vsel %vm396, %v803, 0.0
    %v808 = vadd.f32 %v806, %v807
    %v809 = vsel %vm396, %v804, 0.0
    %v810 = vadd.f32 %v808, %v809
    %v811 = vsel %vm396, %v805, 0.0
    %v812 = vadd.f32 %v810, %v811
    %v813 = vrot.slane %v812, 4
    %v814 = vadd.f32 %v812, %v813
    %v815 = vrot.slane %v814, 2
    %v816 = vadd.f32 %v814, %v815
    %v817 = vrot.slane %v816, 1
    %v818 = vadd.f32 %v816, %v817
    %v819 = vmul.f32 %v818, %v634
    %v820 = vmul.f32 %v801, %v801
    %v821 = vsub.f32 %v819, %v820
    %v822 = vsub.f32 %v772, %v801
    %v823 = vsub.f32 %v775, %v801
    %v824 = vsub.f32 %v780, %v801
    %v825 = vsub.f32 %v783, %v801
    %v826 = vadd.f32 %v821, 1e-05
    %v827 = vrsqrt.pop %v826
    %v828 = vmul.f32 %v822, %v827
    %v829 = vmul.f32 %v823, %v827
    %v830 = vmul.f32 %v824, %v827
    %v831 = vmul.f32 %v825, %v827
    %v833 = vlaneseq
    %v834 = vshrl.u32 %v833, 7
    %v835 = vsub.s32 0, %v834
    %v836 = vrot.slane %v786, %v835
    %v838 = vmul.f32 %v828, %v836
    %v839 = vmul.f32 %v829, %v836
    %v840 = vmul.f32 %v830, %v836
    %v841 = vmul.f32 %v831, %v836
    %v843 = vlaneseq
    %v844 = vshrl.u32 %v843, 7
    %v845 = vsub.s32 0, %v844
    %v846 = vrot.slane %v787, %v845
    %v848 = vadd.f32 %v838, %v846
    %v849 = vadd.f32 %v839, %v846
    %v850 = vadd.f32 %v840, %v846
    %v851 = vadd.f32 %v841, %v846
    %v852 = vmax.f32 %v848, 0.0
    %v853 = vmax.f32 %v849, 0.0
    %v854 = vmax.f32 %v850, 0.0
    %v855 = vmax.f32 %v851, 0.0
    %v856 = vlaneseq
    %v857 = vshrl.u32 %v856, 7
    %v858 = vsub.s32 0, %v857
    %v859 = vrot.slane %v203, %v858
    %861 = vbcast.lane.b32.xlu0 %v859, 256
    %v862 = vpop.permute.xlu0 %861
    %s864 = sor.u32 256, 8
    %865 = vbcast.lane.b32.xlu0 %v859, %s864
    %v866 = vpop.permute.xlu0 %865
    %v867 = vlaneseq
    %v868 = vshrl.u32 %v867, 7
    %v869 = vsub.s32 1, %v868
    %v870 = vrot.slane %v203, %v869
    %872 = vbcast.lane.b32.xlu0 %v870, 256
    %v873 = vpop.permute.xlu0 %872
    %s875 = sor.u32 256, 8
    %876 = vbcast.lane.b32.xlu0 %v870, %s875
    %v877 = vpop.permute.xlu0 %876
    %v878 = vlaneseq
    %v879 = vshrl.u32 %v878, 7
    %v880 = vsub.s32 2, %v879
    %v881 = vrot.slane %v203, %v880
    %883 = vbcast.lane.b32.xlu0 %v881, 256
    %v884 = vpop.permute.xlu0 %883
    %s886 = sor.u32 256, 8
    %887 = vbcast.lane.b32.xlu0 %v881, %s886
    %v888 = vpop.permute.xlu0 %887
    %v889 = vlaneseq
    %v890 = vshrl.u32 %v889, 7
    %v891 = vsub.s32 3, %v890
    %v892 = vrot.slane %v203, %v891
    %894 = vbcast.lane.b32.xlu0 %v892, 256
    %v895 = vpop.permute.xlu0 %894
    %s897 = sor.u32 256, 8
    %898 = vbcast.lane.b32.xlu0 %v892, %s897
    %v899 = vpop.permute.xlu0 %898
    %v900 = vlaneseq
    %v901 = vshrl.u32 %v900, 7
    %v902 = vsub.s32 4, %v901
    %v903 = vrot.slane %v203, %v902
    %905 = vbcast.lane.b32.xlu0 %v903, 256
    %v906 = vpop.permute.xlu0 %905
    %s908 = sor.u32 256, 8
    %909 = vbcast.lane.b32.xlu0 %v903, %s908
    %v910 = vpop.permute.xlu0 %909
    %v911 = vlaneseq
    %v912 = vshrl.u32 %v911, 7
    %v913 = vsub.s32 5, %v912
    %v914 = vrot.slane %v203, %v913
    %916 = vbcast.lane.b32.xlu0 %v914, 256
    %v917 = vpop.permute.xlu0 %916
    %s919 = sor.u32 256, 8
    %920 = vbcast.lane.b32.xlu0 %v914, %s919
    %v921 = vpop.permute.xlu0 %920
    %v922 = vlaneseq
    %v923 = vshrl.u32 %v922, 7
    %v924 = vsub.s32 6, %v923
    %v925 = vrot.slane %v203, %v924
    %927 = vbcast.lane.b32.xlu0 %v925, 256
    %v928 = vpop.permute.xlu0 %927
    %s930 = sor.u32 256, 8
    %931 = vbcast.lane.b32.xlu0 %v925, %s930
    %v932 = vpop.permute.xlu0 %931
    %v933 = vlaneseq
    %v934 = vshrl.u32 %v933, 7
    %v935 = vsub.s32 7, %v934
    %v936 = vrot.slane %v203, %v935
    %938 = vbcast.lane.b32.xlu0 %v936, 256
    %v939 = vpop.permute.xlu0 %938
    %s941 = sor.u32 256, 8
    %942 = vbcast.lane.b32.xlu0 %v936, %s941
    %v943 = vpop.permute.xlu0 %942
    %v945 = vcombine.high %v852, %v852
    %v947 = vunpack.c.l.s4 1966171168
    %v948 = vunpack.c.0.s8 %v947
    %v949 = vlaneseq
    %v950 = vshrl.u32 %v949, 7
    %v951 = vsub.s32 %v948, %v950
    %v952 = vrot.slane %v852, %v951
    %v954 = vunpack.c.l.s4 1966171168
    %v955 = vunpack.c.0.s8 %v954
    %v956 = vlaneseq
    %v957 = vshrl.u32 %v956, 7
    %v958 = vsub.s32 %v955, %v957
    %v959 = vrot.slane %v945, %v958
    %v960 = vcombine.high %v952, %v952
    %v961 = vcombine.high %v959, %v959
    %v963 = vunpack.c.l.s4 1966171168
    %v964 = vunpack.c.0.s8 %v963
    %v965 = vlaneseq
    %v966 = vshrl.u32 %v965, 7
    %v967 = vsub.s32 %v964, %v966
    %v968 = vrot.slane %v952, %v967
    %v970 = vunpack.c.l.s4 1966171168
    %v971 = vunpack.c.0.s8 %v970
    %v972 = vlaneseq
    %v973 = vshrl.u32 %v972, 7
    %v974 = vsub.s32 %v971, %v973
    %v975 = vrot.slane %v959, %v974
    %v977 = vunpack.c.l.s4 1966171168
    %v978 = vunpack.c.0.s8 %v977
    %v979 = vlaneseq
    %v980 = vshrl.u32 %v979, 7
    %v981 = vsub.s32 %v978, %v980
    %v982 = vrot.slane %v960, %v981
    %v984 = vunpack.c.l.s4 1966171168
    %v985 = vunpack.c.0.s8 %v984
    %v986 = vlaneseq
    %v987 = vshrl.u32 %v986, 7
    %v988 = vsub.s32 %v985, %v987
    %v989 = vrot.slane %v961, %v988
    %v990 = vcombine.high %v968, %v968
    %v991 = vcombine.high %v975, %v975
    %v992 = vcombine.high %v982, %v982
    %v993 = vcombine.high %v989, %v989
    %v994 = vlaneseq
    %v995 = vshrl.u32 %v994, 7
    %v996 = vsub.s32 0, %v995
    %v997 = vrot.slane %v968, %v996
    %v998 = vlaneseq
    %v999 = vshrl.u32 %v998, 7
    %v1000 = vsub.s32 0, %v999
    %v1001 = vrot.slane %v982, %v1000
    %v1002 = vlaneseq
    %v1003 = vshrl.u32 %v1002, 7
    %v1004 = vsub.s32 0, %v1003
    %v1005 = vrot.slane %v990, %v1004
    %v1006 = vlaneseq
    %v1007 = vshrl.u32 %v1006, 7
    %v1008 = vsub.s32 0, %v1007
    %v1009 = vrot.slane %v992, %v1008
    %v1010 = vlaneseq
    %v1011 = vshrl.u32 %v1010, 7
    %v1012 = vsub.s32 0, %v1011
    %v1013 = vrot.slane %v975, %v1012
    %v1014 = vlaneseq
    %v1015 = vshrl.u32 %v1014, 7
    %v1016 = vsub.s32 0, %v1015
    %v1017 = vrot.slane %v989, %v1016
    %v1018 = vlaneseq
    %v1019 = vshrl.u32 %v1018, 7
    %v1020 = vsub.s32 0, %v1019
    %v1021 = vrot.slane %v991, %v1020
    %v1022 = vlaneseq
    %v1023 = vshrl.u32 %v1022, 7
    %v1024 = vsub.s32 0, %v1023
    %v1025 = vrot.slane %v993, %v1024
    %v1034 = vmul.f32 %v862, %v997
    %v1035 = vmul.f32 %v866, %v997
    %v1036 = vmul.f32 %v873, %v1001
    %v1037 = vmul.f32 %v877, %v1001
    %v1038 = vmul.f32 %v884, %v1005
    %v1039 = vmul.f32 %v888, %v1005
    %v1040 = vmul.f32 %v895, %v1009
    %v1041 = vmul.f32 %v899, %v1009
    %v1042 = vmul.f32 %v906, %v1013
    %v1043 = vmul.f32 %v910, %v1013
    %v1044 = vmul.f32 %v917, %v1017
    %v1045 = vmul.f32 %v921, %v1017
    %v1046 = vmul.f32 %v928, %v1021
    %v1047 = vmul.f32 %v932, %v1021
    %v1048 = vmul.f32 %v939, %v1025
    %v1049 = vmul.f32 %v943, %v1025
    %v1050 = vsel %vm396, %v1034, -inf
    %v1051 = vsel %vm396, %v1036, -inf
    %v1052 = vsel %vm396, %v1038, -inf
    %v1053 = vmax.f32 %v1050, %v1052
    %v1054 = vsel %vm396, %v1040, -inf
    %v1055 = vmax.f32 %v1051, %v1054
    %v1056 = vsel %vm396, %v1042, -inf
    %v1057 = vmax.f32 %v1053, %v1056
    %v1058 = vsel %vm396, %v1044, -inf
    %v1059 = vmax.f32 %v1055, %v1058
    %v1060 = vsel %vm396, %v1046, -inf
    %v1061 = vmax.f32 %v1057, %v1060
    %v1062 = vsel %vm396, %v1048, -inf
    %v1063 = vmax.f32 %v1059, %v1062
    %v1064 = vmax.f32 %v1061, %v1063
    %v1065 = vsel %vm396, %v1035, -inf
    %v1066 = vsel %vm396, %v1037, -inf
    %v1067 = vsel %vm396, %v1039, -inf
    %v1068 = vmax.f32 %v1065, %v1067
    %v1069 = vsel %vm396, %v1041, -inf
    %v1070 = vmax.f32 %v1066, %v1069
    %v1071 = vsel %vm396, %v1043, -inf
    %v1072 = vmax.f32 %v1068, %v1071
    %v1073 = vsel %vm396, %v1045, -inf
    %v1074 = vmax.f32 %v1070, %v1073
    %v1075 = vsel %vm396, %v1047, -inf
    %v1076 = vmax.f32 %v1072, %v1075
    %v1077 = vsel %vm396, %v1049, -inf
    %v1078 = vmax.f32 %v1074, %v1077
    %v1079 = vmax.f32 %v1076, %v1078
    %v1080 = vmax.f32 %v1064, 0.0
    %v1081 = vmax.f32 %v1079, 0.0
    %v1082 = vlaneseq
    %v1083 = vshrl.u32 %v1082, 7
    %v1084 = vsub.s32 0, %v1083
    %v1085 = vrot.slane %v204, %v1084
    %1087 = vbcast.lane.b32.xlu0 %v1085, 256
    %v1088 = vpop.permute.xlu0 %1087
    %s1090 = sor.u32 256, 8
    %1091 = vbcast.lane.b32.xlu0 %v1085, %s1090
    %v1092 = vpop.permute.xlu0 %1091
    %v1093 = vlaneseq
    %v1094 = vshrl.u32 %v1093, 7
    %v1095 = vsub.s32 1, %v1094
    %v1096 = vrot.slane %v204, %v1095
    %1098 = vbcast.lane.b32.xlu0 %v1096, 256
    %v1099 = vpop.permute.xlu0 %1098
    %s1101 = sor.u32 256, 8
    %1102 = vbcast.lane.b32.xlu0 %v1096, %s1101
    %v1103 = vpop.permute.xlu0 %1102
    %v1104 = vlaneseq
    %v1105 = vshrl.u32 %v1104, 7
    %v1106 = vsub.s32 2, %v1105
    %v1107 = vrot.slane %v204, %v1106
    %1109 = vbcast.lane.b32.xlu0 %v1107, 256
    %v1110 = vpop.permute.xlu0 %1109
    %s1112 = sor.u32 256, 8
    %1113 = vbcast.lane.b32.xlu0 %v1107, %s1112
    %v1114 = vpop.permute.xlu0 %1113
    %v1115 = vlaneseq
    %v1116 = vshrl.u32 %v1115, 7
    %v1117 = vsub.s32 3, %v1116
    %v1118 = vrot.slane %v204, %v1117
    %1120 = vbcast.lane.b32.xlu0 %v1118, 256
    %v1121 = vpop.permute.xlu0 %1120
    %s1123 = sor.u32 256, 8
    %1124 = vbcast.lane.b32.xlu0 %v1118, %s1123
    %v1125 = vpop.permute.xlu0 %1124
    %v1126 = vlaneseq
    %v1127 = vshrl.u32 %v1126, 7
    %v1128 = vsub.s32 4, %v1127
    %v1129 = vrot.slane %v204, %v1128
    %1131 = vbcast.lane.b32.xlu0 %v1129, 256
    %v1132 = vpop.permute.xlu0 %1131
    %s1134 = sor.u32 256, 8
    %1135 = vbcast.lane.b32.xlu0 %v1129, %s1134
    %v1136 = vpop.permute.xlu0 %1135
    %v1137 = vlaneseq
    %v1138 = vshrl.u32 %v1137, 7
    %v1139 = vsub.s32 5, %v1138
    %v1140 = vrot.slane %v204, %v1139
    %1142 = vbcast.lane.b32.xlu0 %v1140, 256
    %v1143 = vpop.permute.xlu0 %1142
    %s1145 = sor.u32 256, 8
    %1146 = vbcast.lane.b32.xlu0 %v1140, %s1145
    %v1147 = vpop.permute.xlu0 %1146
    %v1148 = vlaneseq
    %v1149 = vshrl.u32 %v1148, 7
    %v1150 = vsub.s32 6, %v1149
    %v1151 = vrot.slane %v204, %v1150
    %1153 = vbcast.lane.b32.xlu0 %v1151, 256
    %v1154 = vpop.permute.xlu0 %1153
    %s1156 = sor.u32 256, 8
    %1157 = vbcast.lane.b32.xlu0 %v1151, %s1156
    %v1158 = vpop.permute.xlu0 %1157
    %v1159 = vlaneseq
    %v1160 = vshrl.u32 %v1159, 7
    %v1161 = vsub.s32 7, %v1160
    %v1162 = vrot.slane %v204, %v1161
    %1164 = vbcast.lane.b32.xlu0 %v1162, 256
    %v1165 = vpop.permute.xlu0 %1164
    %s1167 = sor.u32 256, 8
    %1168 = vbcast.lane.b32.xlu0 %v1162, %s1167
    %v1169 = vpop.permute.xlu0 %1168
    %v1171 = vcombine.high %v853, %v853
    %v1173 = vunpack.c.l.s4 1966171168
    %v1174 = vunpack.c.0.s8 %v1173
    %v1175 = vlaneseq
    %v1176 = vshrl.u32 %v1175, 7
    %v1177 = vsub.s32 %v1174, %v1176
    %v1178 = vrot.slane %v853, %v1177
    %v1180 = vunpack.c.l.s4 1966171168
    %v1181 = vunpack.c.0.s8 %v1180
    %v1182 = vlaneseq
    %v1183 = vshrl.u32 %v1182, 7
    %v1184 = vsub.s32 %v1181, %v1183
    %v1185 = vrot.slane %v1171, %v1184
    %v1186 = vcombine.high %v1178, %v1178
    %v1187 = vcombine.high %v1185, %v1185
    %v1189 = vunpack.c.l.s4 1966171168
    %v1190 = vunpack.c.0.s8 %v1189
    %v1191 = vlaneseq
    %v1192 = vshrl.u32 %v1191, 7
    %v1193 = vsub.s32 %v1190, %v1192
    %v1194 = vrot.slane %v1178, %v1193
    %v1196 = vunpack.c.l.s4 1966171168
    %v1197 = vunpack.c.0.s8 %v1196
    %v1198 = vlaneseq
    %v1199 = vshrl.u32 %v1198, 7
    %v1200 = vsub.s32 %v1197, %v1199
    %v1201 = vrot.slane %v1185, %v1200
    %v1203 = vunpack.c.l.s4 1966171168
    %v1204 = vunpack.c.0.s8 %v1203
    %v1205 = vlaneseq
    %v1206 = vshrl.u32 %v1205, 7
    %v1207 = vsub.s32 %v1204, %v1206
    %v1208 = vrot.slane %v1186, %v1207
    %v1210 = vunpack.c.l.s4 1966171168
    %v1211 = vunpack.c.0.s8 %v1210
    %v1212 = vlaneseq
    %v1213 = vshrl.u32 %v1212, 7
    %v1214 = vsub.s32 %v1211, %v1213
    %v1215 = vrot.slane %v1187, %v1214
    %v1216 = vcombine.high %v1194, %v1194
    %v1217 = vcombine.high %v1201, %v1201
    %v1218 = vcombine.high %v1208, %v1208
    %v1219 = vcombine.high %v1215, %v1215
    %v1220 = vlaneseq
    %v1221 = vshrl.u32 %v1220, 7
    %v1222 = vsub.s32 0, %v1221
    %v1223 = vrot.slane %v1194, %v1222
    %v1224 = vlaneseq
    %v1225 = vshrl.u32 %v1224, 7
    %v1226 = vsub.s32 0, %v1225
    %v1227 = vrot.slane %v1208, %v1226
    %v1228 = vlaneseq
    %v1229 = vshrl.u32 %v1228, 7
    %v1230 = vsub.s32 0, %v1229
    %v1231 = vrot.slane %v1216, %v1230
    %v1232 = vlaneseq
    %v1233 = vshrl.u32 %v1232, 7
    %v1234 = vsub.s32 0, %v1233
    %v1235 = vrot.slane %v1218, %v1234
    %v1236 = vlaneseq
    %v1237 = vshrl.u32 %v1236, 7
    %v1238 = vsub.s32 0, %v1237
    %v1239 = vrot.slane %v1201, %v1238
    %v1240 = vlaneseq
    %v1241 = vshrl.u32 %v1240, 7
    %v1242 = vsub.s32 0, %v1241
    %v1243 = vrot.slane %v1215, %v1242
    %v1244 = vlaneseq
    %v1245 = vshrl.u32 %v1244, 7
    %v1246 = vsub.s32 0, %v1245
    %v1247 = vrot.slane %v1217, %v1246
    %v1248 = vlaneseq
    %v1249 = vshrl.u32 %v1248, 7
    %v1250 = vsub.s32 0, %v1249
    %v1251 = vrot.slane %v1219, %v1250
    %v1260 = vmul.f32 %v1088, %v1223
    %v1261 = vmul.f32 %v1092, %v1223
    %v1262 = vmul.f32 %v1099, %v1227
    %v1263 = vmul.f32 %v1103, %v1227
    %v1264 = vmul.f32 %v1110, %v1231
    %v1265 = vmul.f32 %v1114, %v1231
    %v1266 = vmul.f32 %v1121, %v1235
    %v1267 = vmul.f32 %v1125, %v1235
    %v1268 = vmul.f32 %v1132, %v1239
    %v1269 = vmul.f32 %v1136, %v1239
    %v1270 = vmul.f32 %v1143, %v1243
    %v1271 = vmul.f32 %v1147, %v1243
    %v1272 = vmul.f32 %v1154, %v1247
    %v1273 = vmul.f32 %v1158, %v1247
    %v1274 = vmul.f32 %v1165, %v1251
    %v1275 = vmul.f32 %v1169, %v1251
    %v1276 = vsel %vm396, %v1260, -inf
    %v1277 = vsel %vm396, %v1262, -inf
    %v1278 = vsel %vm396, %v1264, -inf
    %v1279 = vmax.f32 %v1276, %v1278
    %v1280 = vsel %vm396, %v1266, -inf
    %v1281 = vmax.f32 %v1277, %v1280
    %v1282 = vsel %vm396, %v1268, -inf
    %v1283 = vmax.f32 %v1279, %v1282
    %v1284 = vsel %vm396, %v1270, -inf
    %v1285 = vmax.f32 %v1281, %v1284
    %v1286 = vsel %vm396, %v1272, -inf
    %v1287 = vmax.f32 %v1283, %v1286
    %v1288 = vsel %vm396, %v1274, -inf
    %v1289 = vmax.f32 %v1285, %v1288
    %v1290 = vmax.f32 %v1287, %v1289
    %v1291 = vsel %vm396, %v1261, -inf
    %v1292 = vsel %vm396, %v1263, -inf
    %v1293 = vsel %vm396, %v1265, -inf
    %v1294 = vmax.f32 %v1291, %v1293
    %v1295 = vsel %vm396, %v1267, -inf
    %v1296 = vmax.f32 %v1292, %v1295
    %v1297 = vsel %vm396, %v1269, -inf
    %v1298 = vmax.f32 %v1294, %v1297
    %v1299 = vsel %vm396, %v1271, -inf
    %v1300 = vmax.f32 %v1296, %v1299
    %v1301 = vsel %vm396, %v1273, -inf
    %v1302 = vmax.f32 %v1298, %v1301
    %v1303 = vsel %vm396, %v1275, -inf
    %v1304 = vmax.f32 %v1300, %v1303
    %v1305 = vmax.f32 %v1302, %v1304
    %v1306 = vmax.f32 %v1080, %v1290
    %v1307 = vmax.f32 %v1081, %v1305
    %v1308 = vlaneseq
    %v1309 = vshrl.u32 %v1308, 7
    %v1310 = vsub.s32 0, %v1309
    %v1311 = vrot.slane %v205, %v1310
    %1313 = vbcast.lane.b32.xlu0 %v1311, 256
    %v1314 = vpop.permute.xlu0 %1313
    %s1316 = sor.u32 256, 8
    %1317 = vbcast.lane.b32.xlu0 %v1311, %s1316
    %v1318 = vpop.permute.xlu0 %1317
    %v1319 = vlaneseq
    %v1320 = vshrl.u32 %v1319, 7
    %v1321 = vsub.s32 1, %v1320
    %v1322 = vrot.slane %v205, %v1321
    %1324 = vbcast.lane.b32.xlu0 %v1322, 256
    %v1325 = vpop.permute.xlu0 %1324
    %s1327 = sor.u32 256, 8
    %1328 = vbcast.lane.b32.xlu0 %v1322, %s1327
    %v1329 = vpop.permute.xlu0 %1328
    %v1330 = vlaneseq
    %v1331 = vshrl.u32 %v1330, 7
    %v1332 = vsub.s32 2, %v1331
    %v1333 = vrot.slane %v205, %v1332
    %1335 = vbcast.lane.b32.xlu0 %v1333, 256
    %v1336 = vpop.permute.xlu0 %1335
    %s1338 = sor.u32 256, 8
    %1339 = vbcast.lane.b32.xlu0 %v1333, %s1338
    %v1340 = vpop.permute.xlu0 %1339
    %v1341 = vlaneseq
    %v1342 = vshrl.u32 %v1341, 7
    %v1343 = vsub.s32 3, %v1342
    %v1344 = vrot.slane %v205, %v1343
    %1346 = vbcast.lane.b32.xlu0 %v1344, 256
    %v1347 = vpop.permute.xlu0 %1346
    %s1349 = sor.u32 256, 8
    %1350 = vbcast.lane.b32.xlu0 %v1344, %s1349
    %v1351 = vpop.permute.xlu0 %1350
    %v1352 = vlaneseq
    %v1353 = vshrl.u32 %v1352, 7
    %v1354 = vsub.s32 4, %v1353
    %v1355 = vrot.slane %v205, %v1354
    %1357 = vbcast.lane.b32.xlu0 %v1355, 256
    %v1358 = vpop.permute.xlu0 %1357
    %s1360 = sor.u32 256, 8
    %1361 = vbcast.lane.b32.xlu0 %v1355, %s1360
    %v1362 = vpop.permute.xlu0 %1361
    %v1363 = vlaneseq
    %v1364 = vshrl.u32 %v1363, 7
    %v1365 = vsub.s32 5, %v1364
    %v1366 = vrot.slane %v205, %v1365
    %1368 = vbcast.lane.b32.xlu0 %v1366, 256
    %v1369 = vpop.permute.xlu0 %1368
    %s1371 = sor.u32 256, 8
    %1372 = vbcast.lane.b32.xlu0 %v1366, %s1371
    %v1373 = vpop.permute.xlu0 %1372
    %v1374 = vlaneseq
    %v1375 = vshrl.u32 %v1374, 7
    %v1376 = vsub.s32 6, %v1375
    %v1377 = vrot.slane %v205, %v1376
    %1379 = vbcast.lane.b32.xlu0 %v1377, 256
    %v1380 = vpop.permute.xlu0 %1379
    %s1382 = sor.u32 256, 8
    %1383 = vbcast.lane.b32.xlu0 %v1377, %s1382
    %v1384 = vpop.permute.xlu0 %1383
    %v1385 = vlaneseq
    %v1386 = vshrl.u32 %v1385, 7
    %v1387 = vsub.s32 7, %v1386
    %v1388 = vrot.slane %v205, %v1387
    %1390 = vbcast.lane.b32.xlu0 %v1388, 256
    %v1391 = vpop.permute.xlu0 %1390
    %s1393 = sor.u32 256, 8
    %1394 = vbcast.lane.b32.xlu0 %v1388, %s1393
    %v1395 = vpop.permute.xlu0 %1394
    %v1397 = vcombine.high %v854, %v854
    %v1399 = vunpack.c.l.s4 1966171168
    %v1400 = vunpack.c.0.s8 %v1399
    %v1401 = vlaneseq
    %v1402 = vshrl.u32 %v1401, 7
    %v1403 = vsub.s32 %v1400, %v1402
    %v1404 = vrot.slane %v854, %v1403
    %v1406 = vunpack.c.l.s4 1966171168
    %v1407 = vunpack.c.0.s8 %v1406
    %v1408 = vlaneseq
    %v1409 = vshrl.u32 %v1408, 7
    %v1410 = vsub.s32 %v1407, %v1409
    %v1411 = vrot.slane %v1397, %v1410
    %v1412 = vcombine.high %v1404, %v1404
    %v1413 = vcombine.high %v1411, %v1411
    %v1415 = vunpack.c.l.s4 1966171168
    %v1416 = vunpack.c.0.s8 %v1415
    %v1417 = vlaneseq
    %v1418 = vshrl.u32 %v1417, 7
    %v1419 = vsub.s32 %v1416, %v1418
    %v1420 = vrot.slane %v1404, %v1419
    %v1422 = vunpack.c.l.s4 1966171168
    %v1423 = vunpack.c.0.s8 %v1422
    %v1424 = vlaneseq
    %v1425 = vshrl.u32 %v1424, 7
    %v1426 = vsub.s32 %v1423, %v1425
    %v1427 = vrot.slane %v1411, %v1426
    %v1429 = vunpack.c.l.s4 1966171168
    %v1430 = vunpack.c.0.s8 %v1429
    %v1431 = vlaneseq
    %v1432 = vshrl.u32 %v1431, 7
    %v1433 = vsub.s32 %v1430, %v1432
    %v1434 = vrot.slane %v1412, %v1433
    %v1436 = vunpack.c.l.s4 1966171168
    %v1437 = vunpack.c.0.s8 %v1436
    %v1438 = vlaneseq
    %v1439 = vshrl.u32 %v1438, 7
    %v1440 = vsub.s32 %v1437, %v1439
    %v1441 = vrot.slane %v1413, %v1440
    %v1442 = vcombine.high %v1420, %v1420
    %v1443 = vcombine.high %v1427, %v1427
    %v1444 = vcombine.high %v1434, %v1434
    %v1445 = vcombine.high %v1441, %v1441
    %v1446 = vlaneseq
    %v1447 = vshrl.u32 %v1446, 7
    %v1448 = vsub.s32 0, %v1447
    %v1449 = vrot.slane %v1420, %v1448
    %v1450 = vlaneseq
    %v1451 = vshrl.u32 %v1450, 7
    %v1452 = vsub.s32 0, %v1451
    %v1453 = vrot.slane %v1434, %v1452
    %v1454 = vlaneseq
    %v1455 = vshrl.u32 %v1454, 7
    %v1456 = vsub.s32 0, %v1455
    %v1457 = vrot.slane %v1442, %v1456
    %v1458 = vlaneseq
    %v1459 = vshrl.u32 %v1458, 7
    %v1460 = vsub.s32 0, %v1459
    %v1461 = vrot.slane %v1444, %v1460
    %v1462 = vlaneseq
    %v1463 = vshrl.u32 %v1462, 7
    %v1464 = vsub.s32 0, %v1463
    %v1465 = vrot.slane %v1427, %v1464
    %v1466 = vlaneseq
    %v1467 = vshrl.u32 %v1466, 7
    %v1468 = vsub.s32 0, %v1467
    %v1469 = vrot.slane %v1441, %v1468
    %v1470 = vlaneseq
    %v1471 = vshrl.u32 %v1470, 7
    %v1472 = vsub.s32 0, %v1471
    %v1473 = vrot.slane %v1443, %v1472
    %v1474 = vlaneseq
    %v1475 = vshrl.u32 %v1474, 7
    %v1476 = vsub.s32 0, %v1475
    %v1477 = vrot.slane %v1445, %v1476
    %v1486 = vmul.f32 %v1314, %v1449
    %v1487 = vmul.f32 %v1318, %v1449
    %v1488 = vmul.f32 %v1325, %v1453
    %v1489 = vmul.f32 %v1329, %v1453
    %v1490 = vmul.f32 %v1336, %v1457
    %v1491 = vmul.f32 %v1340, %v1457
    %v1492 = vmul.f32 %v1347, %v1461
    %v1493 = vmul.f32 %v1351, %v1461
    %v1494 = vmul.f32 %v1358, %v1465
    %v1495 = vmul.f32 %v1362, %v1465
    %v1496 = vmul.f32 %v1369, %v1469
    %v1497 = vmul.f32 %v1373, %v1469
    %v1498 = vmul.f32 %v1380, %v1473
    %v1499 = vmul.f32 %v1384, %v1473
    %v1500 = vmul.f32 %v1391, %v1477
    %v1501 = vmul.f32 %v1395, %v1477
    %v1502 = vsel %vm396, %v1486, -inf
    %v1503 = vsel %vm396, %v1488, -inf
    %v1504 = vsel %vm396, %v1490, -inf
    %v1505 = vmax.f32 %v1502, %v1504
    %v1506 = vsel %vm396, %v1492, -inf
    %v1507 = vmax.f32 %v1503, %v1506
    %v1508 = vsel %vm396, %v1494, -inf
    %v1509 = vmax.f32 %v1505, %v1508
    %v1510 = vsel %vm396, %v1496, -inf
    %v1511 = vmax.f32 %v1507, %v1510
    %v1512 = vsel %vm396, %v1498, -inf
    %v1513 = vmax.f32 %v1509, %v1512
    %v1514 = vsel %vm396, %v1500, -inf
    %v1515 = vmax.f32 %v1511, %v1514
    %v1516 = vmax.f32 %v1513, %v1515
    %v1517 = vsel %vm396, %v1487, -inf
    %v1518 = vsel %vm396, %v1489, -inf
    %v1519 = vsel %vm396, %v1491, -inf
    %v1520 = vmax.f32 %v1517, %v1519
    %v1521 = vsel %vm396, %v1493, -inf
    %v1522 = vmax.f32 %v1518, %v1521
    %v1523 = vsel %vm396, %v1495, -inf
    %v1524 = vmax.f32 %v1520, %v1523
    %v1525 = vsel %vm396, %v1497, -inf
    %v1526 = vmax.f32 %v1522, %v1525
    %v1527 = vsel %vm396, %v1499, -inf
    %v1528 = vmax.f32 %v1524, %v1527
    %v1529 = vsel %vm396, %v1501, -inf
    %v1530 = vmax.f32 %v1526, %v1529
    %v1531 = vmax.f32 %v1528, %v1530
    %v1532 = vmax.f32 %v1306, %v1516
    %v1533 = vmax.f32 %v1307, %v1531
    %v1534 = vlaneseq
    %v1535 = vshrl.u32 %v1534, 7
    %v1536 = vsub.s32 0, %v1535
    %v1537 = vrot.slane %v206, %v1536
    %1539 = vbcast.lane.b32.xlu0 %v1537, 256
    %v1540 = vpop.permute.xlu0 %1539
    %s1542 = sor.u32 256, 8
    %1543 = vbcast.lane.b32.xlu0 %v1537, %s1542
    %v1544 = vpop.permute.xlu0 %1543
    %v1545 = vlaneseq
    %v1546 = vshrl.u32 %v1545, 7
    %v1547 = vsub.s32 1, %v1546
    %v1548 = vrot.slane %v206, %v1547
    %1550 = vbcast.lane.b32.xlu0 %v1548, 256
    %v1551 = vpop.permute.xlu0 %1550
    %s1553 = sor.u32 256, 8
    %1554 = vbcast.lane.b32.xlu0 %v1548, %s1553
    %v1555 = vpop.permute.xlu0 %1554
    %v1556 = vlaneseq
    %v1557 = vshrl.u32 %v1556, 7
    %v1558 = vsub.s32 2, %v1557
    %v1559 = vrot.slane %v206, %v1558
    %1561 = vbcast.lane.b32.xlu0 %v1559, 256
    %v1562 = vpop.permute.xlu0 %1561
    %s1564 = sor.u32 256, 8
    %1565 = vbcast.lane.b32.xlu0 %v1559, %s1564
    %v1566 = vpop.permute.xlu0 %1565
    %v1567 = vlaneseq
    %v1568 = vshrl.u32 %v1567, 7
    %v1569 = vsub.s32 3, %v1568
    %v1570 = vrot.slane %v206, %v1569
    %1572 = vbcast.lane.b32.xlu0 %v1570, 256
    %v1573 = vpop.permute.xlu0 %1572
    %s1575 = sor.u32 256, 8
    %1576 = vbcast.lane.b32.xlu0 %v1570, %s1575
    %v1577 = vpop.permute.xlu0 %1576
    %v1578 = vlaneseq
    %v1579 = vshrl.u32 %v1578, 7
    %v1580 = vsub.s32 4, %v1579
    %v1581 = vrot.slane %v206, %v1580
    %1583 = vbcast.lane.b32.xlu0 %v1581, 256
    %v1584 = vpop.permute.xlu0 %1583
    %s1586 = sor.u32 256, 8
    %1587 = vbcast.lane.b32.xlu0 %v1581, %s1586
    %v1588 = vpop.permute.xlu0 %1587
    %v1589 = vlaneseq
    %v1590 = vshrl.u32 %v1589, 7
    %v1591 = vsub.s32 5, %v1590
    %v1592 = vrot.slane %v206, %v1591
    %1594 = vbcast.lane.b32.xlu0 %v1592, 256
    %v1595 = vpop.permute.xlu0 %1594
    %s1597 = sor.u32 256, 8
    %1598 = vbcast.lane.b32.xlu0 %v1592, %s1597
    %v1599 = vpop.permute.xlu0 %1598
    %v1600 = vlaneseq
    %v1601 = vshrl.u32 %v1600, 7
    %v1602 = vsub.s32 6, %v1601
    %v1603 = vrot.slane %v206, %v1602
    %1605 = vbcast.lane.b32.xlu0 %v1603, 256
    %v1606 = vpop.permute.xlu0 %1605
    %s1608 = sor.u32 256, 8
    %1609 = vbcast.lane.b32.xlu0 %v1603, %s1608
    %v1610 = vpop.permute.xlu0 %1609
    %v1611 = vlaneseq
    %v1612 = vshrl.u32 %v1611, 7
    %v1613 = vsub.s32 7, %v1612
    %v1614 = vrot.slane %v206, %v1613
    %1616 = vbcast.lane.b32.xlu0 %v1614, 256
    %v1617 = vpop.permute.xlu0 %1616
    %s1619 = sor.u32 256, 8
    %1620 = vbcast.lane.b32.xlu0 %v1614, %s1619
    %v1621 = vpop.permute.xlu0 %1620
    %v1623 = vcombine.high %v855, %v855
    %v1625 = vunpack.c.l.s4 1966171168
    %v1626 = vunpack.c.0.s8 %v1625
    %v1627 = vlaneseq
    %v1628 = vshrl.u32 %v1627, 7
    %v1629 = vsub.s32 %v1626, %v1628
    %v1630 = vrot.slane %v855, %v1629
    %v1632 = vunpack.c.l.s4 1966171168
    %v1633 = vunpack.c.0.s8 %v1632
    %v1634 = vlaneseq
    %v1635 = vshrl.u32 %v1634, 7
    %v1636 = vsub.s32 %v1633, %v1635
    %v1637 = vrot.slane %v1623, %v1636
    %v1638 = vcombine.high %v1630, %v1630
    %v1639 = vcombine.high %v1637, %v1637
    %v1641 = vunpack.c.l.s4 1966171168
    %v1642 = vunpack.c.0.s8 %v1641
    %v1643 = vlaneseq
    %v1644 = vshrl.u32 %v1643, 7
    %v1645 = vsub.s32 %v1642, %v1644
    %v1646 = vrot.slane %v1630, %v1645
    %v1648 = vunpack.c.l.s4 1966171168
    %v1649 = vunpack.c.0.s8 %v1648
    %v1650 = vlaneseq
    %v1651 = vshrl.u32 %v1650, 7
    %v1652 = vsub.s32 %v1649, %v1651
    %v1653 = vrot.slane %v1637, %v1652
    %v1655 = vunpack.c.l.s4 1966171168
    %v1656 = vunpack.c.0.s8 %v1655
    %v1657 = vlaneseq
    %v1658 = vshrl.u32 %v1657, 7
    %v1659 = vsub.s32 %v1656, %v1658
    %v1660 = vrot.slane %v1638, %v1659
    %v1662 = vunpack.c.l.s4 1966171168
    %v1663 = vunpack.c.0.s8 %v1662
    %v1664 = vlaneseq
    %v1665 = vshrl.u32 %v1664, 7
    %v1666 = vsub.s32 %v1663, %v1665
    %v1667 = vrot.slane %v1639, %v1666
    %v1668 = vcombine.high %v1646, %v1646
    %v1669 = vcombine.high %v1653, %v1653
    %v1670 = vcombine.high %v1660, %v1660
    %v1671 = vcombine.high %v1667, %v1667
    %v1672 = vlaneseq
    %v1673 = vshrl.u32 %v1672, 7
    %v1674 = vsub.s32 0, %v1673
    %v1675 = vrot.slane %v1646, %v1674
    %v1676 = vlaneseq
    %v1677 = vshrl.u32 %v1676, 7
    %v1678 = vsub.s32 0, %v1677
    %v1679 = vrot.slane %v1660, %v1678
    %v1680 = vlaneseq
    %v1681 = vshrl.u32 %v1680, 7
    %v1682 = vsub.s32 0, %v1681
    %v1683 = vrot.slane %v1668, %v1682
    %v1684 = vlaneseq
    %v1685 = vshrl.u32 %v1684, 7
    %v1686 = vsub.s32 0, %v1685
    %v1687 = vrot.slane %v1670, %v1686
    %v1688 = vlaneseq
    %v1689 = vshrl.u32 %v1688, 7
    %v1690 = vsub.s32 0, %v1689
    %v1691 = vrot.slane %v1653, %v1690
    %v1692 = vlaneseq
    %v1693 = vshrl.u32 %v1692, 7
    %v1694 = vsub.s32 0, %v1693
    %v1695 = vrot.slane %v1667, %v1694
    %v1696 = vlaneseq
    %v1697 = vshrl.u32 %v1696, 7
    %v1698 = vsub.s32 0, %v1697
    %v1699 = vrot.slane %v1669, %v1698
    %v1700 = vlaneseq
    %v1701 = vshrl.u32 %v1700, 7
    %v1702 = vsub.s32 0, %v1701
    %v1703 = vrot.slane %v1671, %v1702
    %v1712 = vmul.f32 %v1540, %v1675
    %v1713 = vmul.f32 %v1544, %v1675
    %v1714 = vmul.f32 %v1551, %v1679
    %v1715 = vmul.f32 %v1555, %v1679
    %v1716 = vmul.f32 %v1562, %v1683
    %v1717 = vmul.f32 %v1566, %v1683
    %v1718 = vmul.f32 %v1573, %v1687
    %v1719 = vmul.f32 %v1577, %v1687
    %v1720 = vmul.f32 %v1584, %v1691
    %v1721 = vmul.f32 %v1588, %v1691
    %v1722 = vmul.f32 %v1595, %v1695
    %v1723 = vmul.f32 %v1599, %v1695
    %v1724 = vmul.f32 %v1606, %v1699
    %v1725 = vmul.f32 %v1610, %v1699
    %v1726 = vmul.f32 %v1617, %v1703
    %v1727 = vmul.f32 %v1621, %v1703
    %v1728 = vsel %vm396, %v1712, -inf
    %v1729 = vsel %vm396, %v1714, -inf
    %v1730 = vsel %vm396, %v1716, -inf
    %v1731 = vmax.f32 %v1728, %v1730
    %v1732 = vsel %vm396, %v1718, -inf
    %v1733 = vmax.f32 %v1729, %v1732
    %v1734 = vsel %vm396, %v1720, -inf
    %v1735 = vmax.f32 %v1731, %v1734
    %v1736 = vsel %vm396, %v1722, -inf
    %v1737 = vmax.f32 %v1733, %v1736
    %v1738 = vsel %vm396, %v1724, -inf
    %v1739 = vmax.f32 %v1735, %v1738
    %v1740 = vsel %vm396, %v1726, -inf
    %v1741 = vmax.f32 %v1737, %v1740
    %v1742 = vmax.f32 %v1739, %v1741
    %v1743 = vsel %vm396, %v1713, -inf
    %v1744 = vsel %vm396, %v1715, -inf
    %v1745 = vsel %vm396, %v1717, -inf
    %v1746 = vmax.f32 %v1743, %v1745
    %v1747 = vsel %vm396, %v1719, -inf
    %v1748 = vmax.f32 %v1744, %v1747
    %v1749 = vsel %vm396, %v1721, -inf
    %v1750 = vmax.f32 %v1746, %v1749
    %v1751 = vsel %vm396, %v1723, -inf
    %v1752 = vmax.f32 %v1748, %v1751
    %v1753 = vsel %vm396, %v1725, -inf
    %v1754 = vmax.f32 %v1750, %v1753
    %v1755 = vsel %vm396, %v1727, -inf
    %v1756 = vmax.f32 %v1752, %v1755
    %v1757 = vmax.f32 %v1754, %v1756
    %v1758 = vmax.f32 %v1532, %v1742
    %v1759 = vmax.f32 %v1533, %v1757
    %v1760 = vld [vmem:[#allocation9] sm:$0xf]
    %v1761 = vld [vmem:[#allocation9 + $0x4] sm:$0xf]
    %v1762 = vld [vmem:[#allocation9 + $0x8] sm:$0xf]
    %v1763 = vld [vmem:[#allocation9 + $0xc] sm:$0xf]
    %v1764 = vld [vmem:[#allocation9 + $0x10] sm:$0xf]
    %v1765 = vld [vmem:[#allocation9 + $0x14] sm:$0xf]
    %v1766 = vld [vmem:[#allocation9 + $0x18] sm:$0xf]
    %v1767 = vld [vmem:[#allocation9 + $0x1c] sm:$0xf]
    %v1768 = vld [vmem:[#allocation11] sm:$0xf]
    %v1769 = vld [vmem:[#allocation11 + $0x4] sm:$0xf]
    %v1770 = vld [vmem:[#allocation11 + $0x8] sm:$0xf]
    %v1771 = vld [vmem:[#allocation11 + $0xc] sm:$0xf]
    %v1772 = vld [vmem:[#allocation11 + $0x10] sm:$0xf]
    %v1773 = vld [vmem:[#allocation11 + $0x14] sm:$0xf]
    %v1774 = vld [vmem:[#allocation11 + $0x18] sm:$0xf]
    %v1775 = vld [vmem:[#allocation11 + $0x1c] sm:$0xf]
    %v1776 = vpack.c.bf16 %v1759, %v1758
    %v1785 = vunpack.c.l.b16 %v1768
    %v1786 = vunpack.c.l.b16 %v1769
    %v1787 = vunpack.c.l.b16 %v1770
    %v1788 = vunpack.c.l.b16 %v1771
    %v1789 = vunpack.c.l.b16 %v1772
    %v1790 = vunpack.c.l.b16 %v1773
    %v1791 = vunpack.c.l.b16 %v1774
    %v1792 = vunpack.c.l.b16 %v1775
    %v1793 = vpack.c.b16 %v1786, %v1785
    %v1794 = vpack.c.b16 %v1788, %v1787
    %v1795 = vpack.c.b16 %v1790, %v1789
    %v1796 = vpack.c.b16 %v1792, %v1791
    %v1802 = vsel %vm396, %v1776, 0
    %1804 = vmatprep.subr.bf16.mxu0 0
    %1805 = vmatpush1.bf16.msra.mxu0 %v1793
    %1806 = vmatprep.subr.bf16.mxu0 0
    %1807 = vmatpush1.bf16.msra.mxu0 %v1794
    %1808 = vmatprep.subr.bf16.mxu0 0
    %1809 = vmatpush1.bf16.msra.mxu0 %v1795
    %1810 = vmatprep.subr.bf16.mxu0 0
    %1811 = vmatpush1.bf16.msra.mxu0 %v1796
    %1812 = vmatprep.subr.bf16.mxu0 0
    %1813 = vmatpush1.bf16.msra.mxu0 0
    %1814 = vmatprep.subr.bf16.mxu0 0
    %1815 = vmatpush1.bf16.msra.mxu0 0
    %1816 = vmatprep.subr.bf16.mxu0 0
    %1817 = vmatpush1.bf16.msra.mxu0 0
    %1818 = vmatprep.subr.bf16.mxu0 0
    %1819 = vmatpush1.bf16.msra.mxu0 0
    %1820 = vmatprep.subr.bf16.mxu0 0
    %1821 = vmatpush1.bf16.msra.mxu0 0
    %1822 = vmatprep.subr.bf16.mxu0 0
    %1823 = vmatpush1.bf16.msra.mxu0 0
    %1824 = vmatprep.subr.bf16.mxu0 0
    %1825 = vmatpush1.bf16.msra.mxu0 0
    %1826 = vmatprep.subr.bf16.mxu0 0
    %1827 = vmatpush1.bf16.msra.mxu0 0
    %1828 = vmatprep.subr.bf16.mxu0 0
    %1829 = vmatpush1.bf16.msra.mxu0 0
    %1830 = vmatprep.subr.bf16.mxu0 0
    %1831 = vmatpush1.bf16.msra.mxu0 0
    %1832 = vmatprep.subr.bf16.mxu0 0
    %1833 = vmatpush1.bf16.msra.mxu0 0
    %1834 = vmatprep.subr.bf16.mxu0 0
    %1835 = vmatpush1.bf16.msra.mxu0 0
    %1836 = vmatprep.mubr.bf16.mxu0 0
    %1837 = vmatmul.mubr.bf16.gmra.mrb[0].mxu0 %v1802
    %v1838 = vpop.f32.mrb[0].mxu0
    %v1839 = vadd.f32 0.0, %v1838
    %v1840 = vpop.f32.mrb[0].mxu0
    %v1841 = vpop.f32.mrb[0].mxu0
    %v1842 = vadd.f32 0.0, %v1841
    %v1843 = vpop.f32.mrb[0].mxu0
    %1844 = vdwg.mxu0
    %v1853 = vunpack.c.l.b16 %v1760
    %v1854 = vunpack.c.l.b16 %v1761
    %v1855 = vunpack.c.l.b16 %v1762
    %v1856 = vunpack.c.l.b16 %v1763
    %v1857 = vunpack.c.l.b16 %v1764
    %v1858 = vunpack.c.l.b16 %v1765
    %v1859 = vunpack.c.l.b16 %v1766
    %v1860 = vunpack.c.l.b16 %v1767
    %v1861 = vpack.c.b16 %v1854, %v1853
    %v1862 = vpack.c.b16 %v1856, %v1855
    %v1863 = vpack.c.b16 %v1858, %v1857
    %v1864 = vpack.c.b16 %v1860, %v1859
    %1869 = vmatprep.subr.bf16.mxu0 0
    %1870 = vmatpush1.bf16.msra.mxu0 %v1861
    %1871 = vmatprep.subr.bf16.mxu0 0
    %1872 = vmatpush1.bf16.msra.mxu0 %v1862
    %1873 = vmatprep.subr.bf16.mxu0 0
    %1874 = vmatpush1.bf16.msra.mxu0 %v1863
    %1875 = vmatprep.subr.bf16.mxu0 0
    %1876 = vmatpush1.bf16.msra.mxu0 %v1864
    %1877 = vmatprep.subr.bf16.mxu0 0
    %1878 = vmatpush1.bf16.msra.mxu0 0
    %1879 = vmatprep.subr.bf16.mxu0 0
    %1880 = vmatpush1.bf16.msra.mxu0 0
    %1881 = vmatprep.subr.bf16.mxu0 0
    %1882 = vmatpush1.bf16.msra.mxu0 0
    %1883 = vmatprep.subr.bf16.mxu0 0
    %1884 = vmatpush1.bf16.msra.mxu0 0
    %1885 = vmatprep.subr.bf16.mxu0 0
    %1886 = vmatpush1.bf16.msra.mxu0 0
    %1887 = vmatprep.subr.bf16.mxu0 0
    %1888 = vmatpush1.bf16.msra.mxu0 0
    %1889 = vmatprep.subr.bf16.mxu0 0
    %1890 = vmatpush1.bf16.msra.mxu0 0
    %1891 = vmatprep.subr.bf16.mxu0 0
    %1892 = vmatpush1.bf16.msra.mxu0 0
    %1893 = vmatprep.subr.bf16.mxu0 0
    %1894 = vmatpush1.bf16.msra.mxu0 0
    %1895 = vmatprep.subr.bf16.mxu0 0
    %1896 = vmatpush1.bf16.msra.mxu0 0
    %1897 = vmatprep.subr.bf16.mxu0 0
    %1898 = vmatpush1.bf16.msra.mxu0 0
    %1899 = vmatprep.subr.bf16.mxu0 0
    %1900 = vmatpush1.bf16.msra.mxu0 0
    %1901 = vmatprep.mubr.bf16.mxu0 0
    %1902 = vmatmul.mubr.bf16.gmra.mrb[0].mxu0 %v398
    %v1903 = vpop.f32.mrb[0].mxu0
    %v1904 = vadd.f32 %v1839, %v1903
    %v1905 = vpop.f32.mrb[0].mxu0
    %v1906 = vpop.f32.mrb[0].mxu0
    %v1907 = vadd.f32 %v1842, %v1906
    %v1908 = vpop.f32.mrb[0].mxu0
    %1909 = vdwg.mxu0
    %v1910 = vld [vmem:[%s16] sm:$0x1]
    %v1912 = vlaneseq
    %v1913 = vshrl.u32 %v1912, 7
    %v1914 = vsub.s32 0, %v1913
    %v1915 = vrot.slane %v1910, %v1914
    %v1917 = vadd.f32 %v1904, %v1915
    %v1918 = vadd.f32 %v1907, %v1915
    %v1919 = vld [vmem:[%s17] sm:$0x1]
    %v1920 = vld [vmem:[%s18] sm:$0x1]
    %v1921 = vsel %vm396, %v1917, 0.0
    %v1922 = vsel %vm396, %v1918, 0.0
    %v1923 = vadd.f32 %v1921, %v1922
    %v1924 = vrot.slane %v1923, 4
    %v1925 = vadd.f32 %v1923, %v1924
    %v1926 = vrot.slane %v1925, 2
    %v1927 = vadd.f32 %v1925, %v1926
    %v1928 = vrot.slane %v1927, 1
    %v1929 = vadd.f32 %v1927, %v1928
    %v1930 = vrcp.pop 16.0
    %v1931 = vmul.f32 %v1929, %v1930
    %v1932 = vmul.f32 %v1917, %v1917
    %v1933 = vmul.f32 %v1918, %v1918
    %v1934 = vsel %vm396, %v1932, 0.0
    %v1935 = vsel %vm396, %v1933, 0.0
    %v1936 = vadd.f32 %v1934, %v1935
    %v1937 = vrot.slane %v1936, 4
    %v1938 = vadd.f32 %v1936, %v1937
    %v1939 = vrot.slane %v1938, 2
    %v1940 = vadd.f32 %v1938, %v1939
    %v1941 = vrot.slane %v1940, 1
    %v1942 = vadd.f32 %v1940, %v1941
    %v1943 = vmul.f32 %v1942, %v1930
    %v1944 = vmul.f32 %v1931, %v1931
    %v1945 = vsub.f32 %v1943, %v1944
    %v1946 = vsub.f32 %v1917, %v1931
    %v1947 = vsub.f32 %v1918, %v1931
    %v1948 = vadd.f32 %v1945, 1e-05
    %v1949 = vrsqrt.pop %v1948
    %v1950 = vmul.f32 %v1946, %v1949
    %v1951 = vmul.f32 %v1947, %v1949
    %v1953 = vlaneseq
    %v1954 = vshrl.u32 %v1953, 7
    %v1955 = vsub.s32 0, %v1954
    %v1956 = vrot.slane %v1919, %v1955
    %v1958 = vmul.f32 %v1950, %v1956
    %v1959 = vmul.f32 %v1951, %v1956
    %v1961 = vlaneseq
    %v1962 = vshrl.u32 %v1961, 7
    %v1963 = vsub.s32 0, %v1962
    %v1964 = vrot.slane %v1920, %v1963
    %v1966 = vadd.f32 %v1958, %v1964
    %v1967 = vadd.f32 %v1959, %v1964
    %v1968 = vmax.f32 %v1966, 0.0
    %v1969 = vmax.f32 %v1967, 0.0
    %v1970 = vld [vmem:[#allocation12] sm:$0xf]
    %v1971 = vld [vmem:[#allocation12 + $0x4] sm:$0xf]
    %v1972 = vld [vmem:[#allocation12 + $0x8] sm:$0xf]
    %v1973 = vld [vmem:[#allocation12 + $0xc] sm:$0xf]
    %v1974 = vld [vmem:[#allocation12 + $0x10] sm:$0xf]
    %v1975 = vld [vmem:[#allocation12 + $0x14] sm:$0xf]
    %v1976 = vld [vmem:[#allocation12 + $0x18] sm:$0xf]
    %v1977 = vld [vmem:[#allocation12 + $0x1c] sm:$0xf]
    %v1978 = vpack.c.bf16 %v1969, %v1968
    %v1979 = vld [vmem:[%s20] sm:$0x1]
    %v1981 = vlaneseq
    %v1982 = vshrl.u32 %v1981, 7
    %v1983 = vsub.s32 0, %v1982
    %v1984 = vrot.slane %v1979, %v1983
    %v1994 = vunpack.c.l.b16 %v1970
    %v1995 = vunpack.c.l.b16 %v1971
    %v1996 = vunpack.c.l.b16 %v1972
    %v1997 = vunpack.c.l.b16 %v1973
    %v1998 = vunpack.c.l.b16 %v1974
    %v1999 = vunpack.c.l.b16 %v1975
    %v2000 = vunpack.c.l.b16 %v1976
    %v2001 = vunpack.c.l.b16 %v1977
    %v2002 = vpack.c.b16 %v1995, %v1994
    %v2003 = vpack.c.b16 %v1997, %v1996
    %v2004 = vpack.c.b16 %v1999, %v1998
    %v2005 = vpack.c.b16 %v2001, %v2000
    %v2011 = vsel %vm396, %v1978, 0
    %2013 = vmatprep.subr.bf16.mxu0 0
    %2014 = vmatpush1.bf16.msra.mxu0 %v2002
    %2015 = vmatprep.subr.bf16.mxu0 0
    %2016 = vmatpush1.bf16.msra.mxu0 %v2003
    %2017 = vmatprep.subr.bf16.mxu0 0
    %2018 = vmatpush1.bf16.msra.mxu0 %v2004
    %2019 = vmatprep.subr.bf16.mxu0 0
    %2020 = vmatpush1.bf16.msra.mxu0 %v2005
    %2021 = vmatprep.subr.bf16.mxu0 0
    %2022 = vmatpush1.bf16.msra.mxu0 0
    %2023 = vmatprep.subr.bf16.mxu0 0
    %2024 = vmatpush1.bf16.msra.mxu0 0
    %2025 = vmatprep.subr.bf16.mxu0 0
    %2026 = vmatpush1.bf16.msra.mxu0 0
    %2027 = vmatprep.subr.bf16.mxu0 0
    %2028 = vmatpush1.bf16.msra.mxu0 0
    %2029 = vmatprep.subr.bf16.mxu0 0
    %2030 = vmatpush1.bf16.msra.mxu0 0
    %2031 = vmatprep.subr.bf16.mxu0 0
    %2032 = vmatpush1.bf16.msra.mxu0 0
    %2033 = vmatprep.subr.bf16.mxu0 0
    %2034 = vmatpush1.bf16.msra.mxu0 0
    %2035 = vmatprep.subr.bf16.mxu0 0
    %2036 = vmatpush1.bf16.msra.mxu0 0
    %2037 = vmatprep.subr.bf16.mxu0 0
    %2038 = vmatpush1.bf16.msra.mxu0 0
    %2039 = vmatprep.subr.bf16.mxu0 0
    %2040 = vmatpush1.bf16.msra.mxu0 0
    %2041 = vmatprep.subr.bf16.mxu0 0
    %2042 = vmatpush1.bf16.msra.mxu0 0
    %2043 = vmatprep.subr.bf16.mxu0 0
    %2044 = vmatpush1.bf16.msra.mxu0 0
    %2045 = vmatprep.mubr.bf16.mxu0 0
    %2046 = vmatmul.mubr.bf16.gmra.mrb[0].mxu0 %v2011
    %v2047 = vpop.f32.mrb[0].mxu0
    %v2048 = vadd.f32 %v1984, %v2047
    %v2049 = vpop.f32.mrb[0].mxu0
    %v2050 = vpop.f32.mrb[0].mxu0
    %v2051 = vadd.f32 %v1984, %v2050
    %v2052 = vpop.f32.mrb[0].mxu0
    %2053 = vdwg.mxu0
    %v2054 = vld [vmem:[%s21] sm:$0x1]
    %v2055 = vld [vmem:[%s22] sm:$0x1]
    %v2056 = vsel %vm396, %v2048, 0.0
    %v2057 = vsel %vm396, %v2051, 0.0
    %v2058 = vadd.f32 %v2056, %v2057
    %v2059 = vrot.slane %v2058, 4
    %v2060 = vadd.f32 %v2058, %v2059
    %v2061 = vrot.slane %v2060, 2
    %v2062 = vadd.f32 %v2060, %v2061
    %v2063 = vrot.slane %v2062, 1
    %v2064 = vadd.f32 %v2062, %v2063
    %v2065 = vmul.f32 %v2064, %v1930
    %v2066 = vmul.f32 %v2048, %v2048
    %v2067 = vmul.f32 %v2051, %v2051
    %v2068 = vsel %vm396, %v2066, 0.0
    %v2069 = vsel %vm396, %v2067, 0.0
    %v2070 = vadd.f32 %v2068, %v2069
    %v2071 = vrot.slane %v2070, 4
    %v2072 = vadd.f32 %v2070, %v2071
    %v2073 = vrot.slane %v2072, 2
    %v2074 = vadd.f32 %v2072, %v2073
    %v2075 = vrot.slane %v2074, 1
    %v2076 = vadd.f32 %v2074, %v2075
    %v2077 = vmul.f32 %v2076, %v1930
    %v2078 = vmul.f32 %v2065, %v2065
    %v2079 = vsub.f32 %v2077, %v2078
    %v2080 = vsub.f32 %v2048, %v2065
    %v2081 = vsub.f32 %v2051, %v2065
    %v2082 = vadd.f32 %v2079, 1e-05
    %v2083 = vrsqrt.pop %v2082
    %v2084 = vmul.f32 %v2080, %v2083
    %v2085 = vmul.f32 %v2081, %v2083
    %v2087 = vlaneseq
    %v2088 = vshrl.u32 %v2087, 7
    %v2089 = vsub.s32 0, %v2088
    %v2090 = vrot.slane %v2054, %v2089
    %v2092 = vmul.f32 %v2084, %v2090
    %v2093 = vmul.f32 %v2085, %v2090
    %v2095 = vlaneseq
    %v2096 = vshrl.u32 %v2095, 7
    %v2097 = vsub.s32 0, %v2096
    %v2098 = vrot.slane %v2055, %v2097
    %v2100 = vadd.f32 %v2092, %v2098
    %v2101 = vadd.f32 %v2093, %v2098
    %v2102 = vmax.f32 %v2100, 0.0
    %v2103 = vmax.f32 %v2101, 0.0
    %v2104 = vadd.f32 %v355, %v2102
    %v2105 = vadd.f32 %v360, %v2103
    %s2106 = scalar_lea.vmem %s5, 32
    %v2107 = vld [vmem:[%s2106] sm:$0xf]
    %v2108 = vld [vmem:[%s2106 + $0x4] sm:$0xf]
    %v2109 = vld [vmem:[%s2106 + $0x8] sm:$0xf]
    %v2110 = vld [vmem:[%s2106 + $0xc] sm:$0xf]
    %v2111 = vld [vmem:[%s2106 + $0x10] sm:$0xf]
    %v2112 = vld [vmem:[%s2106 + $0x14] sm:$0xf]
    %v2113 = vld [vmem:[%s2106 + $0x18] sm:$0xf]
    %v2114 = vld [vmem:[%s2106 + $0x1c] sm:$0xf]
    %v2115 = vpack.c.bf16 %v2105, %v2104
    %v2124 = vunpack.c.l.b16 %v2107
    %v2125 = vunpack.c.l.b16 %v2108
    %v2126 = vunpack.c.l.b16 %v2109
    %v2127 = vunpack.c.l.b16 %v2110
    %v2128 = vunpack.c.l.b16 %v2111
    %v2129 = vunpack.c.l.b16 %v2112
    %v2130 = vunpack.c.l.b16 %v2113
    %v2131 = vunpack.c.l.b16 %v2114
    %v2132 = vpack.c.b16 %v2125, %v2124
    %v2133 = vpack.c.b16 %v2127, %v2126
    %v2134 = vpack.c.b16 %v2129, %v2128
    %v2135 = vpack.c.b16 %v2131, %v2130
    %v2141 = vsel %vm396, %v2115, 0
    %2143 = vmatprep.subr.bf16.mxu0 0
    %2144 = vmatpush1.bf16.msra.mxu0 %v2132
    %2145 = vmatprep.subr.bf16.mxu0 0
    %2146 = vmatpush1.bf16.msra.mxu0 %v2133
    %2147 = vmatprep.subr.bf16.mxu0 0
    %2148 = vmatpush1.bf16.msra.mxu0 %v2134
    %2149 = vmatprep.subr.bf16.mxu0 0
    %2150 = vmatpush1.bf16.msra.mxu0 %v2135
    %2151 = vmatprep.subr.bf16.mxu0 0
    %2152 = vmatpush1.bf16.msra.mxu0 0
    %2153 = vmatprep.subr.bf16.mxu0 0
    %2154 = vmatpush1.bf16.msra.mxu0 0
    %2155 = vmatprep.subr.bf16.mxu0 0
    %2156 = vmatpush1.bf16.msra.mxu0 0
    %2157 = vmatprep.subr.bf16.mxu0 0
    %2158 = vmatpush1.bf16.msra.mxu0 0
    %2159 = vmatprep.subr.bf16.mxu0 0
    %2160 = vmatpush1.bf16.msra.mxu0 0
    %2161 = vmatprep.subr.bf16.mxu0 0
    %2162 = vmatpush1.bf16.msra.mxu0 0
    %2163 = vmatprep.subr.bf16.mxu0 0
    %2164 = vmatpush1.bf16.msra.mxu0 0
    %2165 = vmatprep.subr.bf16.mxu0 0
    %2166 = vmatpush1.bf16.msra.mxu0 0
    %2167 = vmatprep.subr.bf16.mxu0 0
    %2168 = vmatpush1.bf16.msra.mxu0 0
    %2169 = vmatprep.subr.bf16.mxu0 0
    %2170 = vmatpush1.bf16.msra.mxu0 0
    %2171 = vmatprep.subr.bf16.mxu0 0
    %2172 = vmatpush1.bf16.msra.mxu0 0
    %2173 = vmatprep.subr.bf16.mxu0 0
    %2174 = vmatpush1.bf16.msra.mxu0 0
    %2175 = vmatprep.mubr.bf16.mxu0 0
    %2176 = vmatmul.mubr.bf16.gmra.mrb[0].mxu0 %v2141
    %v2177 = vpop.f32.mrb[0].mxu0
    %v2178 = vadd.f32 0.0, %v2177
    %v2179 = vpop.f32.mrb[0].mxu0
    %v2180 = vpop.f32.mrb[0].mxu0
    %v2181 = vadd.f32 0.0, %v2180
    %v2182 = vpop.f32.mrb[0].mxu0
    %2183 = vdwg.mxu0
    %s2184 = scalar_lea.vmem [#allocation6], 32
    %v2185 = vld [vmem:[%s2184] sm:$0xf]
    %v2186 = vld [vmem:[%s2184 + $0x4] sm:$0xf]
    %v2187 = vld [vmem:[%s2184 + $0x8] sm:$0xf]
    %v2188 = vld [vmem:[%s2184 + $0xc] sm:$0xf]
    %v2189 = vld [vmem:[%s2184 + $0x10] sm:$0xf]
    %v2190 = vld [vmem:[%s2184 + $0x14] sm:$0xf]
    %v2191 = vld [vmem:[%s2184 + $0x18] sm:$0xf]
    %v2192 = vld [vmem:[%s2184 + $0x1c] sm:$0xf]
    %v2201 = vunpack.c.l.b16 %v2185
    %v2202 = vunpack.c.l.b16 %v2186
    %v2203 = vunpack.c.l.b16 %v2187
    %v2204 = vunpack.c.l.b16 %v2188
    %v2205 = vunpack.c.l.b16 %v2189
    %v2206 = vunpack.c.l.b16 %v2190
    %v2207 = vunpack.c.l.b16 %v2191
    %v2208 = vunpack.c.l.b16 %v2192
    %v2209 = vpack.c.b16 %v2202, %v2201
    %v2210 = vpack.c.b16 %v2204, %v2203
    %v2211 = vpack.c.b16 %v2206, %v2205
    %v2212 = vpack.c.b16 %v2208, %v2207
    %2217 = vmatprep.subr.bf16.mxu0 0
    %2218 = vmatpush1.bf16.msra.mxu0 %v2209
    %2219 = vmatprep.subr.bf16.mxu0 0
    %2220 = vmatpush1.bf16.msra.mxu0 %v2210
    %2221 = vmatprep.subr.bf16.mxu0 0
    %2222 = vmatpush1.bf16.msra.mxu0 %v2211
    %2223 = vmatprep.subr.bf16.mxu0 0
    %2224 = vmatpush1.bf16.msra.mxu0 %v2212
    %2225 = vmatprep.subr.bf16.mxu0 0
    %2226 = vmatpush1.bf16.msra.mxu0 0
    %2227 = vmatprep.subr.bf16.mxu0 0
    %2228 = vmatpush1.bf16.msra.mxu0 0
    %2229 = vmatprep.subr.bf16.mxu0 0
    %2230 = vmatpush1.bf16.msra.mxu0 0
    %2231 = vmatprep.subr.bf16.mxu0 0
    %2232 = vmatpush1.bf16.msra.mxu0 0
    %2233 = vmatprep.subr.bf16.mxu0 0
    %2234 = vmatpush1.bf16.msra.mxu0 0
    %2235 = vmatprep.subr.bf16.mxu0 0
    %2236 = vmatpush1.bf16.msra.mxu0 0
    %2237 = vmatprep.subr.bf16.mxu0 0
    %2238 = vmatpush1.bf16.msra.mxu0 0
    %2239 = vmatprep.subr.bf16.mxu0 0
    %2240 = vmatpush1.bf16.msra.mxu0 0
    %2241 = vmatprep.subr.bf16.mxu0 0
    %2242 = vmatpush1.bf16.msra.mxu0 0
    %2243 = vmatprep.subr.bf16.mxu0 0
    %2244 = vmatpush1.bf16.msra.mxu0 0
    %2245 = vmatprep.subr.bf16.mxu0 0
    %2246 = vmatpush1.bf16.msra.mxu0 0
    %2247 = vmatprep.subr.bf16.mxu0 0
    %2248 = vmatpush1.bf16.msra.mxu0 0
    %2249 = vmatprep.mubr.bf16.mxu0 0
    %2250 = vmatmul.mubr.bf16.gmra.mrb[0].mxu0 %v2141
    %v2251 = vpop.f32.mrb[0].mxu0
    %v2252 = vadd.f32 0.0, %v2251
    %v2253 = vpop.f32.mrb[0].mxu0
    %v2254 = vpop.f32.mrb[0].mxu0
    %v2255 = vadd.f32 0.0, %v2254
    %v2256 = vpop.f32.mrb[0].mxu0
    %2257 = vdwg.mxu0
    %s2258 = scalar_lea.vmem %s7, 1
    %v2259 = vld [vmem:[%s2258] sm:$0x1]
    %v2261 = vlaneseq
    %v2262 = vshrl.u32 %v2261, 7
    %v2263 = vsub.s32 0, %v2262
    %v2264 = vrot.slane %v2259, %v2263
    %2266 = vmatprep.subr.mxu0 0.0
    %2267 = vmatpush1.msra.mxu0 %v2178
    %2268 = vmatprep.subr.mxu0 0.0
    %2269 = vmatpush1.msra.mxu0 %v2181
    %2270 = vmatprep.subr.mxu0 0.0
    %2271 = vmatpush1.msra.mxu0 %v2252
    %2272 = vmatprep.subr.mxu0 0.0
    %2273 = vmatpush1.msra.mxu0 %v2255
    %2274 = vmatprep.subr.mxu0 0.0
    %2275 = vmatpush1.msra.mxu0 0.0
    %2276 = vmatprep.subr.mxu0 0.0
    %2277 = vmatpush1.msra.mxu0 0.0
    %2278 = vmatprep.subr.mxu0 0.0
    %2279 = vmatpush1.msra.mxu0 0.0
    %2280 = vmatprep.subr.mxu0 0.0
    %2281 = vmatpush1.msra.mxu0 0.0
    %2282 = vmatprep.subr.mxu0 0.0
    %2283 = vmatpush1.msra.mxu0 0.0
    %2284 = vmatprep.subr.mxu0 0.0
    %2285 = vmatpush1.msra.mxu0 0.0
    %2286 = vmatprep.subr.mxu0 0.0
    %2287 = vmatpush1.msra.mxu0 0.0
    %2288 = vmatprep.subr.mxu0 0.0
    %2289 = vmatpush1.msra.mxu0 0.0
    %2290 = vmatprep.subr.mxu0 0.0
    %2291 = vmatpush1.msra.mxu0 0.0
    %2292 = vmatprep.subr.mxu0 0.0
    %2293 = vmatpush1.msra.mxu0 0.0
    %2294 = vmatprep.subr.mxu0 0.0
    %2295 = vmatpush1.msra.mxu0 0.0
    %2296 = vmatprep.subr.mxu0 0.0
    %2297 = vmatpush1.msra.mxu0 0.0
    %2298 = vmatprep.subr.mxu0 0.0
    %2299 = vmatpush1.msra.mxu0 0.0
    %2300 = vmatprep.subr.mxu0 0.0
    %2301 = vmatpush1.msra.mxu0 0.0
    %2302 = vmatprep.subr.mxu0 0.0
    %2303 = vmatpush1.msra.mxu0 0.0
    %2304 = vmatprep.subr.mxu0 0.0
    %2305 = vmatpush1.msra.mxu0 0.0
    %2306 = vmatprep.subr.mxu0 0.0
    %2307 = vmatpush1.msra.mxu0 0.0
    %2308 = vmatprep.subr.mxu0 0.0
    %2309 = vmatpush1.msra.mxu0 0.0
    %2310 = vmatprep.subr.mxu0 0.0
    %2311 = vmatpush1.msra.mxu0 0.0
    %2312 = vmatprep.subr.mxu0 0.0
    %2313 = vmatpush1.msra.mxu0 0.0
    %2314 = vmatprep.subr.mxu0 0.0
    %2315 = vmatpush1.msra.mxu0 0.0
    %2316 = vmatprep.subr.mxu0 0.0
    %2317 = vmatpush1.msra.mxu0 0.0
    %2318 = vmatprep.subr.mxu0 0.0
    %2319 = vmatpush1.msra.mxu0 0.0
    %2320 = vmatprep.subr.mxu0 0.0
    %2321 = vmatpush1.msra.mxu0 0.0
    %2322 = vmatprep.subr.mxu0 0.0
    %2323 = vmatpush1.msra.mxu0 0.0
    %2324 = vmatprep.subr.mxu0 0.0
    %2325 = vmatpush1.msra.mxu0 0.0
    %2326 = vmatprep.subr.mxu0 0.0
    %2327 = vmatpush1.msra.mxu0 0.0
    %2328 = vmatprep.subr.mxu0 0.0
    %2329 = vmatpush1.msra.mxu0 0.0
    %2330 = vmatprep.mubr.f32.mxu0 0.0
    %2331 = vmatmul.mubr.f32.gmra.mrb[0].mxu0 %v523
    %v2332 = vpop.f32.mrb[0].mxu0
    %v2333 = vadd.f32 %v2264, %v2332
    %v2334 = vpop.f32.mrb[0].mxu0
    %2335 = vmatprep.mubr.f32.mxu0 0.0
    %2336 = vmatmul.mubr.f32.gmra.mrb[0].mxu0 %v526
    %v2337 = vpop.f32.mrb[0].mxu0
    %v2338 = vadd.f32 %v2264, %v2337
    %v2339 = vpop.f32.mrb[0].mxu0
    %2340 = vmatprep.mubr.f32.mxu0 0.0
    %2341 = vmatmul.mubr.f32.gmra.mrb[0].mxu0 %v529
    %v2342 = vpop.f32.mrb[0].mxu0
    %v2343 = vadd.f32 %v2264, %v2342
    %v2344 = vpop.f32.mrb[0].mxu0
    %2345 = vmatprep.mubr.f32.mxu0 0.0
    %2346 = vmatmul.mubr.f32.gmra.mrb[0].mxu0 %v532
    %v2347 = vpop.f32.mrb[0].mxu0
    %v2348 = vadd.f32 %v2264, %v2347
    %v2349 = vpop.f32.mrb[0].mxu0
    %2350 = vdwg.mxu0
    %s2351 = scalar_lea.vmem %s8, 1
    %v2352 = vld [vmem:[%s2351] sm:$0x1]
    %s2353 = scalar_lea.vmem %s9, 1
    %v2354 = vld [vmem:[%s2353] sm:$0x1]
    %v2355 = vsel %vm396, %v2333, 0.0
    %v2356 = vsel %vm396, %v2338, 0.0
    %v2357 = vadd.f32 %v2355, %v2356
    %v2358 = vsel %vm396, %v2343, 0.0
    %v2359 = vadd.f32 %v2357, %v2358
    %v2360 = vsel %vm396, %v2348, 0.0
    %v2361 = vadd.f32 %v2359, %v2360
    %v2362 = vrot.slane %v2361, 4
    %v2363 = vadd.f32 %v2361, %v2362
    %v2364 = vrot.slane %v2363, 2
    %v2365 = vadd.f32 %v2363, %v2364
    %v2366 = vrot.slane %v2365, 1
    %v2367 = vadd.f32 %v2365, %v2366
    %v2368 = vmul.f32 %v2367, %v634
    %v2369 = vmul.f32 %v2333, %v2333
    %v2370 = vmul.f32 %v2338, %v2338
    %v2371 = vmul.f32 %v2343, %v2343
    %v2372 = vmul.f32 %v2348, %v2348
    %v2373 = vsel %vm396, %v2369, 0.0
    %v2374 = vsel %vm396, %v2370, 0.0
    %v2375 = vadd.f32 %v2373, %v2374
    %v2376 = vsel %vm396, %v2371, 0.0
    %v2377 = vadd.f32 %v2375, %v2376
    %v2378 = vsel %vm396, %v2372, 0.0
    %v2379 = vadd.f32 %v2377, %v2378
    %v2380 = vrot.slane %v2379, 4
    %v2381 = vadd.f32 %v2379, %v2380
    %v2382 = vrot.slane %v2381, 2
    %v2383 = vadd.f32 %v2381, %v2382
    %v2384 = vrot.slane %v2383, 1
    %v2385 = vadd.f32 %v2383, %v2384
    %v2386 = vmul.f32 %v2385, %v634
    %v2387 = vmul.f32 %v2368, %v2368
    %v2388 = vsub.f32 %v2386, %v2387
    %v2389 = vsub.f32 %v2333, %v2368
    %v2390 = vsub.f32 %v2338, %v2368
    %v2391 = vsub.f32 %v2343, %v2368
    %v2392 = vsub.f32 %v2348, %v2368
    %v2393 = vadd.f32 %v2388, 1e-05
    %v2394 = vrsqrt.pop %v2393
    %v2395 = vmul.f32 %v2389, %v2394
    %v2396 = vmul.f32 %v2390, %v2394
    %v2397 = vmul.f32 %v2391, %v2394
    %v2398 = vmul.f32 %v2392, %v2394
    %v2400 = vlaneseq
    %v2401 = vshrl.u32 %v2400, 7
    %v2402 = vsub.s32 0, %v2401
    %v2403 = vrot.slane %v2352, %v2402
    %v2405 = vmul.f32 %v2395, %v2403
    %v2406 = vmul.f32 %v2396, %v2403
    %v2407 = vmul.f32 %v2397, %v2403
    %v2408 = vmul.f32 %v2398, %v2403
    %v2410 = vlaneseq
    %v2411 = vshrl.u32 %v2410, 7
    %v2412 = vsub.s32 0, %v2411
    %v2413 = vrot.slane %v2354, %v2412
    %v2415 = vadd.f32 %v2405, %v2413
    %v2416 = vadd.f32 %v2406, %v2413
    %v2417 = vadd.f32 %v2407, %v2413
    %v2418 = vadd.f32 %v2408, %v2413
    %v2419 = vmax.f32 %v2415, 0.0
    %v2420 = vmax.f32 %v2416, 0.0
    %v2421 = vmax.f32 %v2417, 0.0
    %v2422 = vmax.f32 %v2418, 0.0
    %s2423 = scalar_lea.vmem [#allocation8], 32
    %v2424 = vld [vmem:[%s2423] sm:$0xf]
    %v2425 = vld [vmem:[%s2423 + $0x4] sm:$0xf]
    %v2426 = vld [vmem:[%s2423 + $0x8] sm:$0xf]
    %v2427 = vld [vmem:[%s2423 + $0xc] sm:$0xf]
    %v2428 = vld [vmem:[%s2423 + $0x10] sm:$0xf]
    %v2429 = vld [vmem:[%s2423 + $0x14] sm:$0xf]
    %v2430 = vld [vmem:[%s2423 + $0x18] sm:$0xf]
    %v2431 = vld [vmem:[%s2423 + $0x1c] sm:$0xf]
    %v2432 = vpack.c.bf16 %v2420, %v2419
    %v2433 = vpack.c.bf16 %v2422, %v2421
    %s2434 = scalar_lea.vmem %s11, 1
    %v2435 = vld [vmem:[%s2434] sm:$0x1]
    %v2437 = vlaneseq
    %v2438 = vshrl.u32 %v2437, 7
    %v2439 = vsub.s32 0, %v2438
    %v2440 = vrot.slane %v2435, %v2439
    %v2450 = vunpack.c.l.b16 %v2424
    %v2451 = vunpack.c.l.b16 %v2425
    %v2452 = vunpack.c.l.b16 %v2426
    %v2453 = vunpack.c.l.b16 %v2427
    %v2454 = vunpack.c.l.b16 %v2428
    %v2455 = vunpack.c.l.b16 %v2429
    %v2456 = vunpack.c.l.b16 %v2430
    %v2457 = vunpack.c.l.b16 %v2431
    %v2458 = vpack.c.b16 %v2451, %v2450
    %v2459 = vpack.c.b16 %v2453, %v2452
    %v2460 = vpack.c.b16 %v2455, %v2454
    %v2461 = vpack.c.b16 %v2457, %v2456
    %v2467 = vsel %vm396, %v2432, 0
    %v2470 = vsel %vm396, %v2433, 0
    %2472 = vmatprep.subr.bf16.mxu0 0
    %2473 = vmatpush1.bf16.msra.mxu0 %v2458
    %2474 = vmatprep.subr.bf16.mxu0 0
    %2475 = vmatpush1.bf16.msra.mxu0 %v2459
    %2476 = vmatprep.subr.bf16.mxu0 0
    %2477 = vmatpush1.bf16.msra.mxu0 %v2460
    %2478 = vmatprep.subr.bf16.mxu0 0
    %2479 = vmatpush1.bf16.msra.mxu0 %v2461
    %2480 = vmatprep.subr.bf16.mxu0 0
    %2481 = vmatpush1.bf16.msra.mxu0 0
    %2482 = vmatprep.subr.bf16.mxu0 0
    %2483 = vmatpush1.bf16.msra.mxu0 0
    %2484 = vmatprep.subr.bf16.mxu0 0
    %2485 = vmatpush1.bf16.msra.mxu0 0
    %2486 = vmatprep.subr.bf16.mxu0 0
    %2487 = vmatpush1.bf16.msra.mxu0 0
    %2488 = vmatprep.subr.bf16.mxu0 0
    %2489 = vmatpush1.bf16.msra.mxu0 0
    %2490 = vmatprep.subr.bf16.mxu0 0
    %2491 = vmatpush1.bf16.msra.mxu0 0
    %2492 = vmatprep.subr.bf16.mxu0 0
    %2493 = vmatpush1.bf16.msra.mxu0 0
    %2494 = vmatprep.subr.bf16.mxu0 0
    %2495 = vmatpush1.bf16.msra.mxu0 0
    %2496 = vmatprep.subr.bf16.mxu0 0
    %2497 = vmatpush1.bf16.msra.mxu0 0
    %2498 = vmatprep.subr.bf16.mxu0 0
    %2499 = vmatpush1.bf16.msra.mxu0 0
    %2500 = vmatprep.subr.bf16.mxu0 0
    %2501 = vmatpush1.bf16.msra.mxu0 0
    %2502 = vmatprep.subr.bf16.mxu0 0
    %2503 = vmatpush1.bf16.msra.mxu0 0
    %2504 = vmatprep.mubr.bf16.mxu0 0
    %2505 = vmatmul.mubr.bf16.gmra.mrb[0].mxu0 %v2467
    %v2506 = vpop.f32.mrb[0].mxu0
    %v2507 = vadd.f32 %v2440, %v2506
    %v2508 = vpop.f32.mrb[0].mxu0
    %v2509 = vpop.f32.mrb[0].mxu0
    %v2510 = vadd.f32 %v2440, %v2509
    %v2511 = vpop.f32.mrb[0].mxu0
    %2512 = vmatprep.mubr.bf16.mxu0 0
    %2513 = vmatmul.mubr.bf16.gmra.mrb[0].mxu0 %v2470
    %v2514 = vpop.f32.mrb[0].mxu0
    %v2515 = vadd.f32 %v2440, %v2514
    %v2516 = vpop.f32.mrb[0].mxu0
    %v2517 = vpop.f32.mrb[0].mxu0
    %v2518 = vadd.f32 %v2440, %v2517
    %v2519 = vpop.f32.mrb[0].mxu0
    %2520 = vdwg.mxu0
    %s2521 = scalar_lea.vmem %s12, 1
    %v2522 = vld [vmem:[%s2521] sm:$0x1]
    %s2523 = scalar_lea.vmem %s13, 1
    %v2524 = vld [vmem:[%s2523] sm:$0x1]
    %v2525 = vsel %vm396, %v2507, 0.0
    %v2526 = vsel %vm396, %v2510, 0.0
    %v2527 = vadd.f32 %v2525, %v2526
    %v2528 = vsel %vm396, %v2515, 0.0
    %v2529 = vadd.f32 %v2527, %v2528
    %v2530 = vsel %vm396, %v2518, 0.0
    %v2531 = vadd.f32 %v2529, %v2530
    %v2532 = vrot.slane %v2531, 4
    %v2533 = vadd.f32 %v2531, %v2532
    %v2534 = vrot.slane %v2533, 2
    %v2535 = vadd.f32 %v2533, %v2534
    %v2536 = vrot.slane %v2535, 1
    %v2537 = vadd.f32 %v2535, %v2536
    %v2538 = vmul.f32 %v2537, %v634
    %v2539 = vmul.f32 %v2507, %v2507
    %v2540 = vmul.f32 %v2510, %v2510
    %v2541 = vmul.f32 %v2515, %v2515
    %v2542 = vmul.f32 %v2518, %v2518
    %v2543 = vsel %vm396, %v2539, 0.0
    %v2544 = vsel %vm396, %v2540, 0.0
    %v2545 = vadd.f32 %v2543, %v2544
    %v2546 = vsel %vm396, %v2541, 0.0
    %v2547 = vadd.f32 %v2545, %v2546
    %v2548 = vsel %vm396, %v2542, 0.0
    %v2549 = vadd.f32 %v2547, %v2548
    %v2550 = vrot.slane %v2549, 4
    %v2551 = vadd.f32 %v2549, %v2550
    %v2552 = vrot.slane %v2551, 2
    %v2553 = vadd.f32 %v2551, %v2552
    %v2554 = vrot.slane %v2553, 1
    %v2555 = vadd.f32 %v2553, %v2554
    %v2556 = vmul.f32 %v2555, %v634
    %v2557 = vmul.f32 %v2538, %v2538
    %v2558 = vsub.f32 %v2556, %v2557
    %v2559 = vsub.f32 %v2507, %v2538
    %v2560 = vsub.f32 %v2510, %v2538
    %v2561 = vsub.f32 %v2515, %v2538
    %v2562 = vsub.f32 %v2518, %v2538
    %v2563 = vadd.f32 %v2558, 1e-05
    %v2564 = vrsqrt.pop %v2563
    %v2565 = vmul.f32 %v2559, %v2564
    %v2566 = vmul.f32 %v2560, %v2564
    %v2567 = vmul.f32 %v2561, %v2564
    %v2568 = vmul.f32 %v2562, %v2564
    %v2570 = vlaneseq
    %v2571 = vshrl.u32 %v2570, 7
    %v2572 = vsub.s32 0, %v2571
    %v2573 = vrot.slane %v2522, %v2572
    %v2575 = vmul.f32 %v2565, %v2573
    %v2576 = vmul.f32 %v2566, %v2573
    %v2577 = vmul.f32 %v2567, %v2573
    %v2578 = vmul.f32 %v2568, %v2573
    %v2580 = vlaneseq
    %v2581 = vshrl.u32 %v2580, 7
    %v2582 = vsub.s32 0, %v2581
    %v2583 = vrot.slane %v2524, %v2582
    %v2585 = vadd.f32 %v2575, %v2583
    %v2586 = vadd.f32 %v2576, %v2583
    %v2587 = vadd.f32 %v2577, %v2583
    %v2588 = vadd.f32 %v2578, %v2583
    %v2589 = vmax.f32 %v2585, 0.0
    %v2590 = vmax.f32 %v2586, 0.0
    %v2591 = vmax.f32 %v2587, 0.0
    %v2592 = vmax.f32 %v2588, 0.0
    %v2594 = vcombine.high %v2589, %v2589
    %v2596 = vunpack.c.l.s4 1966171168
    %v2597 = vunpack.c.0.s8 %v2596
    %v2598 = vlaneseq
    %v2599 = vshrl.u32 %v2598, 7
    %v2600 = vsub.s32 %v2597, %v2599
    %v2601 = vrot.slane %v2589, %v2600
    %v2603 = vunpack.c.l.s4 1966171168
    %v2604 = vunpack.c.0.s8 %v2603
    %v2605 = vlaneseq
    %v2606 = vshrl.u32 %v2605, 7
    %v2607 = vsub.s32 %v2604, %v2606
    %v2608 = vrot.slane %v2594, %v2607
    %v2609 = vcombine.high %v2601, %v2601
    %v2610 = vcombine.high %v2608, %v2608
    %v2612 = vunpack.c.l.s4 1966171168
    %v2613 = vunpack.c.0.s8 %v2612
    %v2614 = vlaneseq
    %v2615 = vshrl.u32 %v2614, 7
    %v2616 = vsub.s32 %v2613, %v2615
    %v2617 = vrot.slane %v2601, %v2616
    %v2619 = vunpack.c.l.s4 1966171168
    %v2620 = vunpack.c.0.s8 %v2619
    %v2621 = vlaneseq
    %v2622 = vshrl.u32 %v2621, 7
    %v2623 = vsub.s32 %v2620, %v2622
    %v2624 = vrot.slane %v2608, %v2623
    %v2626 = vunpack.c.l.s4 1966171168
    %v2627 = vunpack.c.0.s8 %v2626
    %v2628 = vlaneseq
    %v2629 = vshrl.u32 %v2628, 7
    %v2630 = vsub.s32 %v2627, %v2629
    %v2631 = vrot.slane %v2609, %v2630
    %v2633 = vunpack.c.l.s4 1966171168
    %v2634 = vunpack.c.0.s8 %v2633
    %v2635 = vlaneseq
    %v2636 = vshrl.u32 %v2635, 7
    %v2637 = vsub.s32 %v2634, %v2636
    %v2638 = vrot.slane %v2610, %v2637
    %v2639 = vcombine.high %v2617, %v2617
    %v2640 = vcombine.high %v2624, %v2624
    %v2641 = vcombine.high %v2631, %v2631
    %v2642 = vcombine.high %v2638, %v2638
    %v2643 = vlaneseq
    %v2644 = vshrl.u32 %v2643, 7
    %v2645 = vsub.s32 0, %v2644
    %v2646 = vrot.slane %v2617, %v2645
    %v2647 = vlaneseq
    %v2648 = vshrl.u32 %v2647, 7
    %v2649 = vsub.s32 0, %v2648
    %v2650 = vrot.slane %v2631, %v2649
    %v2651 = vlaneseq
    %v2652 = vshrl.u32 %v2651, 7
    %v2653 = vsub.s32 0, %v2652
    %v2654 = vrot.slane %v2639, %v2653
    %v2655 = vlaneseq
    %v2656 = vshrl.u32 %v2655, 7
    %v2657 = vsub.s32 0, %v2656
    %v2658 = vrot.slane %v2641, %v2657
    %v2659 = vlaneseq
    %v2660 = vshrl.u32 %v2659, 7
    %v2661 = vsub.s32 0, %v2660
    %v2662 = vrot.slane %v2624, %v2661
    %v2663 = vlaneseq
    %v2664 = vshrl.u32 %v2663, 7
    %v2665 = vsub.s32 0, %v2664
    %v2666 = vrot.slane %v2638, %v2665
    %v2667 = vlaneseq
    %v2668 = vshrl.u32 %v2667, 7
    %v2669 = vsub.s32 0, %v2668
    %v2670 = vrot.slane %v2640, %v2669
    %v2671 = vlaneseq
    %v2672 = vshrl.u32 %v2671, 7
    %v2673 = vsub.s32 0, %v2672
    %v2674 = vrot.slane %v2642, %v2673
    %v2683 = vmul.f32 %v862, %v2646
    %v2684 = vmul.f32 %v866, %v2646
    %v2685 = vmul.f32 %v873, %v2650
    %v2686 = vmul.f32 %v877, %v2650
    %v2687 = vmul.f32 %v884, %v2654
    %v2688 = vmul.f32 %v888, %v2654
    %v2689 = vmul.f32 %v895, %v2658
    %v2690 = vmul.f32 %v899, %v2658
    %v2691 = vmul.f32 %v906, %v2662
    %v2692 = vmul.f32 %v910, %v2662
    %v2693 = vmul.f32 %v917, %v2666
    %v2694 = vmul.f32 %v921, %v2666
    %v2695 = vmul.f32 %v928, %v2670
    %v2696 = vmul.f32 %v932, %v2670
    %v2697 = vmul.f32 %v939, %v2674
    %v2698 = vmul.f32 %v943, %v2674
    %v2699 = vsel %vm396, %v2683, -inf
    %v2700 = vsel %vm396, %v2685, -inf
    %v2701 = vsel %vm396, %v2687, -inf
    %v2702 = vmax.f32 %v2699, %v2701
    %v2703 = vsel %vm396, %v2689, -inf
    %v2704 = vmax.f32 %v2700, %v2703
    %v2705 = vsel %vm396, %v2691, -inf
    %v2706 = vmax.f32 %v2702, %v2705
    %v2707 = vsel %vm396, %v2693, -inf
    %v2708 = vmax.f32 %v2704, %v2707
    %v2709 = vsel %vm396, %v2695, -inf
    %v2710 = vmax.f32 %v2706, %v2709
    %v2711 = vsel %vm396, %v2697, -inf
    %v2712 = vmax.f32 %v2708, %v2711
    %v2713 = vmax.f32 %v2710, %v2712
    %v2714 = vsel %vm396, %v2684, -inf
    %v2715 = vsel %vm396, %v2686, -inf
    %v2716 = vsel %vm396, %v2688, -inf
    %v2717 = vmax.f32 %v2714, %v2716
    %v2718 = vsel %vm396, %v2690, -inf
    %v2719 = vmax.f32 %v2715, %v2718
    %v2720 = vsel %vm396, %v2692, -inf
    %v2721 = vmax.f32 %v2717, %v2720
    %v2722 = vsel %vm396, %v2694, -inf
    %v2723 = vmax.f32 %v2719, %v2722
    %v2724 = vsel %vm396, %v2696, -inf
    %v2725 = vmax.f32 %v2721, %v2724
    %v2726 = vsel %vm396, %v2698, -inf
    %v2727 = vmax.f32 %v2723, %v2726
    %v2728 = vmax.f32 %v2725, %v2727
    %v2729 = vmax.f32 %v2713, 0.0
    %v2730 = vmax.f32 %v2728, 0.0
    %v2732 = vcombine.high %v2590, %v2590
    %v2734 = vunpack.c.l.s4 1966171168
    %v2735 = vunpack.c.0.s8 %v2734
    %v2736 = vlaneseq
    %v2737 = vshrl.u32 %v2736, 7
    %v2738 = vsub.s32 %v2735, %v2737
    %v2739 = vrot.slane %v2590, %v2738
    %v2741 = vunpack.c.l.s4 1966171168
    %v2742 = vunpack.c.0.s8 %v2741
    %v2743 = vlaneseq
    %v2744 = vshrl.u32 %v2743, 7
    %v2745 = vsub.s32 %v2742, %v2744
    %v2746 = vrot.slane %v2732, %v2745
    %v2747 = vcombine.high %v2739, %v2739
    %v2748 = vcombine.high %v2746, %v2746
    %v2750 = vunpack.c.l.s4 1966171168
    %v2751 = vunpack.c.0.s8 %v2750
    %v2752 = vlaneseq
    %v2753 = vshrl.u32 %v2752, 7
    %v2754 = vsub.s32 %v2751, %v2753
    %v2755 = vrot.slane %v2739, %v2754
    %v2757 = vunpack.c.l.s4 1966171168
    %v2758 = vunpack.c.0.s8 %v2757
    %v2759 = vlaneseq
    %v2760 = vshrl.u32 %v2759, 7
    %v2761 = vsub.s32 %v2758, %v2760
    %v2762 = vrot.slane %v2746, %v2761
    %v2764 = vunpack.c.l.s4 1966171168
    %v2765 = vunpack.c.0.s8 %v2764
    %v2766 = vlaneseq
    %v2767 = vshrl.u32 %v2766, 7
    %v2768 = vsub.s32 %v2765, %v2767
    %v2769 = vrot.slane %v2747, %v2768
    %v2771 = vunpack.c.l.s4 1966171168
    %v2772 = vunpack.c.0.s8 %v2771
    %v2773 = vlaneseq
    %v2774 = vshrl.u32 %v2773, 7
    %v2775 = vsub.s32 %v2772, %v2774
    %v2776 = vrot.slane %v2748, %v2775
    %v2777 = vcombine.high %v2755, %v2755
    %v2778 = vcombine.high %v2762, %v2762
    %v2779 = vcombine.high %v2769, %v2769
    %v2780 = vcombine.high %v2776, %v2776
    %v2781 = vlaneseq
    %v2782 = vshrl.u32 %v2781, 7
    %v2783 = vsub.s32 0, %v2782
    %v2784 = vrot.slane %v2755, %v2783
    %v2785 = vlaneseq
    %v2786 = vshrl.u32 %v2785, 7
    %v2787 = vsub.s32 0, %v2786
    %v2788 = vrot.slane %v2769, %v2787
    %v2789 = vlaneseq
    %v2790 = vshrl.u32 %v2789, 7
    %v2791 = vsub.s32 0, %v2790
    %v2792 = vrot.slane %v2777, %v2791
    %v2793 = vlaneseq
    %v2794 = vshrl.u32 %v2793, 7
    %v2795 = vsub.s32 0, %v2794
    %v2796 = vrot.slane %v2779, %v2795
    %v2797 = vlaneseq
    %v2798 = vshrl.u32 %v2797, 7
    %v2799 = vsub.s32 0, %v2798
    %v2800 = vrot.slane %v2762, %v2799
    %v2801 = vlaneseq
    %v2802 = vshrl.u32 %v2801, 7
    %v2803 = vsub.s32 0, %v2802
    %v2804 = vrot.slane %v2776, %v2803
    %v2805 = vlaneseq
    %v2806 = vshrl.u32 %v2805, 7
    %v2807 = vsub.s32 0, %v2806
    %v2808 = vrot.slane %v2778, %v2807
    %v2809 = vlaneseq
    %v2810 = vshrl.u32 %v2809, 7
    %v2811 = vsub.s32 0, %v2810
    %v2812 = vrot.slane %v2780, %v2811
    %v2821 = vmul.f32 %v1088, %v2784
    %v2822 = vmul.f32 %v1092, %v2784
    %v2823 = vmul.f32 %v1099, %v2788
    %v2824 = vmul.f32 %v1103, %v2788
    %v2825 = vmul.f32 %v1110, %v2792
    %v2826 = vmul.f32 %v1114, %v2792
    %v2827 = vmul.f32 %v1121, %v2796
    %v2828 = vmul.f32 %v1125, %v2796
    %v2829 = vmul.f32 %v1132, %v2800
    %v2830 = vmul.f32 %v1136, %v2800
    %v2831 = vmul.f32 %v1143, %v2804
    %v2832 = vmul.f32 %v1147, %v2804
    %v2833 = vmul.f32 %v1154, %v2808
    %v2834 = vmul.f32 %v1158, %v2808
    %v2835 = vmul.f32 %v1165, %v2812
    %v2836 = vmul.f32 %v1169, %v2812
    %v2837 = vsel %vm396, %v2821, -inf
    %v2838 = vsel %vm396, %v2823, -inf
    %v2839 = vsel %vm396, %v2825, -inf
    %v2840 = vmax.f32 %v2837, %v2839
    %v2841 = vsel %vm396, %v2827, -inf
    %v2842 = vmax.f32 %v2838, %v2841
    %v2843 = vsel %vm396, %v2829, -inf
    %v2844 = vmax.f32 %v2840, %v2843
    %v2845 = vsel %vm396, %v2831, -inf
    %v2846 = vmax.f32 %v2842, %v2845
    %v2847 = vsel %vm396, %v2833, -inf
    %v2848 = vmax.f32 %v2844, %v2847
    %v2849 = vsel %vm396, %v2835, -inf
    %v2850 = vmax.f32 %v2846, %v2849
    %v2851 = vmax.f32 %v2848, %v2850
    %v2852 = vsel %vm396, %v2822, -inf
    %v2853 = vsel %vm396, %v2824, -inf
    %v2854 = vsel %vm396, %v2826, -inf
    %v2855 = vmax.f32 %v2852, %v2854
    %v2856 = vsel %vm396, %v2828, -inf
    %v2857 = vmax.f32 %v2853, %v2856
    %v2858 = vsel %vm396, %v2830, -inf
    %v2859 = vmax.f32 %v2855, %v2858
    %v2860 = vsel %vm396, %v2832, -inf
    %v2861 = vmax.f32 %v2857, %v2860
    %v2862 = vsel %vm396, %v2834, -inf
    %v2863 = vmax.f32 %v2859, %v2862
    %v2864 = vsel %vm396, %v2836, -inf
    %v2865 = vmax.f32 %v2861, %v2864
    %v2866 = vmax.f32 %v2863, %v2865
    %v2867 = vmax.f32 %v2729, %v2851
    %v2868 = vmax.f32 %v2730, %v2866
    %v2870 = vcombine.high %v2591, %v2591
    %v2872 = vunpack.c.l.s4 1966171168
    %v2873 = vunpack.c.0.s8 %v2872
    %v2874 = vlaneseq
    %v2875 = vshrl.u32 %v2874, 7
    %v2876 = vsub.s32 %v2873, %v2875
    %v2877 = vrot.slane %v2591, %v2876
    %v2879 = vunpack.c.l.s4 1966171168
    %v2880 = vunpack.c.0.s8 %v2879
    %v2881 = vlaneseq
    %v2882 = vshrl.u32 %v2881, 7
    %v2883 = vsub.s32 %v2880, %v2882
    %v2884 = vrot.slane %v2870, %v2883
    %v2885 = vcombine.high %v2877, %v2877
    %v2886 = vcombine.high %v2884, %v2884
    %v2888 = vunpack.c.l.s4 1966171168
    %v2889 = vunpack.c.0.s8 %v2888
    %v2890 = vlaneseq
    %v2891 = vshrl.u32 %v2890, 7
    %v2892 = vsub.s32 %v2889, %v2891
    %v2893 = vrot.slane %v2877, %v2892
    %v2895 = vunpack.c.l.s4 1966171168
    %v2896 = vunpack.c.0.s8 %v2895
    %v2897 = vlaneseq
    %v2898 = vshrl.u32 %v2897, 7
    %v2899 = vsub.s32 %v2896, %v2898
    %v2900 = vrot.slane %v2884, %v2899
    %v2902 = vunpack.c.l.s4 1966171168
    %v2903 = vunpack.c.0.s8 %v2902
    %v2904 = vlaneseq
    %v2905 = vshrl.u32 %v2904, 7
    %v2906 = vsub.s32 %v2903, %v2905
    %v2907 = vrot.slane %v2885, %v2906
    %v2909 = vunpack.c.l.s4 1966171168
    %v2910 = vunpack.c.0.s8 %v2909
    %v2911 = vlaneseq
    %v2912 = vshrl.u32 %v2911, 7
    %v2913 = vsub.s32 %v2910, %v2912
    %v2914 = vrot.slane %v2886, %v2913
    %v2915 = vcombine.high %v2893, %v2893
    %v2916 = vcombine.high %v2900, %v2900
    %v2917 = vcombine.high %v2907, %v2907
    %v2918 = vcombine.high %v2914, %v2914
    %v2919 = vlaneseq
    %v2920 = vshrl.u32 %v2919, 7
    %v2921 = vsub.s32 0, %v2920
    %v2922 = vrot.slane %v2893, %v2921
    %v2923 = vlaneseq
    %v2924 = vshrl.u32 %v2923, 7
    %v2925 = vsub.s32 0, %v2924
    %v2926 = vrot.slane %v2907, %v2925
    %v2927 = vlaneseq
    %v2928 = vshrl.u32 %v2927, 7
    %v2929 = vsub.s32 0, %v2928
    %v2930 = vrot.slane %v2915, %v2929
    %v2931 = vlaneseq
    %v2932 = vshrl.u32 %v2931, 7
    %v2933 = vsub.s32 0, %v2932
    %v2934 = vrot.slane %v2917, %v2933
    %v2935 = vlaneseq
    %v2936 = vshrl.u32 %v2935, 7
    %v2937 = vsub.s32 0, %v2936
    %v2938 = vrot.slane %v2900, %v2937
    %v2939 = vlaneseq
    %v2940 = vshrl.u32 %v2939, 7
    %v2941 = vsub.s32 0, %v2940
    %v2942 = vrot.slane %v2914, %v2941
    %v2943 = vlaneseq
    %v2944 = vshrl.u32 %v2943, 7
    %v2945 = vsub.s32 0, %v2944
    %v2946 = vrot.slane %v2916, %v2945
    %v2947 = vlaneseq
    %v2948 = vshrl.u32 %v2947, 7
    %v2949 = vsub.s32 0, %v2948
    %v2950 = vrot.slane %v2918, %v2949
    %v2959 = vmul.f32 %v1314, %v2922
    %v2960 = vmul.f32 %v1318, %v2922
    %v2961 = vmul.f32 %v1325, %v2926
    %v2962 = vmul.f32 %v1329, %v2926
    %v2963 = vmul.f32 %v1336, %v2930
    %v2964 = vmul.f32 %v1340, %v2930
    %v2965 = vmul.f32 %v1347, %v2934
    %v2966 = vmul.f32 %v1351, %v2934
    %v2967 = vmul.f32 %v1358, %v2938
    %v2968 = vmul.f32 %v1362, %v2938
    %v2969 = vmul.f32 %v1369, %v2942
    %v2970 = vmul.f32 %v1373, %v2942
    %v2971 = vmul.f32 %v1380, %v2946
    %v2972 = vmul.f32 %v1384, %v2946
    %v2973 = vmul.f32 %v1391, %v2950
    %v2974 = vmul.f32 %v1395, %v2950
    %v2975 = vsel %vm396, %v2959, -inf
    %v2976 = vsel %vm396, %v2961, -inf
    %v2977 = vsel %vm396, %v2963, -inf
    %v2978 = vmax.f32 %v2975, %v2977
    %v2979 = vsel %vm396, %v2965, -inf
    %v2980 = vmax.f32 %v2976, %v2979
    %v2981 = vsel %vm396, %v2967, -inf
    %v2982 = vmax.f32 %v2978, %v2981
    %v2983 = vsel %vm396, %v2969, -inf
    %v2984 = vmax.f32 %v2980, %v2983
    %v2985 = vsel %vm396, %v2971, -inf
    %v2986 = vmax.f32 %v2982, %v2985
    %v2987 = vsel %vm396, %v2973, -inf
    %v2988 = vmax.f32 %v2984, %v2987
    %v2989 = vmax.f32 %v2986, %v2988
    %v2990 = vsel %vm396, %v2960, -inf
    %v2991 = vsel %vm396, %v2962, -inf
    %v2992 = vsel %vm396, %v2964, -inf
    %v2993 = vmax.f32 %v2990, %v2992
    %v2994 = vsel %vm396, %v2966, -inf
    %v2995 = vmax.f32 %v2991, %v2994
    %v2996 = vsel %vm396, %v2968, -inf
    %v2997 = vmax.f32 %v2993, %v2996
    %v2998 = vsel %vm396, %v2970, -inf
    %v2999 = vmax.f32 %v2995, %v2998
    %v3000 = vsel %vm396, %v2972, -inf
    %v3001 = vmax.f32 %v2997, %v3000
    %v3002 = vsel %vm396, %v2974, -inf
    %v3003 = vmax.f32 %v2999, %v3002
    %v3004 = vmax.f32 %v3001, %v3003
    %v3005 = vmax.f32 %v2867, %v2989
    %v3006 = vmax.f32 %v2868, %v3004
    %v3008 = vcombine.high %v2592, %v2592
    %v3010 = vunpack.c.l.s4 1966171168
    %v3011 = vunpack.c.0.s8 %v3010
    %v3012 = vlaneseq
    %v3013 = vshrl.u32 %v3012, 7
    %v3014 = vsub.s32 %v3011, %v3013
    %v3015 = vrot.slane %v2592, %v3014
    %v3017 = vunpack.c.l.s4 1966171168
    %v3018 = vunpack.c.0.s8 %v3017
    %v3019 = vlaneseq
    %v3020 = vshrl.u32 %v3019, 7
    %v3021 = vsub.s32 %v3018, %v3020
    %v3022 = vrot.slane %v3008, %v3021
    %v3023 = vcombine.high %v3015, %v3015
    %v3024 = vcombine.high %v3022, %v3022
    %v3026 = vunpack.c.l.s4 1966171168
    %v3027 = vunpack.c.0.s8 %v3026
    %v3028 = vlaneseq
    %v3029 = vshrl.u32 %v3028, 7
    %v3030 = vsub.s32 %v3027, %v3029
    %v3031 = vrot.slane %v3015, %v3030
    %v3033 = vunpack.c.l.s4 1966171168
    %v3034 = vunpack.c.0.s8 %v3033
    %v3035 = vlaneseq
    %v3036 = vshrl.u32 %v3035, 7
    %v3037 = vsub.s32 %v3034, %v3036
    %v3038 = vrot.slane %v3022, %v3037
    %v3040 = vunpack.c.l.s4 1966171168
    %v3041 = vunpack.c.0.s8 %v3040
    %v3042 = vlaneseq
    %v3043 = vshrl.u32 %v3042, 7
    %v3044 = vsub.s32 %v3041, %v3043
    %v3045 = vrot.slane %v3023, %v3044
    %v3047 = vunpack.c.l.s4 1966171168
    %v3048 = vunpack.c.0.s8 %v3047
    %v3049 = vlaneseq
    %v3050 = vshrl.u32 %v3049, 7
    %v3051 = vsub.s32 %v3048, %v3050
    %v3052 = vrot.slane %v3024, %v3051
    %v3053 = vcombine.high %v3031, %v3031
    %v3054 = vcombine.high %v3038, %v3038
    %v3055 = vcombine.high %v3045, %v3045
    %v3056 = vcombine.high %v3052, %v3052
    %v3057 = vlaneseq
    %v3058 = vshrl.u32 %v3057, 7
    %v3059 = vsub.s32 0, %v3058
    %v3060 = vrot.slane %v3031, %v3059
    %v3061 = vlaneseq
    %v3062 = vshrl.u32 %v3061, 7
    %v3063 = vsub.s32 0, %v3062
    %v3064 = vrot.slane %v3045, %v3063
    %v3065 = vlaneseq
    %v3066 = vshrl.u32 %v3065, 7
    %v3067 = vsub.s32 0, %v3066
    %v3068 = vrot.slane %v3053, %v3067
    %v3069 = vlaneseq
    %v3070 = vshrl.u32 %v3069, 7
    %v3071 = vsub.s32 0, %v3070
    %v3072 = vrot.slane %v3055, %v3071
    %v3073 = vlaneseq
    %v3074 = vshrl.u32 %v3073, 7
    %v3075 = vsub.s32 0, %v3074
    %v3076 = vrot.slane %v3038, %v3075
    %v3077 = vlaneseq
    %v3078 = vshrl.u32 %v3077, 7
    %v3079 = vsub.s32 0, %v3078
    %v3080 = vrot.slane %v3052, %v3079
    %v3081 = vlaneseq
    %v3082 = vshrl.u32 %v3081, 7
    %v3083 = vsub.s32 0, %v3082
    %v3084 = vrot.slane %v3054, %v3083
    %v3085 = vlaneseq
    %v3086 = vshrl.u32 %v3085, 7
    %v3087 = vsub.s32 0, %v3086
    %v3088 = vrot.slane %v3056, %v3087
    %v3097 = vmul.f32 %v1540, %v3060
    %v3098 = vmul.f32 %v1544, %v3060
    %v3099 = vmul.f32 %v1551, %v3064
    %v3100 = vmul.f32 %v1555, %v3064
    %v3101 = vmul.f32 %v1562, %v3068
    %v3102 = vmul.f32 %v1566, %v3068
    %v3103 = vmul.f32 %v1573, %v3072
    %v3104 = vmul.f32 %v1577, %v3072
    %v3105 = vmul.f32 %v1584, %v3076
    %v3106 = vmul.f32 %v1588, %v3076
    %v3107 = vmul.f32 %v1595, %v3080
    %v3108 = vmul.f32 %v1599, %v3080
    %v3109 = vmul.f32 %v1606, %v3084
    %v3110 = vmul.f32 %v1610, %v3084
    %v3111 = vmul.f32 %v1617, %v3088
    %v3112 = vmul.f32 %v1621, %v3088
    %v3113 = vsel %vm396, %v3097, -inf
    %v3114 = vsel %vm396, %v3099, -inf
    %v3115 = vsel %vm396, %v3101, -inf
    %v3116 = vmax.f32 %v3113, %v3115
    %v3117 = vsel %vm396, %v3103, -inf
    %v3118 = vmax.f32 %v3114, %v3117
    %v3119 = vsel %vm396, %v3105, -inf
    %v3120 = vmax.f32 %v3116, %v3119
    %v3121 = vsel %vm396, %v3107, -inf
    %v3122 = vmax.f32 %v3118, %v3121
    %v3123 = vsel %vm396, %v3109, -inf
    %v3124 = vmax.f32 %v3120, %v3123
    %v3125 = vsel %vm396, %v3111, -inf
    %v3126 = vmax.f32 %v3122, %v3125
    %v3127 = vmax.f32 %v3124, %v3126
    %v3128 = vsel %vm396, %v3098, -inf
    %v3129 = vsel %vm396, %v3100, -inf
    %v3130 = vsel %vm396, %v3102, -inf
    %v3131 = vmax.f32 %v3128, %v3130
    %v3132 = vsel %vm396, %v3104, -inf
    %v3133 = vmax.f32 %v3129, %v3132
    %v3134 = vsel %vm396, %v3106, -inf
    %v3135 = vmax.f32 %v3131, %v3134
    %v3136 = vsel %vm396, %v3108, -inf
    %v3137 = vmax.f32 %v3133, %v3136
    %v3138 = vsel %vm396, %v3110, -inf
    %v3139 = vmax.f32 %v3135, %v3138
    %v3140 = vsel %vm396, %v3112, -inf
    %v3141 = vmax.f32 %v3137, %v3140
    %v3142 = vmax.f32 %v3139, %v3141
    %v3143 = vmax.f32 %v3005, %v3127
    %v3144 = vmax.f32 %v3006, %v3142
    %s3145 = scalar_lea.vmem [#allocation9], 32
    %v3146 = vld [vmem:[%s3145] sm:$0xf]
    %v3147 = vld [vmem:[%s3145 + $0x4] sm:$0xf]
    %v3148 = vld [vmem:[%s3145 + $0x8] sm:$0xf]
    %v3149 = vld [vmem:[%s3145 + $0xc] sm:$0xf]
    %v3150 = vld [vmem:[%s3145 + $0x10] sm:$0xf]
    %v3151 = vld [vmem:[%s3145 + $0x14] sm:$0xf]
    %v3152 = vld [vmem:[%s3145 + $0x18] sm:$0xf]
    %v3153 = vld [vmem:[%s3145 + $0x1c] sm:$0xf]
    %s3154 = scalar_lea.vmem [#allocation11], 32
    %v3155 = vld [vmem:[%s3154] sm:$0xf]
    %v3156 = vld [vmem:[%s3154 + $0x4] sm:$0xf]
    %v3157 = vld [vmem:[%s3154 + $0x8] sm:$0xf]
    %v3158 = vld [vmem:[%s3154 + $0xc] sm:$0xf]
    %v3159 = vld [vmem:[%s3154 + $0x10] sm:$0xf]
    %v3160 = vld [vmem:[%s3154 + $0x14] sm:$0xf]
    %v3161 = vld [vmem:[%s3154 + $0x18] sm:$0xf]
    %v3162 = vld [vmem:[%s3154 + $0x1c] sm:$0xf]
    %v3163 = vpack.c.bf16 %v3144, %v3143
    %v3172 = vunpack.c.l.b16 %v3155
    %v3173 = vunpack.c.l.b16 %v3156
    %v3174 = vunpack.c.l.b16 %v3157
    %v3175 = vunpack.c.l.b16 %v3158
    %v3176 = vunpack.c.l.b16 %v3159
    %v3177 = vunpack.c.l.b16 %v3160
    %v3178 = vunpack.c.l.b16 %v3161
    %v3179 = vunpack.c.l.b16 %v3162
    %v3180 = vpack.c.b16 %v3173, %v3172
    %v3181 = vpack.c.b16 %v3175, %v3174
    %v3182 = vpack.c.b16 %v3177, %v3176
    %v3183 = vpack.c.b16 %v3179, %v3178
    %v3189 = vsel %vm396, %v3163, 0
    %3191 = vmatprep.subr.bf16.mxu0 0
    %3192 = vmatpush1.bf16.msra.mxu0 %v3180
    %3193 = vmatprep.subr.bf16.mxu0 0
    %3194 = vmatpush1.bf16.msra.mxu0 %v3181
    %3195 = vmatprep.subr.bf16.mxu0 0
    %3196 = vmatpush1.bf16.msra.mxu0 %v3182
    %3197 = vmatprep.subr.bf16.mxu0 0
    %3198 = vmatpush1.bf16.msra.mxu0 %v3183
    %3199 = vmatprep.subr.bf16.mxu0 0
    %3200 = vmatpush1.bf16.msra.mxu0 0
    %3201 = vmatprep.subr.bf16.mxu0 0
    %3202 = vmatpush1.bf16.msra.mxu0 0
    %3203 = vmatprep.subr.bf16.mxu0 0
    %3204 = vmatpush1.bf16.msra.mxu0 0
    %3205 = vmatprep.subr.bf16.mxu0 0
    %3206 = vmatpush1.bf16.msra.mxu0 0
    %3207 = vmatprep.subr.bf16.mxu0 0
    %3208 = vmatpush1.bf16.msra.mxu0 0
    %3209 = vmatprep.subr.bf16.mxu0 0
    %3210 = vmatpush1.bf16.msra.mxu0 0
    %3211 = vmatprep.subr.bf16.mxu0 0
    %3212 = vmatpush1.bf16.msra.mxu0 0
    %3213 = vmatprep.subr.bf16.mxu0 0
    %3214 = vmatpush1.bf16.msra.mxu0 0
    %3215 = vmatprep.subr.bf16.mxu0 0
    %3216 = vmatpush1.bf16.msra.mxu0 0
    %3217 = vmatprep.subr.bf16.mxu0 0
    %3218 = vmatpush1.bf16.msra.mxu0 0
    %3219 = vmatprep.subr.bf16.mxu0 0
    %3220 = vmatpush1.bf16.msra.mxu0 0
    %3221 = vmatprep.subr.bf16.mxu0 0
    %3222 = vmatpush1.bf16.msra.mxu0 0
    %3223 = vmatprep.mubr.bf16.mxu0 0
    %3224 = vmatmul.mubr.bf16.gmra.mrb[0].mxu0 %v3189
    %v3225 = vpop.f32.mrb[0].mxu0
    %v3226 = vadd.f32 0.0, %v3225
    %v3227 = vpop.f32.mrb[0].mxu0
    %v3228 = vpop.f32.mrb[0].mxu0
    %v3229 = vadd.f32 0.0, %v3228
    %v3230 = vpop.f32.mrb[0].mxu0
    %3231 = vdwg.mxu0
    %v3240 = vunpack.c.l.b16 %v3146
    %v3241 = vunpack.c.l.b16 %v3147
    %v3242 = vunpack.c.l.b16 %v3148
    %v3243 = vunpack.c.l.b16 %v3149
    %v3244 = vunpack.c.l.b16 %v3150
    %v3245 = vunpack.c.l.b16 %v3151
    %v3246 = vunpack.c.l.b16 %v3152
    %v3247 = vunpack.c.l.b16 %v3153
    %v3248 = vpack.c.b16 %v3241, %v3240
    %v3249 = vpack.c.b16 %v3243, %v3242
    %v3250 = vpack.c.b16 %v3245, %v3244
    %v3251 = vpack.c.b16 %v3247, %v3246
    %3256 = vmatprep.subr.bf16.mxu0 0
    %3257 = vmatpush1.bf16.msra.mxu0 %v3248
    %3258 = vmatprep.subr.bf16.mxu0 0
    %3259 = vmatpush1.bf16.msra.mxu0 %v3249
    %3260 = vmatprep.subr.bf16.mxu0 0
    %3261 = vmatpush1.bf16.msra.mxu0 %v3250
    %3262 = vmatprep.subr.bf16.mxu0 0
    %3263 = vmatpush1.bf16.msra.mxu0 %v3251
    %3264 = vmatprep.subr.bf16.mxu0 0
    %3265 = vmatpush1.bf16.msra.mxu0 0
    %3266 = vmatprep.subr.bf16.mxu0 0
    %3267 = vmatpush1.bf16.msra.mxu0 0
    %3268 = vmatprep.subr.bf16.mxu0 0
    %3269 = vmatpush1.bf16.msra.mxu0 0
    %3270 = vmatprep.subr.bf16.mxu0 0
    %3271 = vmatpush1.bf16.msra.mxu0 0
    %3272 = vmatprep.subr.bf16.mxu0 0
    %3273 = vmatpush1.bf16.msra.mxu0 0
    %3274 = vmatprep.subr.bf16.mxu0 0
    %3275 = vmatpush1.bf16.msra.mxu0 0
    %3276 = vmatprep.subr.bf16.mxu0 0
    %3277 = vmatpush1.bf16.msra.mxu0 0
    %3278 = vmatprep.subr.bf16.mxu0 0
    %3279 = vmatpush1.bf16.msra.mxu0 0
    %3280 = vmatprep.subr.bf16.mxu0 0
    %3281 = vmatpush1.bf16.msra.mxu0 0
    %3282 = vmatprep.subr.bf16.mxu0 0
    %3283 = vmatpush1.bf16.msra.mxu0 0
    %3284 = vmatprep.subr.bf16.mxu0 0
    %3285 = vmatpush1.bf16.msra.mxu0 0
    %3286 = vmatprep.subr.bf16.mxu0 0
    %3287 = vmatpush1.bf16.msra.mxu0 0
    %3288 = vmatprep.mubr.bf16.mxu0 0
    %3289 = vmatmul.mubr.bf16.gmra.mrb[0].mxu0 %v2141
    %v3290 = vpop.f32.mrb[0].mxu0
    %v3291 = vadd.f32 %v3226, %v3290
    %v3292 = vpop.f32.mrb[0].mxu0
    %v3293 = vpop.f32.mrb[0].mxu0
    %v3294 = vadd.f32 %v3229, %v3293
    %v3295 = vpop.f32.mrb[0].mxu0
    %3296 = vdwg.mxu0
    %s3297 = scalar_lea.vmem %s16, 1
    %v3298 = vld [vmem:[%s3297] sm:$0x1]
    %v3300 = vlaneseq
    %v3301 = vshrl.u32 %v3300, 7
    %v3302 = vsub.s32 0, %v3301
    %v3303 = vrot.slane %v3298, %v3302
    %v3305 = vadd.f32 %v3291, %v3303
    %v3306 = vadd.f32 %v3294, %v3303
    %s3307 = scalar_lea.vmem %s17, 1
    %v3308 = vld [vmem:[%s3307] sm:$0x1]
    %s3309 = scalar_lea.vmem %s18, 1
    %v3310 = vld [vmem:[%s3309] sm:$0x1]
    %v3311 = vsel %vm396, %v3305, 0.0
    %v3312 = vsel %vm396, %v3306, 0.0
    %v3313 = vadd.f32 %v3311, %v3312
    %v3314 = vrot.slane %v3313, 4
    %v3315 = vadd.f32 %v3313, %v3314
    %v3316 = vrot.slane %v3315, 2
    %v3317 = vadd.f32 %v3315, %v3316
    %v3318 = vrot.slane %v3317, 1
    %v3319 = vadd.f32 %v3317, %v3318
    %v3320 = vmul.f32 %v3319, %v1930
    %v3321 = vmul.f32 %v3305, %v3305
    %v3322 = vmul.f32 %v3306, %v3306
    %v3323 = vsel %vm396, %v3321, 0.0
    %v3324 = vsel %vm396, %v3322, 0.0
    %v3325 = vadd.f32 %v3323, %v3324
    %v3326 = vrot.slane %v3325, 4
    %v3327 = vadd.f32 %v3325, %v3326
    %v3328 = vrot.slane %v3327, 2
    %v3329 = vadd.f32 %v3327, %v3328
    %v3330 = vrot.slane %v3329, 1
    %v3331 = vadd.f32 %v3329, %v3330
    %v3332 = vmul.f32 %v3331, %v1930
    %v3333 = vmul.f32 %v3320, %v3320
    %v3334 = vsub.f32 %v3332, %v3333
    %v3335 = vsub.f32 %v3305, %v3320
    %v3336 = vsub.f32 %v3306, %v3320
    %v3337 = vadd.f32 %v3334, 1e-05
    %v3338 = vrsqrt.pop %v3337
    %v3339 = vmul.f32 %v3335, %v3338
    %v3340 = vmul.f32 %v3336, %v3338
    %v3342 = vlaneseq
    %v3343 = vshrl.u32 %v3342, 7
    %v3344 = vsub.s32 0, %v3343
    %v3345 = vrot.slane %v3308, %v3344
    %v3347 = vmul.f32 %v3339, %v3345
    %v3348 = vmul.f32 %v3340, %v3345
    %v3350 = vlaneseq
    %v3351 = vshrl.u32 %v3350, 7
    %v3352 = vsub.s32 0, %v3351
    %v3353 = vrot.slane %v3310, %v3352
    %v3355 = vadd.f32 %v3347, %v3353
    %v3356 = vadd.f32 %v3348, %v3353
    %v3357 = vmax.f32 %v3355, 0.0
    %v3358 = vmax.f32 %v3356, 0.0
    %s3359 = scalar_lea.vmem [#allocation12], 32
    %v3360 = vld [vmem:[%s3359] sm:$0xf]
    %v3361 = vld [vmem:[%s3359 + $0x4] sm:$0xf]
    %v3362 = vld [vmem:[%s3359 + $0x8] sm:$0xf]
    %v3363 = vld [vmem:[%s3359 + $0xc] sm:$0xf]
    %v3364 = vld [vmem:[%s3359 + $0x10] sm:$0xf]
    %v3365 = vld [vmem:[%s3359 + $0x14] sm:$0xf]
    %v3366 = vld [vmem:[%s3359 + $0x18] sm:$0xf]
    %v3367 = vld [vmem:[%s3359 + $0x1c] sm:$0xf]
    %v3368 = vpack.c.bf16 %v3358, %v3357
    %s3369 = scalar_lea.vmem %s20, 1
    %v3370 = vld [vmem:[%s3369] sm:$0x1]
    %v3372 = vlaneseq
    %v3373 = vshrl.u32 %v3372, 7
    %v3374 = vsub.s32 0, %v3373
    %v3375 = vrot.slane %v3370, %v3374
    %v3385 = vunpack.c.l.b16 %v3360
    %v3386 = vunpack.c.l.b16 %v3361
    %v3387 = vunpack.c.l.b16 %v3362
    %v3388 = vunpack.c.l.b16 %v3363
    %v3389 = vunpack.c.l.b16 %v3364
    %v3390 = vunpack.c.l.b16 %v3365
    %v3391 = vunpack.c.l.b16 %v3366
    %v3392 = vunpack.c.l.b16 %v3367
    %v3393 = vpack.c.b16 %v3386, %v3385
    %v3394 = vpack.c.b16 %v3388, %v3387
    %v3395 = vpack.c.b16 %v3390, %v3389
    %v3396 = vpack.c.b16 %v3392, %v3391
    %v3402 = vsel %vm396, %v3368, 0
    %3404 = vmatprep.subr.bf16.mxu0 0
    %3405 = vmatpush1.bf16.msra.mxu0 %v3393
    %3406 = vmatprep.subr.bf16.mxu0 0
    %3407 = vmatpush1.bf16.msra.mxu0 %v3394
    %3408 = vmatprep.subr.bf16.mxu0 0
    %3409 = vmatpush1.bf16.msra.mxu0 %v3395
    %3410 = vmatprep.subr.bf16.mxu0 0
    %3411 = vmatpush1.bf16.msra.mxu0 %v3396
    %3412 = vmatprep.subr.bf16.mxu0 0
    %3413 = vmatpush1.bf16.msra.mxu0 0
    %3414 = vmatprep.subr.bf16.mxu0 0
    %3415 = vmatpush1.bf16.msra.mxu0 0
    %3416 = vmatprep.subr.bf16.mxu0 0
    %3417 = vmatpush1.bf16.msra.mxu0 0
    %3418 = vmatprep.subr.bf16.mxu0 0
    %3419 = vmatpush1.bf16.msra.mxu0 0
    %3420 = vmatprep.subr.bf16.mxu0 0
    %3421 = vmatpush1.bf16.msra.mxu0 0
    %3422 = vmatprep.subr.bf16.mxu0 0
    %3423 = vmatpush1.bf16.msra.mxu0 0
    %3424 = vmatprep.subr.bf16.mxu0 0
    %3425 = vmatpush1.bf16.msra.mxu0 0
    %3426 = vmatprep.subr.bf16.mxu0 0
    %3427 = vmatpush1.bf16.msra.mxu0 0
    %3428 = vmatprep.subr.bf16.mxu0 0
    %3429 = vmatpush1.bf16.msra.mxu0 0
    %3430 = vmatprep.subr.bf16.mxu0 0
    %3431 = vmatpush1.bf16.msra.mxu0 0
    %3432 = vmatprep.subr.bf16.mxu0 0
    %3433 = vmatpush1.bf16.msra.mxu0 0
    %3434 = vmatprep.subr.bf16.mxu0 0
    %3435 = vmatpush1.bf16.msra.mxu0 0
    %3436 = vmatprep.mubr.bf16.mxu0 0
    %3437 = vmatmul.mubr.bf16.gmra.mrb[0].mxu0 %v3402
    %v3438 = vpop.f32.mrb[0].mxu0
    %v3439 = vadd.f32 %v3375, %v3438
    %v3440 = vpop.f32.mrb[0].mxu0
    %v3441 = vpop.f32.mrb[0].mxu0
    %v3442 = vadd.f32 %v3375, %v3441
    %v3443 = vpop.f32.mrb[0].mxu0
    %3444 = vdwg.mxu0
    %s3445 = scalar_lea.vmem %s21, 1
    %v3446 = vld [vmem:[%s3445] sm:$0x1]
    %s3447 = scalar_lea.vmem %s22, 1
    %v3448 = vld [vmem:[%s3447] sm:$0x1]
    %v3449 = vsel %vm396, %v3439, 0.0
    %v3450 = vsel %vm396, %v3442, 0.0
    %v3451 = vadd.f32 %v3449, %v3450
    %v3452 = vrot.slane %v3451, 4
    %v3453 = vadd.f32 %v3451, %v3452
    %v3454 = vrot.slane %v3453, 2
    %v3455 = vadd.f32 %v3453, %v3454
    %v3456 = vrot.slane %v3455, 1
    %v3457 = vadd.f32 %v3455, %v3456
    %v3458 = vmul.f32 %v3457, %v1930
    %v3459 = vmul.f32 %v3439, %v3439
    %v3460 = vmul.f32 %v3442, %v3442
    %v3461 = vsel %vm396, %v3459, 0.0
    %v3462 = vsel %vm396, %v3460, 0.0
    %v3463 = vadd.f32 %v3461, %v3462
    %v3464 = vrot.slane %v3463, 4
    %v3465 = vadd.f32 %v3463, %v3464
    %v3466 = vrot.slane %v3465, 2
    %v3467 = vadd.f32 %v3465, %v3466
    %v3468 = vrot.slane %v3467, 1
    %v3469 = vadd.f32 %v3467, %v3468
    %v3470 = vmul.f32 %v3469, %v1930
    %v3471 = vmul.f32 %v3458, %v3458
    %v3472 = vsub.f32 %v3470, %v3471
    %v3473 = vsub.f32 %v3439, %v3458
    %v3474 = vsub.f32 %v3442, %v3458
    %v3475 = vadd.f32 %v3472, 1e-05
    %v3476 = vrsqrt.pop %v3475
    %v3477 = vmul.f32 %v3473, %v3476
    %v3478 = vmul.f32 %v3474, %v3476
    %v3480 = vlaneseq
    %v3481 = vshrl.u32 %v3480, 7
    %v3482 = vsub.s32 0, %v3481
    %v3483 = vrot.slane %v3446, %v3482
    %v3485 = vmul.f32 %v3477, %v3483
    %v3486 = vmul.f32 %v3478, %v3483
    %v3488 = vlaneseq
    %v3489 = vshrl.u32 %v3488, 7
    %v3490 = vsub.s32 0, %v3489
    %v3491 = vrot.slane %v3448, %v3490
    %v3493 = vadd.f32 %v3485, %v3491
    %v3494 = vadd.f32 %v3486, %v3491
    %v3495 = vmax.f32 %v3493, 0.0
    %v3496 = vmax.f32 %v3494, 0.0
    %v3497 = vadd.f32 %v2104, %v3495
    %v3498 = vadd.f32 %v2105, %v3496
    %s3499 = scalar_lea.vmem %s5, 64
    %v3500 = vld [vmem:[%s3499] sm:$0xf]
    %v3501 = vld [vmem:[%s3499 + $0x4] sm:$0xf]
    %v3502 = vld [vmem:[%s3499 + $0x8] sm:$0xf]
    %v3503 = vld [vmem:[%s3499 + $0xc] sm:$0xf]
    %v3504 = vld [vmem:[%s3499 + $0x10] sm:$0xf]
    %v3505 = vld [vmem:[%s3499 + $0x14] sm:$0xf]
    %v3506 = vld [vmem:[%s3499 + $0x18] sm:$0xf]
    %v3507 = vld [vmem:[%s3499 + $0x1c] sm:$0xf]
    %v3508 = vpack.c.bf16 %v3498, %v3497
    %v3517 = vunpack.c.l.b16 %v3500
    %v3518 = vunpack.c.l.b16 %v3501
    %v3519 = vunpack.c.l.b16 %v3502
    %v3520 = vunpack.c.l.b16 %v3503
    %v3521 = vunpack.c.l.b16 %v3504
    %v3522 = vunpack.c.l.b16 %v3505
    %v3523 = vunpack.c.l.b16 %v3506
    %v3524 = vunpack.c.l.b16 %v3507
    %v3525 = vpack.c.b16 %v3518, %v3517
    %v3526 = vpack.c.b16 %v3520, %v3519
    %v3527 = vpack.c.b16 %v3522, %v3521
    %v3528 = vpack.c.b16 %v3524, %v3523
    %v3534 = vsel %vm396, %v3508, 0
    %3536 = vmatprep.subr.bf16.mxu0 0
    %3537 = vmatpush1.bf16.msra.mxu0 %v3525
    %3538 = vmatprep.subr.bf16.mxu0 0
    %3539 = vmatpush1.bf16.msra.mxu0 %v3526
    %3540 = vmatprep.subr.bf16.mxu0 0
    %3541 = vmatpush1.bf16.msra.mxu0 %v3527
    %3542 = vmatprep.subr.bf16.mxu0 0
    %3543 = vmatpush1.bf16.msra.mxu0 %v3528
    %3544 = vmatprep.subr.bf16.mxu0 0
    %3545 = vmatpush1.bf16.msra.mxu0 0
    %3546 = vmatprep.subr.bf16.mxu0 0
    %3547 = vmatpush1.bf16.msra.mxu0 0
    %3548 = vmatprep.subr.bf16.mxu0 0
    %3549 = vmatpush1.bf16.msra.mxu0 0
    %3550 = vmatprep.subr.bf16.mxu0 0
    %3551 = vmatpush1.bf16.msra.mxu0 0
    %3552 = vmatprep.subr.bf16.mxu0 0
    %3553 = vmatpush1.bf16.msra.mxu0 0
    %3554 = vmatprep.subr.bf16.mxu0 0
    %3555 = vmatpush1.bf16.msra.mxu0 0
    %3556 = vmatprep.subr.bf16.mxu0 0
    %3557 = vmatpush1.bf16.msra.mxu0 0
    %3558 = vmatprep.subr.bf16.mxu0 0
    %3559 = vmatpush1.bf16.msra.mxu0 0
    %3560 = vmatprep.subr.bf16.mxu0 0
    %3561 = vmatpush1.bf16.msra.mxu0 0
    %3562 = vmatprep.subr.bf16.mxu0 0
    %3563 = vmatpush1.bf16.msra.mxu0 0
    %3564 = vmatprep.subr.bf16.mxu0 0
    %3565 = vmatpush1.bf16.msra.mxu0 0
    %3566 = vmatprep.subr.bf16.mxu0 0
    %3567 = vmatpush1.bf16.msra.mxu0 0
    %3568 = vmatprep.mubr.bf16.mxu0 0
    %3569 = vmatmul.mubr.bf16.gmra.mrb[0].mxu0 %v3534
    %v3570 = vpop.f32.mrb[0].mxu0
    %v3571 = vadd.f32 0.0, %v3570
    %v3572 = vpop.f32.mrb[0].mxu0
    %v3573 = vpop.f32.mrb[0].mxu0
    %v3574 = vadd.f32 0.0, %v3573
    %v3575 = vpop.f32.mrb[0].mxu0
    %3576 = vdwg.mxu0
    %s3577 = scalar_lea.vmem [#allocation6], 64
    %v3578 = vld [vmem:[%s3577] sm:$0xf]
    %v3579 = vld [vmem:[%s3577 + $0x4] sm:$0xf]
    %v3580 = vld [vmem:[%s3577 + $0x8] sm:$0xf]
    %v3581 = vld [vmem:[%s3577 + $0xc] sm:$0xf]
    %v3582 = vld [vmem:[%s3577 + $0x10] sm:$0xf]
    %v3583 = vld [vmem:[%s3577 + $0x14] sm:$0xf]
    %v3584 = vld [vmem:[%s3577 + $0x18] sm:$0xf]
    %v3585 = vld [vmem:[%s3577 + $0x1c] sm:$0xf]
    %v3594 = vunpack.c.l.b16 %v3578
    %v3595 = vunpack.c.l.b16 %v3579
    %v3596 = vunpack.c.l.b16 %v3580
    %v3597 = vunpack.c.l.b16 %v3581
    %v3598 = vunpack.c.l.b16 %v3582
    %v3599 = vunpack.c.l.b16 %v3583
    %v3600 = vunpack.c.l.b16 %v3584
    %v3601 = vunpack.c.l.b16 %v3585
    %v3602 = vpack.c.b16 %v3595, %v3594
    %v3603 = vpack.c.b16 %v3597, %v3596
    %v3604 = vpack.c.b16 %v3599, %v3598
    %v3605 = vpack.c.b16 %v3601, %v3600
    %3610 = vmatprep.subr.bf16.mxu0 0
    %3611 = vmatpush1.bf16.msra.mxu0 %v3602
    %3612 = vmatprep.subr.bf16.mxu0 0
    %3613 = vmatpush1.bf16.msra.mxu0 %v3603
    %3614 = vmatprep.subr.bf16.mxu0 0
    %3615 = vmatpush1.bf16.msra.mxu0 %v3604
    %3616 = vmatprep.subr.bf16.mxu0 0
    %3617 = vmatpush1.bf16.msra.mxu0 %v3605
    %3618 = vmatprep.subr.bf16.mxu0 0
    %3619 = vmatpush1.bf16.msra.mxu0 0
    %3620 = vmatprep.subr.bf16.mxu0 0
    %3621 = vmatpush1.bf16.msra.mxu0 0
    %3622 = vmatprep.subr.bf16.mxu0 0
    %3623 = vmatpush1.bf16.msra.mxu0 0
    %3624 = vmatprep.subr.bf16.mxu0 0
    %3625 = vmatpush1.bf16.msra.mxu0 0
    %3626 = vmatprep.subr.bf16.mxu0 0
    %3627 = vmatpush1.bf16.msra.mxu0 0
    %3628 = vmatprep.subr.bf16.mxu0 0
    %3629 = vmatpush1.bf16.msra.mxu0 0
    %3630 = vmatprep.subr.bf16.mxu0 0
    %3631 = vmatpush1.bf16.msra.mxu0 0
    %3632 = vmatprep.subr.bf16.mxu0 0
    %3633 = vmatpush1.bf16.msra.mxu0 0
    %3634 = vmatprep.subr.bf16.mxu0 0
    %3635 = vmatpush1.bf16.msra.mxu0 0
    %3636 = vmatprep.subr.bf16.mxu0 0
    %3637 = vmatpush1.bf16.msra.mxu0 0
    %3638 = vmatprep.subr.bf16.mxu0 0
    %3639 = vmatpush1.bf16.msra.mxu0 0
    %3640 = vmatprep.subr.bf16.mxu0 0
    %3641 = vmatpush1.bf16.msra.mxu0 0
    %3642 = vmatprep.mubr.bf16.mxu0 0
    %3643 = vmatmul.mubr.bf16.gmra.mrb[0].mxu0 %v3534
    %v3644 = vpop.f32.mrb[0].mxu0
    %v3645 = vadd.f32 0.0, %v3644
    %v3646 = vpop.f32.mrb[0].mxu0
    %v3647 = vpop.f32.mrb[0].mxu0
    %v3648 = vadd.f32 0.0, %v3647
    %v3649 = vpop.f32.mrb[0].mxu0
    %3650 = vdwg.mxu0
    %s3651 = scalar_lea.vmem %s7, 2
    %v3652 = vld [vmem:[%s3651] sm:$0x1]
    %v3654 = vlaneseq
    %v3655 = vshrl.u32 %v3654, 7
    %v3656 = vsub.s32 0, %v3655
    %v3657 = vrot.slane %v3652, %v3656
    %3659 = vmatprep.subr.mxu0 0.0
    %3660 = vmatpush1.msra.mxu0 %v3571
    %3661 = vmatprep.subr.mxu0 0.0
    %3662 = vmatpush1.msra.mxu0 %v3574
    %3663 = vmatprep.subr.mxu0 0.0
    %3664 = vmatpush1.msra.mxu0 %v3645
    %3665 = vmatprep.subr.mxu0 0.0
    %3666 = vmatpush1.msra.mxu0 %v3648
    %3667 = vmatprep.subr.mxu0 0.0
    %3668 = vmatpush1.msra.mxu0 0.0
    %3669 = vmatprep.subr.mxu0 0.0
    %3670 = vmatpush1.msra.mxu0 0.0
    %3671 = vmatprep.subr.mxu0 0.0
    %3672 = vmatpush1.msra.mxu0 0.0
    %3673 = vmatprep.subr.mxu0 0.0
    %3674 = vmatpush1.msra.mxu0 0.0
    %3675 = vmatprep.subr.mxu0 0.0
    %3676 = vmatpush1.msra.mxu0 0.0
    %3677 = vmatprep.subr.mxu0 0.0
    %3678 = vmatpush1.msra.mxu0 0.0
    %3679 = vmatprep.subr.mxu0 0.0
    %3680 = vmatpush1.msra.mxu0 0.0
    %3681 = vmatprep.subr.mxu0 0.0
    %3682 = vmatpush1.msra.mxu0 0.0
    %3683 = vmatprep.subr.mxu0 0.0
    %3684 = vmatpush1.msra.mxu0 0.0
    %3685 = vmatprep.subr.mxu0 0.0
    %3686 = vmatpush1.msra.mxu0 0.0
    %3687 = vmatprep.subr.mxu0 0.0
    %3688 = vmatpush1.msra.mxu0 0.0
    %3689 = vmatprep.subr.mxu0 0.0
    %3690 = vmatpush1.msra.mxu0 0.0
    %3691 = vmatprep.subr.mxu0 0.0
    %3692 = vmatpush1.msra.mxu0 0.0
    %3693 = vmatprep.subr.mxu0 0.0
    %3694 = vmatpush1.msra.mxu0 0.0
    %3695 = vmatprep.subr.mxu0 0.0
    %3696 = vmatpush1.msra.mxu0 0.0
    %3697 = vmatprep.subr.mxu0 0.0
    %3698 = vmatpush1.msra.mxu0 0.0
    %3699 = vmatprep.subr.mxu0 0.0
    %3700 = vmatpush1.msra.mxu0 0.0
    %3701 = vmatprep.subr.mxu0 0.0
    %3702 = vmatpush1.msra.mxu0 0.0
    %3703 = vmatprep.subr.mxu0 0.0
    %3704 = vmatpush1.msra.mxu0 0.0
    %3705 = vmatprep.subr.mxu0 0.0
    %3706 = vmatpush1.msra.mxu0 0.0
    %3707 = vmatprep.subr.mxu0 0.0
    %3708 = vmatpush1.msra.mxu0 0.0
    %3709 = vmatprep.subr.mxu0 0.0
    %3710 = vmatpush1.msra.mxu0 0.0
    %3711 = vmatprep.subr.mxu0 0.0
    %3712 = vmatpush1.msra.mxu0 0.0
    %3713 = vmatprep.subr.mxu0 0.0
    %3714 = vmatpush1.msra.mxu0 0.0
    %3715 = vmatprep.subr.mxu0 0.0
    %3716 = vmatpush1.msra.mxu0 0.0
    %3717 = vmatprep.subr.mxu0 0.0
    %3718 = vmatpush1.msra.mxu0 0.0
    %3719 = vmatprep.subr.mxu0 0.0
    %3720 = vmatpush1.msra.mxu0 0.0
    %3721 = vmatprep.subr.mxu0 0.0
    %3722 = vmatpush1.msra.mxu0 0.0
    %3723 = vmatprep.mubr.f32.mxu0 0.0
    %3724 = vmatmul.mubr.f32.gmra.mrb[0].mxu0 %v523
    %v3725 = vpop.f32.mrb[0].mxu0
    %v3726 = vadd.f32 %v3657, %v3725
    %v3727 = vpop.f32.mrb[0].mxu0
    %3728 = vmatprep.mubr.f32.mxu0 0.0
    %3729 = vmatmul.mubr.f32.gmra.mrb[0].mxu0 %v526
    %v3730 = vpop.f32.mrb[0].mxu0
    %v3731 = vadd.f32 %v3657, %v3730
    %v3732 = vpop.f32.mrb[0].mxu0
    %3733 = vmatprep.mubr.f32.mxu0 0.0
    %3734 = vmatmul.mubr.f32.gmra.mrb[0].mxu0 %v529
    %v3735 = vpop.f32.mrb[0].mxu0
    %v3736 = vadd.f32 %v3657, %v3735
    %v3737 = vpop.f32.mrb[0].mxu0
    %3738 = vmatprep.mubr.f32.mxu0 0.0
    %3739 = vmatmul.mubr.f32.gmra.mrb[0].mxu0 %v532
    %v3740 = vpop.f32.mrb[0].mxu0
    %v3741 = vadd.f32 %v3657, %v3740
    %v3742 = vpop.f32.mrb[0].mxu0
    %3743 = vdwg.mxu0
    %s3744 = scalar_lea.vmem %s8, 2
    %v3745 = vld [vmem:[%s3744] sm:$0x1]
    %s3746 = scalar_lea.vmem %s9, 2
    %v3747 = vld [vmem:[%s3746] sm:$0x1]
    %v3748 = vsel %vm396, %v3726, 0.0
    %v3749 = vsel %vm396, %v3731, 0.0
    %v3750 = vadd.f32 %v3748, %v3749
    %v3751 = vsel %vm396, %v3736, 0.0
    %v3752 = vadd.f32 %v3750, %v3751
    %v3753 = vsel %vm396, %v3741, 0.0
    %v3754 = vadd.f32 %v3752, %v3753
    %v3755 = vrot.slane %v3754, 4
    %v3756 = vadd.f32 %v3754, %v3755
    %v3757 = vrot.slane %v3756, 2
    %v3758 = vadd.f32 %v3756, %v3757
    %v3759 = vrot.slane %v3758, 1
    %v3760 = vadd.f32 %v3758, %v3759
    %v3761 = vmul.f32 %v3760, %v634
    %v3762 = vmul.f32 %v3726, %v3726
    %v3763 = vmul.f32 %v3731, %v3731
    %v3764 = vmul.f32 %v3736, %v3736
    %v3765 = vmul.f32 %v3741, %v3741
    %v3766 = vsel %vm396, %v3762, 0.0
    %v3767 = vsel %vm396, %v3763, 0.0
    %v3768 = vadd.f32 %v3766, %v3767
    %v3769 = vsel %vm396, %v3764, 0.0
    %v3770 = vadd.f32 %v3768, %v3769
    %v3771 = vsel %vm396, %v3765, 0.0
    %v3772 = vadd.f32 %v3770, %v3771
    %v3773 = vrot.slane %v3772, 4
    %v3774 = vadd.f32 %v3772, %v3773
    %v3775 = vrot.slane %v3774, 2
    %v3776 = vadd.f32 %v3774, %v3775
    %v3777 = vrot.slane %v3776, 1
    %v3778 = vadd.f32 %v3776, %v3777
    %v3779 = vmul.f32 %v3778, %v634
    %v3780 = vmul.f32 %v3761, %v3761
    %v3781 = vsub.f32 %v3779, %v3780
    %v3782 = vsub.f32 %v3726, %v3761
    %v3783 = vsub.f32 %v3731, %v3761
    %v3784 = vsub.f32 %v3736, %v3761
    %v3785 = vsub.f32 %v3741, %v3761
    %v3786 = vadd.f32 %v3781, 1e-05
    %v3787 = vrsqrt.pop %v3786
    %v3788 = vmul.f32 %v3782, %v3787
    %v3789 = vmul.f32 %v3783, %v3787
    %v3790 = vmul.f32 %v3784, %v3787
    %v3791 = vmul.f32 %v3785, %v3787
    %v3793 = vlaneseq
    %v3794 = vshrl.u32 %v3793, 7
    %v3795 = vsub.s32 0, %v3794
    %v3796 = vrot.slane %v3745, %v3795
    %v3798 = vmul.f32 %v3788, %v3796
    %v3799 = vmul.f32 %v3789, %v3796
    %v3800 = vmul.f32 %v3790, %v3796
    %v3801 = vmul.f32 %v3791, %v3796
    %v3803 = vlaneseq
    %v3804 = vshrl.u32 %v3803, 7
    %v3805 = vsub.s32 0, %v3804
    %v3806 = vrot.slane %v3747, %v3805
    %v3808 = vadd.f32 %v3798, %v3806
    %v3809 = vadd.f32 %v3799, %v3806
    %v3810 = vadd.f32 %v3800, %v3806
    %v3811 = vadd.f32 %v3801, %v3806
    %v3812 = vmax.f32 %v3808, 0.0
    %v3813 = vmax.f32 %v3809, 0.0
    %v3814 = vmax.f32 %v3810, 0.0
    %v3815 = vmax.f32 %v3811, 0.0
    %s3816 = scalar_lea.vmem [#allocation8], 64
    %v3817 = vld [vmem:[%s3816] sm:$0xf]
    %v3818 = vld [vmem:[%s3816 + $0x4] sm:$0xf]
    %v3819 = vld [vmem:[%s3816 + $0x8] sm:$0xf]
    %v3820 = vld [vmem:[%s3816 + $0xc] sm:$0xf]
    %v3821 = vld [vmem:[%s3816 + $0x10] sm:$0xf]
    %v3822 = vld [vmem:[%s3816 + $0x14] sm:$0xf]
    %v3823 = vld [vmem:[%s3816 + $0x18] sm:$0xf]
    %v3824 = vld [vmem:[%s3816 + $0x1c] sm:$0xf]
    %v3825 = vpack.c.bf16 %v3813, %v3812
    %v3826 = vpack.c.bf16 %v3815, %v3814
    %s3827 = scalar_lea.vmem %s11, 2
    %v3828 = vld [vmem:[%s3827] sm:$0x1]
    %v3830 = vlaneseq
    %v3831 = vshrl.u32 %v3830, 7
    %v3832 = vsub.s32 0, %v3831
    %v3833 = vrot.slane %v3828, %v3832
    %v3843 = vunpack.c.l.b16 %v3817
    %v3844 = vunpack.c.l.b16 %v3818
    %v3845 = vunpack.c.l.b16 %v3819
    %v3846 = vunpack.c.l.b16 %v3820
    %v3847 = vunpack.c.l.b16 %v3821
    %v3848 = vunpack.c.l.b16 %v3822
    %v3849 = vunpack.c.l.b16 %v3823
    %v3850 = vunpack.c.l.b16 %v3824
    %v3851 = vpack.c.b16 %v3844, %v3843
    %v3852 = vpack.c.b16 %v3846, %v3845
    %v3853 = vpack.c.b16 %v3848, %v3847
    %v3854 = vpack.c.b16 %v3850, %v3849
    %v3860 = vsel %vm396, %v3825, 0
    %v3863 = vsel %vm396, %v3826, 0
    %3865 = vmatprep.subr.bf16.mxu0 0
    %3866 = vmatpush1.bf16.msra.mxu0 %v3851
    %3867 = vmatprep.subr.bf16.mxu0 0
    %3868 = vmatpush1.bf16.msra.mxu0 %v3852
    %3869 = vmatprep.subr.bf16.mxu0 0
    %3870 = vmatpush1.bf16.msra.mxu0 %v3853
    %3871 = vmatprep.subr.bf16.mxu0 0
    %3872 = vmatpush1.bf16.msra.mxu0 %v3854
    %3873 = vmatprep.subr.bf16.mxu0 0
    %3874 = vmatpush1.bf16.msra.mxu0 0
    %3875 = vmatprep.subr.bf16.mxu0 0
    %3876 = vmatpush1.bf16.msra.mxu0 0
    %3877 = vmatprep.subr.bf16.mxu0 0
    %3878 = vmatpush1.bf16.msra.mxu0 0
    %3879 = vmatprep.subr.bf16.mxu0 0
    %3880 = vmatpush1.bf16.msra.mxu0 0
    %3881 = vmatprep.subr.bf16.mxu0 0
    %3882 = vmatpush1.bf16.msra.mxu0 0
    %3883 = vmatprep.subr.bf16.mxu0 0
    %3884 = vmatpush1.bf16.msra.mxu0 0
    %3885 = vmatprep.subr.bf16.mxu0 0
    %3886 = vmatpush1.bf16.msra.mxu0 0
    %3887 = vmatprep.subr.bf16.mxu0 0
    %3888 = vmatpush1.bf16.msra.mxu0 0
    %3889 = vmatprep.subr.bf16.mxu0 0
    %3890 = vmatpush1.bf16.msra.mxu0 0
    %3891 = vmatprep.subr.bf16.mxu0 0
    %3892 = vmatpush1.bf16.msra.mxu0 0
    %3893 = vmatprep.subr.bf16.mxu0 0
    %3894 = vmatpush1.bf16.msra.mxu0 0
    %3895 = vmatprep.subr.bf16.mxu0 0
    %3896 = vmatpush1.bf16.msra.mxu0 0
    %3897 = vmatprep.mubr.bf16.mxu0 0
    %3898 = vmatmul.mubr.bf16.gmra.mrb[0].mxu0 %v3860
    %v3899 = vpop.f32.mrb[0].mxu0
    %v3900 = vadd.f32 %v3833, %v3899
    %v3901 = vpop.f32.mrb[0].mxu0
    %v3902 = vpop.f32.mrb[0].mxu0
    %v3903 = vadd.f32 %v3833, %v3902
    %v3904 = vpop.f32.mrb[0].mxu0
    %3905 = vmatprep.mubr.bf16.mxu0 0
    %3906 = vmatmul.mubr.bf16.gmra.mrb[0].mxu0 %v3863
    %v3907 = vpop.f32.mrb[0].mxu0
    %v3908 = vadd.f32 %v3833, %v3907
    %v3909 = vpop.f32.mrb[0].mxu0
    %v3910 = vpop.f32.mrb[0].mxu0
    %v3911 = vadd.f32 %v3833, %v3910
    %v3912 = vpop.f32.mrb[0].mxu0
    %3913 = vdwg.mxu0
    %s3914 = scalar_lea.vmem %s12, 2
    %v3915 = vld [vmem:[%s3914] sm:$0x1]
    %s3916 = scalar_lea.vmem %s13, 2
    %v3917 = vld [vmem:[%s3916] sm:$0x1]
    %v3918 = vsel %vm396, %v3900, 0.0
    %v3919 = vsel %vm396, %v3903, 0.0
    %v3920 = vadd.f32 %v3918, %v3919
    %v3921 = vsel %vm396, %v3908, 0.0
    %v3922 = vadd.f32 %v3920, %v3921
    %v3923 = vsel %vm396, %v3911, 0.0
    %v3924 = vadd.f32 %v3922, %v3923
    %v3925 = vrot.slane %v3924, 4
    %v3926 = vadd.f32 %v3924, %v3925
    %v3927 = vrot.slane %v3926, 2
    %v3928 = vadd.f32 %v3926, %v3927
    %v3929 = vrot.slane %v3928, 1
    %v3930 = vadd.f32 %v3928, %v3929
    %v3931 = vmul.f32 %v3930, %v634
    %v3932 = vmul.f32 %v3900, %v3900
    %v3933 = vmul.f32 %v3903, %v3903
    %v3934 = vmul.f32 %v3908, %v3908
    %v3935 = vmul.f32 %v3911, %v3911
    %v3936 = vsel %vm396, %v3932, 0.0
    %v3937 = vsel %vm396, %v3933, 0.0
    %v3938 = vadd.f32 %v3936, %v3937
    %v3939 = vsel %vm396, %v3934, 0.0
    %v3940 = vadd.f32 %v3938, %v3939
    %v3941 = vsel %vm396, %v3935, 0.0
    %v3942 = vadd.f32 %v3940, %v3941
    %v3943 = vrot.slane %v3942, 4
    %v3944 = vadd.f32 %v3942, %v3943
    %v3945 = vrot.slane %v3944, 2
    %v3946 = vadd.f32 %v3944, %v3945
    %v3947 = vrot.slane %v3946, 1
    %v3948 = vadd.f32 %v3946, %v3947
    %v3949 = vmul.f32 %v3948, %v634
    %v3950 = vmul.f32 %v3931, %v3931
    %v3951 = vsub.f32 %v3949, %v3950
    %v3952 = vsub.f32 %v3900, %v3931
    %v3953 = vsub.f32 %v3903, %v3931
    %v3954 = vsub.f32 %v3908, %v3931
    %v3955 = vsub.f32 %v3911, %v3931
    %v3956 = vadd.f32 %v3951, 1e-05
    %v3957 = vrsqrt.pop %v3956
    %v3958 = vmul.f32 %v3952, %v3957
    %v3959 = vmul.f32 %v3953, %v3957
    %v3960 = vmul.f32 %v3954, %v3957
    %v3961 = vmul.f32 %v3955, %v3957
    %v3963 = vlaneseq
    %v3964 = vshrl.u32 %v3963, 7
    %v3965 = vsub.s32 0, %v3964
    %v3966 = vrot.slane %v3915, %v3965
    %v3968 = vmul.f32 %v3958, %v3966
    %v3969 = vmul.f32 %v3959, %v3966
    %v3970 = vmul.f32 %v3960, %v3966
    %v3971 = vmul.f32 %v3961, %v3966
    %v3973 = vlaneseq
    %v3974 = vshrl.u32 %v3973, 7
    %v3975 = vsub.s32 0, %v3974
    %v3976 = vrot.slane %v3917, %v3975
    %v3978 = vadd.f32 %v3968, %v3976
    %v3979 = vadd.f32 %v3969, %v3976
    %v3980 = vadd.f32 %v3970, %v3976
    %v3981 = vadd.f32 %v3971, %v3976
    %v3982 = vmax.f32 %v3978, 0.0
    %v3983 = vmax.f32 %v3979, 0.0
    %v3984 = vmax.f32 %v3980, 0.0
    %v3985 = vmax.f32 %v3981, 0.0
    %v3987 = vcombine.high %v3982, %v3982
    %v3989 = vunpack.c.l.s4 1966171168
    %v3990 = vunpack.c.0.s8 %v3989
    %v3991 = vlaneseq
    %v3992 = vshrl.u32 %v3991, 7
    %v3993 = vsub.s32 %v3990, %v3992
    %v3994 = vrot.slane %v3982, %v3993
    %v3996 = vunpack.c.l.s4 1966171168
    %v3997 = vunpack.c.0.s8 %v3996
    %v3998 = vlaneseq
    %v3999 = vshrl.u32 %v3998, 7
    %v4000 = vsub.s32 %v3997, %v3999
    %v4001 = vrot.slane %v3987, %v4000
    %v4002 = vcombine.high %v3994, %v3994
    %v4003 = vcombine.high %v4001, %v4001
    %v4005 = vunpack.c.l.s4 1966171168
    %v4006 = vunpack.c.0.s8 %v4005
    %v4007 = vlaneseq
    %v4008 = vshrl.u32 %v4007, 7
    %v4009 = vsub.s32 %v4006, %v4008
    %v4010 = vrot.slane %v3994, %v4009
    %v4012 = vunpack.c.l.s4 1966171168
    %v4013 = vunpack.c.0.s8 %v4012
    %v4014 = vlaneseq
    %v4015 = vshrl.u32 %v4014, 7
    %v4016 = vsub.s32 %v4013, %v4015
    %v4017 = vrot.slane %v4001, %v4016
    %v4019 = vunpack.c.l.s4 1966171168
    %v4020 = vunpack.c.0.s8 %v4019
    %v4021 = vlaneseq
    %v4022 = vshrl.u32 %v4021, 7
    %v4023 = vsub.s32 %v4020, %v4022
    %v4024 = vrot.slane %v4002, %v4023
    %v4026 = vunpack.c.l.s4 1966171168
    %v4027 = vunpack.c.0.s8 %v4026
    %v4028 = vlaneseq
    %v4029 = vshrl.u32 %v4028, 7
    %v4030 = vsub.s32 %v4027, %v4029
    %v4031 = vrot.slane %v4003, %v4030
    %v4032 = vcombine.high %v4010, %v4010
    %v4033 = vcombine.high %v4017, %v4017
    %v4034 = vcombine.high %v4024, %v4024
    %v4035 = vcombine.high %v4031, %v4031
    %v4036 = vlaneseq
    %v4037 = vshrl.u32 %v4036, 7
    %v4038 = vsub.s32 0, %v4037
    %v4039 = vrot.slane %v4010, %v4038
    %v4040 = vlaneseq
    %v4041 = vshrl.u32 %v4040, 7
    %v4042 = vsub.s32 0, %v4041
    %v4043 = vrot.slane %v4024, %v4042
    %v4044 = vlaneseq
    %v4045 = vshrl.u32 %v4044, 7
    %v4046 = vsub.s32 0, %v4045
    %v4047 = vrot.slane %v4032, %v4046
    %v4048 = vlaneseq
    %v4049 = vshrl.u32 %v4048, 7
    %v4050 = vsub.s32 0, %v4049
    %v4051 = vrot.slane %v4034, %v4050
    %v4052 = vlaneseq
    %v4053 = vshrl.u32 %v4052, 7
    %v4054 = vsub.s32 0, %v4053
    %v4055 = vrot.slane %v4017, %v4054
    %v4056 = vlaneseq
    %v4057 = vshrl.u32 %v4056, 7
    %v4058 = vsub.s32 0, %v4057
    %v4059 = vrot.slane %v4031, %v4058
    %v4060 = vlaneseq
    %v4061 = vshrl.u32 %v4060, 7
    %v4062 = vsub.s32 0, %v4061
    %v4063 = vrot.slane %v4033, %v4062
    %v4064 = vlaneseq
    %v4065 = vshrl.u32 %v4064, 7
    %v4066 = vsub.s32 0, %v4065
    %v4067 = vrot.slane %v4035, %v4066
    %v4076 = vmul.f32 %v862, %v4039
    %v4077 = vmul.f32 %v866, %v4039
    %v4078 = vmul.f32 %v873, %v4043
    %v4079 = vmul.f32 %v877, %v4043
    %v4080 = vmul.f32 %v884, %v4047
    %v4081 = vmul.f32 %v888, %v4047
    %v4082 = vmul.f32 %v895, %v4051
    %v4083 = vmul.f32 %v899, %v4051
    %v4084 = vmul.f32 %v906, %v4055
    %v4085 = vmul.f32 %v910, %v4055
    %v4086 = vmul.f32 %v917, %v4059
    %v4087 = vmul.f32 %v921, %v4059
    %v4088 = vmul.f32 %v928, %v4063
    %v4089 = vmul.f32 %v932, %v4063
    %v4090 = vmul.f32 %v939, %v4067
    %v4091 = vmul.f32 %v943, %v4067
    %v4092 = vsel %vm396, %v4076, -inf
    %v4093 = vsel %vm396, %v4078, -inf
    %v4094 = vsel %vm396, %v4080, -inf
    %v4095 = vmax.f32 %v4092, %v4094
    %v4096 = vsel %vm396, %v4082, -inf
    %v4097 = vmax.f32 %v4093, %v4096
    %v4098 = vsel %vm396, %v4084, -inf
    %v4099 = vmax.f32 %v4095, %v4098
    %v4100 = vsel %vm396, %v4086, -inf
    %v4101 = vmax.f32 %v4097, %v4100
    %v4102 = vsel %vm396, %v4088, -inf
    %v4103 = vmax.f32 %v4099, %v4102
    %v4104 = vsel %vm396, %v4090, -inf
    %v4105 = vmax.f32 %v4101, %v4104
    %v4106 = vmax.f32 %v4103, %v4105
    %v4107 = vsel %vm396, %v4077, -inf
    %v4108 = vsel %vm396, %v4079, -inf
    %v4109 = vsel %vm396, %v4081, -inf
    %v4110 = vmax.f32 %v4107, %v4109
    %v4111 = vsel %vm396, %v4083, -inf
    %v4112 = vmax.f32 %v4108, %v4111
    %v4113 = vsel %vm396, %v4085, -inf
    %v4114 = vmax.f32 %v4110, %v4113
    %v4115 = vsel %vm396, %v4087, -inf
    %v4116 = vmax.f32 %v4112, %v4115
    %v4117 = vsel %vm396, %v4089, -inf
    %v4118 = vmax.f32 %v4114, %v4117
    %v4119 = vsel %vm396, %v4091, -inf
    %v4120 = vmax.f32 %v4116, %v4119
    %v4121 = vmax.f32 %v4118, %v4120
    %v4122 = vmax.f32 %v4106, 0.0
    %v4123 = vmax.f32 %v4121, 0.0
    %v4125 = vcombine.high %v3983, %v3983
    %v4127 = vunpack.c.l.s4 1966171168
    %v4128 = vunpack.c.0.s8 %v4127
    %v4129 = vlaneseq
    %v4130 = vshrl.u32 %v4129, 7
    %v4131 = vsub.s32 %v4128, %v4130
    %v4132 = vrot.slane %v3983, %v4131
    %v4134 = vunpack.c.l.s4 1966171168
    %v4135 = vunpack.c.0.s8 %v4134
    %v4136 = vlaneseq
    %v4137 = vshrl.u32 %v4136, 7
    %v4138 = vsub.s32 %v4135, %v4137
    %v4139 = vrot.slane %v4125, %v4138
    %v4140 = vcombine.high %v4132, %v4132
    %v4141 = vcombine.high %v4139, %v4139
    %v4143 = vunpack.c.l.s4 1966171168
    %v4144 = vunpack.c.0.s8 %v4143
    %v4145 = vlaneseq
    %v4146 = vshrl.u32 %v4145, 7
    %v4147 = vsub.s32 %v4144, %v4146
    %v4148 = vrot.slane %v4132, %v4147
    %v4150 = vunpack.c.l.s4 1966171168
    %v4151 = vunpack.c.0.s8 %v4150
    %v4152 = vlaneseq
    %v4153 = vshrl.u32 %v4152, 7
    %v4154 = vsub.s32 %v4151, %v4153
    %v4155 = vrot.slane %v4139, %v4154
    %v4157 = vunpack.c.l.s4 1966171168
    %v4158 = vunpack.c.0.s8 %v4157
    %v4159 = vlaneseq
    %v4160 = vshrl.u32 %v4159, 7
    %v4161 = vsub.s32 %v4158, %v4160
    %v4162 = vrot.slane %v4140, %v4161
    %v4164 = vunpack.c.l.s4 1966171168
    %v4165 = vunpack.c.0.s8 %v4164
    %v4166 = vlaneseq
    %v4167 = vshrl.u32 %v4166, 7
    %v4168 = vsub.s32 %v4165, %v4167
    %v4169 = vrot.slane %v4141, %v4168
    %v4170 = vcombine.high %v4148, %v4148
    %v4171 = vcombine.high %v4155, %v4155
    %v4172 = vcombine.high %v4162, %v4162
    %v4173 = vcombine.high %v4169, %v4169
    %v4174 = vlaneseq
    %v4175 = vshrl.u32 %v4174, 7
    %v4176 = vsub.s32 0, %v4175
    %v4177 = vrot.slane %v4148, %v4176
    %v4178 = vlaneseq
    %v4179 = vshrl.u32 %v4178, 7
    %v4180 = vsub.s32 0, %v4179
    %v4181 = vrot.slane %v4162, %v4180
    %v4182 = vlaneseq
    %v4183 = vshrl.u32 %v4182, 7
    %v4184 = vsub.s32 0, %v4183
    %v4185 = vrot.slane %v4170, %v4184
    %v4186 = vlaneseq
    %v4187 = vshrl.u32 %v4186, 7
    %v4188 = vsub.s32 0, %v4187
    %v4189 = vrot.slane %v4172, %v4188
    %v4190 = vlaneseq
    %v4191 = vshrl.u32 %v4190, 7
    %v4192 = vsub.s32 0, %v4191
    %v4193 = vrot.slane %v4155, %v4192
    %v4194 = vlaneseq
    %v4195 = vshrl.u32 %v4194, 7
    %v4196 = vsub.s32 0, %v4195
    %v4197 = vrot.slane %v4169, %v4196
    %v4198 = vlaneseq
    %v4199 = vshrl.u32 %v4198, 7
    %v4200 = vsub.s32 0, %v4199
    %v4201 = vrot.slane %v4171, %v4200
    %v4202 = vlaneseq
    %v4203 = vshrl.u32 %v4202, 7
    %v4204 = vsub.s32 0, %v4203
    %v4205 = vrot.slane %v4173, %v4204
    %v4214 = vmul.f32 %v1088, %v4177
    %v4215 = vmul.f32 %v1092, %v4177
    %v4216 = vmul.f32 %v1099, %v4181
    %v4217 = vmul.f32 %v1103, %v4181
    %v4218 = vmul.f32 %v1110, %v4185
    %v4219 = vmul.f32 %v1114, %v4185
    %v4220 = vmul.f32 %v1121, %v4189
    %v4221 = vmul.f32 %v1125, %v4189
    %v4222 = vmul.f32 %v1132, %v4193
    %v4223 = vmul.f32 %v1136, %v4193
    %v4224 = vmul.f32 %v1143, %v4197
    %v4225 = vmul.f32 %v1147, %v4197
    %v4226 = vmul.f32 %v1154, %v4201
    %v4227 = vmul.f32 %v1158, %v4201
    %v4228 = vmul.f32 %v1165, %v4205
    %v4229 = vmul.f32 %v1169, %v4205
    %v4230 = vsel %vm396, %v4214, -inf
    %v4231 = vsel %vm396, %v4216, -inf
    %v4232 = vsel %vm396, %v4218, -inf
    %v4233 = vmax.f32 %v4230, %v4232
    %v4234 = vsel %vm396, %v4220, -inf
    %v4235 = vmax.f32 %v4231, %v4234
    %v4236 = vsel %vm396, %v4222, -inf
    %v4237 = vmax.f32 %v4233, %v4236
    %v4238 = vsel %vm396, %v4224, -inf
    %v4239 = vmax.f32 %v4235, %v4238
    %v4240 = vsel %vm396, %v4226, -inf
    %v4241 = vmax.f32 %v4237, %v4240
    %v4242 = vsel %vm396, %v4228, -inf
    %v4243 = vmax.f32 %v4239, %v4242
    %v4244 = vmax.f32 %v4241, %v4243
    %v4245 = vsel %vm396, %v4215, -inf
    %v4246 = vsel %vm396, %v4217, -inf
    %v4247 = vsel %vm396, %v4219, -inf
    %v4248 = vmax.f32 %v4245, %v4247
    %v4249 = vsel %vm396, %v4221, -inf
    %v4250 = vmax.f32 %v4246, %v4249
    %v4251 = vsel %vm396, %v4223, -inf
    %v4252 = vmax.f32 %v4248, %v4251
    %v4253 = vsel %vm396, %v4225, -inf
    %v4254 = vmax.f32 %v4250, %v4253
    %v4255 = vsel %vm396, %v4227, -inf
    %v4256 = vmax.f32 %v4252, %v4255
    %v4257 = vsel %vm396, %v4229, -inf
    %v4258 = vmax.f32 %v4254, %v4257
    %v4259 = vmax.f32 %v4256, %v4258
    %v4260 = vmax.f32 %v4122, %v4244
    %v4261 = vmax.f32 %v4123, %v4259
    %v4263 = vcombine.high %v3984, %v3984
    %v4265 = vunpack.c.l.s4 1966171168
    %v4266 = vunpack.c.0.s8 %v4265
    %v4267 = vlaneseq
    %v4268 = vshrl.u32 %v4267, 7
    %v4269 = vsub.s32 %v4266, %v4268
    %v4270 = vrot.slane %v3984, %v4269
    %v4272 = vunpack.c.l.s4 1966171168
    %v4273 = vunpack.c.0.s8 %v4272
    %v4274 = vlaneseq
    %v4275 = vshrl.u32 %v4274, 7
    %v4276 = vsub.s32 %v4273, %v4275
    %v4277 = vrot.slane %v4263, %v4276
    %v4278 = vcombine.high %v4270, %v4270
    %v4279 = vcombine.high %v4277, %v4277
    %v4281 = vunpack.c.l.s4 1966171168
    %v4282 = vunpack.c.0.s8 %v4281
    %v4283 = vlaneseq
    %v4284 = vshrl.u32 %v4283, 7
    %v4285 = vsub.s32 %v4282, %v4284
    %v4286 = vrot.slane %v4270, %v4285
    %v4288 = vunpack.c.l.s4 1966171168
    %v4289 = vunpack.c.0.s8 %v4288
    %v4290 = vlaneseq
    %v4291 = vshrl.u32 %v4290, 7
    %v4292 = vsub.s32 %v4289, %v4291
    %v4293 = vrot.slane %v4277, %v4292
    %v4295 = vunpack.c.l.s4 1966171168
    %v4296 = vunpack.c.0.s8 %v4295
    %v4297 = vlaneseq
    %v4298 = vshrl.u32 %v4297, 7
    %v4299 = vsub.s32 %v4296, %v4298
    %v4300 = vrot.slane %v4278, %v4299
    %v4302 = vunpack.c.l.s4 1966171168
    %v4303 = vunpack.c.0.s8 %v4302
    %v4304 = vlaneseq
    %v4305 = vshrl.u32 %v4304, 7
    %v4306 = vsub.s32 %v4303, %v4305
    %v4307 = vrot.slane %v4279, %v4306
    %v4308 = vcombine.high %v4286, %v4286
    %v4309 = vcombine.high %v4293, %v4293
    %v4310 = vcombine.high %v4300, %v4300
    %v4311 = vcombine.high %v4307, %v4307
    %v4312 = vlaneseq
    %v4313 = vshrl.u32 %v4312, 7
    %v4314 = vsub.s32 0, %v4313
    %v4315 = vrot.slane %v4286, %v4314
    %v4316 = vlaneseq
    %v4317 = vshrl.u32 %v4316, 7
    %v4318 = vsub.s32 0, %v4317
    %v4319 = vrot.slane %v4300, %v4318
    %v4320 = vlaneseq
    %v4321 = vshrl.u32 %v4320, 7
    %v4322 = vsub.s32 0, %v4321
    %v4323 = vrot.slane %v4308, %v4322
    %v4324 = vlaneseq
    %v4325 = vshrl.u32 %v4324, 7
    %v4326 = vsub.s32 0, %v4325
    %v4327 = vrot.slane %v4310, %v4326
    %v4328 = vlaneseq
    %v4329 = vshrl.u32 %v4328, 7
    %v4330 = vsub.s32 0, %v4329
    %v4331 = vrot.slane %v4293, %v4330
    %v4332 = vlaneseq
    %v4333 = vshrl.u32 %v4332, 7
    %v4334 = vsub.s32 0, %v4333
    %v4335 = vrot.slane %v4307, %v4334
    %v4336 = vlaneseq
    %v4337 = vshrl.u32 %v4336, 7
    %v4338 = vsub.s32 0, %v4337
    %v4339 = vrot.slane %v4309, %v4338
    %v4340 = vlaneseq
    %v4341 = vshrl.u32 %v4340, 7
    %v4342 = vsub.s32 0, %v4341
    %v4343 = vrot.slane %v4311, %v4342
    %v4352 = vmul.f32 %v1314, %v4315
    %v4353 = vmul.f32 %v1318, %v4315
    %v4354 = vmul.f32 %v1325, %v4319
    %v4355 = vmul.f32 %v1329, %v4319
    %v4356 = vmul.f32 %v1336, %v4323
    %v4357 = vmul.f32 %v1340, %v4323
    %v4358 = vmul.f32 %v1347, %v4327
    %v4359 = vmul.f32 %v1351, %v4327
    %v4360 = vmul.f32 %v1358, %v4331
    %v4361 = vmul.f32 %v1362, %v4331
    %v4362 = vmul.f32 %v1369, %v4335
    %v4363 = vmul.f32 %v1373, %v4335
    %v4364 = vmul.f32 %v1380, %v4339
    %v4365 = vmul.f32 %v1384, %v4339
    %v4366 = vmul.f32 %v1391, %v4343
    %v4367 = vmul.f32 %v1395, %v4343
    %v4368 = vsel %vm396, %v4352, -inf
    %v4369 = vsel %vm396, %v4354, -inf
    %v4370 = vsel %vm396, %v4356, -inf
    %v4371 = vmax.f32 %v4368, %v4370
    %v4372 = vsel %vm396, %v4358, -inf
    %v4373 = vmax.f32 %v4369, %v4372
    %v4374 = vsel %vm396, %v4360, -inf
    %v4375 = vmax.f32 %v4371, %v4374
    %v4376 = vsel %vm396, %v4362, -inf
    %v4377 = vmax.f32 %v4373, %v4376
    %v4378 = vsel %vm396, %v4364, -inf
    %v4379 = vmax.f32 %v4375, %v4378
    %v4380 = vsel %vm396, %v4366, -inf
    %v4381 = vmax.f32 %v4377, %v4380
    %v4382 = vmax.f32 %v4379, %v4381
    %v4383 = vsel %vm396, %v4353, -inf
    %v4384 = vsel %vm396, %v4355, -inf
    %v4385 = vsel %vm396, %v4357, -inf
    %v4386 = vmax.f32 %v4383, %v4385
    %v4387 = vsel %vm396, %v4359, -inf
    %v4388 = vmax.f32 %v4384, %v4387
    %v4389 = vsel %vm396, %v4361, -inf
    %v4390 = vmax.f32 %v4386, %v4389
    %v4391 = vsel %vm396, %v4363, -inf
    %v4392 = vmax.f32 %v4388, %v4391
    %v4393 = vsel %vm396, %v4365, -inf
    %v4394 = vmax.f32 %v4390, %v4393
    %v4395 = vsel %vm396, %v4367, -inf
    %v4396 = vmax.f32 %v4392, %v4395
    %v4397 = vmax.f32 %v4394, %v4396
    %v4398 = vmax.f32 %v4260, %v4382
    %v4399 = vmax.f32 %v4261, %v4397
    %v4401 = vcombine.high %v3985, %v3985
    %v4403 = vunpack.c.l.s4 1966171168
    %v4404 = vunpack.c.0.s8 %v4403
    %v4405 = vlaneseq
    %v4406 = vshrl.u32 %v4405, 7
    %v4407 = vsub.s32 %v4404, %v4406
    %v4408 = vrot.slane %v3985, %v4407
    %v4410 = vunpack.c.l.s4 1966171168
    %v4411 = vunpack.c.0.s8 %v4410
    %v4412 = vlaneseq
    %v4413 = vshrl.u32 %v4412, 7
    %v4414 = vsub.s32 %v4411, %v4413
    %v4415 = vrot.slane %v4401, %v4414
    %v4416 = vcombine.high %v4408, %v4408
    %v4417 = vcombine.high %v4415, %v4415
    %v4419 = vunpack.c.l.s4 1966171168
    %v4420 = vunpack.c.0.s8 %v4419
    %v4421 = vlaneseq
    %v4422 = vshrl.u32 %v4421, 7
    %v4423 = vsub.s32 %v4420, %v4422
    %v4424 = vrot.slane %v4408, %v4423
    %v4426 = vunpack.c.l.s4 1966171168
    %v4427 = vunpack.c.0.s8 %v4426
    %v4428 = vlaneseq
    %v4429 = vshrl.u32 %v4428, 7
    %v4430 = vsub.s32 %v4427, %v4429
    %v4431 = vrot.slane %v4415, %v4430
    %v4433 = vunpack.c.l.s4 1966171168
    %v4434 = vunpack.c.0.s8 %v4433
    %v4435 = vlaneseq
    %v4436 = vshrl.u32 %v4435, 7
    %v4437 = vsub.s32 %v4434, %v4436
    %v4438 = vrot.slane %v4416, %v4437
    %v4440 = vunpack.c.l.s4 1966171168
    %v4441 = vunpack.c.0.s8 %v4440
    %v4442 = vlaneseq
    %v4443 = vshrl.u32 %v4442, 7
    %v4444 = vsub.s32 %v4441, %v4443
    %v4445 = vrot.slane %v4417, %v4444
    %v4446 = vcombine.high %v4424, %v4424
    %v4447 = vcombine.high %v4431, %v4431
    %v4448 = vcombine.high %v4438, %v4438
    %v4449 = vcombine.high %v4445, %v4445
    %v4450 = vlaneseq
    %v4451 = vshrl.u32 %v4450, 7
    %v4452 = vsub.s32 0, %v4451
    %v4453 = vrot.slane %v4424, %v4452
    %v4454 = vlaneseq
    %v4455 = vshrl.u32 %v4454, 7
    %v4456 = vsub.s32 0, %v4455
    %v4457 = vrot.slane %v4438, %v4456
    %v4458 = vlaneseq
    %v4459 = vshrl.u32 %v4458, 7
    %v4460 = vsub.s32 0, %v4459
    %v4461 = vrot.slane %v4446, %v4460
    %v4462 = vlaneseq
    %v4463 = vshrl.u32 %v4462, 7
    %v4464 = vsub.s32 0, %v4463
    %v4465 = vrot.slane %v4448, %v4464
    %v4466 = vlaneseq
    %v4467 = vshrl.u32 %v4466, 7
    %v4468 = vsub.s32 0, %v4467
    %v4469 = vrot.slane %v4431, %v4468
    %v4470 = vlaneseq
    %v4471 = vshrl.u32 %v4470, 7
    %v4472 = vsub.s32 0, %v4471
    %v4473 = vrot.slane %v4445, %v4472
    %v4474 = vlaneseq
    %v4475 = vshrl.u32 %v4474, 7
    %v4476 = vsub.s32 0, %v4475
    %v4477 = vrot.slane %v4447, %v4476
    %v4478 = vlaneseq
    %v4479 = vshrl.u32 %v4478, 7
    %v4480 = vsub.s32 0, %v4479
    %v4481 = vrot.slane %v4449, %v4480
    %v4490 = vmul.f32 %v1540, %v4453
    %v4491 = vmul.f32 %v1544, %v4453
    %v4492 = vmul.f32 %v1551, %v4457
    %v4493 = vmul.f32 %v1555, %v4457
    %v4494 = vmul.f32 %v1562, %v4461
    %v4495 = vmul.f32 %v1566, %v4461
    %v4496 = vmul.f32 %v1573, %v4465
    %v4497 = vmul.f32 %v1577, %v4465
    %v4498 = vmul.f32 %v1584, %v4469
    %v4499 = vmul.f32 %v1588, %v4469
    %v4500 = vmul.f32 %v1595, %v4473
    %v4501 = vmul.f32 %v1599, %v4473
    %v4502 = vmul.f32 %v1606, %v4477
    %v4503 = vmul.f32 %v1610, %v4477
    %v4504 = vmul.f32 %v1617, %v4481
    %v4505 = vmul.f32 %v1621, %v4481
    %v4506 = vsel %vm396, %v4490, -inf
    %v4507 = vsel %vm396, %v4492, -inf
    %v4508 = vsel %vm396, %v4494, -inf
    %v4509 = vmax.f32 %v4506, %v4508
    %v4510 = vsel %vm396, %v4496, -inf
    %v4511 = vmax.f32 %v4507, %v4510
    %v4512 = vsel %vm396, %v4498, -inf
    %v4513 = vmax.f32 %v4509, %v4512
    %v4514 = vsel %vm396, %v4500, -inf
    %v4515 = vmax.f32 %v4511, %v4514
    %v4516 = vsel %vm396, %v4502, -inf
    %v4517 = vmax.f32 %v4513, %v4516
    %v4518 = vsel %vm396, %v4504, -inf
    %v4519 = vmax.f32 %v4515, %v4518
    %v4520 = vmax.f32 %v4517, %v4519
    %v4521 = vsel %vm396, %v4491, -inf
    %v4522 = vsel %vm396, %v4493, -inf
    %v4523 = vsel %vm396, %v4495, -inf
    %v4524 = vmax.f32 %v4521, %v4523
    %v4525 = vsel %vm396, %v4497, -inf
    %v4526 = vmax.f32 %v4522, %v4525
    %v4527 = vsel %vm396, %v4499, -inf
    %v4528 = vmax.f32 %v4524, %v4527
    %v4529 = vsel %vm396, %v4501, -inf
    %v4530 = vmax.f32 %v4526, %v4529
    %v4531 = vsel %vm396, %v4503, -inf
    %v4532 = vmax.f32 %v4528, %v4531
    %v4533 = vsel %vm396, %v4505, -inf
    %v4534 = vmax.f32 %v4530, %v4533
    %v4535 = vmax.f32 %v4532, %v4534
    %v4536 = vmax.f32 %v4398, %v4520
    %v4537 = vmax.f32 %v4399, %v4535
    %s4538 = scalar_lea.vmem [#allocation9], 64
    %v4539 = vld [vmem:[%s4538] sm:$0xf]
    %v4540 = vld [vmem:[%s4538 + $0x4] sm:$0xf]
    %v4541 = vld [vmem:[%s4538 + $0x8] sm:$0xf]
    %v4542 = vld [vmem:[%s4538 + $0xc] sm:$0xf]
    %v4543 = vld [vmem:[%s4538 + $0x10] sm:$0xf]
    %v4544 = vld [vmem:[%s4538 + $0x14] sm:$0xf]
    %v4545 = vld [vmem:[%s4538 + $0x18] sm:$0xf]
    %v4546 = vld [vmem:[%s4538 + $0x1c] sm:$0xf]
    %s4547 = scalar_lea.vmem [#allocation11], 64
    %v4548 = vld [vmem:[%s4547] sm:$0xf]
    %v4549 = vld [vmem:[%s4547 + $0x4] sm:$0xf]
    %v4550 = vld [vmem:[%s4547 + $0x8] sm:$0xf]
    %v4551 = vld [vmem:[%s4547 + $0xc] sm:$0xf]
    %v4552 = vld [vmem:[%s4547 + $0x10] sm:$0xf]
    %v4553 = vld [vmem:[%s4547 + $0x14] sm:$0xf]
    %v4554 = vld [vmem:[%s4547 + $0x18] sm:$0xf]
    %v4555 = vld [vmem:[%s4547 + $0x1c] sm:$0xf]
    %v4556 = vpack.c.bf16 %v4537, %v4536
    %v4565 = vunpack.c.l.b16 %v4548
    %v4566 = vunpack.c.l.b16 %v4549
    %v4567 = vunpack.c.l.b16 %v4550
    %v4568 = vunpack.c.l.b16 %v4551
    %v4569 = vunpack.c.l.b16 %v4552
    %v4570 = vunpack.c.l.b16 %v4553
    %v4571 = vunpack.c.l.b16 %v4554
    %v4572 = vunpack.c.l.b16 %v4555
    %v4573 = vpack.c.b16 %v4566, %v4565
    %v4574 = vpack.c.b16 %v4568, %v4567
    %v4575 = vpack.c.b16 %v4570, %v4569
    %v4576 = vpack.c.b16 %v4572, %v4571
    %v4582 = vsel %vm396, %v4556, 0
    %4584 = vmatprep.subr.bf16.mxu0 0
    %4585 = vmatpush1.bf16.msra.mxu0 %v4573
    %4586 = vmatprep.subr.bf16.mxu0 0
    %4587 = vmatpush1.bf16.msra.mxu0 %v4574
    %4588 = vmatprep.subr.bf16.mxu0 0
    %4589 = vmatpush1.bf16.msra.mxu0 %v4575
    %4590 = vmatprep.subr.bf16.mxu0 0
    %4591 = vmatpush1.bf16.msra.mxu0 %v4576
    %4592 = vmatprep.subr.bf16.mxu0 0
    %4593 = vmatpush1.bf16.msra.mxu0 0
    %4594 = vmatprep.subr.bf16.mxu0 0
    %4595 = vmatpush1.bf16.msra.mxu0 0
    %4596 = vmatprep.subr.bf16.mxu0 0
    %4597 = vmatpush1.bf16.msra.mxu0 0
    %4598 = vmatprep.subr.bf16.mxu0 0
    %4599 = vmatpush1.bf16.msra.mxu0 0
    %4600 = vmatprep.subr.bf16.mxu0 0
    %4601 = vmatpush1.bf16.msra.mxu0 0
    %4602 = vmatprep.subr.bf16.mxu0 0
    %4603 = vmatpush1.bf16.msra.mxu0 0
    %4604 = vmatprep.subr.bf16.mxu0 0
    %4605 = vmatpush1.bf16.msra.mxu0 0
    %4606 = vmatprep.subr.bf16.mxu0 0
    %4607 = vmatpush1.bf16.msra.mxu0 0
    %4608 = vmatprep.subr.bf16.mxu0 0
    %4609 = vmatpush1.bf16.msra.mxu0 0
    %4610 = vmatprep.subr.bf16.mxu0 0
    %4611 = vmatpush1.bf16.msra.mxu0 0
    %4612 = vmatprep.subr.bf16.mxu0 0
    %4613 = vmatpush1.bf16.msra.mxu0 0
    %4614 = vmatprep.subr.bf16.mxu0 0
    %4615 = vmatpush1.bf16.msra.mxu0 0
    %4616 = vmatprep.mubr.bf16.mxu0 0
    %4617 = vmatmul.mubr.bf16.gmra.mrb[0].mxu0 %v4582
    %v4618 = vpop.f32.mrb[0].mxu0
    %v4619 = vadd.f32 0.0, %v4618
    %v4620 = vpop.f32.mrb[0].mxu0
    %v4621 = vpop.f32.mrb[0].mxu0
    %v4622 = vadd.f32 0.0, %v4621
    %v4623 = vpop.f32.mrb[0].mxu0
    %4624 = vdwg.mxu0
    %v4633 = vunpack.c.l.b16 %v4539
    %v4634 = vunpack.c.l.b16 %v4540
    %v4635 = vunpack.c.l.b16 %v4541
    %v4636 = vunpack.c.l.b16 %v4542
    %v4637 = vunpack.c.l.b16 %v4543
    %v4638 = vunpack.c.l.b16 %v4544
    %v4639 = vunpack.c.l.b16 %v4545
    %v4640 = vunpack.c.l.b16 %v4546
    %v4641 = vpack.c.b16 %v4634, %v4633
    %v4642 = vpack.c.b16 %v4636, %v4635
    %v4643 = vpack.c.b16 %v4638, %v4637
    %v4644 = vpack.c.b16 %v4640, %v4639
    %4649 = vmatprep.subr.bf16.mxu0 0
    %4650 = vmatpush1.bf16.msra.mxu0 %v4641
    %4651 = vmatprep.subr.bf16.mxu0 0
    %4652 = vmatpush1.bf16.msra.mxu0 %v4642
    %4653 = vmatprep.subr.bf16.mxu0 0
    %4654 = vmatpush1.bf16.msra.mxu0 %v4643
    %4655 = vmatprep.subr.bf16.mxu0 0
    %4656 = vmatpush1.bf16.msra.mxu0 %v4644
    %4657 = vmatprep.subr.bf16.mxu0 0
    %4658 = vmatpush1.bf16.msra.mxu0 0
    %4659 = vmatprep.subr.bf16.mxu0 0
    %4660 = vmatpush1.bf16.msra.mxu0 0
    %4661 = vmatprep.subr.bf16.mxu0 0
    %4662 = vmatpush1.bf16.msra.mxu0 0
    %4663 = vmatprep.subr.bf16.mxu0 0
    %4664 = vmatpush1.bf16.msra.mxu0 0
    %4665 = vmatprep.subr.bf16.mxu0 0
    %4666 = vmatpush1.bf16.msra.mxu0 0
    %4667 = vmatprep.subr.bf16.mxu0 0
    %4668 = vmatpush1.bf16.msra.mxu0 0
    %4669 = vmatprep.subr.bf16.mxu0 0
    %4670 = vmatpush1.bf16.msra.mxu0 0
    %4671 = vmatprep.subr.bf16.mxu0 0
    %4672 = vmatpush1.bf16.msra.mxu0 0
    %4673 = vmatprep.subr.bf16.mxu0 0
    %4674 = vmatpush1.bf16.msra.mxu0 0
    %4675 = vmatprep.subr.bf16.mxu0 0
    %4676 = vmatpush1.bf16.msra.mxu0 0
    %4677 = vmatprep.subr.bf16.mxu0 0
    %4678 = vmatpush1.bf16.msra.mxu0 0
    %4679 = vmatprep.subr.bf16.mxu0 0
    %4680 = vmatpush1.bf16.msra.mxu0 0
    %4681 = vmatprep.mubr.bf16.mxu0 0
    %4682 = vmatmul.mubr.bf16.gmra.mrb[0].mxu0 %v3534
    %v4683 = vpop.f32.mrb[0].mxu0
    %v4684 = vadd.f32 %v4619, %v4683
    %v4685 = vpop.f32.mrb[0].mxu0
    %v4686 = vpop.f32.mrb[0].mxu0
    %v4687 = vadd.f32 %v4622, %v4686
    %v4688 = vpop.f32.mrb[0].mxu0
    %4689 = vdwg.mxu0
    %s4690 = scalar_lea.vmem %s16, 2
    %v4691 = vld [vmem:[%s4690] sm:$0x1]
    %v4693 = vlaneseq
    %v4694 = vshrl.u32 %v4693, 7
    %v4695 = vsub.s32 0, %v4694
    %v4696 = vrot.slane %v4691, %v4695
    %v4698 = vadd.f32 %v4684, %v4696
    %v4699 = vadd.f32 %v4687, %v4696
    %s4700 = scalar_lea.vmem %s17, 2
    %v4701 = vld [vmem:[%s4700] sm:$0x1]
    %s4702 = scalar_lea.vmem %s18, 2
    %v4703 = vld [vmem:[%s4702] sm:$0x1]
    %v4704 = vsel %vm396, %v4698, 0.0
    %v4705 = vsel %vm396, %v4699, 0.0
    %v4706 = vadd.f32 %v4704, %v4705
    %v4707 = vrot.slane %v4706, 4
    %v4708 = vadd.f32 %v4706, %v4707
    %v4709 = vrot.slane %v4708, 2
    %v4710 = vadd.f32 %v4708, %v4709
    %v4711 = vrot.slane %v4710, 1
    %v4712 = vadd.f32 %v4710, %v4711
    %v4713 = vmul.f32 %v4712, %v1930
    %v4714 = vmul.f32 %v4698, %v4698
    %v4715 = vmul.f32 %v4699, %v4699
    %v4716 = vsel %vm396, %v4714, 0.0
    %v4717 = vsel %vm396, %v4715, 0.0
    %v4718 = vadd.f32 %v4716, %v4717
    %v4719 = vrot.slane %v4718, 4
    %v4720 = vadd.f32 %v4718, %v4719
    %v4721 = vrot.slane %v4720, 2
    %v4722 = vadd.f32 %v4720, %v4721
    %v4723 = vrot.slane %v4722, 1
    %v4724 = vadd.f32 %v4722, %v4723
    %v4725 = vmul.f32 %v4724, %v1930
    %v4726 = vmul.f32 %v4713, %v4713
    %v4727 = vsub.f32 %v4725, %v4726
    %v4728 = vsub.f32 %v4698, %v4713
    %v4729 = vsub.f32 %v4699, %v4713
    %v4730 = vadd.f32 %v4727, 1e-05
    %v4731 = vrsqrt.pop %v4730
    %v4732 = vmul.f32 %v4728, %v4731
    %v4733 = vmul.f32 %v4729, %v4731
    %v4735 = vlaneseq
    %v4736 = vshrl.u32 %v4735, 7
    %v4737 = vsub.s32 0, %v4736
    %v4738 = vrot.slane %v4701, %v4737
    %v4740 = vmul.f32 %v4732, %v4738
    %v4741 = vmul.f32 %v4733, %v4738
    %v4743 = vlaneseq
    %v4744 = vshrl.u32 %v4743, 7
    %v4745 = vsub.s32 0, %v4744
    %v4746 = vrot.slane %v4703, %v4745
    %v4748 = vadd.f32 %v4740, %v4746
    %v4749 = vadd.f32 %v4741, %v4746
    %v4750 = vmax.f32 %v4748, 0.0
    %v4751 = vmax.f32 %v4749, 0.0
    %s4752 = scalar_lea.vmem [#allocation12], 64
    %v4753 = vld [vmem:[%s4752] sm:$0xf]
    %v4754 = vld [vmem:[%s4752 + $0x4] sm:$0xf]
    %v4755 = vld [vmem:[%s4752 + $0x8] sm:$0xf]
    %v4756 = vld [vmem:[%s4752 + $0xc] sm:$0xf]
    %v4757 = vld [vmem:[%s4752 + $0x10] sm:$0xf]
    %v4758 = vld [vmem:[%s4752 + $0x14] sm:$0xf]
    %v4759 = vld [vmem:[%s4752 + $0x18] sm:$0xf]
    %v4760 = vld [vmem:[%s4752 + $0x1c] sm:$0xf]
    %v4761 = vpack.c.bf16 %v4751, %v4750
    %s4762 = scalar_lea.vmem %s20, 2
    %v4763 = vld [vmem:[%s4762] sm:$0x1]
    %v4765 = vlaneseq
    %v4766 = vshrl.u32 %v4765, 7
    %v4767 = vsub.s32 0, %v4766
    %v4768 = vrot.slane %v4763, %v4767
    %v4778 = vunpack.c.l.b16 %v4753
    %v4779 = vunpack.c.l.b16 %v4754
    %v4780 = vunpack.c.l.b16 %v4755
    %v4781 = vunpack.c.l.b16 %v4756
    %v4782 = vunpack.c.l.b16 %v4757
    %v4783 = vunpack.c.l.b16 %v4758
    %v4784 = vunpack.c.l.b16 %v4759
    %v4785 = vunpack.c.l.b16 %v4760
    %v4786 = vpack.c.b16 %v4779, %v4778
    %v4787 = vpack.c.b16 %v4781, %v4780
    %v4788 = vpack.c.b16 %v4783, %v4782
    %v4789 = vpack.c.b16 %v4785, %v4784
    %v4795 = vsel %vm396, %v4761, 0
    %4797 = vmatprep.subr.bf16.mxu0 0
    %4798 = vmatpush1.bf16.msra.mxu0 %v4786
    %4799 = vmatprep.subr.bf16.mxu0 0
    %4800 = vmatpush1.bf16.msra.mxu0 %v4787
    %4801 = vmatprep.subr.bf16.mxu0 0
    %4802 = vmatpush1.bf16.msra.mxu0 %v4788
    %4803 = vmatprep.subr.bf16.mxu0 0
    %4804 = vmatpush1.bf16.msra.mxu0 %v4789
    %4805 = vmatprep.subr.bf16.mxu0 0
    %4806 = vmatpush1.bf16.msra.mxu0 0
    %4807 = vmatprep.subr.bf16.mxu0 0
    %4808 = vmatpush1.bf16.msra.mxu0 0
    %4809 = vmatprep.subr.bf16.mxu0 0
    %4810 = vmatpush1.bf16.msra.mxu0 0
    %4811 = vmatprep.subr.bf16.mxu0 0
    %4812 = vmatpush1.bf16.msra.mxu0 0
    %4813 = vmatprep.subr.bf16.mxu0 0
    %4814 = vmatpush1.bf16.msra.mxu0 0
    %4815 = vmatprep.subr.bf16.mxu0 0
    %4816 = vmatpush1.bf16.msra.mxu0 0
    %4817 = vmatprep.subr.bf16.mxu0 0
    %4818 = vmatpush1.bf16.msra.mxu0 0
    %4819 = vmatprep.subr.bf16.mxu0 0
    %4820 = vmatpush1.bf16.msra.mxu0 0
    %4821 = vmatprep.subr.bf16.mxu0 0
    %4822 = vmatpush1.bf16.msra.mxu0 0
    %4823 = vmatprep.subr.bf16.mxu0 0
    %4824 = vmatpush1.bf16.msra.mxu0 0
    %4825 = vmatprep.subr.bf16.mxu0 0
    %4826 = vmatpush1.bf16.msra.mxu0 0
    %4827 = vmatprep.subr.bf16.mxu0 0
    %4828 = vmatpush1.bf16.msra.mxu0 0
    %4829 = vmatprep.mubr.bf16.mxu0 0
    %4830 = vmatmul.mubr.bf16.gmra.mrb[0].mxu0 %v4795
    %v4831 = vpop.f32.mrb[0].mxu0
    %v4832 = vadd.f32 %v4768, %v4831
    %v4833 = vpop.f32.mrb[0].mxu0
    %v4834 = vpop.f32.mrb[0].mxu0
    %v4835 = vadd.f32 %v4768, %v4834
    %v4836 = vpop.f32.mrb[0].mxu0
    %4837 = vdwg.mxu0
    %s4838 = scalar_lea.vmem %s21, 2
    %v4839 = vld [vmem:[%s4838] sm:$0x1]
    %s4840 = scalar_lea.vmem %s22, 2
    %v4841 = vld [vmem:[%s4840] sm:$0x1]
    %v4842 = vsel %vm396, %v4832, 0.0
    %v4843 = vsel %vm396, %v4835, 0.0
    %v4844 = vadd.f32 %v4842, %v4843
    %v4845 = vrot.slane %v4844, 4
    %v4846 = vadd.f32 %v4844, %v4845
    %v4847 = vrot.slane %v4846, 2
    %v4848 = vadd.f32 %v4846, %v4847
    %v4849 = vrot.slane %v4848, 1
    %v4850 = vadd.f32 %v4848, %v4849
    %v4851 = vmul.f32 %v4850, %v1930
    %v4852 = vmul.f32 %v4832, %v4832
    %v4853 = vmul.f32 %v4835, %v4835
    %v4854 = vsel %vm396, %v4852, 0.0
    %v4855 = vsel %vm396, %v4853, 0.0
    %v4856 = vadd.f32 %v4854, %v4855
    %v4857 = vrot.slane %v4856, 4
    %v4858 = vadd.f32 %v4856, %v4857
    %v4859 = vrot.slane %v4858, 2
    %v4860 = vadd.f32 %v4858, %v4859
    %v4861 = vrot.slane %v4860, 1
    %v4862 = vadd.f32 %v4860, %v4861
    %v4863 = vmul.f32 %v4862, %v1930
    %v4864 = vmul.f32 %v4851, %v4851
    %v4865 = vsub.f32 %v4863, %v4864
    %v4866 = vsub.f32 %v4832, %v4851
    %v4867 = vsub.f32 %v4835, %v4851
    %v4868 = vadd.f32 %v4865, 1e-05
    %v4869 = vrsqrt.pop %v4868
    %v4870 = vmul.f32 %v4866, %v4869
    %v4871 = vmul.f32 %v4867, %v4869
    %v4873 = vlaneseq
    %v4874 = vshrl.u32 %v4873, 7
    %v4875 = vsub.s32 0, %v4874
    %v4876 = vrot.slane %v4839, %v4875
    %v4878 = vmul.f32 %v4870, %v4876
    %v4879 = vmul.f32 %v4871, %v4876
    %v4881 = vlaneseq
    %v4882 = vshrl.u32 %v4881, 7
    %v4883 = vsub.s32 0, %v4882
    %v4884 = vrot.slane %v4841, %v4883
    %v4886 = vadd.f32 %v4878, %v4884
    %v4887 = vadd.f32 %v4879, %v4884
    %v4888 = vmax.f32 %v4886, 0.0
    %v4889 = vmax.f32 %v4887, 0.0
    %v4890 = vadd.f32 %v3497, %v4888
    %v4891 = vadd.f32 %v3498, %v4889
    %s4892 = scalar_lea.vmem %s5, 96
    %v4893 = vld [vmem:[%s4892] sm:$0xf]
    %v4894 = vld [vmem:[%s4892 + $0x4] sm:$0xf]
    %v4895 = vld [vmem:[%s4892 + $0x8] sm:$0xf]
    %v4896 = vld [vmem:[%s4892 + $0xc] sm:$0xf]
    %v4897 = vld [vmem:[%s4892 + $0x10] sm:$0xf]
    %v4898 = vld [vmem:[%s4892 + $0x14] sm:$0xf]
    %v4899 = vld [vmem:[%s4892 + $0x18] sm:$0xf]
    %v4900 = vld [vmem:[%s4892 + $0x1c] sm:$0xf]
    %v4901 = vpack.c.bf16 %v4891, %v4890
    %v4910 = vunpack.c.l.b16 %v4893
    %v4911 = vunpack.c.l.b16 %v4894
    %v4912 = vunpack.c.l.b16 %v4895
    %v4913 = vunpack.c.l.b16 %v4896
    %v4914 = vunpack.c.l.b16 %v4897
    %v4915 = vunpack.c.l.b16 %v4898
    %v4916 = vunpack.c.l.b16 %v4899
    %v4917 = vunpack.c.l.b16 %v4900
    %v4918 = vpack.c.b16 %v4911, %v4910
    %v4919 = vpack.c.b16 %v4913, %v4912
    %v4920 = vpack.c.b16 %v4915, %v4914
    %v4921 = vpack.c.b16 %v4917, %v4916
    %v4927 = vsel %vm396, %v4901, 0
    %4929 = vmatprep.subr.bf16.mxu0 0
    %4930 = vmatpush1.bf16.msra.mxu0 %v4918
    %4931 = vmatprep.subr.bf16.mxu0 0
    %4932 = vmatpush1.bf16.msra.mxu0 %v4919
    %4933 = vmatprep.subr.bf16.mxu0 0
    %4934 = vmatpush1.bf16.msra.mxu0 %v4920
    %4935 = vmatprep.subr.bf16.mxu0 0
    %4936 = vmatpush1.bf16.msra.mxu0 %v4921
    %4937 = vmatprep.subr.bf16.mxu0 0
    %4938 = vmatpush1.bf16.msra.mxu0 0
    %4939 = vmatprep.subr.bf16.mxu0 0
    %4940 = vmatpush1.bf16.msra.mxu0 0
    %4941 = vmatprep.subr.bf16.mxu0 0
    %4942 = vmatpush1.bf16.msra.mxu0 0
    %4943 = vmatprep.subr.bf16.mxu0 0
    %4944 = vmatpush1.bf16.msra.mxu0 0
    %4945 = vmatprep.subr.bf16.mxu0 0
    %4946 = vmatpush1.bf16.msra.mxu0 0
    %4947 = vmatprep.subr.bf16.mxu0 0
    %4948 = vmatpush1.bf16.msra.mxu0 0
    %4949 = vmatprep.subr.bf16.mxu0 0
    %4950 = vmatpush1.bf16.msra.mxu0 0
    %4951 = vmatprep.subr.bf16.mxu0 0
    %4952 = vmatpush1.bf16.msra.mxu0 0
    %4953 = vmatprep.subr.bf16.mxu0 0
    %4954 = vmatpush1.bf16.msra.mxu0 0
    %4955 = vmatprep.subr.bf16.mxu0 0
    %4956 = vmatpush1.bf16.msra.mxu0 0
    %4957 = vmatprep.subr.bf16.mxu0 0
    %4958 = vmatpush1.bf16.msra.mxu0 0
    %4959 = vmatprep.subr.bf16.mxu0 0
    %4960 = vmatpush1.bf16.msra.mxu0 0
    %4961 = vmatprep.mubr.bf16.mxu0 0
    %4962 = vmatmul.mubr.bf16.gmra.mrb[0].mxu0 %v4927
    %v4963 = vpop.f32.mrb[0].mxu0
    %v4964 = vadd.f32 0.0, %v4963
    %v4965 = vpop.f32.mrb[0].mxu0
    %v4966 = vpop.f32.mrb[0].mxu0
    %v4967 = vadd.f32 0.0, %v4966
    %v4968 = vpop.f32.mrb[0].mxu0
    %4969 = vdwg.mxu0
    %s4970 = scalar_lea.vmem [#allocation6], 96
    %v4971 = vld [vmem:[%s4970] sm:$0xf]
    %v4972 = vld [vmem:[%s4970 + $0x4] sm:$0xf]
    %v4973 = vld [vmem:[%s4970 + $0x8] sm:$0xf]
    %v4974 = vld [vmem:[%s4970 + $0xc] sm:$0xf]
    %v4975 = vld [vmem:[%s4970 + $0x10] sm:$0xf]
    %v4976 = vld [vmem:[%s4970 + $0x14] sm:$0xf]
    %v4977 = vld [vmem:[%s4970 + $0x18] sm:$0xf]
    %v4978 = vld [vmem:[%s4970 + $0x1c] sm:$0xf]
    %v4987 = vunpack.c.l.b16 %v4971
    %v4988 = vunpack.c.l.b16 %v4972
    %v4989 = vunpack.c.l.b16 %v4973
    %v4990 = vunpack.c.l.b16 %v4974
    %v4991 = vunpack.c.l.b16 %v4975
    %v4992 = vunpack.c.l.b16 %v4976
    %v4993 = vunpack.c.l.b16 %v4977
    %v4994 = vunpack.c.l.b16 %v4978
    %v4995 = vpack.c.b16 %v4988, %v4987
    %v4996 = vpack.c.b16 %v4990, %v4989
    %v4997 = vpack.c.b16 %v4992, %v4991
    %v4998 = vpack.c.b16 %v4994, %v4993
    %5003 = vmatprep.subr.bf16.mxu0 0
    %5004 = vmatpush1.bf16.msra.mxu0 %v4995
    %5005 = vmatprep.subr.bf16.mxu0 0
    %5006 = vmatpush1.bf16.msra.mxu0 %v4996
    %5007 = vmatprep.subr.bf16.mxu0 0
    %5008 = vmatpush1.bf16.msra.mxu0 %v4997
    %5009 = vmatprep.subr.bf16.mxu0 0
    %5010 = vmatpush1.bf16.msra.mxu0 %v4998
    %5011 = vmatprep.subr.bf16.mxu0 0
    %5012 = vmatpush1.bf16.msra.mxu0 0
    %5013 = vmatprep.subr.bf16.mxu0 0
    %5014 = vmatpush1.bf16.msra.mxu0 0
    %5015 = vmatprep.subr.bf16.mxu0 0
    %5016 = vmatpush1.bf16.msra.mxu0 0
    %5017 = vmatprep.subr.bf16.mxu0 0
    %5018 = vmatpush1.bf16.msra.mxu0 0
    %5019 = vmatprep.subr.bf16.mxu0 0
    %5020 = vmatpush1.bf16.msra.mxu0 0
    %5021 = vmatprep.subr.bf16.mxu0 0
    %5022 = vmatpush1.bf16.msra.mxu0 0
    %5023 = vmatprep.subr.bf16.mxu0 0
    %5024 = vmatpush1.bf16.msra.mxu0 0
    %5025 = vmatprep.subr.bf16.mxu0 0
    %5026 = vmatpush1.bf16.msra.mxu0 0
    %5027 = vmatprep.subr.bf16.mxu0 0
    %5028 = vmatpush1.bf16.msra.mxu0 0
    %5029 = vmatprep.subr.bf16.mxu0 0
    %5030 = vmatpush1.bf16.msra.mxu0 0
    %5031 = vmatprep.subr.bf16.mxu0 0
    %5032 = vmatpush1.bf16.msra.mxu0 0
    %5033 = vmatprep.subr.bf16.mxu0 0
    %5034 = vmatpush1.bf16.msra.mxu0 0
    %5035 = vmatprep.mubr.bf16.mxu0 0
    %5036 = vmatmul.mubr.bf16.gmra.mrb[0].mxu0 %v4927
    %v5037 = vpop.f32.mrb[0].mxu0
    %v5038 = vadd.f32 0.0, %v5037
    %v5039 = vpop.f32.mrb[0].mxu0
    %v5040 = vpop.f32.mrb[0].mxu0
    %v5041 = vadd.f32 0.0, %v5040
    %v5042 = vpop.f32.mrb[0].mxu0
    %5043 = vdwg.mxu0
    %s5044 = scalar_lea.vmem %s7, 3
    %v5045 = vld [vmem:[%s5044] sm:$0x1]
    %v5047 = vlaneseq
    %v5048 = vshrl.u32 %v5047, 7
    %v5049 = vsub.s32 0, %v5048
    %v5050 = vrot.slane %v5045, %v5049
    %5052 = vmatprep.subr.mxu0 0.0
    %5053 = vmatpush1.msra.mxu0 %v4964
    %5054 = vmatprep.subr.mxu0 0.0
    %5055 = vmatpush1.msra.mxu0 %v4967
    %5056 = vmatprep.subr.mxu0 0.0
    %5057 = vmatpush1.msra.mxu0 %v5038
    %5058 = vmatprep.subr.mxu0 0.0
    %5059 = vmatpush1.msra.mxu0 %v5041
    %5060 = vmatprep.subr.mxu0 0.0
    %5061 = vmatpush1.msra.mxu0 0.0
    %5062 = vmatprep.subr.mxu0 0.0
    %5063 = vmatpush1.msra.mxu0 0.0
    %5064 = vmatprep.subr.mxu0 0.0
    %5065 = vmatpush1.msra.mxu0 0.0
    %5066 = vmatprep.subr.mxu0 0.0
    %5067 = vmatpush1.msra.mxu0 0.0
    %5068 = vmatprep.subr.mxu0 0.0
    %5069 = vmatpush1.msra.mxu0 0.0
    %5070 = vmatprep.subr.mxu0 0.0
    %5071 = vmatpush1.msra.mxu0 0.0
    %5072 = vmatprep.subr.mxu0 0.0
    %5073 = vmatpush1.msra.mxu0 0.0
    %5074 = vmatprep.subr.mxu0 0.0
    %5075 = vmatpush1.msra.mxu0 0.0
    %5076 = vmatprep.subr.mxu0 0.0
    %5077 = vmatpush1.msra.mxu0 0.0
    %5078 = vmatprep.subr.mxu0 0.0
    %5079 = vmatpush1.msra.mxu0 0.0
    %5080 = vmatprep.subr.mxu0 0.0
    %5081 = vmatpush1.msra.mxu0 0.0
    %5082 = vmatprep.subr.mxu0 0.0
    %5083 = vmatpush1.msra.mxu0 0.0
    %5084 = vmatprep.subr.mxu0 0.0
    %5085 = vmatpush1.msra.mxu0 0.0
    %5086 = vmatprep.subr.mxu0 0.0
    %5087 = vmatpush1.msra.mxu0 0.0
    %5088 = vmatprep.subr.mxu0 0.0
    %5089 = vmatpush1.msra.mxu0 0.0
    %5090 = vmatprep.subr.mxu0 0.0
    %5091 = vmatpush1.msra.mxu0 0.0
    %5092 = vmatprep.subr.mxu0 0.0
    %5093 = vmatpush1.msra.mxu0 0.0
    %5094 = vmatprep.subr.mxu0 0.0
    %5095 = vmatpush1.msra.mxu0 0.0
    %5096 = vmatprep.subr.mxu0 0.0
    %5097 = vmatpush1.msra.mxu0 0.0
    %5098 = vmatprep.subr.mxu0 0.0
    %5099 = vmatpush1.msra.mxu0 0.0
    %5100 = vmatprep.subr.mxu0 0.0
    %5101 = vmatpush1.msra.mxu0 0.0
    %5102 = vmatprep.subr.mxu0 0.0
    %5103 = vmatpush1.msra.mxu0 0.0
    %5104 = vmatprep.subr.mxu0 0.0
    %5105 = vmatpush1.msra.mxu0 0.0
    %5106 = vmatprep.subr.mxu0 0.0
    %5107 = vmatpush1.msra.mxu0 0.0
    %5108 = vmatprep.subr.mxu0 0.0
    %5109 = vmatpush1.msra.mxu0 0.0
    %5110 = vmatprep.subr.mxu0 0.0
    %5111 = vmatpush1.msra.mxu0 0.0
    %5112 = vmatprep.subr.mxu0 0.0
    %5113 = vmatpush1.msra.mxu0 0.0
    %5114 = vmatprep.subr.mxu0 0.0
    %5115 = vmatpush1.msra.mxu0 0.0
    %5116 = vmatprep.mubr.f32.mxu0 0.0
    %5117 = vmatmul.mubr.f32.gmra.mrb[0].mxu0 %v523
    %v5118 = vpop.f32.mrb[0].mxu0
    %v5119 = vadd.f32 %v5050, %v5118
    %v5120 = vpop.f32.mrb[0].mxu0
    %5121 = vmatprep.mubr.f32.mxu0 0.0
    %5122 = vmatmul.mubr.f32.gmra.mrb[0].mxu0 %v526
    %v5123 = vpop.f32.mrb[0].mxu0
    %v5124 = vadd.f32 %v5050, %v5123
    %v5125 = vpop.f32.mrb[0].mxu0
    %5126 = vmatprep.mubr.f32.mxu0 0.0
    %5127 = vmatmul.mubr.f32.gmra.mrb[0].mxu0 %v529
    %v5128 = vpop.f32.mrb[0].mxu0
    %v5129 = vadd.f32 %v5050, %v5128
    %v5130 = vpop.f32.mrb[0].mxu0
    %5131 = vmatprep.mubr.f32.mxu0 0.0
    %5132 = vmatmul.mubr.f32.gmra.mrb[0].mxu0 %v532
    %v5133 = vpop.f32.mrb[0].mxu0
    %v5134 = vadd.f32 %v5050, %v5133
    %v5135 = vpop.f32.mrb[0].mxu0
    %5136 = vdwg.mxu0
    %s5137 = scalar_lea.vmem %s8, 3
    %v5138 = vld [vmem:[%s5137] sm:$0x1]
    %s5139 = scalar_lea.vmem %s9, 3
    %v5140 = vld [vmem:[%s5139] sm:$0x1]
    %v5141 = vsel %vm396, %v5119, 0.0
    %v5142 = vsel %vm396, %v5124, 0.0
    %v5143 = vadd.f32 %v5141, %v5142
    %v5144 = vsel %vm396, %v5129, 0.0
    %v5145 = vadd.f32 %v5143, %v5144
    %v5146 = vsel %vm396, %v5134, 0.0
    %v5147 = vadd.f32 %v5145, %v5146
    %v5148 = vrot.slane %v5147, 4
    %v5149 = vadd.f32 %v5147, %v5148
    %v5150 = vrot.slane %v5149, 2
    %v5151 = vadd.f32 %v5149, %v5150
    %v5152 = vrot.slane %v5151, 1
    %v5153 = vadd.f32 %v5151, %v5152
    %v5154 = vmul.f32 %v5153, %v634
    %v5155 = vmul.f32 %v5119, %v5119
    %v5156 = vmul.f32 %v5124, %v5124
    %v5157 = vmul.f32 %v5129, %v5129
    %v5158 = vmul.f32 %v5134, %v5134
    %v5159 = vsel %vm396, %v5155, 0.0
    %v5160 = vsel %vm396, %v5156, 0.0
    %v5161 = vadd.f32 %v5159, %v5160
    %v5162 = vsel %vm396, %v5157, 0.0
    %v5163 = vadd.f32 %v5161, %v5162
    %v5164 = vsel %vm396, %v5158, 0.0
    %v5165 = vadd.f32 %v5163, %v5164
    %v5166 = vrot.slane %v5165, 4
    %v5167 = vadd.f32 %v5165, %v5166
    %v5168 = vrot.slane %v5167, 2
    %v5169 = vadd.f32 %v5167, %v5168
    %v5170 = vrot.slane %v5169, 1
    %v5171 = vadd.f32 %v5169, %v5170
    %v5172 = vmul.f32 %v5171, %v634
    %v5173 = vmul.f32 %v5154, %v5154
    %v5174 = vsub.f32 %v5172, %v5173
    %v5175 = vsub.f32 %v5119, %v5154
    %v5176 = vsub.f32 %v5124, %v5154
    %v5177 = vsub.f32 %v5129, %v5154
    %v5178 = vsub.f32 %v5134, %v5154
    %v5179 = vadd.f32 %v5174, 1e-05
    %v5180 = vrsqrt.pop %v5179
    %v5181 = vmul.f32 %v5175, %v5180
    %v5182 = vmul.f32 %v5176, %v5180
    %v5183 = vmul.f32 %v5177, %v5180
    %v5184 = vmul.f32 %v5178, %v5180
    %v5186 = vlaneseq
    %v5187 = vshrl.u32 %v5186, 7
    %v5188 = vsub.s32 0, %v5187
    %v5189 = vrot.slane %v5138, %v5188
    %v5191 = vmul.f32 %v5181, %v5189
    %v5192 = vmul.f32 %v5182, %v5189
    %v5193 = vmul.f32 %v5183, %v5189
    %v5194 = vmul.f32 %v5184, %v5189
    %v5196 = vlaneseq
    %v5197 = vshrl.u32 %v5196, 7
    %v5198 = vsub.s32 0, %v5197
    %v5199 = vrot.slane %v5140, %v5198
    %v5201 = vadd.f32 %v5191, %v5199
    %v5202 = vadd.f32 %v5192, %v5199
    %v5203 = vadd.f32 %v5193, %v5199
    %v5204 = vadd.f32 %v5194, %v5199
    %v5205 = vmax.f32 %v5201, 0.0
    %v5206 = vmax.f32 %v5202, 0.0
    %v5207 = vmax.f32 %v5203, 0.0
    %v5208 = vmax.f32 %v5204, 0.0
    %s5209 = scalar_lea.vmem [#allocation8], 96
    %v5210 = vld [vmem:[%s5209] sm:$0xf]
    %v5211 = vld [vmem:[%s5209 + $0x4] sm:$0xf]
    %v5212 = vld [vmem:[%s5209 + $0x8] sm:$0xf]
    %v5213 = vld [vmem:[%s5209 + $0xc] sm:$0xf]
    %v5214 = vld [vmem:[%s5209 + $0x10] sm:$0xf]
    %v5215 = vld [vmem:[%s5209 + $0x14] sm:$0xf]
    %v5216 = vld [vmem:[%s5209 + $0x18] sm:$0xf]
    %v5217 = vld [vmem:[%s5209 + $0x1c] sm:$0xf]
    %v5218 = vpack.c.bf16 %v5206, %v5205
    %v5219 = vpack.c.bf16 %v5208, %v5207
    %s5220 = scalar_lea.vmem %s11, 3
    %v5221 = vld [vmem:[%s5220] sm:$0x1]
    %v5223 = vlaneseq
    %v5224 = vshrl.u32 %v5223, 7
    %v5225 = vsub.s32 0, %v5224
    %v5226 = vrot.slane %v5221, %v5225
    %v5236 = vunpack.c.l.b16 %v5210
    %v5237 = vunpack.c.l.b16 %v5211
    %v5238 = vunpack.c.l.b16 %v5212
    %v5239 = vunpack.c.l.b16 %v5213
    %v5240 = vunpack.c.l.b16 %v5214
    %v5241 = vunpack.c.l.b16 %v5215
    %v5242 = vunpack.c.l.b16 %v5216
    %v5243 = vunpack.c.l.b16 %v5217
    %v5244 = vpack.c.b16 %v5237, %v5236
    %v5245 = vpack.c.b16 %v5239, %v5238
    %v5246 = vpack.c.b16 %v5241, %v5240
    %v5247 = vpack.c.b16 %v5243, %v5242
    %v5253 = vsel %vm396, %v5218, 0
    %v5256 = vsel %vm396, %v5219, 0
    %5258 = vmatprep.subr.bf16.mxu0 0
    %5259 = vmatpush1.bf16.msra.mxu0 %v5244
    %5260 = vmatprep.subr.bf16.mxu0 0
    %5261 = vmatpush1.bf16.msra.mxu0 %v5245
    %5262 = vmatprep.subr.bf16.mxu0 0
    %5263 = vmatpush1.bf16.msra.mxu0 %v5246
    %5264 = vmatprep.subr.bf16.mxu0 0
    %5265 = vmatpush1.bf16.msra.mxu0 %v5247
    %5266 = vmatprep.subr.bf16.mxu0 0
    %5267 = vmatpush1.bf16.msra.mxu0 0
    %5268 = vmatprep.subr.bf16.mxu0 0
    %5269 = vmatpush1.bf16.msra.mxu0 0
    %5270 = vmatprep.subr.bf16.mxu0 0
    %5271 = vmatpush1.bf16.msra.mxu0 0
    %5272 = vmatprep.subr.bf16.mxu0 0
    %5273 = vmatpush1.bf16.msra.mxu0 0
    %5274 = vmatprep.subr.bf16.mxu0 0
    %5275 = vmatpush1.bf16.msra.mxu0 0
    %5276 = vmatprep.subr.bf16.mxu0 0
    %5277 = vmatpush1.bf16.msra.mxu0 0
    %5278 = vmatprep.subr.bf16.mxu0 0
    %5279 = vmatpush1.bf16.msra.mxu0 0
    %5280 = vmatprep.subr.bf16.mxu0 0
    %5281 = vmatpush1.bf16.msra.mxu0 0
    %5282 = vmatprep.subr.bf16.mxu0 0
    %5283 = vmatpush1.bf16.msra.mxu0 0
    %5284 = vmatprep.subr.bf16.mxu0 0
    %5285 = vmatpush1.bf16.msra.mxu0 0
    %5286 = vmatprep.subr.bf16.mxu0 0
    %5287 = vmatpush1.bf16.msra.mxu0 0
    %5288 = vmatprep.subr.bf16.mxu0 0
    %5289 = vmatpush1.bf16.msra.mxu0 0
    %5290 = vmatprep.mubr.bf16.mxu0 0
    %5291 = vmatmul.mubr.bf16.gmra.mrb[0].mxu0 %v5253
    %v5292 = vpop.f32.mrb[0].mxu0
    %v5293 = vadd.f32 %v5226, %v5292
    %v5294 = vpop.f32.mrb[0].mxu0
    %v5295 = vpop.f32.mrb[0].mxu0
    %v5296 = vadd.f32 %v5226, %v5295
    %v5297 = vpop.f32.mrb[0].mxu0
    %5298 = vmatprep.mubr.bf16.mxu0 0
    %5299 = vmatmul.mubr.bf16.gmra.mrb[0].mxu0 %v5256
    %v5300 = vpop.f32.mrb[0].mxu0
    %v5301 = vadd.f32 %v5226, %v5300
    %v5302 = vpop.f32.mrb[0].mxu0
    %v5303 = vpop.f32.mrb[0].mxu0
    %v5304 = vadd.f32 %v5226, %v5303
    %v5305 = vpop.f32.mrb[0].mxu0
    %5306 = vdwg.mxu0
    %s5307 = scalar_lea.vmem %s12, 3
    %v5308 = vld [vmem:[%s5307] sm:$0x1]
    %s5309 = scalar_lea.vmem %s13, 3
    %v5310 = vld [vmem:[%s5309] sm:$0x1]
    %v5311 = vsel %vm396, %v5293, 0.0
    %v5312 = vsel %vm396, %v5296, 0.0
    %v5313 = vadd.f32 %v5311, %v5312
    %v5314 = vsel %vm396, %v5301, 0.0
    %v5315 = vadd.f32 %v5313, %v5314
    %v5316 = vsel %vm396, %v5304, 0.0
    %v5317 = vadd.f32 %v5315, %v5316
    %v5318 = vrot.slane %v5317, 4
    %v5319 = vadd.f32 %v5317, %v5318
    %v5320 = vrot.slane %v5319, 2
    %v5321 = vadd.f32 %v5319, %v5320
    %v5322 = vrot.slane %v5321, 1
    %v5323 = vadd.f32 %v5321, %v5322
    %v5324 = vmul.f32 %v5323, %v634
    %v5325 = vmul.f32 %v5293, %v5293
    %v5326 = vmul.f32 %v5296, %v5296
    %v5327 = vmul.f32 %v5301, %v5301
    %v5328 = vmul.f32 %v5304, %v5304
    %v5329 = vsel %vm396, %v5325, 0.0
    %v5330 = vsel %vm396, %v5326, 0.0
    %v5331 = vadd.f32 %v5329, %v5330
    %v5332 = vsel %vm396, %v5327, 0.0
    %v5333 = vadd.f32 %v5331, %v5332
    %v5334 = vsel %vm396, %v5328, 0.0
    %v5335 = vadd.f32 %v5333, %v5334
    %v5336 = vrot.slane %v5335, 4
    %v5337 = vadd.f32 %v5335, %v5336
    %v5338 = vrot.slane %v5337, 2
    %v5339 = vadd.f32 %v5337, %v5338
    %v5340 = vrot.slane %v5339, 1
    %v5341 = vadd.f32 %v5339, %v5340
    %v5342 = vmul.f32 %v5341, %v634
    %v5343 = vmul.f32 %v5324, %v5324
    %v5344 = vsub.f32 %v5342, %v5343
    %v5345 = vsub.f32 %v5293, %v5324
    %v5346 = vsub.f32 %v5296, %v5324
    %v5347 = vsub.f32 %v5301, %v5324
    %v5348 = vsub.f32 %v5304, %v5324
    %v5349 = vadd.f32 %v5344, 1e-05
    %v5350 = vrsqrt.pop %v5349
    %v5351 = vmul.f32 %v5345, %v5350
    %v5352 = vmul.f32 %v5346, %v5350
    %v5353 = vmul.f32 %v5347, %v5350
    %v5354 = vmul.f32 %v5348, %v5350
    %v5356 = vlaneseq
    %v5357 = vshrl.u32 %v5356, 7
    %v5358 = vsub.s32 0, %v5357
    %v5359 = vrot.slane %v5308, %v5358
    %v5361 = vmul.f32 %v5351, %v5359
    %v5362 = vmul.f32 %v5352, %v5359
    %v5363 = vmul.f32 %v5353, %v5359
    %v5364 = vmul.f32 %v5354, %v5359
    %v5366 = vlaneseq
    %v5367 = vshrl.u32 %v5366, 7
    %v5368 = vsub.s32 0, %v5367
    %v5369 = vrot.slane %v5310, %v5368
    %v5371 = vadd.f32 %v5361, %v5369
    %v5372 = vadd.f32 %v5362, %v5369
    %v5373 = vadd.f32 %v5363, %v5369
    %v5374 = vadd.f32 %v5364, %v5369
    %v5375 = vmax.f32 %v5371, 0.0
    %v5376 = vmax.f32 %v5372, 0.0
    %v5377 = vmax.f32 %v5373, 0.0
    %v5378 = vmax.f32 %v5374, 0.0
    %v5380 = vcombine.high %v5375, %v5375
    %v5382 = vunpack.c.l.s4 1966171168
    %v5383 = vunpack.c.0.s8 %v5382
    %v5384 = vlaneseq
    %v5385 = vshrl.u32 %v5384, 7
    %v5386 = vsub.s32 %v5383, %v5385
    %v5387 = vrot.slane %v5375, %v5386
    %v5389 = vunpack.c.l.s4 1966171168
    %v5390 = vunpack.c.0.s8 %v5389
    %v5391 = vlaneseq
    %v5392 = vshrl.u32 %v5391, 7
    %v5393 = vsub.s32 %v5390, %v5392
    %v5394 = vrot.slane %v5380, %v5393
    %v5395 = vcombine.high %v5387, %v5387
    %v5396 = vcombine.high %v5394, %v5394
    %v5398 = vunpack.c.l.s4 1966171168
    %v5399 = vunpack.c.0.s8 %v5398
    %v5400 = vlaneseq
    %v5401 = vshrl.u32 %v5400, 7
    %v5402 = vsub.s32 %v5399, %v5401
    %v5403 = vrot.slane %v5387, %v5402
    %v5405 = vunpack.c.l.s4 1966171168
    %v5406 = vunpack.c.0.s8 %v5405
    %v5407 = vlaneseq
    %v5408 = vshrl.u32 %v5407, 7
    %v5409 = vsub.s32 %v5406, %v5408
    %v5410 = vrot.slane %v5394, %v5409
    %v5412 = vunpack.c.l.s4 1966171168
    %v5413 = vunpack.c.0.s8 %v5412
    %v5414 = vlaneseq
    %v5415 = vshrl.u32 %v5414, 7
    %v5416 = vsub.s32 %v5413, %v5415
    %v5417 = vrot.slane %v5395, %v5416
    %v5419 = vunpack.c.l.s4 1966171168
    %v5420 = vunpack.c.0.s8 %v5419
    %v5421 = vlaneseq
    %v5422 = vshrl.u32 %v5421, 7
    %v5423 = vsub.s32 %v5420, %v5422
    %v5424 = vrot.slane %v5396, %v5423
    %v5425 = vcombine.high %v5403, %v5403
    %v5426 = vcombine.high %v5410, %v5410
    %v5427 = vcombine.high %v5417, %v5417
    %v5428 = vcombine.high %v5424, %v5424
    %v5429 = vlaneseq
    %v5430 = vshrl.u32 %v5429, 7
    %v5431 = vsub.s32 0, %v5430
    %v5432 = vrot.slane %v5403, %v5431
    %v5433 = vlaneseq
    %v5434 = vshrl.u32 %v5433, 7
    %v5435 = vsub.s32 0, %v5434
    %v5436 = vrot.slane %v5417, %v5435
    %v5437 = vlaneseq
    %v5438 = vshrl.u32 %v5437, 7
    %v5439 = vsub.s32 0, %v5438
    %v5440 = vrot.slane %v5425, %v5439
    %v5441 = vlaneseq
    %v5442 = vshrl.u32 %v5441, 7
    %v5443 = vsub.s32 0, %v5442
    %v5444 = vrot.slane %v5427, %v5443
    %v5445 = vlaneseq
    %v5446 = vshrl.u32 %v5445, 7
    %v5447 = vsub.s32 0, %v5446
    %v5448 = vrot.slane %v5410, %v5447
    %v5449 = vlaneseq
    %v5450 = vshrl.u32 %v5449, 7
    %v5451 = vsub.s32 0, %v5450
    %v5452 = vrot.slane %v5424, %v5451
    %v5453 = vlaneseq
    %v5454 = vshrl.u32 %v5453, 7
    %v5455 = vsub.s32 0, %v5454
    %v5456 = vrot.slane %v5426, %v5455
    %v5457 = vlaneseq
    %v5458 = vshrl.u32 %v5457, 7
    %v5459 = vsub.s32 0, %v5458
    %v5460 = vrot.slane %v5428, %v5459
    %v5469 = vmul.f32 %v862, %v5432
    %v5470 = vmul.f32 %v866, %v5432
    %v5471 = vmul.f32 %v873, %v5436
    %v5472 = vmul.f32 %v877, %v5436
    %v5473 = vmul.f32 %v884, %v5440
    %v5474 = vmul.f32 %v888, %v5440
    %v5475 = vmul.f32 %v895, %v5444
    %v5476 = vmul.f32 %v899, %v5444
    %v5477 = vmul.f32 %v906, %v5448
    %v5478 = vmul.f32 %v910, %v5448
    %v5479 = vmul.f32 %v917, %v5452
    %v5480 = vmul.f32 %v921, %v5452
    %v5481 = vmul.f32 %v928, %v5456
    %v5482 = vmul.f32 %v932, %v5456
    %v5483 = vmul.f32 %v939, %v5460
    %v5484 = vmul.f32 %v943, %v5460
    %v5485 = vsel %vm396, %v5469, -inf
    %v5486 = vsel %vm396, %v5471, -inf
    %v5487 = vsel %vm396, %v5473, -inf
    %v5488 = vmax.f32 %v5485, %v5487
    %v5489 = vsel %vm396, %v5475, -inf
    %v5490 = vmax.f32 %v5486, %v5489
    %v5491 = vsel %vm396, %v5477, -inf
    %v5492 = vmax.f32 %v5488, %v5491
    %v5493 = vsel %vm396, %v5479, -inf
    %v5494 = vmax.f32 %v5490, %v5493
    %v5495 = vsel %vm396, %v5481, -inf
    %v5496 = vmax.f32 %v5492, %v5495
    %v5497 = vsel %vm396, %v5483, -inf
    %v5498 = vmax.f32 %v5494, %v5497
    %v5499 = vmax.f32 %v5496, %v5498
    %v5500 = vsel %vm396, %v5470, -inf
    %v5501 = vsel %vm396, %v5472, -inf
    %v5502 = vsel %vm396, %v5474, -inf
    %v5503 = vmax.f32 %v5500, %v5502
    %v5504 = vsel %vm396, %v5476, -inf
    %v5505 = vmax.f32 %v5501, %v5504
    %v5506 = vsel %vm396, %v5478, -inf
    %v5507 = vmax.f32 %v5503, %v5506
    %v5508 = vsel %vm396, %v5480, -inf
    %v5509 = vmax.f32 %v5505, %v5508
    %v5510 = vsel %vm396, %v5482, -inf
    %v5511 = vmax.f32 %v5507, %v5510
    %v5512 = vsel %vm396, %v5484, -inf
    %v5513 = vmax.f32 %v5509, %v5512
    %v5514 = vmax.f32 %v5511, %v5513
    %v5515 = vmax.f32 %v5499, 0.0
    %v5516 = vmax.f32 %v5514, 0.0
    %v5518 = vcombine.high %v5376, %v5376
    %v5520 = vunpack.c.l.s4 1966171168
    %v5521 = vunpack.c.0.s8 %v5520
    %v5522 = vlaneseq
    %v5523 = vshrl.u32 %v5522, 7
    %v5524 = vsub.s32 %v5521, %v5523
    %v5525 = vrot.slane %v5376, %v5524
    %v5527 = vunpack.c.l.s4 1966171168
    %v5528 = vunpack.c.0.s8 %v5527
    %v5529 = vlaneseq
    %v5530 = vshrl.u32 %v5529, 7
    %v5531 = vsub.s32 %v5528, %v5530
    %v5532 = vrot.slane %v5518, %v5531
    %v5533 = vcombine.high %v5525, %v5525
    %v5534 = vcombine.high %v5532, %v5532
    %v5536 = vunpack.c.l.s4 1966171168
    %v5537 = vunpack.c.0.s8 %v5536
    %v5538 = vlaneseq
    %v5539 = vshrl.u32 %v5538, 7
    %v5540 = vsub.s32 %v5537, %v5539
    %v5541 = vrot.slane %v5525, %v5540
    %v5543 = vunpack.c.l.s4 1966171168
    %v5544 = vunpack.c.0.s8 %v5543
    %v5545 = vlaneseq
    %v5546 = vshrl.u32 %v5545, 7
    %v5547 = vsub.s32 %v5544, %v5546
    %v5548 = vrot.slane %v5532, %v5547
    %v5550 = vunpack.c.l.s4 1966171168
    %v5551 = vunpack.c.0.s8 %v5550
    %v5552 = vlaneseq
    %v5553 = vshrl.u32 %v5552, 7
    %v5554 = vsub.s32 %v5551, %v5553
    %v5555 = vrot.slane %v5533, %v5554
    %v5557 = vunpack.c.l.s4 1966171168
    %v5558 = vunpack.c.0.s8 %v5557
    %v5559 = vlaneseq
    %v5560 = vshrl.u32 %v5559, 7
    %v5561 = vsub.s32 %v5558, %v5560
    %v5562 = vrot.slane %v5534, %v5561
    %v5563 = vcombine.high %v5541, %v5541
    %v5564 = vcombine.high %v5548, %v5548
    %v5565 = vcombine.high %v5555, %v5555
    %v5566 = vcombine.high %v5562, %v5562
    %v5567 = vlaneseq
    %v5568 = vshrl.u32 %v5567, 7
    %v5569 = vsub.s32 0, %v5568
    %v5570 = vrot.slane %v5541, %v5569
    %v5571 = vlaneseq
    %v5572 = vshrl.u32 %v5571, 7
    %v5573 = vsub.s32 0, %v5572
    %v5574 = vrot.slane %v5555, %v5573
    %v5575 = vlaneseq
    %v5576 = vshrl.u32 %v5575, 7
    %v5577 = vsub.s32 0, %v5576
    %v5578 = vrot.slane %v5563, %v5577
    %v5579 = vlaneseq
    %v5580 = vshrl.u32 %v5579, 7
    %v5581 = vsub.s32 0, %v5580
    %v5582 = vrot.slane %v5565, %v5581
    %v5583 = vlaneseq
    %v5584 = vshrl.u32 %v5583, 7
    %v5585 = vsub.s32 0, %v5584
    %v5586 = vrot.slane %v5548, %v5585
    %v5587 = vlaneseq
    %v5588 = vshrl.u32 %v5587, 7
    %v5589 = vsub.s32 0, %v5588
    %v5590 = vrot.slane %v5562, %v5589
    %v5591 = vlaneseq
    %v5592 = vshrl.u32 %v5591, 7
    %v5593 = vsub.s32 0, %v5592
    %v5594 = vrot.slane %v5564, %v5593
    %v5595 = vlaneseq
    %v5596 = vshrl.u32 %v5595, 7
    %v5597 = vsub.s32 0, %v5596
    %v5598 = vrot.slane %v5566, %v5597
    %v5607 = vmul.f32 %v1088, %v5570
    %v5608 = vmul.f32 %v1092, %v5570
    %v5609 = vmul.f32 %v1099, %v5574
    %v5610 = vmul.f32 %v1103, %v5574
    %v5611 = vmul.f32 %v1110, %v5578
    %v5612 = vmul.f32 %v1114, %v5578
    %v5613 = vmul.f32 %v1121, %v5582
    %v5614 = vmul.f32 %v1125, %v5582
    %v5615 = vmul.f32 %v1132, %v5586
    %v5616 = vmul.f32 %v1136, %v5586
    %v5617 = vmul.f32 %v1143, %v5590
    %v5618 = vmul.f32 %v1147, %v5590
    %v5619 = vmul.f32 %v1154, %v5594
    %v5620 = vmul.f32 %v1158, %v5594
    %v5621 = vmul.f32 %v1165, %v5598
    %v5622 = vmul.f32 %v1169, %v5598
    %v5623 = vsel %vm396, %v5607, -inf
    %v5624 = vsel %vm396, %v5609, -inf
    %v5625 = vsel %vm396, %v5611, -inf
    %v5626 = vmax.f32 %v5623, %v5625
    %v5627 = vsel %vm396, %v5613, -inf
    %v5628 = vmax.f32 %v5624, %v5627
    %v5629 = vsel %vm396, %v5615, -inf
    %v5630 = vmax.f32 %v5626, %v5629
    %v5631 = vsel %vm396, %v5617, -inf
    %v5632 = vmax.f32 %v5628, %v5631
    %v5633 = vsel %vm396, %v5619, -inf
    %v5634 = vmax.f32 %v5630, %v5633
    %v5635 = vsel %vm396, %v5621, -inf
    %v5636 = vmax.f32 %v5632, %v5635
    %v5637 = vmax.f32 %v5634, %v5636
    %v5638 = vsel %vm396, %v5608, -inf
    %v5639 = vsel %vm396, %v5610, -inf
    %v5640 = vsel %vm396, %v5612, -inf
    %v5641 = vmax.f32 %v5638, %v5640
    %v5642 = vsel %vm396, %v5614, -inf
    %v5643 = vmax.f32 %v5639, %v5642
    %v5644 = vsel %vm396, %v5616, -inf
    %v5645 = vmax.f32 %v5641, %v5644
    %v5646 = vsel %vm396, %v5618, -inf
    %v5647 = vmax.f32 %v5643, %v5646
    %v5648 = vsel %vm396, %v5620, -inf
    %v5649 = vmax.f32 %v5645, %v5648
    %v5650 = vsel %vm396, %v5622, -inf
    %v5651 = vmax.f32 %v5647, %v5650
    %v5652 = vmax.f32 %v5649, %v5651
    %v5653 = vmax.f32 %v5515, %v5637
    %v5654 = vmax.f32 %v5516, %v5652
    %v5656 = vcombine.high %v5377, %v5377
    %v5658 = vunpack.c.l.s4 1966171168
    %v5659 = vunpack.c.0.s8 %v5658
    %v5660 = vlaneseq
    %v5661 = vshrl.u32 %v5660, 7
    %v5662 = vsub.s32 %v5659, %v5661
    %v5663 = vrot.slane %v5377, %v5662
    %v5665 = vunpack.c.l.s4 1966171168
    %v5666 = vunpack.c.0.s8 %v5665
    %v5667 = vlaneseq
    %v5668 = vshrl.u32 %v5667, 7
    %v5669 = vsub.s32 %v5666, %v5668
    %v5670 = vrot.slane %v5656, %v5669
    %v5671 = vcombine.high %v5663, %v5663
    %v5672 = vcombine.high %v5670, %v5670
    %v5674 = vunpack.c.l.s4 1966171168
    %v5675 = vunpack.c.0.s8 %v5674
    %v5676 = vlaneseq
    %v5677 = vshrl.u32 %v5676, 7
    %v5678 = vsub.s32 %v5675, %v5677
    %v5679 = vrot.slane %v5663, %v5678
    %v5681 = vunpack.c.l.s4 1966171168
    %v5682 = vunpack.c.0.s8 %v5681
    %v5683 = vlaneseq
    %v5684 = vshrl.u32 %v5683, 7
    %v5685 = vsub.s32 %v5682, %v5684
    %v5686 = vrot.slane %v5670, %v5685
    %v5688 = vunpack.c.l.s4 1966171168
    %v5689 = vunpack.c.0.s8 %v5688
    %v5690 = vlaneseq
    %v5691 = vshrl.u32 %v5690, 7
    %v5692 = vsub.s32 %v5689, %v5691
    %v5693 = vrot.slane %v5671, %v5692
    %v5695 = vunpack.c.l.s4 1966171168
    %v5696 = vunpack.c.0.s8 %v5695
    %v5697 = vlaneseq
    %v5698 = vshrl.u32 %v5697, 7
    %v5699 = vsub.s32 %v5696, %v5698
    %v5700 = vrot.slane %v5672, %v5699
    %v5701 = vcombine.high %v5679, %v5679
    %v5702 = vcombine.high %v5686, %v5686
    %v5703 = vcombine.high %v5693, %v5693
    %v5704 = vcombine.high %v5700, %v5700
    %v5705 = vlaneseq
    %v5706 = vshrl.u32 %v5705, 7
    %v5707 = vsub.s32 0, %v5706
    %v5708 = vrot.slane %v5679, %v5707
    %v5709 = vlaneseq
    %v5710 = vshrl.u32 %v5709, 7
    %v5711 = vsub.s32 0, %v5710
    %v5712 = vrot.slane %v5693, %v5711
    %v5713 = vlaneseq
    %v5714 = vshrl.u32 %v5713, 7
    %v5715 = vsub.s32 0, %v5714
    %v5716 = vrot.slane %v5701, %v5715
    %v5717 = vlaneseq
    %v5718 = vshrl.u32 %v5717, 7
    %v5719 = vsub.s32 0, %v5718
    %v5720 = vrot.slane %v5703, %v5719
    %v5721 = vlaneseq
    %v5722 = vshrl.u32 %v5721, 7
    %v5723 = vsub.s32 0, %v5722
    %v5724 = vrot.slane %v5686, %v5723
    %v5725 = vlaneseq
    %v5726 = vshrl.u32 %v5725, 7
    %v5727 = vsub.s32 0, %v5726
    %v5728 = vrot.slane %v5700, %v5727
    %v5729 = vlaneseq
    %v5730 = vshrl.u32 %v5729, 7
    %v5731 = vsub.s32 0, %v5730
    %v5732 = vrot.slane %v5702, %v5731
    %v5733 = vlaneseq
    %v5734 = vshrl.u32 %v5733, 7
    %v5735 = vsub.s32 0, %v5734
    %v5736 = vrot.slane %v5704, %v5735
    %v5745 = vmul.f32 %v1314, %v5708
    %v5746 = vmul.f32 %v1318, %v5708
    %v5747 = vmul.f32 %v1325, %v5712
    %v5748 = vmul.f32 %v1329, %v5712
    %v5749 = vmul.f32 %v1336, %v5716
    %v5750 = vmul.f32 %v1340, %v5716
    %v5751 = vmul.f32 %v1347, %v5720
    %v5752 = vmul.f32 %v1351, %v5720
    %v5753 = vmul.f32 %v1358, %v5724
    %v5754 = vmul.f32 %v1362, %v5724
    %v5755 = vmul.f32 %v1369, %v5728
    %v5756 = vmul.f32 %v1373, %v5728
    %v5757 = vmul.f32 %v1380, %v5732
    %v5758 = vmul.f32 %v1384, %v5732
    %v5759 = vmul.f32 %v1391, %v5736
    %v5760 = vmul.f32 %v1395, %v5736
    %v5761 = vsel %vm396, %v5745, -inf
    %v5762 = vsel %vm396, %v5747, -inf
    %v5763 = vsel %vm396, %v5749, -inf
    %v5764 = vmax.f32 %v5761, %v5763
    %v5765 = vsel %vm396, %v5751, -inf
    %v5766 = vmax.f32 %v5762, %v5765
    %v5767 = vsel %vm396, %v5753, -inf
    %v5768 = vmax.f32 %v5764, %v5767
    %v5769 = vsel %vm396, %v5755, -inf
    %v5770 = vmax.f32 %v5766, %v5769
    %v5771 = vsel %vm396, %v5757, -inf
    %v5772 = vmax.f32 %v5768, %v5771
    %v5773 = vsel %vm396, %v5759, -inf
    %v5774 = vmax.f32 %v5770, %v5773
    %v5775 = vmax.f32 %v5772, %v5774
    %v5776 = vsel %vm396, %v5746, -inf
    %v5777 = vsel %vm396, %v5748, -inf
    %v5778 = vsel %vm396, %v5750, -inf
    %v5779 = vmax.f32 %v5776, %v5778
    %v5780 = vsel %vm396, %v5752, -inf
    %v5781 = vmax.f32 %v5777, %v5780
    %v5782 = vsel %vm396, %v5754, -inf
    %v5783 = vmax.f32 %v5779, %v5782
    %v5784 = vsel %vm396, %v5756, -inf
    %v5785 = vmax.f32 %v5781, %v5784
    %v5786 = vsel %vm396, %v5758, -inf
    %v5787 = vmax.f32 %v5783, %v5786
    %v5788 = vsel %vm396, %v5760, -inf
    %v5789 = vmax.f32 %v5785, %v5788
    %v5790 = vmax.f32 %v5787, %v5789
    %v5791 = vmax.f32 %v5653, %v5775
    %v5792 = vmax.f32 %v5654, %v5790
    %v5794 = vcombine.high %v5378, %v5378
    %v5796 = vunpack.c.l.s4 1966171168
    %v5797 = vunpack.c.0.s8 %v5796
    %v5798 = vlaneseq
    %v5799 = vshrl.u32 %v5798, 7
    %v5800 = vsub.s32 %v5797, %v5799
    %v5801 = vrot.slane %v5378, %v5800
    %v5803 = vunpack.c.l.s4 1966171168
    %v5804 = vunpack.c.0.s8 %v5803
    %v5805 = vlaneseq
    %v5806 = vshrl.u32 %v5805, 7
    %v5807 = vsub.s32 %v5804, %v5806
    %v5808 = vrot.slane %v5794, %v5807
    %v5809 = vcombine.high %v5801, %v5801
    %v5810 = vcombine.high %v5808, %v5808
    %v5812 = vunpack.c.l.s4 1966171168
    %v5813 = vunpack.c.0.s8 %v5812
    %v5814 = vlaneseq
    %v5815 = vshrl.u32 %v5814, 7
    %v5816 = vsub.s32 %v5813, %v5815
    %v5817 = vrot.slane %v5801, %v5816
    %v5819 = vunpack.c.l.s4 1966171168
    %v5820 = vunpack.c.0.s8 %v5819
    %v5821 = vlaneseq
    %v5822 = vshrl.u32 %v5821, 7
    %v5823 = vsub.s32 %v5820, %v5822
    %v5824 = vrot.slane %v5808, %v5823
    %v5826 = vunpack.c.l.s4 1966171168
    %v5827 = vunpack.c.0.s8 %v5826
    %v5828 = vlaneseq
    %v5829 = vshrl.u32 %v5828, 7
    %v5830 = vsub.s32 %v5827, %v5829
    %v5831 = vrot.slane %v5809, %v5830
    %v5833 = vunpack.c.l.s4 1966171168
    %v5834 = vunpack.c.0.s8 %v5833
    %v5835 = vlaneseq
    %v5836 = vshrl.u32 %v5835, 7
    %v5837 = vsub.s32 %v5834, %v5836
    %v5838 = vrot.slane %v5810, %v5837
    %v5839 = vcombine.high %v5817, %v5817
    %v5840 = vcombine.high %v5824, %v5824
    %v5841 = vcombine.high %v5831, %v5831
    %v5842 = vcombine.high %v5838, %v5838
    %v5843 = vlaneseq
    %v5844 = vshrl.u32 %v5843, 7
    %v5845 = vsub.s32 0, %v5844
    %v5846 = vrot.slane %v5817, %v5845
    %v5847 = vlaneseq
    %v5848 = vshrl.u32 %v5847, 7
    %v5849 = vsub.s32 0, %v5848
    %v5850 = vrot.slane %v5831, %v5849
    %v5851 = vlaneseq
    %v5852 = vshrl.u32 %v5851, 7
    %v5853 = vsub.s32 0, %v5852
    %v5854 = vrot.slane %v5839, %v5853
    %v5855 = vlaneseq
    %v5856 = vshrl.u32 %v5855, 7
    %v5857 = vsub.s32 0, %v5856
    %v5858 = vrot.slane %v5841, %v5857
    %v5859 = vlaneseq
    %v5860 = vshrl.u32 %v5859, 7
    %v5861 = vsub.s32 0, %v5860
    %v5862 = vrot.slane %v5824, %v5861
    %v5863 = vlaneseq
    %v5864 = vshrl.u32 %v5863, 7
    %v5865 = vsub.s32 0, %v5864
    %v5866 = vrot.slane %v5838, %v5865
    %v5867 = vlaneseq
    %v5868 = vshrl.u32 %v5867, 7
    %v5869 = vsub.s32 0, %v5868
    %v5870 = vrot.slane %v5840, %v5869
    %v5871 = vlaneseq
    %v5872 = vshrl.u32 %v5871, 7
    %v5873 = vsub.s32 0, %v5872
    %v5874 = vrot.slane %v5842, %v5873
    %v5883 = vmul.f32 %v1540, %v5846
    %v5884 = vmul.f32 %v1544, %v5846
    %v5885 = vmul.f32 %v1551, %v5850
    %v5886 = vmul.f32 %v1555, %v5850
    %v5887 = vmul.f32 %v1562, %v5854
    %v5888 = vmul.f32 %v1566, %v5854
    %v5889 = vmul.f32 %v1573, %v5858
    %v5890 = vmul.f32 %v1577, %v5858
    %v5891 = vmul.f32 %v1584, %v5862
    %v5892 = vmul.f32 %v1588, %v5862
    %v5893 = vmul.f32 %v1595, %v5866
    %v5894 = vmul.f32 %v1599, %v5866
    %v5895 = vmul.f32 %v1606, %v5870
    %v5896 = vmul.f32 %v1610, %v5870
    %v5897 = vmul.f32 %v1617, %v5874
    %v5898 = vmul.f32 %v1621, %v5874
    %v5899 = vsel %vm396, %v5883, -inf
    %v5900 = vsel %vm396, %v5885, -inf
    %v5901 = vsel %vm396, %v5887, -inf
    %v5902 = vmax.f32 %v5899, %v5901
    %v5903 = vsel %vm396, %v5889, -inf
    %v5904 = vmax.f32 %v5900, %v5903
    %v5905 = vsel %vm396, %v5891, -inf
    %v5906 = vmax.f32 %v5902, %v5905
    %v5907 = vsel %vm396, %v5893, -inf
    %v5908 = vmax.f32 %v5904, %v5907
    %v5909 = vsel %vm396, %v5895, -inf
    %v5910 = vmax.f32 %v5906, %v5909
    %v5911 = vsel %vm396, %v5897, -inf
    %v5912 = vmax.f32 %v5908, %v5911
    %v5913 = vmax.f32 %v5910, %v5912
    %v5914 = vsel %vm396, %v5884, -inf
    %v5915 = vsel %vm396, %v5886, -inf
    %v5916 = vsel %vm396, %v5888, -inf
    %v5917 = vmax.f32 %v5914, %v5916
    %v5918 = vsel %vm396, %v5890, -inf
    %v5919 = vmax.f32 %v5915, %v5918
    %v5920 = vsel %vm396, %v5892, -inf
    %v5921 = vmax.f32 %v5917, %v5920
    %v5922 = vsel %vm396, %v5894, -inf
    %v5923 = vmax.f32 %v5919, %v5922
    %v5924 = vsel %vm396, %v5896, -inf
    %v5925 = vmax.f32 %v5921, %v5924
    %v5926 = vsel %vm396, %v5898, -inf
    %v5927 = vmax.f32 %v5923, %v5926
    %v5928 = vmax.f32 %v5925, %v5927
    %v5929 = vmax.f32 %v5791, %v5913
    %v5930 = vmax.f32 %v5792, %v5928
    %s5931 = scalar_lea.vmem [#allocation9], 96
    %v5932 = vld [vmem:[%s5931] sm:$0xf]
    %v5933 = vld [vmem:[%s5931 + $0x4] sm:$0xf]
    %v5934 = vld [vmem:[%s5931 + $0x8] sm:$0xf]
    %v5935 = vld [vmem:[%s5931 + $0xc] sm:$0xf]
    %v5936 = vld [vmem:[%s5931 + $0x10] sm:$0xf]
    %v5937 = vld [vmem:[%s5931 + $0x14] sm:$0xf]
    %v5938 = vld [vmem:[%s5931 + $0x18] sm:$0xf]
    %v5939 = vld [vmem:[%s5931 + $0x1c] sm:$0xf]
    %s5940 = scalar_lea.vmem [#allocation11], 96
    %v5941 = vld [vmem:[%s5940] sm:$0xf]
    %v5942 = vld [vmem:[%s5940 + $0x4] sm:$0xf]
    %v5943 = vld [vmem:[%s5940 + $0x8] sm:$0xf]
    %v5944 = vld [vmem:[%s5940 + $0xc] sm:$0xf]
    %v5945 = vld [vmem:[%s5940 + $0x10] sm:$0xf]
    %v5946 = vld [vmem:[%s5940 + $0x14] sm:$0xf]
    %v5947 = vld [vmem:[%s5940 + $0x18] sm:$0xf]
    %v5948 = vld [vmem:[%s5940 + $0x1c] sm:$0xf]
    %v5949 = vpack.c.bf16 %v5930, %v5929
    %v5958 = vunpack.c.l.b16 %v5941
    %v5959 = vunpack.c.l.b16 %v5942
    %v5960 = vunpack.c.l.b16 %v5943
    %v5961 = vunpack.c.l.b16 %v5944
    %v5962 = vunpack.c.l.b16 %v5945
    %v5963 = vunpack.c.l.b16 %v5946
    %v5964 = vunpack.c.l.b16 %v5947
    %v5965 = vunpack.c.l.b16 %v5948
    %v5966 = vpack.c.b16 %v5959, %v5958
    %v5967 = vpack.c.b16 %v5961, %v5960
    %v5968 = vpack.c.b16 %v5963, %v5962
    %v5969 = vpack.c.b16 %v5965, %v5964
    %v5975 = vsel %vm396, %v5949, 0
    %5977 = vmatprep.subr.bf16.mxu0 0
    %5978 = vmatpush1.bf16.msra.mxu0 %v5966
    %5979 = vmatprep.subr.bf16.mxu0 0
    %5980 = vmatpush1.bf16.msra.mxu0 %v5967
    %5981 = vmatprep.subr.bf16.mxu0 0
    %5982 = vmatpush1.bf16.msra.mxu0 %v5968
    %5983 = vmatprep.subr.bf16.mxu0 0
    %5984 = vmatpush1.bf16.msra.mxu0 %v5969
    %5985 = vmatprep.subr.bf16.mxu0 0
    %5986 = vmatpush1.bf16.msra.mxu0 0
    %5987 = vmatprep.subr.bf16.mxu0 0
    %5988 = vmatpush1.bf16.msra.mxu0 0
    %5989 = vmatprep.subr.bf16.mxu0 0
    %5990 = vmatpush1.bf16.msra.mxu0 0
    %5991 = vmatprep.subr.bf16.mxu0 0
    %5992 = vmatpush1.bf16.msra.mxu0 0
    %5993 = vmatprep.subr.bf16.mxu0 0
    %5994 = vmatpush1.bf16.msra.mxu0 0
    %5995 = vmatprep.subr.bf16.mxu0 0
    %5996 = vmatpush1.bf16.msra.mxu0 0
    %5997 = vmatprep.subr.bf16.mxu0 0
    %5998 = vmatpush1.bf16.msra.mxu0 0
    %5999 = vmatprep.subr.bf16.mxu0 0
    %6000 = vmatpush1.bf16.msra.mxu0 0
    %6001 = vmatprep.subr.bf16.mxu0 0
    %6002 = vmatpush1.bf16.msra.mxu0 0
    %6003 = vmatprep.subr.bf16.mxu0 0
    %6004 = vmatpush1.bf16.msra.mxu0 0
    %6005 = vmatprep.subr.bf16.mxu0 0
    %6006 = vmatpush1.bf16.msra.mxu0 0
    %6007 = vmatprep.subr.bf16.mxu0 0
    %6008 = vmatpush1.bf16.msra.mxu0 0
    %6009 = vmatprep.mubr.bf16.mxu0 0
    %6010 = vmatmul.mubr.bf16.gmra.mrb[0].mxu0 %v5975
    %v6011 = vpop.f32.mrb[0].mxu0
    %v6012 = vadd.f32 0.0, %v6011
    %v6013 = vpop.f32.mrb[0].mxu0
    %v6014 = vpop.f32.mrb[0].mxu0
    %v6015 = vadd.f32 0.0, %v6014
    %v6016 = vpop.f32.mrb[0].mxu0
    %6017 = vdwg.mxu0
    %v6026 = vunpack.c.l.b16 %v5932
    %v6027 = vunpack.c.l.b16 %v5933
    %v6028 = vunpack.c.l.b16 %v5934
    %v6029 = vunpack.c.l.b16 %v5935
    %v6030 = vunpack.c.l.b16 %v5936
    %v6031 = vunpack.c.l.b16 %v5937
    %v6032 = vunpack.c.l.b16 %v5938
    %v6033 = vunpack.c.l.b16 %v5939
    %v6034 = vpack.c.b16 %v6027, %v6026
    %v6035 = vpack.c.b16 %v6029, %v6028
    %v6036 = vpack.c.b16 %v6031, %v6030
    %v6037 = vpack.c.b16 %v6033, %v6032
    %6042 = vmatprep.subr.bf16.mxu0 0
    %6043 = vmatpush1.bf16.msra.mxu0 %v6034
    %6044 = vmatprep.subr.bf16.mxu0 0
    %6045 = vmatpush1.bf16.msra.mxu0 %v6035
    %6046 = vmatprep.subr.bf16.mxu0 0
    %6047 = vmatpush1.bf16.msra.mxu0 %v6036
    %6048 = vmatprep.subr.bf16.mxu0 0
    %6049 = vmatpush1.bf16.msra.mxu0 %v6037
    %6050 = vmatprep.subr.bf16.mxu0 0
    %6051 = vmatpush1.bf16.msra.mxu0 0
    %6052 = vmatprep.subr.bf16.mxu0 0
    %6053 = vmatpush1.bf16.msra.mxu0 0
    %6054 = vmatprep.subr.bf16.mxu0 0
    %6055 = vmatpush1.bf16.msra.mxu0 0
    %6056 = vmatprep.subr.bf16.mxu0 0
    %6057 = vmatpush1.bf16.msra.mxu0 0
    %6058 = vmatprep.subr.bf16.mxu0 0
    %6059 = vmatpush1.bf16.msra.mxu0 0
    %6060 = vmatprep.subr.bf16.mxu0 0
    %6061 = vmatpush1.bf16.msra.mxu0 0
    %6062 = vmatprep.subr.bf16.mxu0 0
    %6063 = vmatpush1.bf16.msra.mxu0 0
    %6064 = vmatprep.subr.bf16.mxu0 0
    %6065 = vmatpush1.bf16.msra.mxu0 0
    %6066 = vmatprep.subr.bf16.mxu0 0
    %6067 = vmatpush1.bf16.msra.mxu0 0
    %6068 = vmatprep.subr.bf16.mxu0 0
    %6069 = vmatpush1.bf16.msra.mxu0 0
    %6070 = vmatprep.subr.bf16.mxu0 0
    %6071 = vmatpush1.bf16.msra.mxu0 0
    %6072 = vmatprep.subr.bf16.mxu0 0
    %6073 = vmatpush1.bf16.msra.mxu0 0
    %6074 = vmatprep.mubr.bf16.mxu0 0
    %6075 = vmatmul.mubr.bf16.gmra.mrb[0].mxu0 %v4927
    %v6076 = vpop.f32.mrb[0].mxu0
    %v6077 = vadd.f32 %v6012, %v6076
    %v6078 = vpop.f32.mrb[0].mxu0
    %v6079 = vpop.f32.mrb[0].mxu0
    %v6080 = vadd.f32 %v6015, %v6079
    %v6081 = vpop.f32.mrb[0].mxu0
    %6082 = vdwg.mxu0
    %s6083 = scalar_lea.vmem %s16, 3
    %v6084 = vld [vmem:[%s6083] sm:$0x1]
    %v6086 = vlaneseq
    %v6087 = vshrl.u32 %v6086, 7
    %v6088 = vsub.s32 0, %v6087
    %v6089 = vrot.slane %v6084, %v6088
    %v6091 = vadd.f32 %v6077, %v6089
    %v6092 = vadd.f32 %v6080, %v6089
    %s6093 = scalar_lea.vmem %s17, 3
    %v6094 = vld [vmem:[%s6093] sm:$0x1]
    %s6095 = scalar_lea.vmem %s18, 3
    %v6096 = vld [vmem:[%s6095] sm:$0x1]
    %v6097 = vsel %vm396, %v6091, 0.0
    %v6098 = vsel %vm396, %v6092, 0.0
    %v6099 = vadd.f32 %v6097, %v6098
    %v6100 = vrot.slane %v6099, 4
    %v6101 = vadd.f32 %v6099, %v6100
    %v6102 = vrot.slane %v6101, 2
    %v6103 = vadd.f32 %v6101, %v6102
    %v6104 = vrot.slane %v6103, 1
    %v6105 = vadd.f32 %v6103, %v6104
    %v6106 = vmul.f32 %v6105, %v1930
    %v6107 = vmul.f32 %v6091, %v6091
    %v6108 = vmul.f32 %v6092, %v6092
    %v6109 = vsel %vm396, %v6107, 0.0
    %v6110 = vsel %vm396, %v6108, 0.0
    %v6111 = vadd.f32 %v6109, %v6110
    %v6112 = vrot.slane %v6111, 4
    %v6113 = vadd.f32 %v6111, %v6112
    %v6114 = vrot.slane %v6113, 2
    %v6115 = vadd.f32 %v6113, %v6114
    %v6116 = vrot.slane %v6115, 1
    %v6117 = vadd.f32 %v6115, %v6116
    %v6118 = vmul.f32 %v6117, %v1930
    %v6119 = vmul.f32 %v6106, %v6106
    %v6120 = vsub.f32 %v6118, %v6119
    %v6121 = vsub.f32 %v6091, %v6106
    %v6122 = vsub.f32 %v6092, %v6106
    %v6123 = vadd.f32 %v6120, 1e-05
    %v6124 = vrsqrt.pop %v6123
    %v6125 = vmul.f32 %v6121, %v6124
    %v6126 = vmul.f32 %v6122, %v6124
    %v6128 = vlaneseq
    %v6129 = vshrl.u32 %v6128, 7
    %v6130 = vsub.s32 0, %v6129
    %v6131 = vrot.slane %v6094, %v6130
    %v6133 = vmul.f32 %v6125, %v6131
    %v6134 = vmul.f32 %v6126, %v6131
    %v6136 = vlaneseq
    %v6137 = vshrl.u32 %v6136, 7
    %v6138 = vsub.s32 0, %v6137
    %v6139 = vrot.slane %v6096, %v6138
    %v6141 = vadd.f32 %v6133, %v6139
    %v6142 = vadd.f32 %v6134, %v6139
    %v6143 = vmax.f32 %v6141, 0.0
    %v6144 = vmax.f32 %v6142, 0.0
    %s6145 = scalar_lea.vmem [#allocation12], 96
    %v6146 = vld [vmem:[%s6145] sm:$0xf]
    %v6147 = vld [vmem:[%s6145 + $0x4] sm:$0xf]
    %v6148 = vld [vmem:[%s6145 + $0x8] sm:$0xf]
    %v6149 = vld [vmem:[%s6145 + $0xc] sm:$0xf]
    %v6150 = vld [vmem:[%s6145 + $0x10] sm:$0xf]
    %v6151 = vld [vmem:[%s6145 + $0x14] sm:$0xf]
    %v6152 = vld [vmem:[%s6145 + $0x18] sm:$0xf]
    %v6153 = vld [vmem:[%s6145 + $0x1c] sm:$0xf]
    %v6154 = vpack.c.bf16 %v6144, %v6143
    %s6155 = scalar_lea.vmem %s20, 3
    %v6156 = vld [vmem:[%s6155] sm:$0x1]
    %v6158 = vlaneseq
    %v6159 = vshrl.u32 %v6158, 7
    %v6160 = vsub.s32 0, %v6159
    %v6161 = vrot.slane %v6156, %v6160
    %v6171 = vunpack.c.l.b16 %v6146
    %v6172 = vunpack.c.l.b16 %v6147
    %v6173 = vunpack.c.l.b16 %v6148
    %v6174 = vunpack.c.l.b16 %v6149
    %v6175 = vunpack.c.l.b16 %v6150
    %v6176 = vunpack.c.l.b16 %v6151
    %v6177 = vunpack.c.l.b16 %v6152
    %v6178 = vunpack.c.l.b16 %v6153
    %v6179 = vpack.c.b16 %v6172, %v6171
    %v6180 = vpack.c.b16 %v6174, %v6173
    %v6181 = vpack.c.b16 %v6176, %v6175
    %v6182 = vpack.c.b16 %v6178, %v6177
    %v6188 = vsel %vm396, %v6154, 0
    %6190 = vmatprep.subr.bf16.mxu0 0
    %6191 = vmatpush1.bf16.msra.mxu0 %v6179
    %6192 = vmatprep.subr.bf16.mxu0 0
    %6193 = vmatpush1.bf16.msra.mxu0 %v6180
    %6194 = vmatprep.subr.bf16.mxu0 0
    %6195 = vmatpush1.bf16.msra.mxu0 %v6181
    %6196 = vmatprep.subr.bf16.mxu0 0
    %6197 = vmatpush1.bf16.msra.mxu0 %v6182
    %6198 = vmatprep.subr.bf16.mxu0 0
    %6199 = vmatpush1.bf16.msra.mxu0 0
    %6200 = vmatprep.subr.bf16.mxu0 0
    %6201 = vmatpush1.bf16.msra.mxu0 0
    %6202 = vmatprep.subr.bf16.mxu0 0
    %6203 = vmatpush1.bf16.msra.mxu0 0
    %6204 = vmatprep.subr.bf16.mxu0 0
    %6205 = vmatpush1.bf16.msra.mxu0 0
    %6206 = vmatprep.subr.bf16.mxu0 0
    %6207 = vmatpush1.bf16.msra.mxu0 0
    %6208 = vmatprep.subr.bf16.mxu0 0
    %6209 = vmatpush1.bf16.msra.mxu0 0
    %6210 = vmatprep.subr.bf16.mxu0 0
    %6211 = vmatpush1.bf16.msra.mxu0 0
    %6212 = vmatprep.subr.bf16.mxu0 0
    %6213 = vmatpush1.bf16.msra.mxu0 0
    %6214 = vmatprep.subr.bf16.mxu0 0
    %6215 = vmatpush1.bf16.msra.mxu0 0
    %6216 = vmatprep.subr.bf16.mxu0 0
    %6217 = vmatpush1.bf16.msra.mxu0 0
    %6218 = vmatprep.subr.bf16.mxu0 0
    %6219 = vmatpush1.bf16.msra.mxu0 0
    %6220 = vmatprep.subr.bf16.mxu0 0
    %6221 = vmatpush1.bf16.msra.mxu0 0
    %6222 = vmatprep.mubr.bf16.mxu0 0
    %6223 = vmatmul.mubr.bf16.gmra.mrb[0].mxu0 %v6188
    %v6224 = vpop.f32.mrb[0].mxu0
    %v6225 = vadd.f32 %v6161, %v6224
    %v6226 = vpop.f32.mrb[0].mxu0
    %v6227 = vpop.f32.mrb[0].mxu0
    %v6228 = vadd.f32 %v6161, %v6227
    %v6229 = vpop.f32.mrb[0].mxu0
    %6230 = vdwg.mxu0
    %s6231 = scalar_lea.vmem %s21, 3
    %v6232 = vld [vmem:[%s6231] sm:$0x1]
    %s6233 = scalar_lea.vmem %s22, 3
    %v6234 = vld [vmem:[%s6233] sm:$0x1]
    %v6235 = vsel %vm396, %v6225, 0.0
    %v6236 = vsel %vm396, %v6228, 0.0
    %v6237 = vadd.f32 %v6235, %v6236
    %v6238 = vrot.slane %v6237, 4
    %v6239 = vadd.f32 %v6237, %v6238
    %v6240 = vrot.slane %v6239, 2
    %v6241 = vadd.f32 %v6239, %v6240
    %v6242 = vrot.slane %v6241, 1
    %v6243 = vadd.f32 %v6241, %v6242
    %v6244 = vmul.f32 %v6243, %v1930
    %v6245 = vmul.f32 %v6225, %v6225
    %v6246 = vmul.f32 %v6228, %v6228
    %v6247 = vsel %vm396, %v6245, 0.0
    %v6248 = vsel %vm396, %v6246, 0.0
    %v6249 = vadd.f32 %v6247, %v6248
    %v6250 = vrot.slane %v6249, 4
    %v6251 = vadd.f32 %v6249, %v6250
    %v6252 = vrot.slane %v6251, 2
    %v6253 = vadd.f32 %v6251, %v6252
    %v6254 = vrot.slane %v6253, 1
    %v6255 = vadd.f32 %v6253, %v6254
    %v6256 = vmul.f32 %v6255, %v1930
    %v6257 = vmul.f32 %v6244, %v6244
    %v6258 = vsub.f32 %v6256, %v6257
    %v6259 = vsub.f32 %v6225, %v6244
    %v6260 = vsub.f32 %v6228, %v6244
    %v6261 = vadd.f32 %v6258, 1e-05
    %v6262 = vrsqrt.pop %v6261
    %v6263 = vmul.f32 %v6259, %v6262
    %v6264 = vmul.f32 %v6260, %v6262
    %v6266 = vlaneseq
    %v6267 = vshrl.u32 %v6266, 7
    %v6268 = vsub.s32 0, %v6267
    %v6269 = vrot.slane %v6232, %v6268
    %v6271 = vmul.f32 %v6263, %v6269
    %v6272 = vmul.f32 %v6264, %v6269
    %v6274 = vlaneseq
    %v6275 = vshrl.u32 %v6274, 7
    %v6276 = vsub.s32 0, %v6275
    %v6277 = vrot.slane %v6234, %v6276
    %v6279 = vadd.f32 %v6271, %v6277
    %v6280 = vadd.f32 %v6272, %v6277
    %v6281 = vmax.f32 %v6279, 0.0
    %v6282 = vmax.f32 %v6280, 0.0
    %v6283 = vadd.f32 %v4890, %v6281
    %v6284 = vadd.f32 %v4891, %v6282
    %s6285 = scalar_lea.vmem %s5, 128
    %v6286 = vld [vmem:[%s6285] sm:$0xf]
    %v6287 = vld [vmem:[%s6285 + $0x4] sm:$0xf]
    %v6288 = vld [vmem:[%s6285 + $0x8] sm:$0xf]
    %v6289 = vld [vmem:[%s6285 + $0xc] sm:$0xf]
    %v6290 = vld [vmem:[%s6285 + $0x10] sm:$0xf]
    %v6291 = vld [vmem:[%s6285 + $0x14] sm:$0xf]
    %v6292 = vld [vmem:[%s6285 + $0x18] sm:$0xf]
    %v6293 = vld [vmem:[%s6285 + $0x1c] sm:$0xf]
    %v6294 = vpack.c.bf16 %v6284, %v6283
    %v6303 = vunpack.c.l.b16 %v6286
    %v6304 = vunpack.c.l.b16 %v6287
    %v6305 = vunpack.c.l.b16 %v6288
    %v6306 = vunpack.c.l.b16 %v6289
    %v6307 = vunpack.c.l.b16 %v6290
    %v6308 = vunpack.c.l.b16 %v6291
    %v6309 = vunpack.c.l.b16 %v6292
    %v6310 = vunpack.c.l.b16 %v6293
    %v6311 = vpack.c.b16 %v6304, %v6303
    %v6312 = vpack.c.b16 %v6306, %v6305
    %v6313 = vpack.c.b16 %v6308, %v6307
    %v6314 = vpack.c.b16 %v6310, %v6309
    %v6320 = vsel %vm396, %v6294, 0
    %6322 = vmatprep.subr.bf16.mxu0 0
    %6323 = vmatpush1.bf16.msra.mxu0 %v6311
    %6324 = vmatprep.subr.bf16.mxu0 0
    %6325 = vmatpush1.bf16.msra.mxu0 %v6312
    %6326 = vmatprep.subr.bf16.mxu0 0
    %6327 = vmatpush1.bf16.msra.mxu0 %v6313
    %6328 = vmatprep.subr.bf16.mxu0 0
    %6329 = vmatpush1.bf16.msra.mxu0 %v6314
    %6330 = vmatprep.subr.bf16.mxu0 0
    %6331 = vmatpush1.bf16.msra.mxu0 0
    %6332 = vmatprep.subr.bf16.mxu0 0
    %6333 = vmatpush1.bf16.msra.mxu0 0
    %6334 = vmatprep.subr.bf16.mxu0 0
    %6335 = vmatpush1.bf16.msra.mxu0 0
    %6336 = vmatprep.subr.bf16.mxu0 0
    %6337 = vmatpush1.bf16.msra.mxu0 0
    %6338 = vmatprep.subr.bf16.mxu0 0
    %6339 = vmatpush1.bf16.msra.mxu0 0
    %6340 = vmatprep.subr.bf16.mxu0 0
    %6341 = vmatpush1.bf16.msra.mxu0 0
    %6342 = vmatprep.subr.bf16.mxu0 0
    %6343 = vmatpush1.bf16.msra.mxu0 0
    %6344 = vmatprep.subr.bf16.mxu0 0
    %6345 = vmatpush1.bf16.msra.mxu0 0
    %6346 = vmatprep.subr.bf16.mxu0 0
    %6347 = vmatpush1.bf16.msra.mxu0 0
    %6348 = vmatprep.subr.bf16.mxu0 0
    %6349 = vmatpush1.bf16.msra.mxu0 0
    %6350 = vmatprep.subr.bf16.mxu0 0
    %6351 = vmatpush1.bf16.msra.mxu0 0
    %6352 = vmatprep.subr.bf16.mxu0 0
    %6353 = vmatpush1.bf16.msra.mxu0 0
    %6354 = vmatprep.mubr.bf16.mxu0 0
    %6355 = vmatmul.mubr.bf16.gmra.mrb[0].mxu0 %v6320
    %v6356 = vpop.f32.mrb[0].mxu0
    %v6357 = vadd.f32 0.0, %v6356
    %v6358 = vpop.f32.mrb[0].mxu0
    %v6359 = vpop.f32.mrb[0].mxu0
    %v6360 = vadd.f32 0.0, %v6359
    %v6361 = vpop.f32.mrb[0].mxu0
    %6362 = vdwg.mxu0
    %s6363 = scalar_lea.vmem [#allocation6], 128
    %v6364 = vld [vmem:[%s6363] sm:$0xf]
    %v6365 = vld [vmem:[%s6363 + $0x4] sm:$0xf]
    %v6366 = vld [vmem:[%s6363 + $0x8] sm:$0xf]
    %v6367 = vld [vmem:[%s6363 + $0xc] sm:$0xf]
    %v6368 = vld [vmem:[%s6363 + $0x10] sm:$0xf]
    %v6369 = vld [vmem:[%s6363 + $0x14] sm:$0xf]
    %v6370 = vld [vmem:[%s6363 + $0x18] sm:$0xf]
    %v6371 = vld [vmem:[%s6363 + $0x1c] sm:$0xf]
    %v6380 = vunpack.c.l.b16 %v6364
    %v6381 = vunpack.c.l.b16 %v6365
    %v6382 = vunpack.c.l.b16 %v6366
    %v6383 = vunpack.c.l.b16 %v6367
    %v6384 = vunpack.c.l.b16 %v6368
    %v6385 = vunpack.c.l.b16 %v6369
    %v6386 = vunpack.c.l.b16 %v6370
    %v6387 = vunpack.c.l.b16 %v6371
    %v6388 = vpack.c.b16 %v6381, %v6380
    %v6389 = vpack.c.b16 %v6383, %v6382
    %v6390 = vpack.c.b16 %v6385, %v6384
    %v6391 = vpack.c.b16 %v6387, %v6386
    %6396 = vmatprep.subr.bf16.mxu0 0
    %6397 = vmatpush1.bf16.msra.mxu0 %v6388
    %6398 = vmatprep.subr.bf16.mxu0 0
    %6399 = vmatpush1.bf16.msra.mxu0 %v6389
    %6400 = vmatprep.subr.bf16.mxu0 0
    %6401 = vmatpush1.bf16.msra.mxu0 %v6390
    %6402 = vmatprep.subr.bf16.mxu0 0
    %6403 = vmatpush1.bf16.msra.mxu0 %v6391
    %6404 = vmatprep.subr.bf16.mxu0 0
    %6405 = vmatpush1.bf16.msra.mxu0 0
    %6406 = vmatprep.subr.bf16.mxu0 0
    %6407 = vmatpush1.bf16.msra.mxu0 0
    %6408 = vmatprep.subr.bf16.mxu0 0
    %6409 = vmatpush1.bf16.msra.mxu0 0
    %6410 = vmatprep.subr.bf16.mxu0 0
    %6411 = vmatpush1.bf16.msra.mxu0 0
    %6412 = vmatprep.subr.bf16.mxu0 0
    %6413 = vmatpush1.bf16.msra.mxu0 0
    %6414 = vmatprep.subr.bf16.mxu0 0
    %6415 = vmatpush1.bf16.msra.mxu0 0
    %6416 = vmatprep.subr.bf16.mxu0 0
    %6417 = vmatpush1.bf16.msra.mxu0 0
    %6418 = vmatprep.subr.bf16.mxu0 0
    %6419 = vmatpush1.bf16.msra.mxu0 0
    %6420 = vmatprep.subr.bf16.mxu0 0
    %6421 = vmatpush1.bf16.msra.mxu0 0
    %6422 = vmatprep.subr.bf16.mxu0 0
    %6423 = vmatpush1.bf16.msra.mxu0 0
    %6424 = vmatprep.subr.bf16.mxu0 0
    %6425 = vmatpush1.bf16.msra.mxu0 0
    %6426 = vmatprep.subr.bf16.mxu0 0
    %6427 = vmatpush1.bf16.msra.mxu0 0
    %6428 = vmatprep.mubr.bf16.mxu0 0
    %6429 = vmatmul.mubr.bf16.gmra.mrb[0].mxu0 %v6320
    %v6430 = vpop.f32.mrb[0].mxu0
    %v6431 = vadd.f32 0.0, %v6430
    %v6432 = vpop.f32.mrb[0].mxu0
    %v6433 = vpop.f32.mrb[0].mxu0
    %v6434 = vadd.f32 0.0, %v6433
    %v6435 = vpop.f32.mrb[0].mxu0
    %6436 = vdwg.mxu0
    %s6437 = scalar_lea.vmem %s7, 4
    %v6438 = vld [vmem:[%s6437] sm:$0x1]
    %v6440 = vlaneseq
    %v6441 = vshrl.u32 %v6440, 7
    %v6442 = vsub.s32 0, %v6441
    %v6443 = vrot.slane %v6438, %v6442
    %6445 = vmatprep.subr.mxu0 0.0
    %6446 = vmatpush1.msra.mxu0 %v6357
    %6447 = vmatprep.subr.mxu0 0.0
    %6448 = vmatpush1.msra.mxu0 %v6360
    %6449 = vmatprep.subr.mxu0 0.0
    %6450 = vmatpush1.msra.mxu0 %v6431
    %6451 = vmatprep.subr.mxu0 0.0
    %6452 = vmatpush1.msra.mxu0 %v6434
    %6453 = vmatprep.subr.mxu0 0.0
    %6454 = vmatpush1.msra.mxu0 0.0
    %6455 = vmatprep.subr.mxu0 0.0
    %6456 = vmatpush1.msra.mxu0 0.0
    %6457 = vmatprep.subr.mxu0 0.0
    %6458 = vmatpush1.msra.mxu0 0.0
    %6459 = vmatprep.subr.mxu0 0.0
    %6460 = vmatpush1.msra.mxu0 0.0
    %6461 = vmatprep.subr.mxu0 0.0
    %6462 = vmatpush1.msra.mxu0 0.0
    %6463 = vmatprep.subr.mxu0 0.0
    %6464 = vmatpush1.msra.mxu0 0.0
    %6465 = vmatprep.subr.mxu0 0.0
    %6466 = vmatpush1.msra.mxu0 0.0
    %6467 = vmatprep.subr.mxu0 0.0
    %6468 = vmatpush1.msra.mxu0 0.0
    %6469 = vmatprep.subr.mxu0 0.0
    %6470 = vmatpush1.msra.mxu0 0.0
    %6471 = vmatprep.subr.mxu0 0.0
    %6472 = vmatpush1.msra.mxu0 0.0
    %6473 = vmatprep.subr.mxu0 0.0
    %6474 = vmatpush1.msra.mxu0 0.0
    %6475 = vmatprep.subr.mxu0 0.0
    %6476 = vmatpush1.msra.mxu0 0.0
    %6477 = vmatprep.subr.mxu0 0.0
    %6478 = vmatpush1.msra.mxu0 0.0
    %6479 = vmatprep.subr.mxu0 0.0
    %6480 = vmatpush1.msra.mxu0 0.0
    %6481 = vmatprep.subr.mxu0 0.0
    %6482 = vmatpush1.msra.mxu0 0.0
    %6483 = vmatprep.subr.mxu0 0.0
    %6484 = vmatpush1.msra.mxu0 0.0
    %6485 = vmatprep.subr.mxu0 0.0
    %6486 = vmatpush1.msra.mxu0 0.0
    %6487 = vmatprep.subr.mxu0 0.0
    %6488 = vmatpush1.msra.mxu0 0.0
    %6489 = vmatprep.subr.mxu0 0.0
    %6490 = vmatpush1.msra.mxu0 0.0
    %6491 = vmatprep.subr.mxu0 0.0
    %6492 = vmatpush1.msra.mxu0 0.0
    %6493 = vmatprep.subr.mxu0 0.0
    %6494 = vmatpush1.msra.mxu0 0.0
    %6495 = vmatprep.subr.mxu0 0.0
    %6496 = vmatpush1.msra.mxu0 0.0
    %6497 = vmatprep.subr.mxu0 0.0
    %6498 = vmatpush1.msra.mxu0 0.0
    %6499 = vmatprep.subr.mxu0 0.0
    %6500 = vmatpush1.msra.mxu0 0.0
    %6501 = vmatprep.subr.mxu0 0.0
    %6502 = vmatpush1.msra.mxu0 0.0
    %6503 = vmatprep.subr.mxu0 0.0
    %6504 = vmatpush1.msra.mxu0 0.0
    %6505 = vmatprep.subr.mxu0 0.0
    %6506 = vmatpush1.msra.mxu0 0.0
    %6507 = vmatprep.subr.mxu0 0.0
    %6508 = vmatpush1.msra.mxu0 0.0
    %6509 = vmatprep.mubr.f32.mxu0 0.0
    %6510 = vmatmul.mubr.f32.gmra.mrb[0].mxu0 %v523
    %v6511 = vpop.f32.mrb[0].mxu0
    %v6512 = vadd.f32 %v6443, %v6511
    %v6513 = vpop.f32.mrb[0].mxu0
    %6514 = vmatprep.mubr.f32.mxu0 0.0
    %6515 = vmatmul.mubr.f32.gmra.mrb[0].mxu0 %v526
    %v6516 = vpop.f32.mrb[0].mxu0
    %v6517 = vadd.f32 %v6443, %v6516
    %v6518 = vpop.f32.mrb[0].mxu0
    %6519 = vmatprep.mubr.f32.mxu0 0.0
    %6520 = vmatmul.mubr.f32.gmra.mrb[0].mxu0 %v529
    %v6521 = vpop.f32.mrb[0].mxu0
    %v6522 = vadd.f32 %v6443, %v6521
    %v6523 = vpop.f32.mrb[0].mxu0
    %6524 = vmatprep.mubr.f32.mxu0 0.0
    %6525 = vmatmul.mubr.f32.gmra.mrb[0].mxu0 %v532
    %v6526 = vpop.f32.mrb[0].mxu0
    %v6527 = vadd.f32 %v6443, %v6526
    %v6528 = vpop.f32.mrb[0].mxu0
    %6529 = vdwg.mxu0
    %s6530 = scalar_lea.vmem %s8, 4
    %v6531 = vld [vmem:[%s6530] sm:$0x1]
    %s6532 = scalar_lea.vmem %s9, 4
    %v6533 = vld [vmem:[%s6532] sm:$0x1]
    %v6534 = vsel %vm396, %v6512, 0.0
    %v6535 = vsel %vm396, %v6517, 0.0
    %v6536 = vadd.f32 %v6534, %v6535
    %v6537 = vsel %vm396, %v6522, 0.0
    %v6538 = vadd.f32 %v6536, %v6537
    %v6539 = vsel %vm396, %v6527, 0.0
    %v6540 = vadd.f32 %v6538, %v6539
    %v6541 = vrot.slane %v6540, 4
    %v6542 = vadd.f32 %v6540, %v6541
    %v6543 = vrot.slane %v6542, 2
    %v6544 = vadd.f32 %v6542, %v6543
    %v6545 = vrot.slane %v6544, 1
    %v6546 = vadd.f32 %v6544, %v6545
    %v6547 = vmul.f32 %v6546, %v634
    %v6548 = vmul.f32 %v6512, %v6512
    %v6549 = vmul.f32 %v6517, %v6517
    %v6550 = vmul.f32 %v6522, %v6522
    %v6551 = vmul.f32 %v6527, %v6527
    %v6552 = vsel %vm396, %v6548, 0.0
    %v6553 = vsel %vm396, %v6549, 0.0
    %v6554 = vadd.f32 %v6552, %v6553
    %v6555 = vsel %vm396, %v6550, 0.0
    %v6556 = vadd.f32 %v6554, %v6555
    %v6557 = vsel %vm396, %v6551, 0.0
    %v6558 = vadd.f32 %v6556, %v6557
    %v6559 = vrot.slane %v6558, 4
    %v6560 = vadd.f32 %v6558, %v6559
    %v6561 = vrot.slane %v6560, 2
    %v6562 = vadd.f32 %v6560, %v6561
    %v6563 = vrot.slane %v6562, 1
    %v6564 = vadd.f32 %v6562, %v6563
    %v6565 = vmul.f32 %v6564, %v634
    %v6566 = vmul.f32 %v6547, %v6547
    %v6567 = vsub.f32 %v6565, %v6566
    %v6568 = vsub.f32 %v6512, %v6547
    %v6569 = vsub.f32 %v6517, %v6547
    %v6570 = vsub.f32 %v6522, %v6547
    %v6571 = vsub.f32 %v6527, %v6547
    %v6572 = vadd.f32 %v6567, 1e-05
    %v6573 = vrsqrt.pop %v6572
    %v6574 = vmul.f32 %v6568, %v6573
    %v6575 = vmul.f32 %v6569, %v6573
    %v6576 = vmul.f32 %v6570, %v6573
    %v6577 = vmul.f32 %v6571, %v6573
    %v6579 = vlaneseq
    %v6580 = vshrl.u32 %v6579, 7
    %v6581 = vsub.s32 0, %v6580
    %v6582 = vrot.slane %v6531, %v6581
    %v6584 = vmul.f32 %v6574, %v6582
    %v6585 = vmul.f32 %v6575, %v6582
    %v6586 = vmul.f32 %v6576, %v6582
    %v6587 = vmul.f32 %v6577, %v6582
    %v6589 = vlaneseq
    %v6590 = vshrl.u32 %v6589, 7
    %v6591 = vsub.s32 0, %v6590
    %v6592 = vrot.slane %v6533, %v6591
    %v6594 = vadd.f32 %v6584, %v6592
    %v6595 = vadd.f32 %v6585, %v6592
    %v6596 = vadd.f32 %v6586, %v6592
    %v6597 = vadd.f32 %v6587, %v6592
    %v6598 = vmax.f32 %v6594, 0.0
    %v6599 = vmax.f32 %v6595, 0.0
    %v6600 = vmax.f32 %v6596, 0.0
    %v6601 = vmax.f32 %v6597, 0.0
    %s6602 = scalar_lea.vmem [#allocation8], 128
    %v6603 = vld [vmem:[%s6602] sm:$0xf]
    %v6604 = vld [vmem:[%s6602 + $0x4] sm:$0xf]
    %v6605 = vld [vmem:[%s6602 + $0x8] sm:$0xf]
    %v6606 = vld [vmem:[%s6602 + $0xc] sm:$0xf]
    %v6607 = vld [vmem:[%s6602 + $0x10] sm:$0xf]
    %v6608 = vld [vmem:[%s6602 + $0x14] sm:$0xf]
    %v6609 = vld [vmem:[%s6602 + $0x18] sm:$0xf]
    %v6610 = vld [vmem:[%s6602 + $0x1c] sm:$0xf]
    %v6611 = vpack.c.bf16 %v6599, %v6598
    %v6612 = vpack.c.bf16 %v6601, %v6600
    %s6613 = scalar_lea.vmem %s11, 4
    %v6614 = vld [vmem:[%s6613] sm:$0x1]
    %v6616 = vlaneseq
    %v6617 = vshrl.u32 %v6616, 7
    %v6618 = vsub.s32 0, %v6617
    %v6619 = vrot.slane %v6614, %v6618
    %v6629 = vunpack.c.l.b16 %v6603
    %v6630 = vunpack.c.l.b16 %v6604
    %v6631 = vunpack.c.l.b16 %v6605
    %v6632 = vunpack.c.l.b16 %v6606
    %v6633 = vunpack.c.l.b16 %v6607
    %v6634 = vunpack.c.l.b16 %v6608
    %v6635 = vunpack.c.l.b16 %v6609
    %v6636 = vunpack.c.l.b16 %v6610
    %v6637 = vpack.c.b16 %v6630, %v6629
    %v6638 = vpack.c.b16 %v6632, %v6631
    %v6639 = vpack.c.b16 %v6634, %v6633
    %v6640 = vpack.c.b16 %v6636, %v6635
    %v6646 = vsel %vm396, %v6611, 0
    %v6649 = vsel %vm396, %v6612, 0
    %6651 = vmatprep.subr.bf16.mxu0 0
    %6652 = vmatpush1.bf16.msra.mxu0 %v6637
    %6653 = vmatprep.subr.bf16.mxu0 0
    %6654 = vmatpush1.bf16.msra.mxu0 %v6638
    %6655 = vmatprep.subr.bf16.mxu0 0
    %6656 = vmatpush1.bf16.msra.mxu0 %v6639
    %6657 = vmatprep.subr.bf16.mxu0 0
    %6658 = vmatpush1.bf16.msra.mxu0 %v6640
    %6659 = vmatprep.subr.bf16.mxu0 0
    %6660 = vmatpush1.bf16.msra.mxu0 0
    %6661 = vmatprep.subr.bf16.mxu0 0
    %6662 = vmatpush1.bf16.msra.mxu0 0
    %6663 = vmatprep.subr.bf16.mxu0 0
    %6664 = vmatpush1.bf16.msra.mxu0 0
    %6665 = vmatprep.subr.bf16.mxu0 0
    %6666 = vmatpush1.bf16.msra.mxu0 0
    %6667 = vmatprep.subr.bf16.mxu0 0
    %6668 = vmatpush1.bf16.msra.mxu0 0
    %6669 = vmatprep.subr.bf16.mxu0 0
    %6670 = vmatpush1.bf16.msra.mxu0 0
    %6671 = vmatprep.subr.bf16.mxu0 0
    %6672 = vmatpush1.bf16.msra.mxu0 0
    %6673 = vmatprep.subr.bf16.mxu0 0
    %6674 = vmatpush1.bf16.msra.mxu0 0
    %6675 = vmatprep.subr.bf16.mxu0 0
    %6676 = vmatpush1.bf16.msra.mxu0 0
    %6677 = vmatprep.subr.bf16.mxu0 0
    %6678 = vmatpush1.bf16.msra.mxu0 0
    %6679 = vmatprep.subr.bf16.mxu0 0
    %6680 = vmatpush1.bf16.msra.mxu0 0
    %6681 = vmatprep.subr.bf16.mxu0 0
    %6682 = vmatpush1.bf16.msra.mxu0 0
    %6683 = vmatprep.mubr.bf16.mxu0 0
    %6684 = vmatmul.mubr.bf16.gmra.mrb[0].mxu0 %v6646
    %v6685 = vpop.f32.mrb[0].mxu0
    %v6686 = vadd.f32 %v6619, %v6685
    %v6687 = vpop.f32.mrb[0].mxu0
    %v6688 = vpop.f32.mrb[0].mxu0
    %v6689 = vadd.f32 %v6619, %v6688
    %v6690 = vpop.f32.mrb[0].mxu0
    %6691 = vmatprep.mubr.bf16.mxu0 0
    %6692 = vmatmul.mubr.bf16.gmra.mrb[0].mxu0 %v6649
    %v6693 = vpop.f32.mrb[0].mxu0
    %v6694 = vadd.f32 %v6619, %v6693
    %v6695 = vpop.f32.mrb[0].mxu0
    %v6696 = vpop.f32.mrb[0].mxu0
    %v6697 = vadd.f32 %v6619, %v6696
    %v6698 = vpop.f32.mrb[0].mxu0
    %6699 = vdwg.mxu0
    %s6700 = scalar_lea.vmem %s12, 4
    %v6701 = vld [vmem:[%s6700] sm:$0x1]
    %s6702 = scalar_lea.vmem %s13, 4
    %v6703 = vld [vmem:[%s6702] sm:$0x1]
    %v6704 = vsel %vm396, %v6686, 0.0
    %v6705 = vsel %vm396, %v6689, 0.0
    %v6706 = vadd.f32 %v6704, %v6705
    %v6707 = vsel %vm396, %v6694, 0.0
    %v6708 = vadd.f32 %v6706, %v6707
    %v6709 = vsel %vm396, %v6697, 0.0
    %v6710 = vadd.f32 %v6708, %v6709
    %v6711 = vrot.slane %v6710, 4
    %v6712 = vadd.f32 %v6710, %v6711
    %v6713 = vrot.slane %v6712, 2
    %v6714 = vadd.f32 %v6712, %v6713
    %v6715 = vrot.slane %v6714, 1
    %v6716 = vadd.f32 %v6714, %v6715
    %v6717 = vmul.f32 %v6716, %v634
    %v6718 = vmul.f32 %v6686, %v6686
    %v6719 = vmul.f32 %v6689, %v6689
    %v6720 = vmul.f32 %v6694, %v6694
    %v6721 = vmul.f32 %v6697, %v6697
    %v6722 = vsel %vm396, %v6718, 0.0
    %v6723 = vsel %vm396, %v6719, 0.0
    %v6724 = vadd.f32 %v6722, %v6723
    %v6725 = vsel %vm396, %v6720, 0.0
    %v6726 = vadd.f32 %v6724, %v6725
    %v6727 = vsel %vm396, %v6721, 0.0
    %v6728 = vadd.f32 %v6726, %v6727
    %v6729 = vrot.slane %v6728, 4
    %v6730 = vadd.f32 %v6728, %v6729
    %v6731 = vrot.slane %v6730, 2
    %v6732 = vadd.f32 %v6730, %v6731
    %v6733 = vrot.slane %v6732, 1
    %v6734 = vadd.f32 %v6732, %v6733
    %v6735 = vmul.f32 %v6734, %v634
    %v6736 = vmul.f32 %v6717, %v6717
    %v6737 = vsub.f32 %v6735, %v6736
    %v6738 = vsub.f32 %v6686, %v6717
    %v6739 = vsub.f32 %v6689, %v6717
    %v6740 = vsub.f32 %v6694, %v6717
    %v6741 = vsub.f32 %v6697, %v6717
    %v6742 = vadd.f32 %v6737, 1e-05
    %v6743 = vrsqrt.pop %v6742
    %v6744 = vmul.f32 %v6738, %v6743
    %v6745 = vmul.f32 %v6739, %v6743
    %v6746 = vmul.f32 %v6740, %v6743
    %v6747 = vmul.f32 %v6741, %v6743
    %v6749 = vlaneseq
    %v6750 = vshrl.u32 %v6749, 7
    %v6751 = vsub.s32 0, %v6750
    %v6752 = vrot.slane %v6701, %v6751
    %v6754 = vmul.f32 %v6744, %v6752
    %v6755 = vmul.f32 %v6745, %v6752
    %v6756 = vmul.f32 %v6746, %v6752
    %v6757 = vmul.f32 %v6747, %v6752
    %v6759 = vlaneseq
    %v6760 = vshrl.u32 %v6759, 7
    %v6761 = vsub.s32 0, %v6760
    %v6762 = vrot.slane %v6703, %v6761
    %v6764 = vadd.f32 %v6754, %v6762
    %v6765 = vadd.f32 %v6755, %v6762
    %v6766 = vadd.f32 %v6756, %v6762
    %v6767 = vadd.f32 %v6757, %v6762
    %v6768 = vmax.f32 %v6764, 0.0
    %v6769 = vmax.f32 %v6765, 0.0
    %v6770 = vmax.f32 %v6766, 0.0
    %v6771 = vmax.f32 %v6767, 0.0
    %v6773 = vcombine.high %v6768, %v6768
    %v6775 = vunpack.c.l.s4 1966171168
    %v6776 = vunpack.c.0.s8 %v6775
    %v6777 = vlaneseq
    %v6778 = vshrl.u32 %v6777, 7
    %v6779 = vsub.s32 %v6776, %v6778
    %v6780 = vrot.slane %v6768, %v6779
    %v6782 = vunpack.c.l.s4 1966171168
    %v6783 = vunpack.c.0.s8 %v6782
    %v6784 = vlaneseq
    %v6785 = vshrl.u32 %v6784, 7
    %v6786 = vsub.s32 %v6783, %v6785
    %v6787 = vrot.slane %v6773, %v6786
    %v6788 = vcombine.high %v6780, %v6780
    %v6789 = vcombine.high %v6787, %v6787
    %v6791 = vunpack.c.l.s4 1966171168
    %v6792 = vunpack.c.0.s8 %v6791
    %v6793 = vlaneseq
    %v6794 = vshrl.u32 %v6793, 7
    %v6795 = vsub.s32 %v6792, %v6794
    %v6796 = vrot.slane %v6780, %v6795
    %v6798 = vunpack.c.l.s4 1966171168
    %v6799 = vunpack.c.0.s8 %v6798
    %v6800 = vlaneseq
    %v6801 = vshrl.u32 %v6800, 7
    %v6802 = vsub.s32 %v6799, %v6801
    %v6803 = vrot.slane %v6787, %v6802
    %v6805 = vunpack.c.l.s4 1966171168
    %v6806 = vunpack.c.0.s8 %v6805
    %v6807 = vlaneseq
    %v6808 = vshrl.u32 %v6807, 7
    %v6809 = vsub.s32 %v6806, %v6808
    %v6810 = vrot.slane %v6788, %v6809
    %v6812 = vunpack.c.l.s4 1966171168
    %v6813 = vunpack.c.0.s8 %v6812
    %v6814 = vlaneseq
    %v6815 = vshrl.u32 %v6814, 7
    %v6816 = vsub.s32 %v6813, %v6815
    %v6817 = vrot.slane %v6789, %v6816
    %v6818 = vcombine.high %v6796, %v6796
    %v6819 = vcombine.high %v6803, %v6803
    %v6820 = vcombine.high %v6810, %v6810
    %v6821 = vcombine.high %v6817, %v6817
    %v6822 = vlaneseq
    %v6823 = vshrl.u32 %v6822, 7
    %v6824 = vsub.s32 0, %v6823
    %v6825 = vrot.slane %v6796, %v6824
    %v6826 = vlaneseq
    %v6827 = vshrl.u32 %v6826, 7
    %v6828 = vsub.s32 0, %v6827
    %v6829 = vrot.slane %v6810, %v6828
    %v6830 = vlaneseq
    %v6831 = vshrl.u32 %v6830, 7
    %v6832 = vsub.s32 0, %v6831
    %v6833 = vrot.slane %v6818, %v6832
    %v6834 = vlaneseq
    %v6835 = vshrl.u32 %v6834, 7
    %v6836 = vsub.s32 0, %v6835
    %v6837 = vrot.slane %v6820, %v6836
    %v6838 = vlaneseq
    %v6839 = vshrl.u32 %v6838, 7
    %v6840 = vsub.s32 0, %v6839
    %v6841 = vrot.slane %v6803, %v6840
    %v6842 = vlaneseq
    %v6843 = vshrl.u32 %v6842, 7
    %v6844 = vsub.s32 0, %v6843
    %v6845 = vrot.slane %v6817, %v6844
    %v6846 = vlaneseq
    %v6847 = vshrl.u32 %v6846, 7
    %v6848 = vsub.s32 0, %v6847
    %v6849 = vrot.slane %v6819, %v6848
    %v6850 = vlaneseq
    %v6851 = vshrl.u32 %v6850, 7
    %v6852 = vsub.s32 0, %v6851
    %v6853 = vrot.slane %v6821, %v6852
    %v6862 = vmul.f32 %v862, %v6825
    %v6863 = vmul.f32 %v866, %v6825
    %v6864 = vmul.f32 %v873, %v6829
    %v6865 = vmul.f32 %v877, %v6829
    %v6866 = vmul.f32 %v884, %v6833
    %v6867 = vmul.f32 %v888, %v6833
    %v6868 = vmul.f32 %v895, %v6837
    %v6869 = vmul.f32 %v899, %v6837
    %v6870 = vmul.f32 %v906, %v6841
    %v6871 = vmul.f32 %v910, %v6841
    %v6872 = vmul.f32 %v917, %v6845
    %v6873 = vmul.f32 %v921, %v6845
    %v6874 = vmul.f32 %v928, %v6849
    %v6875 = vmul.f32 %v932, %v6849
    %v6876 = vmul.f32 %v939, %v6853
    %v6877 = vmul.f32 %v943, %v6853
    %v6878 = vsel %vm396, %v6862, -inf
    %v6879 = vsel %vm396, %v6864, -inf
    %v6880 = vsel %vm396, %v6866, -inf
    %v6881 = vmax.f32 %v6878, %v6880
    %v6882 = vsel %vm396, %v6868, -inf
    %v6883 = vmax.f32 %v6879, %v6882
    %v6884 = vsel %vm396, %v6870, -inf
    %v6885 = vmax.f32 %v6881, %v6884
    %v6886 = vsel %vm396, %v6872, -inf
    %v6887 = vmax.f32 %v6883, %v6886
    %v6888 = vsel %vm396, %v6874, -inf
    %v6889 = vmax.f32 %v6885, %v6888
    %v6890 = vsel %vm396, %v6876, -inf
    %v6891 = vmax.f32 %v6887, %v6890
    %v6892 = vmax.f32 %v6889, %v6891
    %v6893 = vsel %vm396, %v6863, -inf
    %v6894 = vsel %vm396, %v6865, -inf
    %v6895 = vsel %vm396, %v6867, -inf
    %v6896 = vmax.f32 %v6893, %v6895
    %v6897 = vsel %vm396, %v6869, -inf
    %v6898 = vmax.f32 %v6894, %v6897
    %v6899 = vsel %vm396, %v6871, -inf
    %v6900 = vmax.f32 %v6896, %v6899
    %v6901 = vsel %vm396, %v6873, -inf
    %v6902 = vmax.f32 %v6898, %v6901
    %v6903 = vsel %vm396, %v6875, -inf
    %v6904 = vmax.f32 %v6900, %v6903
    %v6905 = vsel %vm396, %v6877, -inf
    %v6906 = vmax.f32 %v6902, %v6905
    %v6907 = vmax.f32 %v6904, %v6906
    %v6908 = vmax.f32 %v6892, 0.0
    %v6909 = vmax.f32 %v6907, 0.0
    %v6911 = vcombine.high %v6769, %v6769
    %v6913 = vunpack.c.l.s4 1966171168
    %v6914 = vunpack.c.0.s8 %v6913
    %v6915 = vlaneseq
    %v6916 = vshrl.u32 %v6915, 7
    %v6917 = vsub.s32 %v6914, %v6916
    %v6918 = vrot.slane %v6769, %v6917
    %v6920 = vunpack.c.l.s4 1966171168
    %v6921 = vunpack.c.0.s8 %v6920
    %v6922 = vlaneseq
    %v6923 = vshrl.u32 %v6922, 7
    %v6924 = vsub.s32 %v6921, %v6923
    %v6925 = vrot.slane %v6911, %v6924
    %v6926 = vcombine.high %v6918, %v6918
    %v6927 = vcombine.high %v6925, %v6925
    %v6929 = vunpack.c.l.s4 1966171168
    %v6930 = vunpack.c.0.s8 %v6929
    %v6931 = vlaneseq
    %v6932 = vshrl.u32 %v6931, 7
    %v6933 = vsub.s32 %v6930, %v6932
    %v6934 = vrot.slane %v6918, %v6933
    %v6936 = vunpack.c.l.s4 1966171168
    %v6937 = vunpack.c.0.s8 %v6936
    %v6938 = vlaneseq
    %v6939 = vshrl.u32 %v6938, 7
    %v6940 = vsub.s32 %v6937, %v6939
    %v6941 = vrot.slane %v6925, %v6940
    %v6943 = vunpack.c.l.s4 1966171168
    %v6944 = vunpack.c.0.s8 %v6943
    %v6945 = vlaneseq
    %v6946 = vshrl.u32 %v6945, 7
    %v6947 = vsub.s32 %v6944, %v6946
    %v6948 = vrot.slane %v6926, %v6947
    %v6950 = vunpack.c.l.s4 1966171168
    %v6951 = vunpack.c.0.s8 %v6950
    %v6952 = vlaneseq
    %v6953 = vshrl.u32 %v6952, 7
    %v6954 = vsub.s32 %v6951, %v6953
    %v6955 = vrot.slane %v6927, %v6954
    %v6956 = vcombine.high %v6934, %v6934
    %v6957 = vcombine.high %v6941, %v6941
    %v6958 = vcombine.high %v6948, %v6948
    %v6959 = vcombine.high %v6955, %v6955
    %v6960 = vlaneseq
    %v6961 = vshrl.u32 %v6960, 7
    %v6962 = vsub.s32 0, %v6961
    %v6963 = vrot.slane %v6934, %v6962
    %v6964 = vlaneseq
    %v6965 = vshrl.u32 %v6964, 7
    %v6966 = vsub.s32 0, %v6965
    %v6967 = vrot.slane %v6948, %v6966
    %v6968 = vlaneseq
    %v6969 = vshrl.u32 %v6968, 7
    %v6970 = vsub.s32 0, %v6969
    %v6971 = vrot.slane %v6956, %v6970
    %v6972 = vlaneseq
    %v6973 = vshrl.u32 %v6972, 7
    %v6974 = vsub.s32 0, %v6973
    %v6975 = vrot.slane %v6958, %v6974
    %v6976 = vlaneseq
    %v6977 = vshrl.u32 %v6976, 7
    %v6978 = vsub.s32 0, %v6977
    %v6979 = vrot.slane %v6941, %v6978
    %v6980 = vlaneseq
    %v6981 = vshrl.u32 %v6980, 7
    %v6982 = vsub.s32 0, %v6981
    %v6983 = vrot.slane %v6955, %v6982
    %v6984 = vlaneseq
    %v6985 = vshrl.u32 %v6984, 7
    %v6986 = vsub.s32 0, %v6985
    %v6987 = vrot.slane %v6957, %v6986
    %v6988 = vlaneseq
    %v6989 = vshrl.u32 %v6988, 7
    %v6990 = vsub.s32 0, %v6989
    %v6991 = vrot.slane %v6959, %v6990
    %v7000 = vmul.f32 %v1088, %v6963
    %v7001 = vmul.f32 %v1092, %v6963
    %v7002 = vmul.f32 %v1099, %v6967
    %v7003 = vmul.f32 %v1103, %v6967
    %v7004 = vmul.f32 %v1110, %v6971
    %v7005 = vmul.f32 %v1114, %v6971
    %v7006 = vmul.f32 %v1121, %v6975
    %v7007 = vmul.f32 %v1125, %v6975
    %v7008 = vmul.f32 %v1132, %v6979
    %v7009 = vmul.f32 %v1136, %v6979
    %v7010 = vmul.f32 %v1143, %v6983
    %v7011 = vmul.f32 %v1147, %v6983
    %v7012 = vmul.f32 %v1154, %v6987
    %v7013 = vmul.f32 %v1158, %v6987
    %v7014 = vmul.f32 %v1165, %v6991
    %v7015 = vmul.f32 %v1169, %v6991
    %v7016 = vsel %vm396, %v7000, -inf
    %v7017 = vsel %vm396, %v7002, -inf
    %v7018 = vsel %vm396, %v7004, -inf
    %v7019 = vmax.f32 %v7016, %v7018
    %v7020 = vsel %vm396, %v7006, -inf
    %v7021 = vmax.f32 %v7017, %v7020
    %v7022 = vsel %vm396, %v7008, -inf
    %v7023 = vmax.f32 %v7019, %v7022
    %v7024 = vsel %vm396, %v7010, -inf
    %v7025 = vmax.f32 %v7021, %v7024
    %v7026 = vsel %vm396, %v7012, -inf
    %v7027 = vmax.f32 %v7023, %v7026
    %v7028 = vsel %vm396, %v7014, -inf
    %v7029 = vmax.f32 %v7025, %v7028
    %v7030 = vmax.f32 %v7027, %v7029
    %v7031 = vsel %vm396, %v7001, -inf
    %v7032 = vsel %vm396, %v7003, -inf
    %v7033 = vsel %vm396, %v7005, -inf
    %v7034 = vmax.f32 %v7031, %v7033
    %v7035 = vsel %vm396, %v7007, -inf
    %v7036 = vmax.f32 %v7032, %v7035
    %v7037 = vsel %vm396, %v7009, -inf
    %v7038 = vmax.f32 %v7034, %v7037
    %v7039 = vsel %vm396, %v7011, -inf
    %v7040 = vmax.f32 %v7036, %v7039
    %v7041 = vsel %vm396, %v7013, -inf
    %v7042 = vmax.f32 %v7038, %v7041
    %v7043 = vsel %vm396, %v7015, -inf
    %v7044 = vmax.f32 %v7040, %v7043
    %v7045 = vmax.f32 %v7042, %v7044
    %v7046 = vmax.f32 %v6908, %v7030
    %v7047 = vmax.f32 %v6909, %v7045
    %v7049 = vcombine.high %v6770, %v6770
    %v7051 = vunpack.c.l.s4 1966171168
    %v7052 = vunpack.c.0.s8 %v7051
    %v7053 = vlaneseq
    %v7054 = vshrl.u32 %v7053, 7
    %v7055 = vsub.s32 %v7052, %v7054
    %v7056 = vrot.slane %v6770, %v7055
    %v7058 = vunpack.c.l.s4 1966171168
    %v7059 = vunpack.c.0.s8 %v7058
    %v7060 = vlaneseq
    %v7061 = vshrl.u32 %v7060, 7
    %v7062 = vsub.s32 %v7059, %v7061
    %v7063 = vrot.slane %v7049, %v7062
    %v7064 = vcombine.high %v7056, %v7056
    %v7065 = vcombine.high %v7063, %v7063
    %v7067 = vunpack.c.l.s4 1966171168
    %v7068 = vunpack.c.0.s8 %v7067
    %v7069 = vlaneseq
    %v7070 = vshrl.u32 %v7069, 7
    %v7071 = vsub.s32 %v7068, %v7070
    %v7072 = vrot.slane %v7056, %v7071
    %v7074 = vunpack.c.l.s4 1966171168
    %v7075 = vunpack.c.0.s8 %v7074
    %v7076 = vlaneseq
    %v7077 = vshrl.u32 %v7076, 7
    %v7078 = vsub.s32 %v7075, %v7077
    %v7079 = vrot.slane %v7063, %v7078
    %v7081 = vunpack.c.l.s4 1966171168
    %v7082 = vunpack.c.0.s8 %v7081
    %v7083 = vlaneseq
    %v7084 = vshrl.u32 %v7083, 7
    %v7085 = vsub.s32 %v7082, %v7084
    %v7086 = vrot.slane %v7064, %v7085
    %v7088 = vunpack.c.l.s4 1966171168
    %v7089 = vunpack.c.0.s8 %v7088
    %v7090 = vlaneseq
    %v7091 = vshrl.u32 %v7090, 7
    %v7092 = vsub.s32 %v7089, %v7091
    %v7093 = vrot.slane %v7065, %v7092
    %v7094 = vcombine.high %v7072, %v7072
    %v7095 = vcombine.high %v7079, %v7079
    %v7096 = vcombine.high %v7086, %v7086
    %v7097 = vcombine.high %v7093, %v7093
    %v7098 = vlaneseq
    %v7099 = vshrl.u32 %v7098, 7
    %v7100 = vsub.s32 0, %v7099
    %v7101 = vrot.slane %v7072, %v7100
    %v7102 = vlaneseq
    %v7103 = vshrl.u32 %v7102, 7
    %v7104 = vsub.s32 0, %v7103
    %v7105 = vrot.slane %v7086, %v7104
    %v7106 = vlaneseq
    %v7107 = vshrl.u32 %v7106, 7
    %v7108 = vsub.s32 0, %v7107
    %v7109 = vrot.slane %v7094, %v7108
    %v7110 = vlaneseq
    %v7111 = vshrl.u32 %v7110, 7
    %v7112 = vsub.s32 0, %v7111
    %v7113 = vrot.slane %v7096, %v7112
    %v7114 = vlaneseq
    %v7115 = vshrl.u32 %v7114, 7
    %v7116 = vsub.s32 0, %v7115
    %v7117 = vrot.slane %v7079, %v7116
    %v7118 = vlaneseq
    %v7119 = vshrl.u32 %v7118, 7
    %v7120 = vsub.s32 0, %v7119
    %v7121 = vrot.slane %v7093, %v7120
    %v7122 = vlaneseq
    %v7123 = vshrl.u32 %v7122, 7
    %v7124 = vsub.s32 0, %v7123
    %v7125 = vrot.slane %v7095, %v7124
    %v7126 = vlaneseq
    %v7127 = vshrl.u32 %v7126, 7
    %v7128 = vsub.s32 0, %v7127
    %v7129 = vrot.slane %v7097, %v7128
    %v7138 = vmul.f32 %v1314, %v7101
    %v7139 = vmul.f32 %v1318, %v7101
    %v7140 = vmul.f32 %v1325, %v7105
    %v7141 = vmul.f32 %v1329, %v7105
    %v7142 = vmul.f32 %v1336, %v7109
    %v7143 = vmul.f32 %v1340, %v7109
    %v7144 = vmul.f32 %v1347, %v7113
    %v7145 = vmul.f32 %v1351, %v7113
    %v7146 = vmul.f32 %v1358, %v7117
    %v7147 = vmul.f32 %v1362, %v7117
    %v7148 = vmul.f32 %v1369, %v7121
    %v7149 = vmul.f32 %v1373, %v7121
    %v7150 = vmul.f32 %v1380, %v7125
    %v7151 = vmul.f32 %v1384, %v7125
    %v7152 = vmul.f32 %v1391, %v7129
    %v7153 = vmul.f32 %v1395, %v7129
    %v7154 = vsel %vm396, %v7138, -inf
    %v7155 = vsel %vm396, %v7140, -inf
    %v7156 = vsel %vm396, %v7142, -inf
    %v7157 = vmax.f32 %v7154, %v7156
    %v7158 = vsel %vm396, %v7144, -inf
    %v7159 = vmax.f32 %v7155, %v7158
    %v7160 = vsel %vm396, %v7146, -inf
    %v7161 = vmax.f32 %v7157, %v7160
    %v7162 = vsel %vm396, %v7148, -inf
    %v7163 = vmax.f32 %v7159, %v7162
    %v7164 = vsel %vm396, %v7150, -inf
    %v7165 = vmax.f32 %v7161, %v7164
    %v7166 = vsel %vm396, %v7152, -inf
    %v7167 = vmax.f32 %v7163, %v7166
    %v7168 = vmax.f32 %v7165, %v7167
    %v7169 = vsel %vm396, %v7139, -inf
    %v7170 = vsel %vm396, %v7141, -inf
    %v7171 = vsel %vm396, %v7143, -inf
    %v7172 = vmax.f32 %v7169, %v7171
    %v7173 = vsel %vm396, %v7145, -inf
    %v7174 = vmax.f32 %v7170, %v7173
    %v7175 = vsel %vm396, %v7147, -inf
    %v7176 = vmax.f32 %v7172, %v7175
    %v7177 = vsel %vm396, %v7149, -inf
    %v7178 = vmax.f32 %v7174, %v7177
    %v7179 = vsel %vm396, %v7151, -inf
    %v7180 = vmax.f32 %v7176, %v7179
    %v7181 = vsel %vm396, %v7153, -inf
    %v7182 = vmax.f32 %v7178, %v7181
    %v7183 = vmax.f32 %v7180, %v7182
    %v7184 = vmax.f32 %v7046, %v7168
    %v7185 = vmax.f32 %v7047, %v7183
    %v7187 = vcombine.high %v6771, %v6771
    %v7189 = vunpack.c.l.s4 1966171168
    %v7190 = vunpack.c.0.s8 %v7189
    %v7191 = vlaneseq
    %v7192 = vshrl.u32 %v7191, 7
    %v7193 = vsub.s32 %v7190, %v7192
    %v7194 = vrot.slane %v6771, %v7193
    %v7196 = vunpack.c.l.s4 1966171168
    %v7197 = vunpack.c.0.s8 %v7196
    %v7198 = vlaneseq
    %v7199 = vshrl.u32 %v7198, 7
    %v7200 = vsub.s32 %v7197, %v7199
    %v7201 = vrot.slane %v7187, %v7200
    %v7202 = vcombine.high %v7194, %v7194
    %v7203 = vcombine.high %v7201, %v7201
    %v7205 = vunpack.c.l.s4 1966171168
    %v7206 = vunpack.c.0.s8 %v7205
    %v7207 = vlaneseq
    %v7208 = vshrl.u32 %v7207, 7
    %v7209 = vsub.s32 %v7206, %v7208
    %v7210 = vrot.slane %v7194, %v7209
    %v7212 = vunpack.c.l.s4 1966171168
    %v7213 = vunpack.c.0.s8 %v7212
    %v7214 = vlaneseq
    %v7215 = vshrl.u32 %v7214, 7
    %v7216 = vsub.s32 %v7213, %v7215
    %v7217 = vrot.slane %v7201, %v7216
    %v7219 = vunpack.c.l.s4 1966171168
    %v7220 = vunpack.c.0.s8 %v7219
    %v7221 = vlaneseq
    %v7222 = vshrl.u32 %v7221, 7
    %v7223 = vsub.s32 %v7220, %v7222
    %v7224 = vrot.slane %v7202, %v7223
    %v7226 = vunpack.c.l.s4 1966171168
    %v7227 = vunpack.c.0.s8 %v7226
    %v7228 = vlaneseq
    %v7229 = vshrl.u32 %v7228, 7
    %v7230 = vsub.s32 %v7227, %v7229
    %v7231 = vrot.slane %v7203, %v7230
    %v7232 = vcombine.high %v7210, %v7210
    %v7233 = vcombine.high %v7217, %v7217
    %v7234 = vcombine.high %v7224, %v7224
    %v7235 = vcombine.high %v7231, %v7231
    %v7236 = vlaneseq
    %v7237 = vshrl.u32 %v7236, 7
    %v7238 = vsub.s32 0, %v7237
    %v7239 = vrot.slane %v7210, %v7238
    %v7240 = vlaneseq
    %v7241 = vshrl.u32 %v7240, 7
    %v7242 = vsub.s32 0, %v7241
    %v7243 = vrot.slane %v7224, %v7242
    %v7244 = vlaneseq
    %v7245 = vshrl.u32 %v7244, 7
    %v7246 = vsub.s32 0, %v7245
    %v7247 = vrot.slane %v7232, %v7246
    %v7248 = vlaneseq
    %v7249 = vshrl.u32 %v7248, 7
    %v7250 = vsub.s32 0, %v7249
    %v7251 = vrot.slane %v7234, %v7250
    %v7252 = vlaneseq
    %v7253 = vshrl.u32 %v7252, 7
    %v7254 = vsub.s32 0, %v7253
    %v7255 = vrot.slane %v7217, %v7254
    %v7256 = vlaneseq
    %v7257 = vshrl.u32 %v7256, 7
    %v7258 = vsub.s32 0, %v7257
    %v7259 = vrot.slane %v7231, %v7258
    %v7260 = vlaneseq
    %v7261 = vshrl.u32 %v7260, 7
    %v7262 = vsub.s32 0, %v7261
    %v7263 = vrot.slane %v7233, %v7262
    %v7264 = vlaneseq
    %v7265 = vshrl.u32 %v7264, 7
    %v7266 = vsub.s32 0, %v7265
    %v7267 = vrot.slane %v7235, %v7266
    %v7276 = vmul.f32 %v1540, %v7239
    %v7277 = vmul.f32 %v1544, %v7239
    %v7278 = vmul.f32 %v1551, %v7243
    %v7279 = vmul.f32 %v1555, %v7243
    %v7280 = vmul.f32 %v1562, %v7247
    %v7281 = vmul.f32 %v1566, %v7247
    %v7282 = vmul.f32 %v1573, %v7251
    %v7283 = vmul.f32 %v1577, %v7251
    %v7284 = vmul.f32 %v1584, %v7255
    %v7285 = vmul.f32 %v1588, %v7255
    %v7286 = vmul.f32 %v1595, %v7259
    %v7287 = vmul.f32 %v1599, %v7259
    %v7288 = vmul.f32 %v1606, %v7263
    %v7289 = vmul.f32 %v1610, %v7263
    %v7290 = vmul.f32 %v1617, %v7267
    %v7291 = vmul.f32 %v1621, %v7267
    %v7292 = vsel %vm396, %v7276, -inf
    %v7293 = vsel %vm396, %v7278, -inf
    %v7294 = vsel %vm396, %v7280, -inf
    %v7295 = vmax.f32 %v7292, %v7294
    %v7296 = vsel %vm396, %v7282, -inf
    %v7297 = vmax.f32 %v7293, %v7296
    %v7298 = vsel %vm396, %v7284, -inf
    %v7299 = vmax.f32 %v7295, %v7298
    %v7300 = vsel %vm396, %v7286, -inf
    %v7301 = vmax.f32 %v7297, %v7300
    %v7302 = vsel %vm396, %v7288, -inf
    %v7303 = vmax.f32 %v7299, %v7302
    %v7304 = vsel %vm396, %v7290, -inf
    %v7305 = vmax.f32 %v7301, %v7304
    %v7306 = vmax.f32 %v7303, %v7305
    %v7307 = vsel %vm396, %v7277, -inf
    %v7308 = vsel %vm396, %v7279, -inf
    %v7309 = vsel %vm396, %v7281, -inf
    %v7310 = vmax.f32 %v7307, %v7309
    %v7311 = vsel %vm396, %v7283, -inf
    %v7312 = vmax.f32 %v7308, %v7311
    %v7313 = vsel %vm396, %v7285, -inf
    %v7314 = vmax.f32 %v7310, %v7313
    %v7315 = vsel %vm396, %v7287, -inf
    %v7316 = vmax.f32 %v7312, %v7315
    %v7317 = vsel %vm396, %v7289, -inf
    %v7318 = vmax.f32 %v7314, %v7317
    %v7319 = vsel %vm396, %v7291, -inf
    %v7320 = vmax.f32 %v7316, %v7319
    %v7321 = vmax.f32 %v7318, %v7320
    %v7322 = vmax.f32 %v7184, %v7306
    %v7323 = vmax.f32 %v7185, %v7321
    %s7324 = scalar_lea.vmem [#allocation9], 128
    %v7325 = vld [vmem:[%s7324] sm:$0xf]
    %v7326 = vld [vmem:[%s7324 + $0x4] sm:$0xf]
    %v7327 = vld [vmem:[%s7324 + $0x8] sm:$0xf]
    %v7328 = vld [vmem:[%s7324 + $0xc] sm:$0xf]
    %v7329 = vld [vmem:[%s7324 + $0x10] sm:$0xf]
    %v7330 = vld [vmem:[%s7324 + $0x14] sm:$0xf]
    %v7331 = vld [vmem:[%s7324 + $0x18] sm:$0xf]
    %v7332 = vld [vmem:[%s7324 + $0x1c] sm:$0xf]
    %s7333 = scalar_lea.vmem [#allocation11], 128
    %v7334 = vld [vmem:[%s7333] sm:$0xf]
    %v7335 = vld [vmem:[%s7333 + $0x4] sm:$0xf]
    %v7336 = vld [vmem:[%s7333 + $0x8] sm:$0xf]
    %v7337 = vld [vmem:[%s7333 + $0xc] sm:$0xf]
    %v7338 = vld [vmem:[%s7333 + $0x10] sm:$0xf]
    %v7339 = vld [vmem:[%s7333 + $0x14] sm:$0xf]
    %v7340 = vld [vmem:[%s7333 + $0x18] sm:$0xf]
    %v7341 = vld [vmem:[%s7333 + $0x1c] sm:$0xf]
    %v7342 = vpack.c.bf16 %v7323, %v7322
    %v7351 = vunpack.c.l.b16 %v7334
    %v7352 = vunpack.c.l.b16 %v7335
    %v7353 = vunpack.c.l.b16 %v7336
    %v7354 = vunpack.c.l.b16 %v7337
    %v7355 = vunpack.c.l.b16 %v7338
    %v7356 = vunpack.c.l.b16 %v7339
    %v7357 = vunpack.c.l.b16 %v7340
    %v7358 = vunpack.c.l.b16 %v7341
    %v7359 = vpack.c.b16 %v7352, %v7351
    %v7360 = vpack.c.b16 %v7354, %v7353
    %v7361 = vpack.c.b16 %v7356, %v7355
    %v7362 = vpack.c.b16 %v7358, %v7357
    %v7368 = vsel %vm396, %v7342, 0
    %7370 = vmatprep.subr.bf16.mxu0 0
    %7371 = vmatpush1.bf16.msra.mxu0 %v7359
    %7372 = vmatprep.subr.bf16.mxu0 0
    %7373 = vmatpush1.bf16.msra.mxu0 %v7360
    %7374 = vmatprep.subr.bf16.mxu0 0
    %7375 = vmatpush1.bf16.msra.mxu0 %v7361
    %7376 = vmatprep.subr.bf16.mxu0 0
    %7377 = vmatpush1.bf16.msra.mxu0 %v7362
    %7378 = vmatprep.subr.bf16.mxu0 0
    %7379 = vmatpush1.bf16.msra.mxu0 0
    %7380 = vmatprep.subr.bf16.mxu0 0
    %7381 = vmatpush1.bf16.msra.mxu0 0
    %7382 = vmatprep.subr.bf16.mxu0 0
    %7383 = vmatpush1.bf16.msra.mxu0 0
    %7384 = vmatprep.subr.bf16.mxu0 0
    %7385 = vmatpush1.bf16.msra.mxu0 0
    %7386 = vmatprep.subr.bf16.mxu0 0
    %7387 = vmatpush1.bf16.msra.mxu0 0
    %7388 = vmatprep.subr.bf16.mxu0 0
    %7389 = vmatpush1.bf16.msra.mxu0 0
    %7390 = vmatprep.subr.bf16.mxu0 0
    %7391 = vmatpush1.bf16.msra.mxu0 0
    %7392 = vmatprep.subr.bf16.mxu0 0
    %7393 = vmatpush1.bf16.msra.mxu0 0
    %7394 = vmatprep.subr.bf16.mxu0 0
    %7395 = vmatpush1.bf16.msra.mxu0 0
    %7396 = vmatprep.subr.bf16.mxu0 0
    %7397 = vmatpush1.bf16.msra.mxu0 0
    %7398 = vmatprep.subr.bf16.mxu0 0
    %7399 = vmatpush1.bf16.msra.mxu0 0
    %7400 = vmatprep.subr.bf16.mxu0 0
    %7401 = vmatpush1.bf16.msra.mxu0 0
    %7402 = vmatprep.mubr.bf16.mxu0 0
    %7403 = vmatmul.mubr.bf16.gmra.mrb[0].mxu0 %v7368
    %v7404 = vpop.f32.mrb[0].mxu0
    %v7405 = vadd.f32 0.0, %v7404
    %v7406 = vpop.f32.mrb[0].mxu0
    %v7407 = vpop.f32.mrb[0].mxu0
    %v7408 = vadd.f32 0.0, %v7407
    %v7409 = vpop.f32.mrb[0].mxu0
    %7410 = vdwg.mxu0
    %v7419 = vunpack.c.l.b16 %v7325
    %v7420 = vunpack.c.l.b16 %v7326
    %v7421 = vunpack.c.l.b16 %v7327
    %v7422 = vunpack.c.l.b16 %v7328
    %v7423 = vunpack.c.l.b16 %v7329
    %v7424 = vunpack.c.l.b16 %v7330
    %v7425 = vunpack.c.l.b16 %v7331
    %v7426 = vunpack.c.l.b16 %v7332
    %v7427 = vpack.c.b16 %v7420, %v7419
    %v7428 = vpack.c.b16 %v7422, %v7421
    %v7429 = vpack.c.b16 %v7424, %v7423
    %v7430 = vpack.c.b16 %v7426, %v7425
    %7435 = vmatprep.subr.bf16.mxu0 0
    %7436 = vmatpush1.bf16.msra.mxu0 %v7427
    %7437 = vmatprep.subr.bf16.mxu0 0
    %7438 = vmatpush1.bf16.msra.mxu0 %v7428
    %7439 = vmatprep.subr.bf16.mxu0 0
    %7440 = vmatpush1.bf16.msra.mxu0 %v7429
    %7441 = vmatprep.subr.bf16.mxu0 0
    %7442 = vmatpush1.bf16.msra.mxu0 %v7430
    %7443 = vmatprep.subr.bf16.mxu0 0
    %7444 = vmatpush1.bf16.msra.mxu0 0
    %7445 = vmatprep.subr.bf16.mxu0 0
    %7446 = vmatpush1.bf16.msra.mxu0 0
    %7447 = vmatprep.subr.bf16.mxu0 0
    %7448 = vmatpush1.bf16.msra.mxu0 0
    %7449 = vmatprep.subr.bf16.mxu0 0
    %7450 = vmatpush1.bf16.msra.mxu0 0
    %7451 = vmatprep.subr.bf16.mxu0 0
    %7452 = vmatpush1.bf16.msra.mxu0 0
    %7453 = vmatprep.subr.bf16.mxu0 0
    %7454 = vmatpush1.bf16.msra.mxu0 0
    %7455 = vmatprep.subr.bf16.mxu0 0
    %7456 = vmatpush1.bf16.msra.mxu0 0
    %7457 = vmatprep.subr.bf16.mxu0 0
    %7458 = vmatpush1.bf16.msra.mxu0 0
    %7459 = vmatprep.subr.bf16.mxu0 0
    %7460 = vmatpush1.bf16.msra.mxu0 0
    %7461 = vmatprep.subr.bf16.mxu0 0
    %7462 = vmatpush1.bf16.msra.mxu0 0
    %7463 = vmatprep.subr.bf16.mxu0 0
    %7464 = vmatpush1.bf16.msra.mxu0 0
    %7465 = vmatprep.subr.bf16.mxu0 0
    %7466 = vmatpush1.bf16.msra.mxu0 0
    %7467 = vmatprep.mubr.bf16.mxu0 0
    %7468 = vmatmul.mubr.bf16.gmra.mrb[0].mxu0 %v6320
    %v7469 = vpop.f32.mrb[0].mxu0
    %v7470 = vadd.f32 %v7405, %v7469
    %v7471 = vpop.f32.mrb[0].mxu0
    %v7472 = vpop.f32.mrb[0].mxu0
    %v7473 = vadd.f32 %v7408, %v7472
    %v7474 = vpop.f32.mrb[0].mxu0
    %7475 = vdwg.mxu0
    %s7476 = scalar_lea.vmem %s16, 4
    %v7477 = vld [vmem:[%s7476] sm:$0x1]
    %v7479 = vlaneseq
    %v7480 = vshrl.u32 %v7479, 7
    %v7481 = vsub.s32 0, %v7480
    %v7482 = vrot.slane %v7477, %v7481
    %v7484 = vadd.f32 %v7470, %v7482
    %v7485 = vadd.f32 %v7473, %v7482
    %s7486 = scalar_lea.vmem %s17, 4
    %v7487 = vld [vmem:[%s7486] sm:$0x1]
    %s7488 = scalar_lea.vmem %s18, 4
    %v7489 = vld [vmem:[%s7488] sm:$0x1]
    %v7490 = vsel %vm396, %v7484, 0.0
    %v7491 = vsel %vm396, %v7485, 0.0
    %v7492 = vadd.f32 %v7490, %v7491
    %v7493 = vrot.slane %v7492, 4
    %v7494 = vadd.f32 %v7492, %v7493
    %v7495 = vrot.slane %v7494, 2
    %v7496 = vadd.f32 %v7494, %v7495
    %v7497 = vrot.slane %v7496, 1
    %v7498 = vadd.f32 %v7496, %v7497
    %v7499 = vmul.f32 %v7498, %v1930
    %v7500 = vmul.f32 %v7484, %v7484
    %v7501 = vmul.f32 %v7485, %v7485
    %v7502 = vsel %vm396, %v7500, 0.0
    %v7503 = vsel %vm396, %v7501, 0.0
    %v7504 = vadd.f32 %v7502, %v7503
    %v7505 = vrot.slane %v7504, 4
    %v7506 = vadd.f32 %v7504, %v7505
    %v7507 = vrot.slane %v7506, 2
    %v7508 = vadd.f32 %v7506, %v7507
    %v7509 = vrot.slane %v7508, 1
    %v7510 = vadd.f32 %v7508, %v7509
    %v7511 = vmul.f32 %v7510, %v1930
    %v7512 = vmul.f32 %v7499, %v7499
    %v7513 = vsub.f32 %v7511, %v7512
    %v7514 = vsub.f32 %v7484, %v7499
    %v7515 = vsub.f32 %v7485, %v7499
    %v7516 = vadd.f32 %v7513, 1e-05
    %v7517 = vrsqrt.pop %v7516
    %v7518 = vmul.f32 %v7514, %v7517
    %v7519 = vmul.f32 %v7515, %v7517
    %v7521 = vlaneseq
    %v7522 = vshrl.u32 %v7521, 7
    %v7523 = vsub.s32 0, %v7522
    %v7524 = vrot.slane %v7487, %v7523
    %v7526 = vmul.f32 %v7518, %v7524
    %v7527 = vmul.f32 %v7519, %v7524
    %v7529 = vlaneseq
    %v7530 = vshrl.u32 %v7529, 7
    %v7531 = vsub.s32 0, %v7530
    %v7532 = vrot.slane %v7489, %v7531
    %v7534 = vadd.f32 %v7526, %v7532
    %v7535 = vadd.f32 %v7527, %v7532
    %v7536 = vmax.f32 %v7534, 0.0
    %v7537 = vmax.f32 %v7535, 0.0
    %s7538 = scalar_lea.vmem [#allocation12], 128
    %v7539 = vld [vmem:[%s7538] sm:$0xf]
    %v7540 = vld [vmem:[%s7538 + $0x4] sm:$0xf]
    %v7541 = vld [vmem:[%s7538 + $0x8] sm:$0xf]
    %v7542 = vld [vmem:[%s7538 + $0xc] sm:$0xf]
    %v7543 = vld [vmem:[%s7538 + $0x10] sm:$0xf]
    %v7544 = vld [vmem:[%s7538 + $0x14] sm:$0xf]
    %v7545 = vld [vmem:[%s7538 + $0x18] sm:$0xf]
    %v7546 = vld [vmem:[%s7538 + $0x1c] sm:$0xf]
    %v7547 = vpack.c.bf16 %v7537, %v7536
    %s7548 = scalar_lea.vmem %s20, 4
    %v7549 = vld [vmem:[%s7548] sm:$0x1]
    %v7551 = vlaneseq
    %v7552 = vshrl.u32 %v7551, 7
    %v7553 = vsub.s32 0, %v7552
    %v7554 = vrot.slane %v7549, %v7553
    %v7564 = vunpack.c.l.b16 %v7539
    %v7565 = vunpack.c.l.b16 %v7540
    %v7566 = vunpack.c.l.b16 %v7541
    %v7567 = vunpack.c.l.b16 %v7542
    %v7568 = vunpack.c.l.b16 %v7543
    %v7569 = vunpack.c.l.b16 %v7544
    %v7570 = vunpack.c.l.b16 %v7545
    %v7571 = vunpack.c.l.b16 %v7546
    %v7572 = vpack.c.b16 %v7565, %v7564
    %v7573 = vpack.c.b16 %v7567, %v7566
    %v7574 = vpack.c.b16 %v7569, %v7568
    %v7575 = vpack.c.b16 %v7571, %v7570
    %v7581 = vsel %vm396, %v7547, 0
    %7583 = vmatprep.subr.bf16.mxu0 0
    %7584 = vmatpush1.bf16.msra.mxu0 %v7572
    %7585 = vmatprep.subr.bf16.mxu0 0
    %7586 = vmatpush1.bf16.msra.mxu0 %v7573
    %7587 = vmatprep.subr.bf16.mxu0 0
    %7588 = vmatpush1.bf16.msra.mxu0 %v7574
    %7589 = vmatprep.subr.bf16.mxu0 0
    %7590 = vmatpush1.bf16.msra.mxu0 %v7575
    %7591 = vmatprep.subr.bf16.mxu0 0
    %7592 = vmatpush1.bf16.msra.mxu0 0
    %7593 = vmatprep.subr.bf16.mxu0 0
    %7594 = vmatpush1.bf16.msra.mxu0 0
    %7595 = vmatprep.subr.bf16.mxu0 0
    %7596 = vmatpush1.bf16.msra.mxu0 0
    %7597 = vmatprep.subr.bf16.mxu0 0
    %7598 = vmatpush1.bf16.msra.mxu0 0
    %7599 = vmatprep.subr.bf16.mxu0 0
    %7600 = vmatpush1.bf16.msra.mxu0 0
    %7601 = vmatprep.subr.bf16.mxu0 0
    %7602 = vmatpush1.bf16.msra.mxu0 0
    %7603 = vmatprep.subr.bf16.mxu0 0
    %7604 = vmatpush1.bf16.msra.mxu0 0
    %7605 = vmatprep.subr.bf16.mxu0 0
    %7606 = vmatpush1.bf16.msra.mxu0 0
    %7607 = vmatprep.subr.bf16.mxu0 0
    %7608 = vmatpush1.bf16.msra.mxu0 0
    %7609 = vmatprep.subr.bf16.mxu0 0
    %7610 = vmatpush1.bf16.msra.mxu0 0
    %7611 = vmatprep.subr.bf16.mxu0 0
    %7612 = vmatpush1.bf16.msra.mxu0 0
    %7613 = vmatprep.subr.bf16.mxu0 0
    %7614 = vmatpush1.bf16.msra.mxu0 0
    %7615 = vmatprep.mubr.bf16.mxu0 0
    %7616 = vmatmul.mubr.bf16.gmra.mrb[0].mxu0 %v7581
    %v7617 = vpop.f32.mrb[0].mxu0
    %v7618 = vadd.f32 %v7554, %v7617
    %v7619 = vpop.f32.mrb[0].mxu0
    %v7620 = vpop.f32.mrb[0].mxu0
    %v7621 = vadd.f32 %v7554, %v7620
    %v7622 = vpop.f32.mrb[0].mxu0
    %7623 = vdwg.mxu0
    %s7624 = scalar_lea.vmem %s21, 4
    %v7625 = vld [vmem:[%s7624] sm:$0x1]
    %s7626 = scalar_lea.vmem %s22, 4
    %v7627 = vld [vmem:[%s7626] sm:$0x1]
    %v7628 = vsel %vm396, %v7618, 0.0
    %v7629 = vsel %vm396, %v7621, 0.0
    %v7630 = vadd.f32 %v7628, %v7629
    %v7631 = vrot.slane %v7630, 4
    %v7632 = vadd.f32 %v7630, %v7631
    %v7633 = vrot.slane %v7632, 2
    %v7634 = vadd.f32 %v7632, %v7633
    %v7635 = vrot.slane %v7634, 1
    %v7636 = vadd.f32 %v7634, %v7635
    %v7637 = vmul.f32 %v7636, %v1930
    %v7638 = vmul.f32 %v7618, %v7618
    %v7639 = vmul.f32 %v7621, %v7621
    %v7640 = vsel %vm396, %v7638, 0.0
    %v7641 = vsel %vm396, %v7639, 0.0
    %v7642 = vadd.f32 %v7640, %v7641
    %v7643 = vrot.slane %v7642, 4
    %v7644 = vadd.f32 %v7642, %v7643
    %v7645 = vrot.slane %v7644, 2
    %v7646 = vadd.f32 %v7644, %v7645
    %v7647 = vrot.slane %v7646, 1
    %v7648 = vadd.f32 %v7646, %v7647
    %v7649 = vmul.f32 %v7648, %v1930
    %v7650 = vmul.f32 %v7637, %v7637
    %v7651 = vsub.f32 %v7649, %v7650
    %v7652 = vsub.f32 %v7618, %v7637
    %v7653 = vsub.f32 %v7621, %v7637
    %v7654 = vadd.f32 %v7651, 1e-05
    %v7655 = vrsqrt.pop %v7654
    %v7656 = vmul.f32 %v7652, %v7655
    %v7657 = vmul.f32 %v7653, %v7655
    %v7659 = vlaneseq
    %v7660 = vshrl.u32 %v7659, 7
    %v7661 = vsub.s32 0, %v7660
    %v7662 = vrot.slane %v7625, %v7661
    %v7664 = vmul.f32 %v7656, %v7662
    %v7665 = vmul.f32 %v7657, %v7662
    %v7667 = vlaneseq
    %v7668 = vshrl.u32 %v7667, 7
    %v7669 = vsub.s32 0, %v7668
    %v7670 = vrot.slane %v7627, %v7669
    %v7672 = vadd.f32 %v7664, %v7670
    %v7673 = vadd.f32 %v7665, %v7670
    %v7674 = vmax.f32 %v7672, 0.0
    %v7675 = vmax.f32 %v7673, 0.0
    %v7676 = vadd.f32 %v6283, %v7674
    %v7677 = vadd.f32 %v6284, %v7675
    %v7678 = vld [vmem:[%s23] sm:$0xf]
    %v7679 = vld [vmem:[%s23 + $0x4] sm:$0xf]
    %v7680 = vld [vmem:[%s23 + $0x8] sm:$0xf]
    %v7681 = vld [vmem:[%s23 + $0xc] sm:$0xf]
    %v7682 = vld [vmem:[%s23 + $0x10] sm:$0xf]
    %v7683 = vld [vmem:[%s23 + $0x14] sm:$0xf]
    %v7684 = vld [vmem:[%s23 + $0x18] sm:$0xf]
    %v7685 = vld [vmem:[%s23 + $0x1c] sm:$0xf]
    %v7686 = vpack.c.bf16 %v7677, %v7676
    %v7695 = vunpack.c.l.b16 %v7678
    %v7696 = vunpack.c.l.b16 %v7679
    %v7697 = vunpack.c.l.b16 %v7680
    %v7698 = vunpack.c.l.b16 %v7681
    %v7699 = vunpack.c.l.b16 %v7682
    %v7700 = vunpack.c.l.b16 %v7683
    %v7701 = vunpack.c.l.b16 %v7684
    %v7702 = vunpack.c.l.b16 %v7685
    %v7703 = vpack.c.b16 %v7696, %v7695
    %v7704 = vpack.c.b16 %v7698, %v7697
    %v7705 = vpack.c.b16 %v7700, %v7699
    %v7706 = vpack.c.b16 %v7702, %v7701
    %v7712 = vsel %vm396, %v7686, 0
    %7714 = vmatprep.subr.bf16.mxu0 0
    %7715 = vmatpush1.bf16.msra.mxu0 %v7703
    %7716 = vmatprep.subr.bf16.mxu0 0
    %7717 = vmatpush1.bf16.msra.mxu0 %v7704
    %7718 = vmatprep.subr.bf16.mxu0 0
    %7719 = vmatpush1.bf16.msra.mxu0 %v7705
    %7720 = vmatprep.subr.bf16.mxu0 0
    %7721 = vmatpush1.bf16.msra.mxu0 %v7706
    %7722 = vmatprep.subr.bf16.mxu0 0
    %7723 = vmatpush1.bf16.msra.mxu0 0
    %7724 = vmatprep.subr.bf16.mxu0 0
    %7725 = vmatpush1.bf16.msra.mxu0 0
    %7726 = vmatprep.subr.bf16.mxu0 0
    %7727 = vmatpush1.bf16.msra.mxu0 0
    %7728 = vmatprep.subr.bf16.mxu0 0
    %7729 = vmatpush1.bf16.msra.mxu0 0
    %7730 = vmatprep.subr.bf16.mxu0 0
    %7731 = vmatpush1.bf16.msra.mxu0 0
    %7732 = vmatprep.subr.bf16.mxu0 0
    %7733 = vmatpush1.bf16.msra.mxu0 0
    %7734 = vmatprep.subr.bf16.mxu0 0
    %7735 = vmatpush1.bf16.msra.mxu0 0
    %7736 = vmatprep.subr.bf16.mxu0 0
    %7737 = vmatpush1.bf16.msra.mxu0 0
    %7738 = vmatprep.subr.bf16.mxu0 0
    %7739 = vmatpush1.bf16.msra.mxu0 0
    %7740 = vmatprep.subr.bf16.mxu0 0
    %7741 = vmatpush1.bf16.msra.mxu0 0
    %7742 = vmatprep.subr.bf16.mxu0 0
    %7743 = vmatpush1.bf16.msra.mxu0 0
    %7744 = vmatprep.subr.bf16.mxu0 0
    %7745 = vmatpush1.bf16.msra.mxu0 0
    %7746 = vmatprep.mubr.bf16.mxu0 0
    %7747 = vmatmul.mubr.bf16.gmra.mrb[0].mxu0 %v7712
    %v7748 = vpop.f32.mrb[0].mxu0
    %v7749 = vadd.f32 0.0, %v7748
    %v7750 = vpop.f32.mrb[0].mxu0
    %v7751 = vpop.f32.mrb[0].mxu0
    %v7752 = vadd.f32 0.0, %v7751
    %v7753 = vpop.f32.mrb[0].mxu0
    %7754 = vdwg.mxu0
    %v7755 = vld [vmem:[%s24] sm:$0xf]
    %v7756 = vld [vmem:[%s24 + $0x4] sm:$0xf]
    %v7757 = vld [vmem:[%s24 + $0x8] sm:$0xf]
    %v7758 = vld [vmem:[%s24 + $0xc] sm:$0xf]
    %v7759 = vld [vmem:[%s24 + $0x10] sm:$0xf]
    %v7760 = vld [vmem:[%s24 + $0x14] sm:$0xf]
    %v7761 = vld [vmem:[%s24 + $0x18] sm:$0xf]
    %v7762 = vld [vmem:[%s24 + $0x1c] sm:$0xf]
    %v7771 = vunpack.c.l.b16 %v7755
    %v7772 = vunpack.c.l.b16 %v7756
    %v7773 = vunpack.c.l.b16 %v7757
    %v7774 = vunpack.c.l.b16 %v7758
    %v7775 = vunpack.c.l.b16 %v7759
    %v7776 = vunpack.c.l.b16 %v7760
    %v7777 = vunpack.c.l.b16 %v7761
    %v7778 = vunpack.c.l.b16 %v7762
    %v7779 = vpack.c.b16 %v7772, %v7771
    %v7780 = vpack.c.b16 %v7774, %v7773
    %v7781 = vpack.c.b16 %v7776, %v7775
    %v7782 = vpack.c.b16 %v7778, %v7777
    %7787 = vmatprep.subr.bf16.mxu0 0
    %7788 = vmatpush1.bf16.msra.mxu0 %v7779
    %7789 = vmatprep.subr.bf16.mxu0 0
    %7790 = vmatpush1.bf16.msra.mxu0 %v7780
    %7791 = vmatprep.subr.bf16.mxu0 0
    %7792 = vmatpush1.bf16.msra.mxu0 %v7781
    %7793 = vmatprep.subr.bf16.mxu0 0
    %7794 = vmatpush1.bf16.msra.mxu0 %v7782
    %7795 = vmatprep.subr.bf16.mxu0 0
    %7796 = vmatpush1.bf16.msra.mxu0 0
    %7797 = vmatprep.subr.bf16.mxu0 0
    %7798 = vmatpush1.bf16.msra.mxu0 0
    %7799 = vmatprep.subr.bf16.mxu0 0
    %7800 = vmatpush1.bf16.msra.mxu0 0
    %7801 = vmatprep.subr.bf16.mxu0 0
    %7802 = vmatpush1.bf16.msra.mxu0 0
    %7803 = vmatprep.subr.bf16.mxu0 0
    %7804 = vmatpush1.bf16.msra.mxu0 0
    %7805 = vmatprep.subr.bf16.mxu0 0
    %7806 = vmatpush1.bf16.msra.mxu0 0
    %7807 = vmatprep.subr.bf16.mxu0 0
    %7808 = vmatpush1.bf16.msra.mxu0 0
    %7809 = vmatprep.subr.bf16.mxu0 0
    %7810 = vmatpush1.bf16.msra.mxu0 0
    %7811 = vmatprep.subr.bf16.mxu0 0
    %7812 = vmatpush1.bf16.msra.mxu0 0
    %7813 = vmatprep.subr.bf16.mxu0 0
    %7814 = vmatpush1.bf16.msra.mxu0 0
    %7815 = vmatprep.subr.bf16.mxu0 0
    %7816 = vmatpush1.bf16.msra.mxu0 0
    %7817 = vmatprep.subr.bf16.mxu0 0
    %7818 = vmatpush1.bf16.msra.mxu0 0
    %7819 = vmatprep.mubr.bf16.mxu0 0
    %7820 = vmatmul.mubr.bf16.gmra.mrb[0].mxu0 %v7712
    %v7821 = vpop.f32.mrb[0].mxu0
    %v7822 = vadd.f32 0.0, %v7821
    %v7823 = vpop.f32.mrb[0].mxu0
    %v7824 = vpop.f32.mrb[0].mxu0
    %v7825 = vadd.f32 0.0, %v7824
    %v7826 = vpop.f32.mrb[0].mxu0
    %7827 = vdwg.mxu0
    %v7828 = vld [vmem:[%s25] sm:$0x1]
    %v7830 = vlaneseq
    %v7831 = vshrl.u32 %v7830, 7
    %v7832 = vsub.s32 0, %v7831
    %v7833 = vrot.slane %v7828, %v7832
    %7835 = vmatprep.subr.mxu0 0.0
    %7836 = vmatpush1.msra.mxu0 %v7822
    %7837 = vmatprep.subr.mxu0 0.0
    %7838 = vmatpush1.msra.mxu0 %v7825
    %7839 = vmatprep.subr.mxu0 0.0
    %7840 = vmatpush1.msra.mxu0 %v7749
    %7841 = vmatprep.subr.mxu0 0.0
    %7842 = vmatpush1.msra.mxu0 %v7752
    %7843 = vmatprep.subr.mxu0 0.0
    %7844 = vmatpush1.msra.mxu0 0.0
    %7845 = vmatprep.subr.mxu0 0.0
    %7846 = vmatpush1.msra.mxu0 0.0
    %7847 = vmatprep.subr.mxu0 0.0
    %7848 = vmatpush1.msra.mxu0 0.0
    %7849 = vmatprep.subr.mxu0 0.0
    %7850 = vmatpush1.msra.mxu0 0.0
    %7851 = vmatprep.subr.mxu0 0.0
    %7852 = vmatpush1.msra.mxu0 0.0
    %7853 = vmatprep.subr.mxu0 0.0
    %7854 = vmatpush1.msra.mxu0 0.0
    %7855 = vmatprep.subr.mxu0 0.0
    %7856 = vmatpush1.msra.mxu0 0.0
    %7857 = vmatprep.subr.mxu0 0.0
    %7858 = vmatpush1.msra.mxu0 0.0
    %7859 = vmatprep.subr.mxu0 0.0
    %7860 = vmatpush1.msra.mxu0 0.0
    %7861 = vmatprep.subr.mxu0 0.0
    %7862 = vmatpush1.msra.mxu0 0.0
    %7863 = vmatprep.subr.mxu0 0.0
    %7864 = vmatpush1.msra.mxu0 0.0
    %7865 = vmatprep.subr.mxu0 0.0
    %7866 = vmatpush1.msra.mxu0 0.0
    %7867 = vmatprep.subr.mxu0 0.0
    %7868 = vmatpush1.msra.mxu0 0.0
    %7869 = vmatprep.subr.mxu0 0.0
    %7870 = vmatpush1.msra.mxu0 0.0
    %7871 = vmatprep.subr.mxu0 0.0
    %7872 = vmatpush1.msra.mxu0 0.0
    %7873 = vmatprep.subr.mxu0 0.0
    %7874 = vmatpush1.msra.mxu0 0.0
    %7875 = vmatprep.subr.mxu0 0.0
    %7876 = vmatpush1.msra.mxu0 0.0
    %7877 = vmatprep.subr.mxu0 0.0
    %7878 = vmatpush1.msra.mxu0 0.0
    %7879 = vmatprep.subr.mxu0 0.0
    %7880 = vmatpush1.msra.mxu0 0.0
    %7881 = vmatprep.subr.mxu0 0.0
    %7882 = vmatpush1.msra.mxu0 0.0
    %7883 = vmatprep.subr.mxu0 0.0
    %7884 = vmatpush1.msra.mxu0 0.0
    %7885 = vmatprep.subr.mxu0 0.0
    %7886 = vmatpush1.msra.mxu0 0.0
    %7887 = vmatprep.subr.mxu0 0.0
    %7888 = vmatpush1.msra.mxu0 0.0
    %7889 = vmatprep.subr.mxu0 0.0
    %7890 = vmatpush1.msra.mxu0 0.0
    %7891 = vmatprep.subr.mxu0 0.0
    %7892 = vmatpush1.msra.mxu0 0.0
    %7893 = vmatprep.subr.mxu0 0.0
    %7894 = vmatpush1.msra.mxu0 0.0
    %7895 = vmatprep.subr.mxu0 0.0
    %7896 = vmatpush1.msra.mxu0 0.0
    %7897 = vmatprep.subr.mxu0 0.0
    %7898 = vmatpush1.msra.mxu0 0.0
    %7899 = vmatprep.mubr.f32.mxu0 0.0
    %7900 = vmatmul.mubr.f32.gmra.mrb[0].mxu0 %v523
    %v7901 = vpop.f32.mrb[0].mxu0
    %v7902 = vadd.f32 %v7833, %v7901
    %v7903 = vpop.f32.mrb[0].mxu0
    %7904 = vmatprep.mubr.f32.mxu0 0.0
    %7905 = vmatmul.mubr.f32.gmra.mrb[0].mxu0 %v526
    %v7906 = vpop.f32.mrb[0].mxu0
    %v7907 = vadd.f32 %v7833, %v7906
    %v7908 = vpop.f32.mrb[0].mxu0
    %7909 = vmatprep.mubr.f32.mxu0 0.0
    %7910 = vmatmul.mubr.f32.gmra.mrb[0].mxu0 %v529
    %v7911 = vpop.f32.mrb[0].mxu0
    %v7912 = vadd.f32 %v7833, %v7911
    %v7913 = vpop.f32.mrb[0].mxu0
    %7914 = vmatprep.mubr.f32.mxu0 0.0
    %7915 = vmatmul.mubr.f32.gmra.mrb[0].mxu0 %v532
    %v7916 = vpop.f32.mrb[0].mxu0
    %v7917 = vadd.f32 %v7833, %v7916
    %v7918 = vpop.f32.mrb[0].mxu0
    %7919 = vdwg.mxu0
    %v7920 = vmax.f32 %v7902, 0.0
    %v7921 = vmax.f32 %v7907, 0.0
    %v7922 = vmax.f32 %v7912, 0.0
    %v7923 = vmax.f32 %v7917, 0.0
    %v7924 = vld [vmem:[%s26] sm:$0xff]
    %v7925 = vld [vmem:[%s26 + $0x8] sm:$0xff]
    %v7926 = vld [vmem:[%s26 + $0x10] sm:$0xff]
    %v7927 = vld [vmem:[%s26 + $0x18] sm:$0xff]
    %v7928 = vld [vmem:[#allocation2] sm:$0x1]
    %v7930 = vlaneseq
    %v7931 = vshrl.u32 %v7930, 7
    %v7932 = vsub.s32 0, %v7931
    %v7933 = vrot.slane %v7928, %v7932
    %v7936 = vsel %vm521, %v7920, 0
    %v7939 = vsel %vm521, %v7921, 0
    %v7942 = vsel %vm521, %v7922, 0
    %v7945 = vsel %vm521, %v7923, 0
    %7947 = vmatprep.subr.mxu0 0.0
    %7948 = vmatpush1.msra.mxu0 %v7924
    %7949 = vmatprep.subr.mxu0 0.0
    %7950 = vmatpush1.msra.mxu0 %v7925
    %7951 = vmatprep.subr.mxu0 0.0
    %7952 = vmatpush1.msra.mxu0 %v7926
    %7953 = vmatprep.subr.mxu0 0.0
    %7954 = vmatpush1.msra.mxu0 %v7927
    %7955 = vmatprep.subr.mxu0 0.0
    %7956 = vmatpush1.msra.mxu0 0.0
    %7957 = vmatprep.subr.mxu0 0.0
    %7958 = vmatpush1.msra.mxu0 0.0
    %7959 = vmatprep.subr.mxu0 0.0
    %7960 = vmatpush1.msra.mxu0 0.0
    %7961 = vmatprep.subr.mxu0 0.0
    %7962 = vmatpush1.msra.mxu0 0.0
    %7963 = vmatprep.subr.mxu0 0.0
    %7964 = vmatpush1.msra.mxu0 0.0
    %7965 = vmatprep.subr.mxu0 0.0
    %7966 = vmatpush1.msra.mxu0 0.0
    %7967 = vmatprep.subr.mxu0 0.0
    %7968 = vmatpush1.msra.mxu0 0.0
    %7969 = vmatprep.subr.mxu0 0.0
    %7970 = vmatpush1.msra.mxu0 0.0
    %7971 = vmatprep.subr.mxu0 0.0
    %7972 = vmatpush1.msra.mxu0 0.0
    %7973 = vmatprep.subr.mxu0 0.0
    %7974 = vmatpush1.msra.mxu0 0.0
    %7975 = vmatprep.subr.mxu0 0.0
    %7976 = vmatpush1.msra.mxu0 0.0
    %7977 = vmatprep.subr.mxu0 0.0
    %7978 = vmatpush1.msra.mxu0 0.0
    %7979 = vmatprep.subr.mxu0 0.0
    %7980 = vmatpush1.msra.mxu0 0.0
    %7981 = vmatprep.subr.mxu0 0.0
    %7982 = vmatpush1.msra.mxu0 0.0
    %7983 = vmatprep.subr.mxu0 0.0
    %7984 = vmatpush1.msra.mxu0 0.0
    %7985 = vmatprep.subr.mxu0 0.0
    %7986 = vmatpush1.msra.mxu0 0.0
    %7987 = vmatprep.subr.mxu0 0.0
    %7988 = vmatpush1.msra.mxu0 0.0
    %7989 = vmatprep.subr.mxu0 0.0
    %7990 = vmatpush1.msra.mxu0 0.0
    %7991 = vmatprep.subr.mxu0 0.0
    %7992 = vmatpush1.msra.mxu0 0.0
    %7993 = vmatprep.subr.mxu0 0.0
    %7994 = vmatpush1.msra.mxu0 0.0
    %7995 = vmatprep.subr.mxu0 0.0
    %7996 = vmatpush1.msra.mxu0 0.0
    %7997 = vmatprep.subr.mxu0 0.0
    %7998 = vmatpush1.msra.mxu0 0.0
    %7999 = vmatprep.subr.mxu0 0.0
    %8000 = vmatpush1.msra.mxu0 0.0
    %8001 = vmatprep.subr.mxu0 0.0
    %8002 = vmatpush1.msra.mxu0 0.0
    %8003 = vmatprep.subr.mxu0 0.0
    %8004 = vmatpush1.msra.mxu0 0.0
    %8005 = vmatprep.subr.mxu0 0.0
    %8006 = vmatpush1.msra.mxu0 0.0
    %8007 = vmatprep.subr.mxu0 0.0
    %8008 = vmatpush1.msra.mxu0 0.0
    %8009 = vmatprep.subr.mxu0 0.0
    %8010 = vmatpush1.msra.mxu0 0.0
    %8011 = vmatprep.mubr.f32.mxu0 0.0
    %8012 = vmatmul.mubr.f32.gmra.mrb[0].mxu0 %v7936
    %v8013 = vpop.f32.mrb[0].mxu0
    %v8014 = vadd.f32 %v7933, %v8013
    %v8015 = vpop.f32.mrb[0].mxu0
    %8016 = vmatprep.mubr.f32.mxu0 0.0
    %8017 = vmatmul.mubr.f32.gmra.mrb[0].mxu0 %v7939
    %v8018 = vpop.f32.mrb[0].mxu0
    %v8019 = vadd.f32 %v7933, %v8018
    %v8020 = vpop.f32.mrb[0].mxu0
    %8021 = vmatprep.mubr.f32.mxu0 0.0
    %8022 = vmatmul.mubr.f32.gmra.mrb[0].mxu0 %v7942
    %v8023 = vpop.f32.mrb[0].mxu0
    %v8024 = vadd.f32 %v7933, %v8023
    %v8025 = vpop.f32.mrb[0].mxu0
    %8026 = vmatprep.mubr.f32.mxu0 0.0
    %8027 = vmatmul.mubr.f32.gmra.mrb[0].mxu0 %v7945
    %v8028 = vpop.f32.mrb[0].mxu0
    %v8029 = vadd.f32 %v7933, %v8028
    %v8030 = vpop.f32.mrb[0].mxu0
    %8031 = vdwg.mxu0
    %8033 = vset.pattern.permute.xlu0 0
    %8034 = vperm.xlu0 %8033, %v8014
    %v8035 = vpop.permute.xlu0 %8034
    %8038 = vset.pattern.permute.xlu0 0
    %8039 = vperm.xlu0 %8038, %v8019
    %v8040 = vpop.permute.xlu0 %8039
    %8043 = vset.pattern.permute.xlu0 0
    %8044 = vperm.xlu0 %8043, %v8024
    %v8045 = vpop.permute.xlu0 %8044
    %8048 = vset.pattern.permute.xlu0 0
    %8049 = vperm.xlu0 %8048, %v8029
    %v8050 = vpop.permute.xlu0 %8049
    %v8052 = vmul.f32 %v227, %v8035
    %v8053 = vmul.f32 %v228, %v8040
    %v8054 = vmul.f32 %v229, %v8045
    %v8055 = vmul.f32 %v230, %v8050
    %8056 = vxpose.xlu0.b32.start [1/16] %v8052, 128
    %8057 = vxpose.xlu0.b32.cont [2/16] %v8053, 128
    %8058 = vxpose.xlu0.b32.cont [3/16] %v8054, 128
    %8059 = vxpose.xlu0.b32.cont [4/16] %v8055, 128
    %8060 = vxpose.xlu0.b32.cont [5/16] 0.0, 128
    %8061 = vxpose.xlu0.b32.cont [6/16] 0.0, 128
    %8062 = vxpose.xlu0.b32.cont [7/16] 0.0, 128
    %8063 = vxpose.xlu0.b32.cont [8/16] 0.0, 128
    %8064 = vxpose.xlu0.b32.cont [9/16] 0.0, 128
    %8065 = vxpose.xlu0.b32.cont [10/16] 0.0, 128
    %8066 = vxpose.xlu0.b32.cont [11/16] 0.0, 128
    %8067 = vxpose.xlu0.b32.cont [12/16] 0.0, 128
    %8068 = vxpose.xlu0.b32.cont [13/16] 0.0, 128
    %8069 = vxpose.xlu0.b32.cont [14/16] 0.0, 128
    %8070 = vxpose.xlu0.b32.cont [15/16] 0.0, 128
    %8071 = vxpose.xlu0.b32.end [16/16] 0.0, 128
    %v8072 = vpop.trf.xlu0
    %v8073 = vpop.trf.xlu0
    %v8074 = vpop.trf.xlu0
    %v8075 = vpop.trf.xlu0
    %v8076 = vpop.trf.xlu0
    %v8077 = vpop.trf.xlu0
    %v8078 = vpop.trf.xlu0
    %v8079 = vpop.trf.xlu0
    %v8080 = vpop.trf.xlu0
    %v8081 = vpop.trf.xlu0
    %v8082 = vpop.trf.xlu0
    %v8083 = vpop.trf.xlu0
    %v8084 = vpop.trf.xlu0
    %v8085 = vpop.trf.xlu0
    %v8086 = vpop.trf.xlu0
    %v8087 = vpop.trf.xlu0
    %v8089 = vsel %vm521, %v8072, 0
    %v8092 = vsel %vm521, %v8073, 0
    %8094 = vmatprep.subr.mxu0 0.0
    %8095 = vmatpush1.msra.mxu0 %v203
    %8096 = vmatprep.subr.mxu0 0.0
    %8097 = vmatpush1.msra.mxu0 %v204
    %8098 = vmatprep.subr.mxu0 0.0
    %8099 = vmatpush1.msra.mxu0 %v205
    %8100 = vmatprep.subr.mxu0 0.0
    %8101 = vmatpush1.msra.mxu0 %v206
    %8102 = vmatprep.subr.mxu0 0.0
    %8103 = vmatpush1.msra.mxu0 0.0
    %8104 = vmatprep.subr.mxu0 0.0
    %8105 = vmatpush1.msra.mxu0 0.0
    %8106 = vmatprep.subr.mxu0 0.0
    %8107 = vmatpush1.msra.mxu0 0.0
    %8108 = vmatprep.subr.mxu0 0.0
    %8109 = vmatpush1.msra.mxu0 0.0
    %8110 = vmatprep.subr.mxu0 0.0
    %8111 = vmatpush1.msra.mxu0 0.0
    %8112 = vmatprep.subr.mxu0 0.0
    %8113 = vmatpush1.msra.mxu0 0.0
    %8114 = vmatprep.subr.mxu0 0.0
    %8115 = vmatpush1.msra.mxu0 0.0
    %8116 = vmatprep.subr.mxu0 0.0
    %8117 = vmatpush1.msra.mxu0 0.0
    %8118 = vmatprep.subr.mxu0 0.0
    %8119 = vmatpush1.msra.mxu0 0.0
    %8120 = vmatprep.subr.mxu0 0.0
    %8121 = vmatpush1.msra.mxu0 0.0
    %8122 = vmatprep.subr.mxu0 0.0
    %8123 = vmatpush1.msra.mxu0 0.0
    %8124 = vmatprep.subr.mxu0 0.0
    %8125 = vmatpush1.msra.mxu0 0.0
    %8126 = vmatprep.subr.mxu0 0.0
    %8127 = vmatpush1.msra.mxu0 0.0
    %8128 = vmatprep.subr.mxu0 0.0
    %8129 = vmatpush1.msra.mxu0 0.0
    %8130 = vmatprep.subr.mxu0 0.0
    %8131 = vmatpush1.msra.mxu0 0.0
    %8132 = vmatprep.subr.mxu0 0.0
    %8133 = vmatpush1.msra.mxu0 0.0
    %8134 = vmatprep.subr.mxu0 0.0
    %8135 = vmatpush1.msra.mxu0 0.0
    %8136 = vmatprep.subr.mxu0 0.0
    %8137 = vmatpush1.msra.mxu0 0.0
    %8138 = vmatprep.subr.mxu0 0.0
    %8139 = vmatpush1.msra.mxu0 0.0
    %8140 = vmatprep.subr.mxu0 0.0
    %8141 = vmatpush1.msra.mxu0 0.0
    %8142 = vmatprep.subr.mxu0 0.0
    %8143 = vmatpush1.msra.mxu0 0.0
    %8144 = vmatprep.subr.mxu0 0.0
    %8145 = vmatpush1.msra.mxu0 0.0
    %8146 = vmatprep.subr.mxu0 0.0
    %8147 = vmatpush1.msra.mxu0 0.0
    %8148 = vmatprep.subr.mxu0 0.0
    %8149 = vmatpush1.msra.mxu0 0.0
    %8150 = vmatprep.subr.mxu0 0.0
    %8151 = vmatpush1.msra.mxu0 0.0
    %8152 = vmatprep.subr.mxu0 0.0
    %8153 = vmatpush1.msra.mxu0 0.0
    %8154 = vmatprep.subr.mxu0 0.0
    %8155 = vmatpush1.msra.mxu0 0.0
    %8156 = vmatprep.subr.mxu0 0.0
    %8157 = vmatpush1.msra.mxu0 0.0
    %8158 = vmatprep.mubr.f32.mxu0 0.0
    %8159 = vmatmul.mubr.f32.gmra.mrb[0].mxu0 %v8089
    %v8160 = vpop.f32.mrb[0].mxu0
    %v8161 = vadd.f32 0.0, %v8160
    %v8162 = vpop.f32.mrb[0].mxu0
    %8163 = vmatprep.mubr.f32.mxu0 0.0
    %8164 = vmatmul.mubr.f32.gmra.mrb[0].mxu0 %v8092
    %v8165 = vpop.f32.mrb[0].mxu0
    %v8166 = vadd.f32 0.0, %v8165
    %v8167 = vpop.f32.mrb[0].mxu0
    %8168 = vdwg.mxu0
    %vm8169 = vcmask 130048
    %8170 = vst.msk [vmem:[#allocation14] sm:$0xff] %vm8169, %v8161
    %8171 = vst.msk [vmem:[#allocation14 + $0x8] sm:$0xff] %vm8169, %v8166
    // Predicated region
    $region138: #{tpu_custom_call.1} parent=1 // pred_check
      _
    $region139: #{tpu_custom_call.1} parent=1 // pred_check_branch
      %8173 = sbr.rel (0) target = $region141
    $region140: #{tpu_custom_call.1} parent=1 // pred_region
      %s8175 = ssub.s32 256, 256
      %8176 = vsyncadd [#allocation5], %s8175
      %s8177 = sshll.u32 [#allocation14], 4
      %s8178 = int_to_ptr.vmem [resolvable:$true] %s8177
      %8183 = dma.vmem_to_hbm [thread:$0]  %s8178, 256, %s28, [#allocation5], 128, 128, 8
    $region141: #{tpu_custom_call.1} parent=1 // pred_fallthru
      _
    // Predicated region
    $region142: #{tpu_custom_call.1} parent=1 // pred_check
      _
    $region143: #{tpu_custom_call.1} parent=1 // pred_check_branch
      %8185 = sbr.rel (0) target = $region145
    $region144: #{tpu_custom_call.1} parent=1 // pred_region
      %8186 = dma.done [#allocation5], 256
    $region145: #{tpu_custom_call.1} parent=1 // pred_fallthru
      _
    %8187 = vsyncpa [#allocation4], 1
    %8188 = vsyncpa [#allocation7], 1
    %8189 = vsyncpa [#allocation10], 1
    %8190 = vsyncpa [#allocation13], 1
    %8191 = vsyncpa [#allocation5], 1

</llo_original>
